<compile_context>
chip_gen: v6e
topology: v6e:2x2x1
jax: 0.10.0
libtpu: 0.0.40
codegen_flags: <defaults>
</compile_context>

<pallas_src>
import math
import functools

import jax
import jax.numpy as jnp
from jax.experimental import pallas as pl
from jax.experimental.pallas import tpu as pltpu


def _gelu_exact(x):
    # PyTorch nn.GELU() default (exact erf form); kept exact for parity.
    return 0.5 * x * (1.0 + jax.lax.erf(x * (1.0 / math.sqrt(2.0))))


def _layer_norm_residual(x, y, gamma, beta, eps=1e-5):
    """LayerNorm(x + y): fused residual add + centered (two-pass) statistics."""
    v = x + y
    m = jnp.mean(v, axis=-1, keepdims=True)
    c = v - m
    var = jnp.mean(c * c, axis=-1, keepdims=True)
    return c * jax.lax.rsqrt(var + eps) * gamma + beta


def encoder_layer_kernel(
    x_full_ref, x_q_ref, mask_ref,
    wq_ref, bq_ref, wk_ref, bk_ref, wv_ref, bv_ref, wo_ref, bo_ref,
    g1_ref, be1_ref, w1_ref, b1_ref, w2_ref, b2_ref, g2_ref, be2_ref,
    o_ref,
    k_scr, v_scr,
    *, num_heads, compute_dtype,
):
    d_model = x_q_ref.shape[-1]
    d_k = d_model // num_heads
    scale = 1.0 / math.sqrt(d_k)
    use_approx_recip = compute_dtype != jnp.float32   # exact on the f32 path

    def mm(a, b):
        # MXU matmul: operands in compute_dtype, accumulate in f32.
        return jax.lax.dot_general(
            a.astype(compute_dtype), b.astype(compute_dtype),
            dimension_numbers=(((a.ndim - 1,), (0,)), ((), ())),
            preferred_element_type=jnp.float32)

    # ---- K/V projections: once per batch element, cached in VMEM scratch ----
    # TODO(synk): for very long sequences on v7x, spill K/V to HBM and add a
    # flash-style KV-tile axis with online softmax instead of O(S*D) scratch.
    @pl.when(pl.program_id(1) == 0)
    def _():
        x_full = x_full_ref[0]                                        # (S, D) f32
        k_scr[...] = (mm(x_full, wk_ref[...]) + bk_ref[0]).astype(compute_dtype)
        v_scr[...] = (mm(x_full, wv_ref[...]) + bv_ref[0]).astype(compute_dtype)

    x_q = x_q_ref[0]                                                  # (TQ, D) f32
    # int8 {0,1} mask tile -> additive bias (0 kept, -1e9 masked); one FMA on (TQ, S).
    bias = (mask_ref[0, 0].astype(jnp.float32) - 1.0) * jnp.float32(1e9)

    # Q projection for this tile only; 1/sqrt(d_k) folded into q (and bq) up front.
    q = ((mm(x_q, wq_ref[...]) + bq_ref[0]) * scale).astype(compute_dtype)
    k = k_scr[...]                                                    # (S, D) compute dtype
    v = v_scr[...]                                                    # (S, D) compute dtype

    # ---- Per-head attention; W_o folded into the head loop (no concat, no (H,S,S)) ----
    attn = jnp.zeros((x_q.shape[0], d_model), jnp.float32)
    for h in range(num_heads):                                        # static unroll, H small
        lo = h * d_k
        q_h = q[:, lo:lo + d_k]                                       # (TQ, d_k)
        k_h = k[:, lo:lo + d_k]                                       # (S, d_k)
        v_h = v[:, lo:lo + d_k]                                       # (S, d_k)
        s = jax.lax.dot_general(                                      # (TQ, S), contract d_k
            q_h, k_h, dimension_numbers=(((1,), (1,)), ((), ())),
            preferred_element_type=jnp.float32)
        s = s + bias                                                  # additive mask bias
        m = jnp.max(s, axis=-1, keepdims=True)
        p = jnp.exp(s - m)                                            # unnormalized probs
        l = jnp.sum(p, axis=-1, keepdims=True)
        o_h = mm(p, v_h) * pl.reciprocal(l, approx=use_approx_recip)  # (TQ, d_k)
        attn = attn + mm(o_h, wo_ref[lo:lo + d_k, :])                 # accumulate (TQ, D)
    attn_out = attn + bo_ref[0]

    # ---- Residual + LayerNorm 1 ----
    x1 = _layer_norm_residual(x_q, attn_out, g1_ref[0], be1_ref[0])

    # ---- Feed-forward (Linear -> [Dropout=identity] -> GELU -> Linear) ----
    h1 = _gelu_exact(mm(x1, w1_ref[...]) + b1_ref[0])
    ff = mm(h1, w2_ref[...]) + b2_ref[0]

    # ---- Residual + LayerNorm 2 ----
    x2 = _layer_norm_residual(x1, ff, g2_ref[0], be2_ref[0])
    o_ref[0] = x2.astype(o_ref.dtype)


def _vmem_capacity_bytes():
    try:
        return int(pltpu.get_tpu_info().vmem_capacity_bytes)
    except Exception:
        return 128 * 1024 * 1024


def _default_q_tile(S, vmem_cap):
    # 256x256 MXU on v6e/v7x wants TQ=256; keep 128 on v5e-and-older (128-wide MXU)
    # and on VMEM-tight chips (v7x, 64 MiB/TC).
    try:
        kind = jax.devices()[0].device_kind.lower()
    except Exception:
        kind = ""
    small_mxu = any(t in kind for t in ("v2", "v3", "v4", "v5"))
    cap = 128 if (small_mxu or vmem_cap < (96 << 20)) else 256
    if S <= cap:
        return S
    t = cap
    while t >= 32 and S % t:
        t //= 2
    return t if (t >= 32 and S % t == 0) else S


def encoder_layer(x, mask, params, *, num_heads, q_tile=None,
                  matmul_dtype=jnp.bfloat16):
    B, S, D = x.shape
    F = params["w1"].shape[1]

    vmem_cap = _vmem_capacity_bytes()
    if q_tile is None:
        q_tile = _default_q_tile(S, vmem_cap)
    assert S % q_tile == 0, "seq_len must be a multiple of q_tile"
    assert q_tile == S or q_tile % 32 == 0, \
        "q_tile must be a multiple of 32 (int8 mask tiling) or equal to seq_len"
    n_q = S // q_tile

    # Mask as int8 {0,1}: 4x less DMA than an f32 additive bias, no O(B*S^2) f32
    # array materialized by XLA.
    mask_i8 = jnp.broadcast_to(mask != 0, (B, 1, S, S)).astype(jnp.int8)

    # Cast MXU weight operands once at the boundary (halves weight DMA in bf16).
    wdt = matmul_dtype
    wq, wk, wv, wo = (params[n].astype(wdt) for n in ("wq", "wk", "wv", "wo"))
    w1, w2 = params["w1"].astype(wdt), params["w2"].astype(wdt)

    kernel = functools.partial(
        encoder_layer_kernel, num_heads=num_heads, compute_dtype=matmul_dtype)

    # Advisory cost estimate (K/V now projected once per batch element).
    mm_flops = 2 * B * (4 * S * D * D + 2 * S * S * D + 2 * S * D * F)
    w_bytes = (4 * D * D + 2 * D * F) * jnp.dtype(wdt).itemsize
    io_bytes = 4 * B * S * D * 3 + B * S * S
    cost = pl.CostEstimate(
        flops=int(mm_flops),
        transcendentals=int(B * (num_heads * S * S + S * F)),
        bytes_accessed=int(w_bytes + io_bytes))

    # Generation-aware VMEM limit: ~56 MiB on v7x (64 MiB/TC), up to 100 MiB on v5e/v6e.
    vmem_limit = max(32 << 20, min(vmem_cap - (8 << 20), 100 << 20))

    operands = (
        x, x, mask_i8,
        wq, params["bq"], wk, params["bk"], wv, params["bv"], wo, params["bo"],
        params["g1"], params["be1"],
        w1, params["b1"], w2, params["b2"],
        params["g2"], params["be2"],
    )

    def build(single_buffer_weights):
        def const(shape):
            idx = lambda b, qi: (0,) * len(shape)
            if single_buffer_weights:
                try:
                    # Constant index map never re-DMAs: single-buffer to halve
                    # resident weight VMEM (decisive on v7x's 64 MiB/TC).
                    return pl.BlockSpec(shape, idx, pipeline_mode=pl.Buffered(1))
                except TypeError:
                    pass
            return pl.BlockSpec(shape, idx)

        return pl.pallas_call(
            kernel,
            out_shape=jax.ShapeDtypeStruct((B, S, D), jnp.float32),
            grid_spec=pltpu.PrefetchScalarGridSpec(
                num_scalar_prefetch=0,
                grid=(B, n_q),
                in_specs=[
                    # x, full sequence: used only at qi == 0 for K/V projection;
                    # constant block index across qi -> DMA'd once per batch element.
                    pl.BlockSpec((1, S, D), lambda b, qi: (b, 0, 0)),
                    # x, query tile: Q projection + residuals (ref slice via BlockSpec).
                    pl.BlockSpec((1, q_tile, D), lambda b, qi: (b, qi, 0)),
                    # int8 mask tile for this q block.
                    pl.BlockSpec((1, 1, q_tile, S), lambda b, qi: (b, 0, qi, 0)),
                    const((D, D)), const((1, D)),   # Wq, bq
                    const((D, D)), const((1, D)),   # Wk, bk
                    const((D, D)), const((1, D)),   # Wv, bv
                    const((D, D)), const((1, D)),   # Wo, bo
                    const((1, D)), const((1, D)),   # norm1 gamma, beta
                    const((D, F)), const((1, F)),   # W1, b1
                    const((F, D)), const((1, D)),   # W2, b2
                    const((1, D)), const((1, D)),   # norm2 gamma, beta
                ],
                out_specs=pl.BlockSpec((1, q_tile, D), lambda b, qi: (b, qi, 0)),
                scratch_shapes=[
                    pltpu.VMEM((S, D), matmul_dtype),   # cached K for current batch elem
                    pltpu.VMEM((S, D), matmul_dtype),   # cached V for current batch elem
                ],
            ),
            compiler_params=pltpu.CompilerParams(
                # qi must run sequentially per batch element (qi==0 fills K/V scratch);
                # only the batch axis is sharded across TensorCores.
                dimension_semantics=("parallel", "arbitrary"),
                vmem_limit_bytes=int(vmem_limit)),
            cost_estimate=cost,
        )

    single_buffer = hasattr(pl, "Buffered")
    try:
        return build(single_buffer)(*operands)
    except Exception:
        if not single_buffer:
            raise
        # Fallback if this jax/Mosaic build rejects single-buffered BlockSpecs.
        return build(False)(*operands)


def reference_encoder_layer(x, mask, params, *, num_heads):
    """Pure-JAX reference mirroring PyTorch semantics (dropout off)."""
    B, S, D = x.shape
    d_k = D // num_heads

    def lin(v, w, b):
        return v @ w + b[0]

    q = lin(x, params["wq"], params["bq"]).reshape(B, S, num_heads, d_k).transpose(0, 2, 1, 3)
    k = lin(x, params["wk"], params["bk"]).reshape(B, S, num_heads, d_k).transpose(0, 2, 1, 3)
    v = lin(x, params["wv"], params["bv"]).reshape(B, S, num_heads, d_k).transpose(0, 2, 1, 3)
    scores = jnp.einsum("bhqd,bhkd->bhqk", q, k) / math.sqrt(d_k)
    scores = jnp.where(mask == 0, -1e9, scores)
    p = jax.nn.softmax(scores, axis=-1)
    attn = jnp.einsum("bhqk,bhkd->bhqd", p, v).transpose(0, 2, 1, 3).reshape(B, S, D)
    attn = lin(attn, params["wo"], params["bo"])

    def ln(v, g, b):
        m = v.mean(-1, keepdims=True)
        var = ((v - m) ** 2).mean(-1, keepdims=True)
        return (v - m) / jnp.sqrt(var + 1e-5) * g[0] + b[0]

    x1 = ln(x + attn, params["g1"], params["be1"])
    h = _gelu_exact(lin(x1, params["w1"], params["b1"]))
    ff = lin(h, params["w2"], params["b2"])
    return ln(x1 + ff, params["g2"], params["be2"])


if __name__ == "__main__":
    B, S, D, H, F = 2, 64, 32, 4, 64
    TQ = 32                                  # 2 query tiles per batch element (exercises K/V cache reuse)
    key = jax.random.PRNGKey(0)
    keys = jax.random.split(key, 16)

    def w(k, shape, scale):
        return jax.random.normal(k, shape, jnp.float32) * scale

    params = {
        "wq": w(keys[0], (D, D), 1.0 / math.sqrt(D)), "bq": w(keys[1], (1, D), 0.02),
        "wk": w(keys[2], (D, D), 1.0 / math.sqrt(D)), "bk": w(keys[3], (1, D), 0.02),
        "wv": w(keys[4], (D, D), 1.0 / math.sqrt(D)), "bv": w(keys[5], (1, D), 0.02),
        "wo": w(keys[6], (D, D), 1.0 / math.sqrt(D)), "bo": w(keys[7], (1, D), 0.02),
        "g1": jnp.ones((1, D), jnp.float32), "be1": jnp.zeros((1, D), jnp.float32),
        "w1": w(keys[8], (D, F), 1.0 / math.sqrt(D)), "b1": w(keys[9], (1, F), 0.02),
        "w2": w(keys[10], (F, D), 1.0 / math.sqrt(F)), "b2": w(keys[11], (1, D), 0.02),
        "g2": jnp.ones((1, D), jnp.float32), "be2": jnp.zeros((1, D), jnp.float32),
    }

    x = jax.random.normal(keys[12], (B, S, D), jnp.float32)
    # causal-style mask (1 = keep, 0 = masked), broadcast over heads
    mask = jnp.tril(jnp.ones((S, S), jnp.float32))[None, None].repeat(B, axis=0)

    ref = reference_encoder_layer(x, mask, params, num_heads=H)

    # f32 path: strict check against the pure-JAX reference.
    out_f32 = encoder_layer(x, mask, params, num_heads=H, q_tile=TQ,
                            matmul_dtype=jnp.float32)
    out_f32 = jax.block_until_ready(out_f32)
    assert out_f32.shape == (B, S, D)
    assert jnp.allclose(out_f32, ref, atol=1e-4, rtol=1e-4), "f32 mismatch vs reference"

    # Default bf16-MXU fast path (accumulation / softmax / layernorm stay f32): loose check.
    out_bf16 = encoder_layer(x, mask, params, num_heads=H, q_tile=TQ)
    out_bf16 = jax.block_until_ready(out_bf16)
    assert out_bf16.shape == (B, S, D)
    assert float(jnp.max(jnp.abs(out_bf16 - ref))) < 0.25, "bf16 path diverged"

    print("KERNEL_OK")
</pallas_src>

<mosaic_0001>
module attributes {stable_mosaic.version = 11 : i64} {
  func.func @encoder_layer_kernel(%arg0: i32, %arg1: i32, %arg2: memref<1x64x32xf32, #tpu.memory_space<vmem>>, %arg3: memref<1x32x32xf32, #tpu.memory_space<vmem>>, %arg4: memref<1x1x32x64xi8, #tpu.memory_space<vmem>>, %arg5: memref<32x32xf32, #tpu.memory_space<vmem>>, %arg6: memref<1x32xf32, #tpu.memory_space<vmem>>, %arg7: memref<32x32xf32, #tpu.memory_space<vmem>>, %arg8: memref<1x32xf32, #tpu.memory_space<vmem>>, %arg9: memref<32x32xf32, #tpu.memory_space<vmem>>, %arg10: memref<1x32xf32, #tpu.memory_space<vmem>>, %arg11: memref<32x32xf32, #tpu.memory_space<vmem>>, %arg12: memref<1x32xf32, #tpu.memory_space<vmem>>, %arg13: memref<1x32xf32, #tpu.memory_space<vmem>>, %arg14: memref<1x32xf32, #tpu.memory_space<vmem>>, %arg15: memref<32x64xf32, #tpu.memory_space<vmem>>, %arg16: memref<1x64xf32, #tpu.memory_space<vmem>>, %arg17: memref<64x32xf32, #tpu.memory_space<vmem>>, %arg18: memref<1x32xf32, #tpu.memory_space<vmem>>, %arg19: memref<1x32xf32, #tpu.memory_space<vmem>>, %arg20: memref<1x32xf32, #tpu.memory_space<vmem>>, %arg21: memref<1x32x32xf32, #tpu.memory_space<vmem>>, %arg22: memref<64x32xf32, #tpu.memory_space<vmem>>, %arg23: memref<64x32xf32, #tpu.memory_space<vmem>>) attributes {dimension_semantics = [#tpu.dimension_semantics<parallel>, #tpu.dimension_semantics<arbitrary>], iteration_bounds = array<i64: 2, 2>, scalar_prefetch = 0 : i64, scratch_operands = 2 : i64, tpu.core_type = #tpu.core_type<tc>, window_params = [{transform_indices = @transform_0, window_bounds = array<i64: 1, 64, 32>}, {transform_indices = @transform_1, window_bounds = array<i64: 1, 32, 32>}, {transform_indices = @transform_2, window_bounds = array<i64: 1, 1, 32, 64>}, {pipeline_mode = #tpu.pipeline_mode<synchronous>, transform_indices = @transform_3, window_bounds = array<i64: 32, 32>}, {pipeline_mode = #tpu.pipeline_mode<synchronous>, transform_indices = @transform_4, window_bounds = array<i64: 1, 32>}, {pipeline_mode = #tpu.pipeline_mode<synchronous>, transform_indices = @transform_5, window_bounds = array<i64: 32, 32>}, {pipeline_mode = #tpu.pipeline_mode<synchronous>, transform_indices = @transform_6, window_bounds = array<i64: 1, 32>}, {pipeline_mode = #tpu.pipeline_mode<synchronous>, transform_indices = @transform_7, window_bounds = array<i64: 32, 32>}, {pipeline_mode = #tpu.pipeline_mode<synchronous>, transform_indices = @transform_8, window_bounds = array<i64: 1, 32>}, {pipeline_mode = #tpu.pipeline_mode<synchronous>, transform_indices = @transform_9, window_bounds = array<i64: 32, 32>}, {pipeline_mode = #tpu.pipeline_mode<synchronous>, transform_indices = @transform_10, window_bounds = array<i64: 1, 32>}, {pipeline_mode = #tpu.pipeline_mode<synchronous>, transform_indices = @transform_11, window_bounds = array<i64: 1, 32>}, {pipeline_mode = #tpu.pipeline_mode<synchronous>, transform_indices = @transform_12, window_bounds = array<i64: 1, 32>}, {pipeline_mode = #tpu.pipeline_mode<synchronous>, transform_indices = @transform_13, window_bounds = array<i64: 32, 64>}, {pipeline_mode = #tpu.pipeline_mode<synchronous>, transform_indices = @transform_14, window_bounds = array<i64: 1, 64>}, {pipeline_mode = #tpu.pipeline_mode<synchronous>, transform_indices = @transform_15, window_bounds = array<i64: 64, 32>}, {pipeline_mode = #tpu.pipeline_mode<synchronous>, transform_indices = @transform_16, window_bounds = array<i64: 1, 32>}, {pipeline_mode = #tpu.pipeline_mode<synchronous>, transform_indices = @transform_17, window_bounds = array<i64: 1, 32>}, {pipeline_mode = #tpu.pipeline_mode<synchronous>, transform_indices = @transform_18, window_bounds = array<i64: 1, 32>}, {transform_indices = @transform_19, window_bounds = array<i64: 1, 32, 32>}]} {
    %c0_i32 = arith.constant 0 : i32
    %0 = arith.cmpi eq, %arg1, %c0_i32 : i32
    %1 = arith.extui %0 : i1 to i32
    %c0_i32_0 = arith.constant 0 : i32
    %2 = arith.cmpi ne, %1, %c0_i32_0 : i32
    scf.if %2 {
      %c0_80 = arith.constant 0 : index
      %c0_81 = arith.constant 0 : index
      %c0_82 = arith.constant 0 : index
      %184 = vector.load %arg2[%c0_80, %c0_81, %c0_82] : memref<1x64x32xf32, #tpu.memory_space<vmem>>, vector<1x64x32xf32>
      %185 = vector.shape_cast %184 : vector<1x64x32xf32> to vector<64x32xf32>
      %c0_83 = arith.constant 0 : index
      %c0_84 = arith.constant 0 : index
      %186 = vector.load %arg7[%c0_83, %c0_84] : memref<32x32xf32, #tpu.memory_space<vmem>>, vector<32x32xf32>
      %cst_85 = arith.constant dense<0.000000e+00> : vector<64x32xf32>
      %187 = tpu.matmul %185, %186, %cst_85 {dimension_numbers = #tpu.dot_dimension_numbers<[1], [0], [0], [1], [0, 0, 1, 1], [], []>} : vector<64x32xf32>, vector<32x32xf32>, vector<64x32xf32> -> vector<64x32xf32>
      %c0_86 = arith.constant 0 : index
      %c0_87 = arith.constant 0 : index
      %188 = vector.load %arg8[%c0_86, %c0_87] : memref<1x32xf32, #tpu.memory_space<vmem>>, vector<1x32xf32>
      %189 = vector.shape_cast %188 : vector<1x32xf32> to vector<32xf32>
      %190 = vector.shape_cast %189 : vector<32xf32> to vector<1x32xf32>
      %191 = vector.broadcast %190 : vector<1x32xf32> to vector<64x32xf32>
      %192 = arith.addf %187, %191 : vector<64x32xf32>
      %c0_88 = arith.constant 0 : index
      %c0_89 = arith.constant 0 : index
      %193 = vector.load %arg22[%c0_88, %c0_89] : memref<64x32xf32, #tpu.memory_space<vmem>>, vector<64x32xf32>
      tpu.vector_store %arg22[%c0_88, %c0_89], %192 {strides = array<i32>} : memref<64x32xf32, #tpu.memory_space<vmem>>, vector<64x32xf32>,
      %c0_90 = arith.constant 0 : index
      %c0_91 = arith.constant 0 : index
      %194 = vector.load %arg9[%c0_90, %c0_91] : memref<32x32xf32, #tpu.memory_space<vmem>>, vector<32x32xf32>
      %cst_92 = arith.constant dense<0.000000e+00> : vector<64x32xf32>
      %195 = tpu.matmul %185, %194, %cst_92 {dimension_numbers = #tpu.dot_dimension_numbers<[1], [0], [0], [1], [0, 0, 1, 1], [], []>} : vector<64x32xf32>, vector<32x32xf32>, vector<64x32xf32> -> vector<64x32xf32>
      %c0_93 = arith.constant 0 : index
      %c0_94 = arith.constant 0 : index
      %196 = vector.load %arg10[%c0_93, %c0_94] : memref<1x32xf32, #tpu.memory_space<vmem>>, vector<1x32xf32>
      %197 = vector.shape_cast %196 : vector<1x32xf32> to vector<32xf32>
      %198 = vector.shape_cast %197 : vector<32xf32> to vector<1x32xf32>
      %199 = vector.broadcast %198 : vector<1x32xf32> to vector<64x32xf32>
      %200 = arith.addf %195, %199 : vector<64x32xf32>
      %c0_95 = arith.constant 0 : index
      %c0_96 = arith.constant 0 : index
      %201 = vector.load %arg23[%c0_95, %c0_96] : memref<64x32xf32, #tpu.memory_space<vmem>>, vector<64x32xf32>
      tpu.vector_store %arg23[%c0_95, %c0_96], %200 {strides = array<i32>} : memref<64x32xf32, #tpu.memory_space<vmem>>, vector<64x32xf32>,
    } else {
    }
    %c0 = arith.constant 0 : index
    %c0_1 = arith.constant 0 : index
    %c0_2 = arith.constant 0 : index
    %3 = vector.load %arg3[%c0, %c0_1, %c0_2] : memref<1x32x32xf32, #tpu.memory_space<vmem>>, vector<1x32x32xf32>
    %4 = vector.shape_cast %3 : vector<1x32x32xf32> to vector<32x32xf32>
    %c0_3 = arith.constant 0 : index
    %c0_4 = arith.constant 0 : index
    %c0_5 = arith.constant 0 : index
    %c0_6 = arith.constant 0 : index
    %5 = vector.load %arg4[%c0_3, %c0_4, %c0_5, %c0_6] : memref<1x1x32x64xi8, #tpu.memory_space<vmem>>, vector<1x1x32x64xi8>
    %6 = vector.shape_cast %5 : vector<1x1x32x64xi8> to vector<32x64xi8>
    %7 = arith.sitofp %6 : vector<32x64xi8> to vector<32x64xf32>
    %cst = arith.constant 1.000000e+00 : f32
    %8 = vector.broadcast %cst : f32 to vector<32x64xf32>
    %9 = arith.subf %7, %8 : vector<32x64xf32>
    %cst_7 = arith.constant 1.000000e+09 : f32
    %10 = vector.broadcast %cst_7 : f32 to vector<32x64xf32>
    %11 = arith.mulf %9, %10 : vector<32x64xf32>
    %c0_8 = arith.constant 0 : index
    %c0_9 = arith.constant 0 : index
    %12 = vector.load %arg5[%c0_8, %c0_9] : memref<32x32xf32, #tpu.memory_space<vmem>>, vector<32x32xf32>
    %cst_10 = arith.constant dense<0.000000e+00> : vector<32x32xf32>
    %13 = tpu.matmul %4, %12, %cst_10 {dimension_numbers = #tpu.dot_dimension_numbers<[1], [0], [0], [1], [0, 0, 1, 1], [], []>} : vector<32x32xf32>, vector<32x32xf32>, vector<32x32xf32> -> vector<32x32xf32>
    %c0_11 = arith.constant 0 : index
    %c0_12 = arith.constant 0 : index
    %14 = vector.load %arg6[%c0_11, %c0_12] : memref<1x32xf32, #tpu.memory_space<vmem>>, vector<1x32xf32>
    %15 = vector.shape_cast %14 : vector<1x32xf32> to vector<32xf32>
    %16 = vector.shape_cast %15 : vector<32xf32> to vector<1x32xf32>
    %17 = vector.broadcast %16 : vector<1x32xf32> to vector<32x32xf32>
    %18 = arith.addf %13, %17 : vector<32x32xf32>
    %cst_13 = arith.constant 0.353553385 : f32
    %19 = vector.broadcast %cst_13 : f32 to vector<32x32xf32>
    %20 = arith.mulf %18, %19 : vector<32x32xf32>
    %c0_14 = arith.constant 0 : index
    %c0_15 = arith.constant 0 : index
    %21 = vector.load %arg22[%c0_14, %c0_15] : memref<64x32xf32, #tpu.memory_space<vmem>>, vector<64x32xf32>
    %c0_16 = arith.constant 0 : index
    %c0_17 = arith.constant 0 : index
    %22 = vector.load %arg23[%c0_16, %c0_17] : memref<64x32xf32, #tpu.memory_space<vmem>>, vector<64x32xf32>
    %cst_18 = arith.constant 0.000000e+00 : f32
    %23 = vector.broadcast %cst_18 : f32 to vector<32x32xf32>
    %24 = vector.extract_strided_slice %20 {offsets = [0, 0], sizes = [32, 8], strides = [1, 1]} : vector<32x32xf32> to vector<32x8xf32>
    %25 = vector.extract_strided_slice %21 {offsets = [0, 0], sizes = [64, 8], strides = [1, 1]} : vector<64x32xf32> to vector<64x8xf32>
    %26 = vector.extract_strided_slice %22 {offsets = [0, 0], sizes = [64, 8], strides = [1, 1]} : vector<64x32xf32> to vector<64x8xf32>
    %cst_19 = arith.constant dense<0.000000e+00> : vector<32x64xf32>
    %27 = tpu.matmul %24, %25, %cst_19 {dimension_numbers = #tpu.dot_dimension_numbers<[1], [1], [0], [0], [0, 0, 1, 0], [], []>} : vector<32x8xf32>, vector<64x8xf32>, vector<32x64xf32> -> vector<32x64xf32>
    %28 = arith.addf %27, %11 : vector<32x64xf32>
    %cst_20 = arith.constant dense<0xFF800000> : vector<32xf32>
    %29 = vector.multi_reduction <maximumf>, %28, %cst_20 [1] : vector<32x64xf32> to vector<32xf32>
    %30 = vector.shape_cast %29 : vector<32xf32> to vector<32x1xf32>
    %31 = vector.broadcast %30 : vector<32x1xf32> to vector<32x64xf32>
    %32 = arith.subf %28, %31 : vector<32x64xf32>
    %33 = math.exp %32 : vector<32x64xf32>
    %cst_21 = arith.constant dense<0.000000e+00> : vector<32xf32>
    %34 = vector.multi_reduction <add>, %33, %cst_21 [1] : vector<32x64xf32> to vector<32xf32>
    %35 = vector.shape_cast %34 : vector<32xf32> to vector<32x1xf32>
    %cst_22 = arith.constant dense<0.000000e+00> : vector<32x8xf32>
    %36 = tpu.matmul %33, %26, %cst_22 {dimension_numbers = #tpu.dot_dimension_numbers<[1], [0], [0], [1], [0, 0, 1, 1], [], []>} : vector<32x64xf32>, vector<64x8xf32>, vector<32x8xf32> -> vector<32x8xf32>
    %37 = tpu.reciprocal %35 : vector<32x1xf32> -> vector<32x1xf32>
    %38 = vector.broadcast %37 : vector<32x1xf32> to vector<32x8xf32>
    %39 = arith.mulf %36, %38 : vector<32x8xf32>
    %c0_23 = arith.constant 0 : index
    %c0_24 = arith.constant 0 : index
    %40 = vector.load %arg11[%c0_23, %c0_24] : memref<32x32xf32, #tpu.memory_space<vmem>>, vector<8x32xf32>
    %cst_25 = arith.constant dense<0.000000e+00> : vector<32x32xf32>
    %41 = tpu.matmul %39, %40, %cst_25 {dimension_numbers = #tpu.dot_dimension_numbers<[1], [0], [0], [1], [0, 0, 1, 1], [], []>} : vector<32x8xf32>, vector<8x32xf32>, vector<32x32xf32> -> vector<32x32xf32>
    %42 = arith.addf %23, %41 : vector<32x32xf32>
    %43 = vector.extract_strided_slice %20 {offsets = [0, 8], sizes = [32, 8], strides = [1, 1]} : vector<32x32xf32> to vector<32x8xf32>
    %44 = vector.extract_strided_slice %21 {offsets = [0, 8], sizes = [64, 8], strides = [1, 1]} : vector<64x32xf32> to vector<64x8xf32>
    %45 = vector.extract_strided_slice %22 {offsets = [0, 8], sizes = [64, 8], strides = [1, 1]} : vector<64x32xf32> to vector<64x8xf32>
    %cst_26 = arith.constant dense<0.000000e+00> : vector<32x64xf32>
    %46 = tpu.matmul %43, %44, %cst_26 {dimension_numbers = #tpu.dot_dimension_numbers<[1], [1], [0], [0], [0, 0, 1, 0], [], []>} : vector<32x8xf32>, vector<64x8xf32>, vector<32x64xf32> -> vector<32x64xf32>
    %47 = arith.addf %46, %11 : vector<32x64xf32>
    %cst_27 = arith.constant dense<0xFF800000> : vector<32xf32>
    %48 = vector.multi_reduction <maximumf>, %47, %cst_27 [1] : vector<32x64xf32> to vector<32xf32>
    %49 = vector.shape_cast %48 : vector<32xf32> to vector<32x1xf32>
    %50 = vector.broadcast %49 : vector<32x1xf32> to vector<32x64xf32>
    %51 = arith.subf %47, %50 : vector<32x64xf32>
    %52 = math.exp %51 : vector<32x64xf32>
    %cst_28 = arith.constant dense<0.000000e+00> : vector<32xf32>
    %53 = vector.multi_reduction <add>, %52, %cst_28 [1] : vector<32x64xf32> to vector<32xf32>
    %54 = vector.shape_cast %53 : vector<32xf32> to vector<32x1xf32>
    %cst_29 = arith.constant dense<0.000000e+00> : vector<32x8xf32>
    %55 = tpu.matmul %52, %45, %cst_29 {dimension_numbers = #tpu.dot_dimension_numbers<[1], [0], [0], [1], [0, 0, 1, 1], [], []>} : vector<32x64xf32>, vector<64x8xf32>, vector<32x8xf32> -> vector<32x8xf32>
    %56 = tpu.reciprocal %54 : vector<32x1xf32> -> vector<32x1xf32>
    %57 = vector.broadcast %56 : vector<32x1xf32> to vector<32x8xf32>
    %58 = arith.mulf %55, %57 : vector<32x8xf32>
    %c8 = arith.constant 8 : index
    %c0_30 = arith.constant 0 : index
    %59 = vector.load %arg11[%c8, %c0_30] : memref<32x32xf32, #tpu.memory_space<vmem>>, vector<8x32xf32>
    %cst_31 = arith.constant dense<0.000000e+00> : vector<32x32xf32>
    %60 = tpu.matmul %58, %59, %cst_31 {dimension_numbers = #tpu.dot_dimension_numbers<[1], [0], [0], [1], [0, 0, 1, 1], [], []>} : vector<32x8xf32>, vector<8x32xf32>, vector<32x32xf32> -> vector<32x32xf32>
    %61 = arith.addf %42, %60 : vector<32x32xf32>
    %62 = vector.extract_strided_slice %20 {offsets = [0, 16], sizes = [32, 8], strides = [1, 1]} : vector<32x32xf32> to vector<32x8xf32>
    %63 = vector.extract_strided_slice %21 {offsets = [0, 16], sizes = [64, 8], strides = [1, 1]} : vector<64x32xf32> to vector<64x8xf32>
    %64 = vector.extract_strided_slice %22 {offsets = [0, 16], sizes = [64, 8], strides = [1, 1]} : vector<64x32xf32> to vector<64x8xf32>
    %cst_32 = arith.constant dense<0.000000e+00> : vector<32x64xf32>
    %65 = tpu.matmul %62, %63, %cst_32 {dimension_numbers = #tpu.dot_dimension_numbers<[1], [1], [0], [0], [0, 0, 1, 0], [], []>} : vector<32x8xf32>, vector<64x8xf32>, vector<32x64xf32> -> vector<32x64xf32>
    %66 = arith.addf %65, %11 : vector<32x64xf32>
    %cst_33 = arith.constant dense<0xFF800000> : vector<32xf32>
    %67 = vector.multi_reduction <maximumf>, %66, %cst_33 [1] : vector<32x64xf32> to vector<32xf32>
    %68 = vector.shape_cast %67 : vector<32xf32> to vector<32x1xf32>
    %69 = vector.broadcast %68 : vector<32x1xf32> to vector<32x64xf32>
    %70 = arith.subf %66, %69 : vector<32x64xf32>
    %71 = math.exp %70 : vector<32x64xf32>
    %cst_34 = arith.constant dense<0.000000e+00> : vector<32xf32>
    %72 = vector.multi_reduction <add>, %71, %cst_34 [1] : vector<32x64xf32> to vector<32xf32>
    %73 = vector.shape_cast %72 : vector<32xf32> to vector<32x1xf32>
    %cst_35 = arith.constant dense<0.000000e+00> : vector<32x8xf32>
    %74 = tpu.matmul %71, %64, %cst_35 {dimension_numbers = #tpu.dot_dimension_numbers<[1], [0], [0], [1], [0, 0, 1, 1], [], []>} : vector<32x64xf32>, vector<64x8xf32>, vector<32x8xf32> -> vector<32x8xf32>
    %75 = tpu.reciprocal %73 : vector<32x1xf32> -> vector<32x1xf32>
    %76 = vector.broadcast %75 : vector<32x1xf32> to vector<32x8xf32>
    %77 = arith.mulf %74, %76 : vector<32x8xf32>
    %c16 = arith.constant 16 : index
    %c0_36 = arith.constant 0 : index
    %78 = vector.load %arg11[%c16, %c0_36] : memref<32x32xf32, #tpu.memory_space<vmem>>, vector<8x32xf32>
    %cst_37 = arith.constant dense<0.000000e+00> : vector<32x32xf32>
    %79 = tpu.matmul %77, %78, %cst_37 {dimension_numbers = #tpu.dot_dimension_numbers<[1], [0], [0], [1], [0, 0, 1, 1], [], []>} : vector<32x8xf32>, vector<8x32xf32>, vector<32x32xf32> -> vector<32x32xf32>
    %80 = arith.addf %61, %79 : vector<32x32xf32>
    %81 = vector.extract_strided_slice %20 {offsets = [0, 24], sizes = [32, 8], strides = [1, 1]} : vector<32x32xf32> to vector<32x8xf32>
    %82 = vector.extract_strided_slice %21 {offsets = [0, 24], sizes = [64, 8], strides = [1, 1]} : vector<64x32xf32> to vector<64x8xf32>
    %83 = vector.extract_strided_slice %22 {offsets = [0, 24], sizes = [64, 8], strides = [1, 1]} : vector<64x32xf32> to vector<64x8xf32>
    %cst_38 = arith.constant dense<0.000000e+00> : vector<32x64xf32>
    %84 = tpu.matmul %81, %82, %cst_38 {dimension_numbers = #tpu.dot_dimension_numbers<[1], [1], [0], [0], [0, 0, 1, 0], [], []>} : vector<32x8xf32>, vector<64x8xf32>, vector<32x64xf32> -> vector<32x64xf32>
    %85 = arith.addf %84, %11 : vector<32x64xf32>
    %cst_39 = arith.constant dense<0xFF800000> : vector<32xf32>
    %86 = vector.multi_reduction <maximumf>, %85, %cst_39 [1] : vector<32x64xf32> to vector<32xf32>
    %87 = vector.shape_cast %86 : vector<32xf32> to vector<32x1xf32>
    %88 = vector.broadcast %87 : vector<32x1xf32> to vector<32x64xf32>
    %89 = arith.subf %85, %88 : vector<32x64xf32>
    %90 = math.exp %89 : vector<32x64xf32>
    %cst_40 = arith.constant dense<0.000000e+00> : vector<32xf32>
    %91 = vector.multi_reduction <add>, %90, %cst_40 [1] : vector<32x64xf32> to vector<32xf32>
    %92 = vector.shape_cast %91 : vector<32xf32> to vector<32x1xf32>
    %cst_41 = arith.constant dense<0.000000e+00> : vector<32x8xf32>
    %93 = tpu.matmul %90, %83, %cst_41 {dimension_numbers = #tpu.dot_dimension_numbers<[1], [0], [0], [1], [0, 0, 1, 1], [], []>} : vector<32x64xf32>, vector<64x8xf32>, vector<32x8xf32> -> vector<32x8xf32>
    %94 = tpu.reciprocal %92 : vector<32x1xf32> -> vector<32x1xf32>
    %95 = vector.broadcast %94 : vector<32x1xf32> to vector<32x8xf32>
    %96 = arith.mulf %93, %95 : vector<32x8xf32>
    %c24 = arith.constant 24 : index
    %c0_42 = arith.constant 0 : index
    %97 = vector.load %arg11[%c24, %c0_42] : memref<32x32xf32, #tpu.memory_space<vmem>>, vector<8x32xf32>
    %cst_43 = arith.constant dense<0.000000e+00> : vector<32x32xf32>
    %98 = tpu.matmul %96, %97, %cst_43 {dimension_numbers = #tpu.dot_dimension_numbers<[1], [0], [0], [1], [0, 0, 1, 1], [], []>} : vector<32x8xf32>, vector<8x32xf32>, vector<32x32xf32> -> vector<32x32xf32>
    %99 = arith.addf %80, %98 : vector<32x32xf32>
    %c0_44 = arith.constant 0 : index
    %c0_45 = arith.constant 0 : index
    %100 = vector.load %arg12[%c0_44, %c0_45] : memref<1x32xf32, #tpu.memory_space<vmem>>, vector<1x32xf32>
    %101 = vector.shape_cast %100 : vector<1x32xf32> to vector<32xf32>
    %102 = vector.shape_cast %101 : vector<32xf32> to vector<1x32xf32>
    %103 = vector.broadcast %102 : vector<1x32xf32> to vector<32x32xf32>
    %104 = arith.addf %99, %103 : vector<32x32xf32>
    %c0_46 = arith.constant 0 : index
    %c0_47 = arith.constant 0 : index
    %105 = vector.load %arg13[%c0_46, %c0_47] : memref<1x32xf32, #tpu.memory_space<vmem>>, vector<1x32xf32>
    %106 = vector.shape_cast %105 : vector<1x32xf32> to vector<32xf32>
    %c0_48 = arith.constant 0 : index
    %c0_49 = arith.constant 0 : index
    %107 = vector.load %arg14[%c0_48, %c0_49] : memref<1x32xf32, #tpu.memory_space<vmem>>, vector<1x32xf32>
    %108 = vector.shape_cast %107 : vector<1x32xf32> to vector<32xf32>
    %109 = arith.addf %4, %104 : vector<32x32xf32>
    %cst_50 = arith.constant dense<0.000000e+00> : vector<32xf32>
    %110 = vector.multi_reduction <add>, %109, %cst_50 [1] : vector<32x32xf32> to vector<32xf32>
    %111 = vector.shape_cast %110 : vector<32xf32> to vector<32x1xf32>
    %cst_51 = arith.constant 3.200000e+01 : f32
    %112 = vector.broadcast %cst_51 : f32 to vector<32x1xf32>
    %113 = arith.divf %111, %112 : vector<32x1xf32>
    %114 = vector.broadcast %113 : vector<32x1xf32> to vector<32x32xf32>
    %115 = arith.subf %109, %114 : vector<32x32xf32>
    %116 = arith.mulf %115, %115 : vector<32x32xf32>
    %cst_52 = arith.constant dense<0.000000e+00> : vector<32xf32>
    %117 = vector.multi_reduction <add>, %116, %cst_52 [1] : vector<32x32xf32> to vector<32xf32>
    %118 = vector.shape_cast %117 : vector<32xf32> to vector<32x1xf32>
    %cst_53 = arith.constant 3.200000e+01 : f32
    %119 = vector.broadcast %cst_53 : f32 to vector<32x1xf32>
    %120 = arith.divf %118, %119 : vector<32x1xf32>
    %cst_54 = arith.constant 9.99999974E-6 : f32
    %121 = vector.broadcast %cst_54 : f32 to vector<32x1xf32>
    %122 = arith.addf %120, %121 : vector<32x1xf32>
    %123 = math.rsqrt %122 : vector<32x1xf32>
    %124 = vector.broadcast %123 : vector<32x1xf32> to vector<32x32xf32>
    %125 = arith.mulf %115, %124 : vector<32x32xf32>
    %126 = vector.shape_cast %106 : vector<32xf32> to vector<1x32xf32>
    %127 = vector.broadcast %126 : vector<1x32xf32> to vector<32x32xf32>
    %128 = arith.mulf %125, %127 : vector<32x32xf32>
    %129 = vector.shape_cast %108 : vector<32xf32> to vector<1x32xf32>
    %130 = vector.broadcast %129 : vector<1x32xf32> to vector<32x32xf32>
    %131 = arith.addf %128, %130 : vector<32x32xf32>
    %c0_55 = arith.constant 0 : index
    %c0_56 = arith.constant 0 : index
    %132 = vector.load %arg15[%c0_55, %c0_56] : memref<32x64xf32, #tpu.memory_space<vmem>>, vector<32x64xf32>
    %cst_57 = arith.constant dense<0.000000e+00> : vector<32x64xf32>
    %133 = tpu.matmul %131, %132, %cst_57 {dimension_numbers = #tpu.dot_dimension_numbers<[1], [0], [0], [1], [0, 0, 1, 1], [], []>} : vector<32x32xf32>, vector<32x64xf32>, vector<32x64xf32> -> vector<32x64xf32>
    %c0_58 = arith.constant 0 : index
    %c0_59 = arith.constant 0 : index
    %134 = vector.load %arg16[%c0_58, %c0_59] : memref<1x64xf32, #tpu.memory_space<vmem>>, vector<1x64xf32>
    %135 = vector.shape_cast %134 : vector<1x64xf32> to vector<64xf32>
    %136 = vector.shape_cast %135 : vector<64xf32> to vector<1x64xf32>
    %137 = vector.broadcast %136 : vector<1x64xf32> to vector<32x64xf32>
    %138 = arith.addf %133, %137 : vector<32x64xf32>
    %cst_60 = arith.constant 5.000000e-01 : f32
    %139 = vector.broadcast %cst_60 : f32 to vector<32x64xf32>
    %140 = arith.mulf %139, %138 : vector<32x64xf32>
    %cst_61 = arith.constant 0.707106769 : f32
    %141 = vector.broadcast %cst_61 : f32 to vector<32x64xf32>
    %142 = arith.mulf %138, %141 : vector<32x64xf32>
    %143 = math.erf %142 : vector<32x64xf32>
    %cst_62 = arith.constant 1.000000e+00 : f32
    %144 = vector.broadcast %cst_62 : f32 to vector<32x64xf32>
    %145 = arith.addf %144, %143 : vector<32x64xf32>
    %146 = arith.mulf %140, %145 : vector<32x64xf32>
    %c0_63 = arith.constant 0 : index
    %c0_64 = arith.constant 0 : index
    %147 = vector.load %arg17[%c0_63, %c0_64] : memref<64x32xf32, #tpu.memory_space<vmem>>, vector<64x32xf32>
    %cst_65 = arith.constant dense<0.000000e+00> : vector<32x32xf32>
    %148 = tpu.matmul %146, %147, %cst_65 {dimension_numbers = #tpu.dot_dimension_numbers<[1], [0], [0], [1], [0, 0, 1, 1], [], []>} : vector<32x64xf32>, vector<64x32xf32>, vector<32x32xf32> -> vector<32x32xf32>
    %c0_66 = arith.constant 0 : index
    %c0_67 = arith.constant 0 : index
    %149 = vector.load %arg18[%c0_66, %c0_67] : memref<1x32xf32, #tpu.memory_space<vmem>>, vector<1x32xf32>
    %150 = vector.shape_cast %149 : vector<1x32xf32> to vector<32xf32>
    %151 = vector.shape_cast %150 : vector<32xf32> to vector<1x32xf32>
    %152 = vector.broadcast %151 : vector<1x32xf32> to vector<32x32xf32>
    %153 = arith.addf %148, %152 : vector<32x32xf32>
    %c0_68 = arith.constant 0 : index
    %c0_69 = arith.constant 0 : index
    %154 = vector.load %arg19[%c0_68, %c0_69] : memref<1x32xf32, #tpu.memory_space<vmem>>, vector<1x32xf32>
    %155 = vector.shape_cast %154 : vector<1x32xf32> to vector<32xf32>
    %c0_70 = arith.constant 0 : index
    %c0_71 = arith.constant 0 : index
    %156 = vector.load %arg20[%c0_70, %c0_71] : memref<1x32xf32, #tpu.memory_space<vmem>>, vector<1x32xf32>
    %157 = vector.shape_cast %156 : vector<1x32xf32> to vector<32xf32>
    %158 = arith.addf %131, %153 : vector<32x32xf32>
    %cst_72 = arith.constant dense<0.000000e+00> : vector<32xf32>
    %159 = vector.multi_reduction <add>, %158, %cst_72 [1] : vector<32x32xf32> to vector<32xf32>
    %160 = vector.shape_cast %159 : vector<32xf32> to vector<32x1xf32>
    %cst_73 = arith.constant 3.200000e+01 : f32
    %161 = vector.broadcast %cst_73 : f32 to vector<32x1xf32>
    %162 = arith.divf %160, %161 : vector<32x1xf32>
    %163 = vector.broadcast %162 : vector<32x1xf32> to vector<32x32xf32>
    %164 = arith.subf %158, %163 : vector<32x32xf32>
    %165 = arith.mulf %164, %164 : vector<32x32xf32>
    %cst_74 = arith.constant dense<0.000000e+00> : vector<32xf32>
    %166 = vector.multi_reduction <add>, %165, %cst_74 [1] : vector<32x32xf32> to vector<32xf32>
    %167 = vector.shape_cast %166 : vector<32xf32> to vector<32x1xf32>
    %cst_75 = arith.constant 3.200000e+01 : f32
    %168 = vector.broadcast %cst_75 : f32 to vector<32x1xf32>
    %169 = arith.divf %167, %168 : vector<32x1xf32>
    %cst_76 = arith.constant 9.99999974E-6 : f32
    %170 = vector.broadcast %cst_76 : f32 to vector<32x1xf32>
    %171 = arith.addf %169, %170 : vector<32x1xf32>
    %172 = math.rsqrt %171 : vector<32x1xf32>
    %173 = vector.broadcast %172 : vector<32x1xf32> to vector<32x32xf32>
    %174 = arith.mulf %164, %173 : vector<32x32xf32>
    %175 = vector.shape_cast %155 : vector<32xf32> to vector<1x32xf32>
    %176 = vector.broadcast %175 : vector<1x32xf32> to vector<32x32xf32>
    %177 = arith.mulf %174, %176 : vector<32x32xf32>
    %178 = vector.shape_cast %157 : vector<32xf32> to vector<1x32xf32>
    %179 = vector.broadcast %178 : vector<1x32xf32> to vector<32x32xf32>
    %180 = arith.addf %177, %179 : vector<32x32xf32>
    %c0_77 = arith.constant 0 : index
    %c0_78 = arith.constant 0 : index
    %c0_79 = arith.constant 0 : index
    %181 = vector.load %arg21[%c0_77, %c0_78, %c0_79] : memref<1x32x32xf32, #tpu.memory_space<vmem>>, vector<1x32x32xf32>
    %182 = vector.shape_cast %181 : vector<1x32x32xf32> to vector<32x32xf32>
    %183 = vector.shape_cast %180 : vector<32x32xf32> to vector<1x32x32xf32>
    tpu.vector_store %arg21[%c0_77, %c0_78, %c0_79], %183 {strides = array<i32>} : memref<1x32x32xf32, #tpu.memory_space<vmem>>, vector<1x32x32xf32>,
    return
  }
  func.func @transform_0(%arg0: i32, %arg1: i32) -> (i32, i32, i32) {
    %c0_i32 = arith.constant 0 : i32
    %c0_i32_0 = arith.constant 0 : i32
    %c0_i32_1 = arith.constant 0 : i32
    return %arg0, %c0_i32, %c0_i32_0 : i32, i32, i32
  }
  func.func @transform_1(%arg0: i32, %arg1: i32) -> (i32, i32, i32) {
    %c0_i32 = arith.constant 0 : i32
    %c0_i32_0 = arith.constant 0 : i32
    return %arg0, %arg1, %c0_i32 : i32, i32, i32
  }
  func.func @transform_2(%arg0: i32, %arg1: i32) -> (i32, i32, i32, i32) {
    %c0_i32 = arith.constant 0 : i32
    %c0_i32_0 = arith.constant 0 : i32
    %c0_i32_1 = arith.constant 0 : i32
    return %arg0, %c0_i32, %arg1, %c0_i32_0 : i32, i32, i32, i32
  }
  func.func @transform_3(%arg0: i32, %arg1: i32) -> (i32, i32) {
    %c0_i32 = arith.constant 0 : i32
    %c0_i32_0 = arith.constant 0 : i32
    %c0_i32_1 = arith.constant 0 : i32
    return %c0_i32, %c0_i32_0 : i32, i32
  }
  func.func @transform_4(%arg0: i32, %arg1: i32) -> (i32, i32) {
    %c0_i32 = arith.constant 0 : i32
    %c0_i32_0 = arith.constant 0 : i32
    %c0_i32_1 = arith.constant 0 : i32
    return %c0_i32, %c0_i32_0 : i32, i32
  }
  func.func @transform_5(%arg0: i32, %arg1: i32) -> (i32, i32) {
    %c0_i32 = arith.constant 0 : i32
    %c0_i32_0 = arith.constant 0 : i32
    %c0_i32_1 = arith.constant 0 : i32
    return %c0_i32, %c0_i32_0 : i32, i32
  }
  func.func @transform_6(%arg0: i32, %arg1: i32) -> (i32, i32) {
    %c0_i32 = arith.constant 0 : i32
    %c0_i32_0 = arith.constant 0 : i32
    %c0_i32_1 = arith.constant 0 : i32
    return %c0_i32, %c0_i32_0 : i32, i32
  }
  func.func @transform_7(%arg0: i32, %arg1: i32) -> (i32, i32) {
    %c0_i32 = arith.constant 0 : i32
    %c0_i32_0 = arith.constant 0 : i32
    %c0_i32_1 = arith.constant 0 : i32
    return %c0_i32, %c0_i32_0 : i32, i32
  }
  func.func @transform_8(%arg0: i32, %arg1: i32) -> (i32, i32) {
    %c0_i32 = arith.constant 0 : i32
    %c0_i32_0 = arith.constant 0 : i32
    %c0_i32_1 = arith.constant 0 : i32
    return %c0_i32, %c0_i32_0 : i32, i32
  }
  func.func @transform_9(%arg0: i32, %arg1: i32) -> (i32, i32) {
    %c0_i32 = arith.constant 0 : i32
    %c0_i32_0 = arith.constant 0 : i32
    %c0_i32_1 = arith.constant 0 : i32
    return %c0_i32, %c0_i32_0 : i32, i32
  }
  func.func @transform_10(%arg0: i32, %arg1: i32) -> (i32, i32) {
    %c0_i32 = arith.constant 0 : i32
    %c0_i32_0 = arith.constant 0 : i32
    %c0_i32_1 = arith.constant 0 : i32
    return %c0_i32, %c0_i32_0 : i32, i32
  }
  func.func @transform_11(%arg0: i32, %arg1: i32) -> (i32, i32) {
    %c0_i32 = arith.constant 0 : i32
    %c0_i32_0 = arith.constant 0 : i32
    %c0_i32_1 = arith.constant 0 : i32
    return %c0_i32, %c0_i32_0 : i32, i32
  }
  func.func @transform_12(%arg0: i32, %arg1: i32) -> (i32, i32) {
    %c0_i32 = arith.constant 0 : i32
    %c0_i32_0 = arith.constant 0 : i32
    %c0_i32_1 = arith.constant 0 : i32
    return %c0_i32, %c0_i32_0 : i32, i32
  }
  func.func @transform_13(%arg0: i32, %arg1: i32) -> (i32, i32) {
    %c0_i32 = arith.constant 0 : i32
    %c0_i32_0 = arith.constant 0 : i32
    %c0_i32_1 = arith.constant 0 : i32
    return %c0_i32, %c0_i32_0 : i32, i32
  }
  func.func @transform_14(%arg0: i32, %arg1: i32) -> (i32, i32) {
    %c0_i32 = arith.constant 0 : i32
    %c0_i32_0 = arith.constant 0 : i32
    %c0_i32_1 = arith.constant 0 : i32
    return %c0_i32, %c0_i32_0 : i32, i32
  }
  func.func @transform_15(%arg0: i32, %arg1: i32) -> (i32, i32) {
    %c0_i32 = arith.constant 0 : i32
    %c0_i32_0 = arith.constant 0 : i32
    %c0_i32_1 = arith.constant 0 : i32
    return %c0_i32, %c0_i32_0 : i32, i32
  }
  func.func @transform_16(%arg0: i32, %arg1: i32) -> (i32, i32) {
    %c0_i32 = arith.constant 0 : i32
    %c0_i32_0 = arith.constant 0 : i32
    %c0_i32_1 = arith.constant 0 : i32
    return %c0_i32, %c0_i32_0 : i32, i32
  }
  func.func @transform_17(%arg0: i32, %arg1: i32) -> (i32, i32) {
    %c0_i32 = arith.constant 0 : i32
    %c0_i32_0 = arith.constant 0 : i32
    %c0_i32_1 = arith.constant 0 : i32
    return %c0_i32, %c0_i32_0 : i32, i32
  }
  func.func @transform_18(%arg0: i32, %arg1: i32) -> (i32, i32) {
    %c0_i32 = arith.constant 0 : i32
    %c0_i32_0 = arith.constant 0 : i32
    %c0_i32_1 = arith.constant 0 : i32
    return %c0_i32, %c0_i32_0 : i32, i32
  }
  func.func @transform_19(%arg0: i32, %arg1: i32) -> (i32, i32, i32) {
    %c0_i32 = arith.constant 0 : i32
    %c0_i32_0 = arith.constant 0 : i32
    return %arg0, %arg1, %c0_i32 : i32, i32, i32
  }
}

module attributes {stable_mosaic.version = 11 : i64} {
  func.func @encoder_layer_kernel(%arg0: i32, %arg1: i32, %arg2: memref<1x64x32xf32, #tpu.memory_space<vmem>>, %arg3: memref<1x32x32xf32, #tpu.memory_space<vmem>>, %arg4: memref<1x1x32x64xi8, #tpu.memory_space<vmem>>, %arg5: memref<32x32xf32, #tpu.memory_space<vmem>>, %arg6: memref<1x32xf32, #tpu.memory_space<vmem>>, %arg7: memref<32x32xf32, #tpu.memory_space<vmem>>, %arg8: memref<1x32xf32, #tpu.memory_space<vmem>>, %arg9: memref<32x32xf32, #tpu.memory_space<vmem>>, %arg10: memref<1x32xf32, #tpu.memory_space<vmem>>, %arg11: memref<32x32xf32, #tpu.memory_space<vmem>>, %arg12: memref<1x32xf32, #tpu.memory_space<vmem>>, %arg13: memref<1x32xf32, #tpu.memory_space<vmem>>, %arg14: memref<1x32xf32, #tpu.memory_space<vmem>>, %arg15: memref<32x64xf32, #tpu.memory_space<vmem>>, %arg16: memref<1x64xf32, #tpu.memory_space<vmem>>, %arg17: memref<64x32xf32, #tpu.memory_space<vmem>>, %arg18: memref<1x32xf32, #tpu.memory_space<vmem>>, %arg19: memref<1x32xf32, #tpu.memory_space<vmem>>, %arg20: memref<1x32xf32, #tpu.memory_space<vmem>>, %arg21: memref<1x32x32xf32, #tpu.memory_space<vmem>>, %arg22: memref<64x32xf32, #tpu.memory_space<vmem>>, %arg23: memref<64x32xf32, #tpu.memory_space<vmem>>) attributes {dimension_semantics = [#tpu.dimension_semantics<parallel>, #tpu.dimension_semantics<arbitrary>], iteration_bounds = array<i64: 2, 2>, scalar_prefetch = 0 : i64, scratch_operands = 2 : i64, tpu.core_type = #tpu.core_type<tc>, window_params = [{transform_indices = @transform_0, window_bounds = array<i64: 1, 64, 32>}, {transform_indices = @transform_1, window_bounds = array<i64: 1, 32, 32>}, {transform_indices = @transform_2, window_bounds = array<i64: 1, 1, 32, 64>}, {pipeline_mode = #tpu.pipeline_mode<synchronous>, transform_indices = @transform_3, window_bounds = array<i64: 32, 32>}, {pipeline_mode = #tpu.pipeline_mode<synchronous>, transform_indices = @transform_4, window_bounds = array<i64: 1, 32>}, {pipeline_mode = #tpu.pipeline_mode<synchronous>, transform_indices = @transform_5, window_bounds = array<i64: 32, 32>}, {pipeline_mode = #tpu.pipeline_mode<synchronous>, transform_indices = @transform_6, window_bounds = array<i64: 1, 32>}, {pipeline_mode = #tpu.pipeline_mode<synchronous>, transform_indices = @transform_7, window_bounds = array<i64: 32, 32>}, {pipeline_mode = #tpu.pipeline_mode<synchronous>, transform_indices = @transform_8, window_bounds = array<i64: 1, 32>}, {pipeline_mode = #tpu.pipeline_mode<synchronous>, transform_indices = @transform_9, window_bounds = array<i64: 32, 32>}, {pipeline_mode = #tpu.pipeline_mode<synchronous>, transform_indices = @transform_10, window_bounds = array<i64: 1, 32>}, {pipeline_mode = #tpu.pipeline_mode<synchronous>, transform_indices = @transform_11, window_bounds = array<i64: 1, 32>}, {pipeline_mode = #tpu.pipeline_mode<synchronous>, transform_indices = @transform_12, window_bounds = array<i64: 1, 32>}, {pipeline_mode = #tpu.pipeline_mode<synchronous>, transform_indices = @transform_13, window_bounds = array<i64: 32, 64>}, {pipeline_mode = #tpu.pipeline_mode<synchronous>, transform_indices = @transform_14, window_bounds = array<i64: 1, 64>}, {pipeline_mode = #tpu.pipeline_mode<synchronous>, transform_indices = @transform_15, window_bounds = array<i64: 64, 32>}, {pipeline_mode = #tpu.pipeline_mode<synchronous>, transform_indices = @transform_16, window_bounds = array<i64: 1, 32>}, {pipeline_mode = #tpu.pipeline_mode<synchronous>, transform_indices = @transform_17, window_bounds = array<i64: 1, 32>}, {pipeline_mode = #tpu.pipeline_mode<synchronous>, transform_indices = @transform_18, window_bounds = array<i64: 1, 32>}, {transform_indices = @transform_19, window_bounds = array<i64: 1, 32, 32>}]} {
    %c0_i32 = arith.constant 0 : i32
    %0 = arith.cmpi eq, %arg1, %c0_i32 : i32
    %1 = arith.extui %0 : i1 to i32
    %c0_i32_0 = arith.constant 0 : i32
    %2 = arith.cmpi ne, %1, %c0_i32_0 : i32
    scf.if %2 {
      %c0_80 = arith.constant 0 : index
      %c0_81 = arith.constant 0 : index
      %c0_82 = arith.constant 0 : index
      %184 = vector.load %arg2[%c0_80, %c0_81, %c0_82] : memref<1x64x32xf32, #tpu.memory_space<vmem>>, vector<1x64x32xf32>
      %185 = vector.shape_cast %184 : vector<1x64x32xf32> to vector<64x32xf32>
      %c0_83 = arith.constant 0 : index
      %c0_84 = arith.constant 0 : index
      %186 = vector.load %arg7[%c0_83, %c0_84] : memref<32x32xf32, #tpu.memory_space<vmem>>, vector<32x32xf32>
      %cst_85 = arith.constant dense<0.000000e+00> : vector<64x32xf32>
      %187 = tpu.matmul %185, %186, %cst_85 {dimension_numbers = #tpu.dot_dimension_numbers<[1], [0], [0], [1], [0, 0, 1, 1], [], []>} : vector<64x32xf32>, vector<32x32xf32>, vector<64x32xf32> -> vector<64x32xf32>
      %c0_86 = arith.constant 0 : index
      %c0_87 = arith.constant 0 : index
      %188 = vector.load %arg8[%c0_86, %c0_87] : memref<1x32xf32, #tpu.memory_space<vmem>>, vector<1x32xf32>
      %189 = vector.shape_cast %188 : vector<1x32xf32> to vector<32xf32>
      %190 = vector.shape_cast %189 : vector<32xf32> to vector<1x32xf32>
      %191 = vector.broadcast %190 : vector<1x32xf32> to vector<64x32xf32>
      %192 = arith.addf %187, %191 : vector<64x32xf32>
      %c0_88 = arith.constant 0 : index
      %c0_89 = arith.constant 0 : index
      %193 = vector.load %arg22[%c0_88, %c0_89] : memref<64x32xf32, #tpu.memory_space<vmem>>, vector<64x32xf32>
      tpu.vector_store %arg22[%c0_88, %c0_89], %192 {strides = array<i32>} : memref<64x32xf32, #tpu.memory_space<vmem>>, vector<64x32xf32>,
      %c0_90 = arith.constant 0 : index
      %c0_91 = arith.constant 0 : index
      %194 = vector.load %arg9[%c0_90, %c0_91] : memref<32x32xf32, #tpu.memory_space<vmem>>, vector<32x32xf32>
      %cst_92 = arith.constant dense<0.000000e+00> : vector<64x32xf32>
      %195 = tpu.matmul %185, %194, %cst_92 {dimension_numbers = #tpu.dot_dimension_numbers<[1], [0], [0], [1], [0, 0, 1, 1], [], []>} : vector<64x32xf32>, vector<32x32xf32>, vector<64x32xf32> -> vector<64x32xf32>
      %c0_93 = arith.constant 0 : index
      %c0_94 = arith.constant 0 : index
      %196 = vector.load %arg10[%c0_93, %c0_94] : memref<1x32xf32, #tpu.memory_space<vmem>>, vector<1x32xf32>
      %197 = vector.shape_cast %196 : vector<1x32xf32> to vector<32xf32>
      %198 = vector.shape_cast %197 : vector<32xf32> to vector<1x32xf32>
      %199 = vector.broadcast %198 : vector<1x32xf32> to vector<64x32xf32>
      %200 = arith.addf %195, %199 : vector<64x32xf32>
      %c0_95 = arith.constant 0 : index
      %c0_96 = arith.constant 0 : index
      %201 = vector.load %arg23[%c0_95, %c0_96] : memref<64x32xf32, #tpu.memory_space<vmem>>, vector<64x32xf32>
      tpu.vector_store %arg23[%c0_95, %c0_96], %200 {strides = array<i32>} : memref<64x32xf32, #tpu.memory_space<vmem>>, vector<64x32xf32>,
    } else {
    }
    %c0 = arith.constant 0 : index
    %c0_1 = arith.constant 0 : index
    %c0_2 = arith.constant 0 : index
    %3 = vector.load %arg3[%c0, %c0_1, %c0_2] : memref<1x32x32xf32, #tpu.memory_space<vmem>>, vector<1x32x32xf32>
    %4 = vector.shape_cast %3 : vector<1x32x32xf32> to vector<32x32xf32>
    %c0_3 = arith.constant 0 : index
    %c0_4 = arith.constant 0 : index
    %c0_5 = arith.constant 0 : index
    %c0_6 = arith.constant 0 : index
    %5 = vector.load %arg4[%c0_3, %c0_4, %c0_5, %c0_6] : memref<1x1x32x64xi8, #tpu.memory_space<vmem>>, vector<1x1x32x64xi8>
    %6 = vector.shape_cast %5 : vector<1x1x32x64xi8> to vector<32x64xi8>
    %7 = arith.sitofp %6 : vector<32x64xi8> to vector<32x64xf32>
    %cst = arith.constant 1.000000e+00 : f32
    %8 = vector.broadcast %cst : f32 to vector<32x64xf32>
    %9 = arith.subf %7, %8 : vector<32x64xf32>
    %cst_7 = arith.constant 1.000000e+09 : f32
    %10 = vector.broadcast %cst_7 : f32 to vector<32x64xf32>
    %11 = arith.mulf %9, %10 : vector<32x64xf32>
    %c0_8 = arith.constant 0 : index
    %c0_9 = arith.constant 0 : index
    %12 = vector.load %arg5[%c0_8, %c0_9] : memref<32x32xf32, #tpu.memory_space<vmem>>, vector<32x32xf32>
    %cst_10 = arith.constant dense<0.000000e+00> : vector<32x32xf32>
    %13 = tpu.matmul %4, %12, %cst_10 {dimension_numbers = #tpu.dot_dimension_numbers<[1], [0], [0], [1], [0, 0, 1, 1], [], []>} : vector<32x32xf32>, vector<32x32xf32>, vector<32x32xf32> -> vector<32x32xf32>
    %c0_11 = arith.constant 0 : index
    %c0_12 = arith.constant 0 : index
    %14 = vector.load %arg6[%c0_11, %c0_12] : memref<1x32xf32, #tpu.memory_space<vmem>>, vector<1x32xf32>
    %15 = vector.shape_cast %14 : vector<1x32xf32> to vector<32xf32>
    %16 = vector.shape_cast %15 : vector<32xf32> to vector<1x32xf32>
    %17 = vector.broadcast %16 : vector<1x32xf32> to vector<32x32xf32>
    %18 = arith.addf %13, %17 : vector<32x32xf32>
    %cst_13 = arith.constant 0.353553385 : f32
    %19 = vector.broadcast %cst_13 : f32 to vector<32x32xf32>
    %20 = arith.mulf %18, %19 : vector<32x32xf32>
    %c0_14 = arith.constant 0 : index
    %c0_15 = arith.constant 0 : index
    %21 = vector.load %arg22[%c0_14, %c0_15] : memref<64x32xf32, #tpu.memory_space<vmem>>, vector<64x32xf32>
    %c0_16 = arith.constant 0 : index
    %c0_17 = arith.constant 0 : index
    %22 = vector.load %arg23[%c0_16, %c0_17] : memref<64x32xf32, #tpu.memory_space<vmem>>, vector<64x32xf32>
    %cst_18 = arith.constant 0.000000e+00 : f32
    %23 = vector.broadcast %cst_18 : f32 to vector<32x32xf32>
    %24 = vector.extract_strided_slice %20 {offsets = [0, 0], sizes = [32, 8], strides = [1, 1]} : vector<32x32xf32> to vector<32x8xf32>
    %25 = vector.extract_strided_slice %21 {offsets = [0, 0], sizes = [64, 8], strides = [1, 1]} : vector<64x32xf32> to vector<64x8xf32>
    %26 = vector.extract_strided_slice %22 {offsets = [0, 0], sizes = [64, 8], strides = [1, 1]} : vector<64x32xf32> to vector<64x8xf32>
    %cst_19 = arith.constant dense<0.000000e+00> : vector<32x64xf32>
    %27 = tpu.matmul %24, %25, %cst_19 {dimension_numbers = #tpu.dot_dimension_numbers<[1], [1], [0], [0], [0, 0, 1, 0], [], []>} : vector<32x8xf32>, vector<64x8xf32>, vector<32x64xf32> -> vector<32x64xf32>
    %28 = arith.addf %27, %11 : vector<32x64xf32>
    %cst_20 = arith.constant dense<0xFF800000> : vector<32xf32>
    %29 = vector.multi_reduction <maximumf>, %28, %cst_20 [1] : vector<32x64xf32> to vector<32xf32>
    %30 = vector.shape_cast %29 : vector<32xf32> to vector<32x1xf32>
    %31 = vector.broadcast %30 : vector<32x1xf32> to vector<32x64xf32>
    %32 = arith.subf %28, %31 : vector<32x64xf32>
    %33 = math.exp %32 : vector<32x64xf32>
    %cst_21 = arith.constant dense<0.000000e+00> : vector<32xf32>
    %34 = vector.multi_reduction <add>, %33, %cst_21 [1] : vector<32x64xf32> to vector<32xf32>
    %35 = vector.shape_cast %34 : vector<32xf32> to vector<32x1xf32>
    %cst_22 = arith.constant dense<0.000000e+00> : vector<32x8xf32>
    %36 = tpu.matmul %33, %26, %cst_22 {dimension_numbers = #tpu.dot_dimension_numbers<[1], [0], [0], [1], [0, 0, 1, 1], [], []>} : vector<32x64xf32>, vector<64x8xf32>, vector<32x8xf32> -> vector<32x8xf32>
    %37 = tpu.reciprocal %35 : vector<32x1xf32> -> vector<32x1xf32>
    %38 = vector.broadcast %37 : vector<32x1xf32> to vector<32x8xf32>
    %39 = arith.mulf %36, %38 : vector<32x8xf32>
    %c0_23 = arith.constant 0 : index
    %c0_24 = arith.constant 0 : index
    %40 = vector.load %arg11[%c0_23, %c0_24] : memref<32x32xf32, #tpu.memory_space<vmem>>, vector<8x32xf32>
    %cst_25 = arith.constant dense<0.000000e+00> : vector<32x32xf32>
    %41 = tpu.matmul %39, %40, %cst_25 {dimension_numbers = #tpu.dot_dimension_numbers<[1], [0], [0], [1], [0, 0, 1, 1], [], []>} : vector<32x8xf32>, vector<8x32xf32>, vector<32x32xf32> -> vector<32x32xf32>
    %42 = arith.addf %23, %41 : vector<32x32xf32>
    %43 = vector.extract_strided_slice %20 {offsets = [0, 8], sizes = [32, 8], strides = [1, 1]} : vector<32x32xf32> to vector<32x8xf32>
    %44 = vector.extract_strided_slice %21 {offsets = [0, 8], sizes = [64, 8], strides = [1, 1]} : vector<64x32xf32> to vector<64x8xf32>
    %45 = vector.extract_strided_slice %22 {offsets = [0, 8], sizes = [64, 8], strides = [1, 1]} : vector<64x32xf32> to vector<64x8xf32>
    %cst_26 = arith.constant dense<0.000000e+00> : vector<32x64xf32>
    %46 = tpu.matmul %43, %44, %cst_26 {dimension_numbers = #tpu.dot_dimension_numbers<[1], [1], [0], [0], [0, 0, 1, 0], [], []>} : vector<32x8xf32>, vector<64x8xf32>, vector<32x64xf32> -> vector<32x64xf32>
    %47 = arith.addf %46, %11 : vector<32x64xf32>
    %cst_27 = arith.constant dense<0xFF800000> : vector<32xf32>
    %48 = vector.multi_reduction <maximumf>, %47, %cst_27 [1] : vector<32x64xf32> to vector<32xf32>
    %49 = vector.shape_cast %48 : vector<32xf32> to vector<32x1xf32>
    %50 = vector.broadcast %49 : vector<32x1xf32> to vector<32x64xf32>
    %51 = arith.subf %47, %50 : vector<32x64xf32>
    %52 = math.exp %51 : vector<32x64xf32>
    %cst_28 = arith.constant dense<0.000000e+00> : vector<32xf32>
    %53 = vector.multi_reduction <add>, %52, %cst_28 [1] : vector<32x64xf32> to vector<32xf32>
    %54 = vector.shape_cast %53 : vector<32xf32> to vector<32x1xf32>
    %cst_29 = arith.constant dense<0.000000e+00> : vector<32x8xf32>
    %55 = tpu.matmul %52, %45, %cst_29 {dimension_numbers = #tpu.dot_dimension_numbers<[1], [0], [0], [1], [0, 0, 1, 1], [], []>} : vector<32x64xf32>, vector<64x8xf32>, vector<32x8xf32> -> vector<32x8xf32>
    %56 = tpu.reciprocal %54 : vector<32x1xf32> -> vector<32x1xf32>
    %57 = vector.broadcast %56 : vector<32x1xf32> to vector<32x8xf32>
    %58 = arith.mulf %55, %57 : vector<32x8xf32>
    %c8 = arith.constant 8 : index
    %c0_30 = arith.constant 0 : index
    %59 = vector.load %arg11[%c8, %c0_30] : memref<32x32xf32, #tpu.memory_space<vmem>>, vector<8x32xf32>
    %cst_31 = arith.constant dense<0.000000e+00> : vector<32x32xf32>
    %60 = tpu.matmul %58, %59, %cst_31 {dimension_numbers = #tpu.dot_dimension_numbers<[1], [0], [0], [1], [0, 0, 1, 1], [], []>} : vector<32x8xf32>, vector<8x32xf32>, vector<32x32xf32> -> vector<32x32xf32>
    %61 = arith.addf %42, %60 : vector<32x32xf32>
    %62 = vector.extract_strided_slice %20 {offsets = [0, 16], sizes = [32, 8], strides = [1, 1]} : vector<32x32xf32> to vector<32x8xf32>
    %63 = vector.extract_strided_slice %21 {offsets = [0, 16], sizes = [64, 8], strides = [1, 1]} : vector<64x32xf32> to vector<64x8xf32>
    %64 = vector.extract_strided_slice %22 {offsets = [0, 16], sizes = [64, 8], strides = [1, 1]} : vector<64x32xf32> to vector<64x8xf32>
    %cst_32 = arith.constant dense<0.000000e+00> : vector<32x64xf32>
    %65 = tpu.matmul %62, %63, %cst_32 {dimension_numbers = #tpu.dot_dimension_numbers<[1], [1], [0], [0], [0, 0, 1, 0], [], []>} : vector<32x8xf32>, vector<64x8xf32>, vector<32x64xf32> -> vector<32x64xf32>
    %66 = arith.addf %65, %11 : vector<32x64xf32>
    %cst_33 = arith.constant dense<0xFF800000> : vector<32xf32>
    %67 = vector.multi_reduction <maximumf>, %66, %cst_33 [1] : vector<32x64xf32> to vector<32xf32>
    %68 = vector.shape_cast %67 : vector<32xf32> to vector<32x1xf32>
    %69 = vector.broadcast %68 : vector<32x1xf32> to vector<32x64xf32>
    %70 = arith.subf %66, %69 : vector<32x64xf32>
    %71 = math.exp %70 : vector<32x64xf32>
    %cst_34 = arith.constant dense<0.000000e+00> : vector<32xf32>
    %72 = vector.multi_reduction <add>, %71, %cst_34 [1] : vector<32x64xf32> to vector<32xf32>
    %73 = vector.shape_cast %72 : vector<32xf32> to vector<32x1xf32>
    %cst_35 = arith.constant dense<0.000000e+00> : vector<32x8xf32>
    %74 = tpu.matmul %71, %64, %cst_35 {dimension_numbers = #tpu.dot_dimension_numbers<[1], [0], [0], [1], [0, 0, 1, 1], [], []>} : vector<32x64xf32>, vector<64x8xf32>, vector<32x8xf32> -> vector<32x8xf32>
    %75 = tpu.reciprocal %73 : vector<32x1xf32> -> vector<32x1xf32>
    %76 = vector.broadcast %75 : vector<32x1xf32> to vector<32x8xf32>
    %77 = arith.mulf %74, %76 : vector<32x8xf32>
    %c16 = arith.constant 16 : index
    %c0_36 = arith.constant 0 : index
    %78 = vector.load %arg11[%c16, %c0_36] : memref<32x32xf32, #tpu.memory_space<vmem>>, vector<8x32xf32>
    %cst_37 = arith.constant dense<0.000000e+00> : vector<32x32xf32>
    %79 = tpu.matmul %77, %78, %cst_37 {dimension_numbers = #tpu.dot_dimension_numbers<[1], [0], [0], [1], [0, 0, 1, 1], [], []>} : vector<32x8xf32>, vector<8x32xf32>, vector<32x32xf32> -> vector<32x32xf32>
    %80 = arith.addf %61, %79 : vector<32x32xf32>
    %81 = vector.extract_strided_slice %20 {offsets = [0, 24], sizes = [32, 8], strides = [1, 1]} : vector<32x32xf32> to vector<32x8xf32>
    %82 = vector.extract_strided_slice %21 {offsets = [0, 24], sizes = [64, 8], strides = [1, 1]} : vector<64x32xf32> to vector<64x8xf32>
    %83 = vector.extract_strided_slice %22 {offsets = [0, 24], sizes = [64, 8], strides = [1, 1]} : vector<64x32xf32> to vector<64x8xf32>
    %cst_38 = arith.constant dense<0.000000e+00> : vector<32x64xf32>
    %84 = tpu.matmul %81, %82, %cst_38 {dimension_numbers = #tpu.dot_dimension_numbers<[1], [1], [0], [0], [0, 0, 1, 0], [], []>} : vector<32x8xf32>, vector<64x8xf32>, vector<32x64xf32> -> vector<32x64xf32>
    %85 = arith.addf %84, %11 : vector<32x64xf32>
    %cst_39 = arith.constant dense<0xFF800000> : vector<32xf32>
    %86 = vector.multi_reduction <maximumf>, %85, %cst_39 [1] : vector<32x64xf32> to vector<32xf32>
    %87 = vector.shape_cast %86 : vector<32xf32> to vector<32x1xf32>
    %88 = vector.broadcast %87 : vector<32x1xf32> to vector<32x64xf32>
    %89 = arith.subf %85, %88 : vector<32x64xf32>
    %90 = math.exp %89 : vector<32x64xf32>
    %cst_40 = arith.constant dense<0.000000e+00> : vector<32xf32>
    %91 = vector.multi_reduction <add>, %90, %cst_40 [1] : vector<32x64xf32> to vector<32xf32>
    %92 = vector.shape_cast %91 : vector<32xf32> to vector<32x1xf32>
    %cst_41 = arith.constant dense<0.000000e+00> : vector<32x8xf32>
    %93 = tpu.matmul %90, %83, %cst_41 {dimension_numbers = #tpu.dot_dimension_numbers<[1], [0], [0], [1], [0, 0, 1, 1], [], []>} : vector<32x64xf32>, vector<64x8xf32>, vector<32x8xf32> -> vector<32x8xf32>
    %94 = tpu.reciprocal %92 : vector<32x1xf32> -> vector<32x1xf32>
    %95 = vector.broadcast %94 : vector<32x1xf32> to vector<32x8xf32>
    %96 = arith.mulf %93, %95 : vector<32x8xf32>
    %c24 = arith.constant 24 : index
    %c0_42 = arith.constant 0 : index
    %97 = vector.load %arg11[%c24, %c0_42] : memref<32x32xf32, #tpu.memory_space<vmem>>, vector<8x32xf32>
    %cst_43 = arith.constant dense<0.000000e+00> : vector<32x32xf32>
    %98 = tpu.matmul %96, %97, %cst_43 {dimension_numbers = #tpu.dot_dimension_numbers<[1], [0], [0], [1], [0, 0, 1, 1], [], []>} : vector<32x8xf32>, vector<8x32xf32>, vector<32x32xf32> -> vector<32x32xf32>
    %99 = arith.addf %80, %98 : vector<32x32xf32>
    %c0_44 = arith.constant 0 : index
    %c0_45 = arith.constant 0 : index
    %100 = vector.load %arg12[%c0_44, %c0_45] : memref<1x32xf32, #tpu.memory_space<vmem>>, vector<1x32xf32>
    %101 = vector.shape_cast %100 : vector<1x32xf32> to vector<32xf32>
    %102 = vector.shape_cast %101 : vector<32xf32> to vector<1x32xf32>
    %103 = vector.broadcast %102 : vector<1x32xf32> to vector<32x32xf32>
    %104 = arith.addf %99, %103 : vector<32x32xf32>
    %c0_46 = arith.constant 0 : index
    %c0_47 = arith.constant 0 : index
    %105 = vector.load %arg13[%c0_46, %c0_47] : memref<1x32xf32, #tpu.memory_space<vmem>>, vector<1x32xf32>
    %106 = vector.shape_cast %105 : vector<1x32xf32> to vector<32xf32>
    %c0_48 = arith.constant 0 : index
    %c0_49 = arith.constant 0 : index
    %107 = vector.load %arg14[%c0_48, %c0_49] : memref<1x32xf32, #tpu.memory_space<vmem>>, vector<1x32xf32>
    %108 = vector.shape_cast %107 : vector<1x32xf32> to vector<32xf32>
    %109 = arith.addf %4, %104 : vector<32x32xf32>
    %cst_50 = arith.constant dense<0.000000e+00> : vector<32xf32>
    %110 = vector.multi_reduction <add>, %109, %cst_50 [1] : vector<32x32xf32> to vector<32xf32>
    %111 = vector.shape_cast %110 : vector<32xf32> to vector<32x1xf32>
    %cst_51 = arith.constant 3.200000e+01 : f32
    %112 = vector.broadcast %cst_51 : f32 to vector<32x1xf32>
    %113 = arith.divf %111, %112 : vector<32x1xf32>
    %114 = vector.broadcast %113 : vector<32x1xf32> to vector<32x32xf32>
    %115 = arith.subf %109, %114 : vector<32x32xf32>
    %116 = arith.mulf %115, %115 : vector<32x32xf32>
    %cst_52 = arith.constant dense<0.000000e+00> : vector<32xf32>
    %117 = vector.multi_reduction <add>, %116, %cst_52 [1] : vector<32x32xf32> to vector<32xf32>
    %118 = vector.shape_cast %117 : vector<32xf32> to vector<32x1xf32>
    %cst_53 = arith.constant 3.200000e+01 : f32
    %119 = vector.broadcast %cst_53 : f32 to vector<32x1xf32>
    %120 = arith.divf %118, %119 : vector<32x1xf32>
    %cst_54 = arith.constant 9.99999974E-6 : f32
    %121 = vector.broadcast %cst_54 : f32 to vector<32x1xf32>
    %122 = arith.addf %120, %121 : vector<32x1xf32>
    %123 = math.rsqrt %122 : vector<32x1xf32>
    %124 = vector.broadcast %123 : vector<32x1xf32> to vector<32x32xf32>
    %125 = arith.mulf %115, %124 : vector<32x32xf32>
    %126 = vector.shape_cast %106 : vector<32xf32> to vector<1x32xf32>
    %127 = vector.broadcast %126 : vector<1x32xf32> to vector<32x32xf32>
    %128 = arith.mulf %125, %127 : vector<32x32xf32>
    %129 = vector.shape_cast %108 : vector<32xf32> to vector<1x32xf32>
    %130 = vector.broadcast %129 : vector<1x32xf32> to vector<32x32xf32>
    %131 = arith.addf %128, %130 : vector<32x32xf32>
    %c0_55 = arith.constant 0 : index
    %c0_56 = arith.constant 0 : index
    %132 = vector.load %arg15[%c0_55, %c0_56] : memref<32x64xf32, #tpu.memory_space<vmem>>, vector<32x64xf32>
    %cst_57 = arith.constant dense<0.000000e+00> : vector<32x64xf32>
    %133 = tpu.matmul %131, %132, %cst_57 {dimension_numbers = #tpu.dot_dimension_numbers<[1], [0], [0], [1], [0, 0, 1, 1], [], []>} : vector<32x32xf32>, vector<32x64xf32>, vector<32x64xf32> -> vector<32x64xf32>
    %c0_58 = arith.constant 0 : index
    %c0_59 = arith.constant 0 : index
    %134 = vector.load %arg16[%c0_58, %c0_59] : memref<1x64xf32, #tpu.memory_space<vmem>>, vector<1x64xf32>
    %135 = vector.shape_cast %134 : vector<1x64xf32> to vector<64xf32>
    %136 = vector.shape_cast %135 : vector<64xf32> to vector<1x64xf32>
    %137 = vector.broadcast %136 : vector<1x64xf32> to vector<32x64xf32>
    %138 = arith.addf %133, %137 : vector<32x64xf32>
    %cst_60 = arith.constant 5.000000e-01 : f32
    %139 = vector.broadcast %cst_60 : f32 to vector<32x64xf32>
    %140 = arith.mulf %139, %138 : vector<32x64xf32>
    %cst_61 = arith.constant 0.707106769 : f32
    %141 = vector.broadcast %cst_61 : f32 to vector<32x64xf32>
    %142 = arith.mulf %138, %141 : vector<32x64xf32>
    %143 = math.erf %142 : vector<32x64xf32>
    %cst_62 = arith.constant 1.000000e+00 : f32
    %144 = vector.broadcast %cst_62 : f32 to vector<32x64xf32>
    %145 = arith.addf %144, %143 : vector<32x64xf32>
    %146 = arith.mulf %140, %145 : vector<32x64xf32>
    %c0_63 = arith.constant 0 : index
    %c0_64 = arith.constant 0 : index
    %147 = vector.load %arg17[%c0_63, %c0_64] : memref<64x32xf32, #tpu.memory_space<vmem>>, vector<64x32xf32>
    %cst_65 = arith.constant dense<0.000000e+00> : vector<32x32xf32>
    %148 = tpu.matmul %146, %147, %cst_65 {dimension_numbers = #tpu.dot_dimension_numbers<[1], [0], [0], [1], [0, 0, 1, 1], [], []>} : vector<32x64xf32>, vector<64x32xf32>, vector<32x32xf32> -> vector<32x32xf32>
    %c0_66 = arith.constant 0 : index
    %c0_67 = arith.constant 0 : index
    %149 = vector.load %arg18[%c0_66, %c0_67] : memref<1x32xf32, #tpu.memory_space<vmem>>, vector<1x32xf32>
    %150 = vector.shape_cast %149 : vector<1x32xf32> to vector<32xf32>
    %151 = vector.shape_cast %150 : vector<32xf32> to vector<1x32xf32>
    %152 = vector.broadcast %151 : vector<1x32xf32> to vector<32x32xf32>
    %153 = arith.addf %148, %152 : vector<32x32xf32>
    %c0_68 = arith.constant 0 : index
    %c0_69 = arith.constant 0 : index
    %154 = vector.load %arg19[%c0_68, %c0_69] : memref<1x32xf32, #tpu.memory_space<vmem>>, vector<1x32xf32>
    %155 = vector.shape_cast %154 : vector<1x32xf32> to vector<32xf32>
    %c0_70 = arith.constant 0 : index
    %c0_71 = arith.constant 0 : index
    %156 = vector.load %arg20[%c0_70, %c0_71] : memref<1x32xf32, #tpu.memory_space<vmem>>, vector<1x32xf32>
    %157 = vector.shape_cast %156 : vector<1x32xf32> to vector<32xf32>
    %158 = arith.addf %131, %153 : vector<32x32xf32>
    %cst_72 = arith.constant dense<0.000000e+00> : vector<32xf32>
    %159 = vector.multi_reduction <add>, %158, %cst_72 [1] : vector<32x32xf32> to vector<32xf32>
    %160 = vector.shape_cast %159 : vector<32xf32> to vector<32x1xf32>
    %cst_73 = arith.constant 3.200000e+01 : f32
    %161 = vector.broadcast %cst_73 : f32 to vector<32x1xf32>
    %162 = arith.divf %160, %161 : vector<32x1xf32>
    %163 = vector.broadcast %162 : vector<32x1xf32> to vector<32x32xf32>
    %164 = arith.subf %158, %163 : vector<32x32xf32>
    %165 = arith.mulf %164, %164 : vector<32x32xf32>
    %cst_74 = arith.constant dense<0.000000e+00> : vector<32xf32>
    %166 = vector.multi_reduction <add>, %165, %cst_74 [1] : vector<32x32xf32> to vector<32xf32>
    %167 = vector.shape_cast %166 : vector<32xf32> to vector<32x1xf32>
    %cst_75 = arith.constant 3.200000e+01 : f32
    %168 = vector.broadcast %cst_75 : f32 to vector<32x1xf32>
    %169 = arith.divf %167, %168 : vector<32x1xf32>
    %cst_76 = arith.constant 9.99999974E-6 : f32
    %170 = vector.broadcast %cst_76 : f32 to vector<32x1xf32>
    %171 = arith.addf %169, %170 : vector<32x1xf32>
    %172 = math.rsqrt %171 : vector<32x1xf32>
    %173 = vector.broadcast %172 : vector<32x1xf32> to vector<32x32xf32>
    %174 = arith.mulf %164, %173 : vector<32x32xf32>
    %175 = vector.shape_cast %155 : vector<32xf32> to vector<1x32xf32>
    %176 = vector.broadcast %175 : vector<1x32xf32> to vector<32x32xf32>
    %177 = arith.mulf %174, %176 : vector<32x32xf32>
    %178 = vector.shape_cast %157 : vector<32xf32> to vector<1x32xf32>
    %179 = vector.broadcast %178 : vector<1x32xf32> to vector<32x32xf32>
    %180 = arith.addf %177, %179 : vector<32x32xf32>
    %c0_77 = arith.constant 0 : index
    %c0_78 = arith.constant 0 : index
    %c0_79 = arith.constant 0 : index
    %181 = vector.load %arg21[%c0_77, %c0_78, %c0_79] : memref<1x32x32xf32, #tpu.memory_space<vmem>>, vector<1x32x32xf32>
    %182 = vector.shape_cast %181 : vector<1x32x32xf32> to vector<32x32xf32>
    %183 = vector.shape_cast %180 : vector<32x32xf32> to vector<1x32x32xf32>
    tpu.vector_store %arg21[%c0_77, %c0_78, %c0_79], %183 {strides = array<i32>} : memref<1x32x32xf32, #tpu.memory_space<vmem>>, vector<1x32x32xf32>,
    return
  }
  func.func @transform_0(%arg0: i32, %arg1: i32) -> (i32, i32, i32) {
    %c0_i32 = arith.constant 0 : i32
    %c0_i32_0 = arith.constant 0 : i32
    %c0_i32_1 = arith.constant 0 : i32
    return %arg0, %c0_i32, %c0_i32_0 : i32, i32, i32
  }
  func.func @transform_1(%arg0: i32, %arg1: i32) -> (i32, i32, i32) {
    %c0_i32 = arith.constant 0 : i32
    %c0_i32_0 = arith.constant 0 : i32
    return %arg0, %arg1, %c0_i32 : i32, i32, i32
  }
  func.func @transform_2(%arg0: i32, %arg1: i32) -> (i32, i32, i32, i32) {
    %c0_i32 = arith.constant 0 : i32
    %c0_i32_0 = arith.constant 0 : i32
    %c0_i32_1 = arith.constant 0 : i32
    return %arg0, %c0_i32, %arg1, %c0_i32_0 : i32, i32, i32, i32
  }
  func.func @transform_3(%arg0: i32, %arg1: i32) -> (i32, i32) {
    %c0_i32 = arith.constant 0 : i32
    %c0_i32_0 = arith.constant 0 : i32
    %c0_i32_1 = arith.constant 0 : i32
    return %c0_i32, %c0_i32_0 : i32, i32
  }
  func.func @transform_4(%arg0: i32, %arg1: i32) -> (i32, i32) {
    %c0_i32 = arith.constant 0 : i32
    %c0_i32_0 = arith.constant 0 : i32
    %c0_i32_1 = arith.constant 0 : i32
    return %c0_i32, %c0_i32_0 : i32, i32
  }
  func.func @transform_5(%arg0: i32, %arg1: i32) -> (i32, i32) {
    %c0_i32 = arith.constant 0 : i32
    %c0_i32_0 = arith.constant 0 : i32
    %c0_i32_1 = arith.constant 0 : i32
    return %c0_i32, %c0_i32_0 : i32, i32
  }
  func.func @transform_6(%arg0: i32, %arg1: i32) -> (i32, i32) {
    %c0_i32 = arith.constant 0 : i32
    %c0_i32_0 = arith.constant 0 : i32
    %c0_i32_1 = arith.constant 0 : i32
    return %c0_i32, %c0_i32_0 : i32, i32
  }
  func.func @transform_7(%arg0: i32, %arg1: i32) -> (i32, i32) {
    %c0_i32 = arith.constant 0 : i32
    %c0_i32_0 = arith.constant 0 : i32
    %c0_i32_1 = arith.constant 0 : i32
    return %c0_i32, %c0_i32_0 : i32, i32
  }
  func.func @transform_8(%arg0: i32, %arg1: i32) -> (i32, i32) {
    %c0_i32 = arith.constant 0 : i32
    %c0_i32_0 = arith.constant 0 : i32
    %c0_i32_1 = arith.constant 0 : i32
    return %c0_i32, %c0_i32_0 : i32, i32
  }
  func.func @transform_9(%arg0: i32, %arg1: i32) -> (i32, i32) {
    %c0_i32 = arith.constant 0 : i32
    %c0_i32_0 = arith.constant 0 : i32
    %c0_i32_1 = arith.constant 0 : i32
    return %c0_i32, %c0_i32_0 : i32, i32
  }
  func.func @transform_10(%arg0: i32, %arg1: i32) -> (i32, i32) {
    %c0_i32 = arith.constant 0 : i32
    %c0_i32_0 = arith.constant 0 : i32
    %c0_i32_1 = arith.constant 0 : i32
    return %c0_i32, %c0_i32_0 : i32, i32
  }
  func.func @transform_11(%arg0: i32, %arg1: i32) -> (i32, i32) {
    %c0_i32 = arith.constant 0 : i32
    %c0_i32_0 = arith.constant 0 : i32
    %c0_i32_1 = arith.constant 0 : i32
    return %c0_i32, %c0_i32_0 : i32, i32
  }
  func.func @transform_12(%arg0: i32, %arg1: i32) -> (i32, i32) {
    %c0_i32 = arith.constant 0 : i32
    %c0_i32_0 = arith.constant 0 : i32
    %c0_i32_1 = arith.constant 0 : i32
    return %c0_i32, %c0_i32_0 : i32, i32
  }
  func.func @transform_13(%arg0: i32, %arg1: i32) -> (i32, i32) {
    %c0_i32 = arith.constant 0 : i32
    %c0_i32_0 = arith.constant 0 : i32
    %c0_i32_1 = arith.constant 0 : i32
    return %c0_i32, %c0_i32_0 : i32, i32
  }
  func.func @transform_14(%arg0: i32, %arg1: i32) -> (i32, i32) {
    %c0_i32 = arith.constant 0 : i32
    %c0_i32_0 = arith.constant 0 : i32
    %c0_i32_1 = arith.constant 0 : i32
    return %c0_i32, %c0_i32_0 : i32, i32
  }
  func.func @transform_15(%arg0: i32, %arg1: i32) -> (i32, i32) {
    %c0_i32 = arith.constant 0 : i32
    %c0_i32_0 = arith.constant 0 : i32
    %c0_i32_1 = arith.constant 0 : i32
    return %c0_i32, %c0_i32_0 : i32, i32
  }
  func.func @transform_16(%arg0: i32, %arg1: i32) -> (i32, i32) {
    %c0_i32 = arith.constant 0 : i32
    %c0_i32_0 = arith.constant 0 : i32
    %c0_i32_1 = arith.constant 0 : i32
    return %c0_i32, %c0_i32_0 : i32, i32
  }
  func.func @transform_17(%arg0: i32, %arg1: i32) -> (i32, i32) {
    %c0_i32 = arith.constant 0 : i32
    %c0_i32_0 = arith.constant 0 : i32
    %c0_i32_1 = arith.constant 0 : i32
    return %c0_i32, %c0_i32_0 : i32, i32
  }
  func.func @transform_18(%arg0: i32, %arg1: i32) -> (i32, i32) {
    %c0_i32 = arith.constant 0 : i32
    %c0_i32_0 = arith.constant 0 : i32
    %c0_i32_1 = arith.constant 0 : i32
    return %c0_i32, %c0_i32_0 : i32, i32
  }
  func.func @transform_19(%arg0: i32, %arg1: i32) -> (i32, i32, i32) {
    %c0_i32 = arith.constant 0 : i32
    %c0_i32_0 = arith.constant 0 : i32
    return %arg0, %arg1, %c0_i32 : i32, i32, i32
  }
}

</mosaic_0001>

<llo_original>
// kernel: tpu_custom_call.1
$region0: #{tpu_custom_call.1}
  #allocation0 [shape = 'u32[]', space=smem, size = 0x4, offset = 0x4, fixed_abs, tag = 'smem constant byte address 0x4 - core index']
  #allocation1 [shape = 'u32[144,128]{1,0:T(1,128)}', space=vmem, size = 0x12000, scoped, tag = 'internal scratch']
  #allocation2 [shape = 'f32[64,32]{1,0:T(8,128)}', space=vmem, size = 0x8000, scoped, tag = 'scratch operand']
  #allocation3 [shape = 'f32[64,32]{1,0:T(8,128)}', space=vmem, size = 0x8000, scoped, tag = 'scratch operand']
  %s0 = inlined_call_operand.vmem [shape: f32[2,64,32], index: 0, kind: input, shape index: {}]
  %s1 = inlined_call_operand.vmem [shape: f32[2,64,32], index: 1, kind: input, shape index: {}]
  %s2 = inlined_call_operand.vmem [shape: s8[2,1,64,64], index: 2, kind: input, shape index: {}]
  %s3 = inlined_call_operand.vmem [shape: f32[32,32], index: 3, kind: input, shape index: {}]
  %s4 = inlined_call_operand.vmem [shape: f32[1,32], index: 4, kind: input, shape index: {}]
  %s5 = inlined_call_operand.vmem [shape: f32[32,32], index: 5, kind: input, shape index: {}]
  %s6 = inlined_call_operand.vmem [shape: f32[1,32], index: 6, kind: input, shape index: {}]
  %s7 = inlined_call_operand.vmem [shape: f32[32,32], index: 7, kind: input, shape index: {}]
  %s8 = inlined_call_operand.vmem [shape: f32[1,32], index: 8, kind: input, shape index: {}]
  %s9 = inlined_call_operand.vmem [shape: f32[32,32], index: 9, kind: input, shape index: {}]
  %s10 = inlined_call_operand.vmem [shape: f32[1,32], index: 10, kind: input, shape index: {}]
  %s11 = inlined_call_operand.vmem [shape: f32[1,32], index: 11, kind: input, shape index: {}]
  %s12 = inlined_call_operand.vmem [shape: f32[1,32], index: 12, kind: input, shape index: {}]
  %s13 = inlined_call_operand.vmem [shape: f32[32,64], index: 13, kind: input, shape index: {}]
  %s14 = inlined_call_operand.vmem [shape: f32[1,64], index: 14, kind: input, shape index: {}]
  %s15 = inlined_call_operand.vmem [shape: f32[64,32], index: 15, kind: input, shape index: {}]
  %s16 = inlined_call_operand.vmem [shape: f32[1,32], index: 16, kind: input, shape index: {}]
  %s17 = inlined_call_operand.vmem [shape: f32[1,32], index: 17, kind: input, shape index: {}]
  %s18 = inlined_call_operand.vmem [shape: f32[1,32], index: 18, kind: input, shape index: {}]
  %s19 = inlined_call_operand.vmem [shape: f32[2,64,32], index: 19, kind: output, shape index: {}]
  %s20 = sld [smem:[#allocation0]]
  $region113: #{tpu_custom_call.1} parent=0
    _
  %s22 = ssub.s32 1, %s20
  %s23 = scalar_select 0, %s22, %s20
  loop: start=0, step=1, limit=6
  $region2: #{tpu_custom_call.1} parent=0 // loop_pre_header
    _
  $region3: #{tpu_custom_call.1} parent=0 // loop_header
    %s25 = sphi 0, %s29
    %p26 = scmp.ge.s32.totalorder %s25, 6
    %s32 = sphi 0, %s44
    %s33 = sphi 0, %s40
    %s34 = sphi 0, %s32
    %s35 = sphi 0, %s33
    %s36 = sphi 0, %s34
    %s37 = sphi 0, %s35
    %s47 = sphi 0, %s49
    %s50 = sphi 0, %s47
    %s51 = sphi 0, %s50
    %s67 = sphi 0, %s51
    %s75 = sphi 0, %s77
    %s78 = sphi 0, %s75
    %s79 = sphi 0, %s78
    %s95 = sphi 0, %s79
    %s103 = sphi 0, %s105
    %s106 = sphi 0, %s103
    %s107 = sphi 0, %s106
    %s123 = sphi 0, %s107
    %s127 = sphi 0, %s127
    %s129 = sphi 0, %s127
    %s130 = sphi 0, %s129
    %s144 = sphi 0, %s130
    %s148 = sphi 0, %s148
    %s150 = sphi 0, %s148
    %s151 = sphi 0, %s150
    %s165 = sphi 0, %s151
    %s169 = sphi 0, %s169
    %s171 = sphi 0, %s169
    %s172 = sphi 0, %s171
    %s186 = sphi 0, %s172
    %s190 = sphi 0, %s190
    %s192 = sphi 0, %s190
    %s193 = sphi 0, %s192
    %s207 = sphi 0, %s193
    %s211 = sphi 0, %s211
    %s213 = sphi 0, %s211
    %s214 = sphi 0, %s213
    %s228 = sphi 0, %s214
    %s232 = sphi 0, %s232
    %s234 = sphi 0, %s232
    %s235 = sphi 0, %s234
    %s249 = sphi 0, %s235
    %s253 = sphi 0, %s253
    %s255 = sphi 0, %s253
    %s256 = sphi 0, %s255
    %s270 = sphi 0, %s256
    %s274 = sphi 0, %s274
    %s276 = sphi 0, %s274
    %s277 = sphi 0, %s276
    %s291 = sphi 0, %s277
    %s295 = sphi 0, %s295
    %s297 = sphi 0, %s295
    %s298 = sphi 0, %s297
    %s312 = sphi 0, %s298
    %s316 = sphi 0, %s316
    %s318 = sphi 0, %s316
    %s319 = sphi 0, %s318
    %s333 = sphi 0, %s319
    %s337 = sphi 0, %s337
    %s339 = sphi 0, %s337
    %s340 = sphi 0, %s339
    %s354 = sphi 0, %s340
    %s358 = sphi 0, %s358
    %s360 = sphi 0, %s358
    %s361 = sphi 0, %s360
    %s375 = sphi 0, %s361
    %s379 = sphi 0, %s379
    %s381 = sphi 0, %s379
    %s382 = sphi 0, %s381
    %s396 = sphi 0, %s382
    %s400 = sphi 0, %s400
    %s402 = sphi 0, %s400
    %s403 = sphi 0, %s402
    %s417 = sphi 0, %s403
    %s421 = sphi 0, %s421
    %s423 = sphi 0, %s421
    %s424 = sphi 0, %s423
    %s438 = sphi 0, %s424
    %s442 = sphi 0, %s442
    %s444 = sphi 0, %s442
    %s445 = sphi 0, %s444
    %s459 = sphi 0, %s445
    %s467 = sphi 0, %s469
    %s470 = sphi 0, %s467
    %s471 = sphi 0, %s470
    %s487 = sphi 0, %s471
  $region4: #{tpu_custom_call.1} parent=0 // loop_header_branch
    %28 = sbr.rel (%p26) target = $region8
  $region5: #{tpu_custom_call.1} parent=0 // loop_body
    %s30 = ssub.s32 %s25, 1
    %s31 = ssub.s32 %s25, 2
    %s38 = sadd.s32 1, %s33
    %p39 = scmp.ge.s32.totalorder %s38, 2
    %s40 = scalar_select %p39, 0, %s38
    %s41 = sadd.s32 1, %s32
    %s42 = scalar_select %p39, %s41, %s32
    %p43 = scmp.ge.s32.totalorder %s42, 2
    %s44 = scalar_select %p43, 0, %s42
    %s45 = ssub.s32 %s32, %s44
    %p46 = scmp.eq.s32.totalorder %s45, 0
    %s48 = sadd.s32 %s47, 1
    %s49 = scalar_select %p46, %s47, %s48
    %p52 = pneg %p46
    %p53 = scmp.eq.s32.totalorder %s25, 3
    %p54 = por %p52, %p53
    %p55 = scmp.ne.s32.totalorder %s47, %s50
    %p56 = scmp.eq.s32.totalorder %s25, 0
    %p57 = por %p55, %p56
    %p58 = scmp.ne.s32.totalorder %s47, %s50
    %p59 = scmp.eq.s32.totalorder %s30, 3
    %p60 = por %p58, %p59
    %p61 = scmp.ne.s32.totalorder %s50, %s51
    %p62 = scmp.eq.s32.totalorder %s30, 0
    %p63 = por %p61, %p62
    %p64 = scmp.ne.s32.totalorder %s50, %s51
    %p65 = scmp.eq.s32.totalorder %s31, 3
    %p66 = por %p64, %p65
    %p68 = scmp.ne.s32.totalorder %s51, %s67
    %p69 = scmp.eq.s32.totalorder %s31, 0
    %p70 = por %p68, %p69
    %s71 = ssub.s32 %s32, %s44
    %s72 = ssub.s32 %s33, %s40
    %s73 = sor.u32 %s71, %s72
    %p74 = scmp.eq.s32.totalorder %s73, 0
    %s76 = sadd.s32 %s75, 1
    %s77 = scalar_select %p74, %s75, %s76
    %p80 = pneg %p74
    %p81 = scmp.eq.s32.totalorder %s25, 3
    %p82 = por %p80, %p81
    %p83 = scmp.ne.s32.totalorder %s75, %s78
    %p84 = scmp.eq.s32.totalorder %s25, 0
    %p85 = por %p83, %p84
    %p86 = scmp.ne.s32.totalorder %s75, %s78
    %p87 = scmp.eq.s32.totalorder %s30, 3
    %p88 = por %p86, %p87
    %p89 = scmp.ne.s32.totalorder %s78, %s79
    %p90 = scmp.eq.s32.totalorder %s30, 0
    %p91 = por %p89, %p90
    %p92 = scmp.ne.s32.totalorder %s78, %s79
    %p93 = scmp.eq.s32.totalorder %s31, 3
    %p94 = por %p92, %p93
    %p96 = scmp.ne.s32.totalorder %s79, %s95
    %p97 = scmp.eq.s32.totalorder %s31, 0
    %p98 = por %p96, %p97
    %s99 = ssub.s32 %s32, %s44
    %s100 = ssub.s32 %s33, %s40
    %s101 = sor.u32 %s99, %s100
    %p102 = scmp.eq.s32.totalorder %s101, 0
    %s104 = sadd.s32 %s103, 1
    %s105 = scalar_select %p102, %s103, %s104
    %p108 = pneg %p102
    %p109 = scmp.eq.s32.totalorder %s25, 3
    %p110 = por %p108, %p109
    %p111 = scmp.ne.s32.totalorder %s103, %s106
    %p112 = scmp.eq.s32.totalorder %s25, 0
    %p113 = por %p111, %p112
    %p114 = scmp.ne.s32.totalorder %s103, %s106
    %p115 = scmp.eq.s32.totalorder %s30, 3
    %p116 = por %p114, %p115
    %p117 = scmp.ne.s32.totalorder %s106, %s107
    %p118 = scmp.eq.s32.totalorder %s30, 0
    %p119 = por %p117, %p118
    %p120 = scmp.ne.s32.totalorder %s106, %s107
    %p121 = scmp.eq.s32.totalorder %s31, 3
    %p122 = por %p120, %p121
    %p124 = scmp.ne.s32.totalorder %s107, %s123
    %p125 = scmp.eq.s32.totalorder %s31, 0
    %p126 = por %p124, %p125
    %s128 = sadd.s32 %s127, 1
    %p131 = scmp.eq.s32.totalorder %s25, 3
    %p132 = scmp.ne.s32.totalorder %s127, %s129
    %p133 = scmp.eq.s32.totalorder %s25, 0
    %p134 = por %p132, %p133
    %p135 = scmp.ne.s32.totalorder %s127, %s129
    %p136 = scmp.eq.s32.totalorder %s30, 3
    %p137 = por %p135, %p136
    %p138 = scmp.ne.s32.totalorder %s129, %s130
    %p139 = scmp.eq.s32.totalorder %s30, 0
    %p140 = por %p138, %p139
    %p141 = scmp.ne.s32.totalorder %s129, %s130
    %p142 = scmp.eq.s32.totalorder %s31, 3
    %p143 = por %p141, %p142
    %p145 = scmp.ne.s32.totalorder %s130, %s144
    %p146 = scmp.eq.s32.totalorder %s31, 0
    %p147 = por %p145, %p146
    %s149 = sadd.s32 %s148, 1
    %p152 = scmp.eq.s32.totalorder %s25, 3
    %p153 = scmp.ne.s32.totalorder %s148, %s150
    %p154 = scmp.eq.s32.totalorder %s25, 0
    %p155 = por %p153, %p154
    %p156 = scmp.ne.s32.totalorder %s148, %s150
    %p157 = scmp.eq.s32.totalorder %s30, 3
    %p158 = por %p156, %p157
    %p159 = scmp.ne.s32.totalorder %s150, %s151
    %p160 = scmp.eq.s32.totalorder %s30, 0
    %p161 = por %p159, %p160
    %p162 = scmp.ne.s32.totalorder %s150, %s151
    %p163 = scmp.eq.s32.totalorder %s31, 3
    %p164 = por %p162, %p163
    %p166 = scmp.ne.s32.totalorder %s151, %s165
    %p167 = scmp.eq.s32.totalorder %s31, 0
    %p168 = por %p166, %p167
    %s170 = sadd.s32 %s169, 1
    %p173 = scmp.eq.s32.totalorder %s25, 3
    %p174 = scmp.ne.s32.totalorder %s169, %s171
    %p175 = scmp.eq.s32.totalorder %s25, 0
    %p176 = por %p174, %p175
    %p177 = scmp.ne.s32.totalorder %s169, %s171
    %p178 = scmp.eq.s32.totalorder %s30, 3
    %p179 = por %p177, %p178
    %p180 = scmp.ne.s32.totalorder %s171, %s172
    %p181 = scmp.eq.s32.totalorder %s30, 0
    %p182 = por %p180, %p181
    %p183 = scmp.ne.s32.totalorder %s171, %s172
    %p184 = scmp.eq.s32.totalorder %s31, 3
    %p185 = por %p183, %p184
    %p187 = scmp.ne.s32.totalorder %s172, %s186
    %p188 = scmp.eq.s32.totalorder %s31, 0
    %p189 = por %p187, %p188
    %s191 = sadd.s32 %s190, 1
    %p194 = scmp.eq.s32.totalorder %s25, 3
    %p195 = scmp.ne.s32.totalorder %s190, %s192
    %p196 = scmp.eq.s32.totalorder %s25, 0
    %p197 = por %p195, %p196
    %p198 = scmp.ne.s32.totalorder %s190, %s192
    %p199 = scmp.eq.s32.totalorder %s30, 3
    %p200 = por %p198, %p199
    %p201 = scmp.ne.s32.totalorder %s192, %s193
    %p202 = scmp.eq.s32.totalorder %s30, 0
    %p203 = por %p201, %p202
    %p204 = scmp.ne.s32.totalorder %s192, %s193
    %p205 = scmp.eq.s32.totalorder %s31, 3
    %p206 = por %p204, %p205
    %p208 = scmp.ne.s32.totalorder %s193, %s207
    %p209 = scmp.eq.s32.totalorder %s31, 0
    %p210 = por %p208, %p209
    %s212 = sadd.s32 %s211, 1
    %p215 = scmp.eq.s32.totalorder %s25, 3
    %p216 = scmp.ne.s32.totalorder %s211, %s213
    %p217 = scmp.eq.s32.totalorder %s25, 0
    %p218 = por %p216, %p217
    %p219 = scmp.ne.s32.totalorder %s211, %s213
    %p220 = scmp.eq.s32.totalorder %s30, 3
    %p221 = por %p219, %p220
    %p222 = scmp.ne.s32.totalorder %s213, %s214
    %p223 = scmp.eq.s32.totalorder %s30, 0
    %p224 = por %p222, %p223
    %p225 = scmp.ne.s32.totalorder %s213, %s214
    %p226 = scmp.eq.s32.totalorder %s31, 3
    %p227 = por %p225, %p226
    %p229 = scmp.ne.s32.totalorder %s214, %s228
    %p230 = scmp.eq.s32.totalorder %s31, 0
    %p231 = por %p229, %p230
    %s233 = sadd.s32 %s232, 1
    %p236 = scmp.eq.s32.totalorder %s25, 3
    %p237 = scmp.ne.s32.totalorder %s232, %s234
    %p238 = scmp.eq.s32.totalorder %s25, 0
    %p239 = por %p237, %p238
    %p240 = scmp.ne.s32.totalorder %s232, %s234
    %p241 = scmp.eq.s32.totalorder %s30, 3
    %p242 = por %p240, %p241
    %p243 = scmp.ne.s32.totalorder %s234, %s235
    %p244 = scmp.eq.s32.totalorder %s30, 0
    %p245 = por %p243, %p244
    %p246 = scmp.ne.s32.totalorder %s234, %s235
    %p247 = scmp.eq.s32.totalorder %s31, 3
    %p248 = por %p246, %p247
    %p250 = scmp.ne.s32.totalorder %s235, %s249
    %p251 = scmp.eq.s32.totalorder %s31, 0
    %p252 = por %p250, %p251
    %s254 = sadd.s32 %s253, 1
    %p257 = scmp.eq.s32.totalorder %s25, 3
    %p258 = scmp.ne.s32.totalorder %s253, %s255
    %p259 = scmp.eq.s32.totalorder %s25, 0
    %p260 = por %p258, %p259
    %p261 = scmp.ne.s32.totalorder %s253, %s255
    %p262 = scmp.eq.s32.totalorder %s30, 3
    %p263 = por %p261, %p262
    %p264 = scmp.ne.s32.totalorder %s255, %s256
    %p265 = scmp.eq.s32.totalorder %s30, 0
    %p266 = por %p264, %p265
    %p267 = scmp.ne.s32.totalorder %s255, %s256
    %p268 = scmp.eq.s32.totalorder %s31, 3
    %p269 = por %p267, %p268
    %p271 = scmp.ne.s32.totalorder %s256, %s270
    %p272 = scmp.eq.s32.totalorder %s31, 0
    %p273 = por %p271, %p272
    %s275 = sadd.s32 %s274, 1
    %p278 = scmp.eq.s32.totalorder %s25, 3
    %p279 = scmp.ne.s32.totalorder %s274, %s276
    %p280 = scmp.eq.s32.totalorder %s25, 0
    %p281 = por %p279, %p280
    %p282 = scmp.ne.s32.totalorder %s274, %s276
    %p283 = scmp.eq.s32.totalorder %s30, 3
    %p284 = por %p282, %p283
    %p285 = scmp.ne.s32.totalorder %s276, %s277
    %p286 = scmp.eq.s32.totalorder %s30, 0
    %p287 = por %p285, %p286
    %p288 = scmp.ne.s32.totalorder %s276, %s277
    %p289 = scmp.eq.s32.totalorder %s31, 3
    %p290 = por %p288, %p289
    %p292 = scmp.ne.s32.totalorder %s277, %s291
    %p293 = scmp.eq.s32.totalorder %s31, 0
    %p294 = por %p292, %p293
    %s296 = sadd.s32 %s295, 1
    %p299 = scmp.eq.s32.totalorder %s25, 3
    %p300 = scmp.ne.s32.totalorder %s295, %s297
    %p301 = scmp.eq.s32.totalorder %s25, 0
    %p302 = por %p300, %p301
    %p303 = scmp.ne.s32.totalorder %s295, %s297
    %p304 = scmp.eq.s32.totalorder %s30, 3
    %p305 = por %p303, %p304
    %p306 = scmp.ne.s32.totalorder %s297, %s298
    %p307 = scmp.eq.s32.totalorder %s30, 0
    %p308 = por %p306, %p307
    %p309 = scmp.ne.s32.totalorder %s297, %s298
    %p310 = scmp.eq.s32.totalorder %s31, 3
    %p311 = por %p309, %p310
    %p313 = scmp.ne.s32.totalorder %s298, %s312
    %p314 = scmp.eq.s32.totalorder %s31, 0
    %p315 = por %p313, %p314
    %s317 = sadd.s32 %s316, 1
    %p320 = scmp.eq.s32.totalorder %s25, 3
    %p321 = scmp.ne.s32.totalorder %s316, %s318
    %p322 = scmp.eq.s32.totalorder %s25, 0
    %p323 = por %p321, %p322
    %p324 = scmp.ne.s32.totalorder %s316, %s318
    %p325 = scmp.eq.s32.totalorder %s30, 3
    %p326 = por %p324, %p325
    %p327 = scmp.ne.s32.totalorder %s318, %s319
    %p328 = scmp.eq.s32.totalorder %s30, 0
    %p329 = por %p327, %p328
    %p330 = scmp.ne.s32.totalorder %s318, %s319
    %p331 = scmp.eq.s32.totalorder %s31, 3
    %p332 = por %p330, %p331
    %p334 = scmp.ne.s32.totalorder %s319, %s333
    %p335 = scmp.eq.s32.totalorder %s31, 0
    %p336 = por %p334, %p335
    %s338 = sadd.s32 %s337, 1
    %p341 = scmp.eq.s32.totalorder %s25, 3
    %p342 = scmp.ne.s32.totalorder %s337, %s339
    %p343 = scmp.eq.s32.totalorder %s25, 0
    %p344 = por %p342, %p343
    %p345 = scmp.ne.s32.totalorder %s337, %s339
    %p346 = scmp.eq.s32.totalorder %s30, 3
    %p347 = por %p345, %p346
    %p348 = scmp.ne.s32.totalorder %s339, %s340
    %p349 = scmp.eq.s32.totalorder %s30, 0
    %p350 = por %p348, %p349
    %p351 = scmp.ne.s32.totalorder %s339, %s340
    %p352 = scmp.eq.s32.totalorder %s31, 3
    %p353 = por %p351, %p352
    %p355 = scmp.ne.s32.totalorder %s340, %s354
    %p356 = scmp.eq.s32.totalorder %s31, 0
    %p357 = por %p355, %p356
    %s359 = sadd.s32 %s358, 1
    %p362 = scmp.eq.s32.totalorder %s25, 3
    %p363 = scmp.ne.s32.totalorder %s358, %s360
    %p364 = scmp.eq.s32.totalorder %s25, 0
    %p365 = por %p363, %p364
    %p366 = scmp.ne.s32.totalorder %s358, %s360
    %p367 = scmp.eq.s32.totalorder %s30, 3
    %p368 = por %p366, %p367
    %p369 = scmp.ne.s32.totalorder %s360, %s361
    %p370 = scmp.eq.s32.totalorder %s30, 0
    %p371 = por %p369, %p370
    %p372 = scmp.ne.s32.totalorder %s360, %s361
    %p373 = scmp.eq.s32.totalorder %s31, 3
    %p374 = por %p372, %p373
    %p376 = scmp.ne.s32.totalorder %s361, %s375
    %p377 = scmp.eq.s32.totalorder %s31, 0
    %p378 = por %p376, %p377
    %s380 = sadd.s32 %s379, 1
    %p383 = scmp.eq.s32.totalorder %s25, 3
    %p384 = scmp.ne.s32.totalorder %s379, %s381
    %p385 = scmp.eq.s32.totalorder %s25, 0
    %p386 = por %p384, %p385
    %p387 = scmp.ne.s32.totalorder %s379, %s381
    %p388 = scmp.eq.s32.totalorder %s30, 3
    %p389 = por %p387, %p388
    %p390 = scmp.ne.s32.totalorder %s381, %s382
    %p391 = scmp.eq.s32.totalorder %s30, 0
    %p392 = por %p390, %p391
    %p393 = scmp.ne.s32.totalorder %s381, %s382
    %p394 = scmp.eq.s32.totalorder %s31, 3
    %p395 = por %p393, %p394
    %p397 = scmp.ne.s32.totalorder %s382, %s396
    %p398 = scmp.eq.s32.totalorder %s31, 0
    %p399 = por %p397, %p398
    %s401 = sadd.s32 %s400, 1
    %p404 = scmp.eq.s32.totalorder %s25, 3
    %p405 = scmp.ne.s32.totalorder %s400, %s402
    %p406 = scmp.eq.s32.totalorder %s25, 0
    %p407 = por %p405, %p406
    %p408 = scmp.ne.s32.totalorder %s400, %s402
    %p409 = scmp.eq.s32.totalorder %s30, 3
    %p410 = por %p408, %p409
    %p411 = scmp.ne.s32.totalorder %s402, %s403
    %p412 = scmp.eq.s32.totalorder %s30, 0
    %p413 = por %p411, %p412
    %p414 = scmp.ne.s32.totalorder %s402, %s403
    %p415 = scmp.eq.s32.totalorder %s31, 3
    %p416 = por %p414, %p415
    %p418 = scmp.ne.s32.totalorder %s403, %s417
    %p419 = scmp.eq.s32.totalorder %s31, 0
    %p420 = por %p418, %p419
    %s422 = sadd.s32 %s421, 1
    %p425 = scmp.eq.s32.totalorder %s25, 3
    %p426 = scmp.ne.s32.totalorder %s421, %s423
    %p427 = scmp.eq.s32.totalorder %s25, 0
    %p428 = por %p426, %p427
    %p429 = scmp.ne.s32.totalorder %s421, %s423
    %p430 = scmp.eq.s32.totalorder %s30, 3
    %p431 = por %p429, %p430
    %p432 = scmp.ne.s32.totalorder %s423, %s424
    %p433 = scmp.eq.s32.totalorder %s30, 0
    %p434 = por %p432, %p433
    %p435 = scmp.ne.s32.totalorder %s423, %s424
    %p436 = scmp.eq.s32.totalorder %s31, 3
    %p437 = por %p435, %p436
    %p439 = scmp.ne.s32.totalorder %s424, %s438
    %p440 = scmp.eq.s32.totalorder %s31, 0
    %p441 = por %p439, %p440
    %s443 = sadd.s32 %s442, 1
    %p446 = scmp.eq.s32.totalorder %s25, 3
    %p447 = scmp.ne.s32.totalorder %s442, %s444
    %p448 = scmp.eq.s32.totalorder %s25, 0
    %p449 = por %p447, %p448
    %p450 = scmp.ne.s32.totalorder %s442, %s444
    %p451 = scmp.eq.s32.totalorder %s30, 3
    %p452 = por %p450, %p451
    %p453 = scmp.ne.s32.totalorder %s444, %s445
    %p454 = scmp.eq.s32.totalorder %s30, 0
    %p455 = por %p453, %p454
    %p456 = scmp.ne.s32.totalorder %s444, %s445
    %p457 = scmp.eq.s32.totalorder %s31, 3
    %p458 = por %p456, %p457
    %p460 = scmp.ne.s32.totalorder %s445, %s459
    %p461 = scmp.eq.s32.totalorder %s31, 0
    %p462 = por %p460, %p461
    %s463 = ssub.s32 %s32, %s44
    %s464 = ssub.s32 %s33, %s40
    %s465 = sor.u32 %s463, %s464
    %p466 = scmp.eq.s32.totalorder %s465, 0
    %s468 = sadd.s32 %s467, 1
    %s469 = scalar_select %p466, %s467, %s468
    %p472 = pneg %p466
    %p473 = scmp.eq.s32.totalorder %s25, 3
    %p474 = por %p472, %p473
    %p475 = scmp.ne.s32.totalorder %s467, %s470
    %p476 = scmp.eq.s32.totalorder %s25, 0
    %p477 = por %p475, %p476
    %p478 = scmp.ne.s32.totalorder %s467, %s470
    %p479 = scmp.eq.s32.totalorder %s30, 3
    %p480 = por %p478, %p479
    %p481 = scmp.ne.s32.totalorder %s470, %s471
    %p482 = scmp.eq.s32.totalorder %s30, 0
    %p483 = por %p481, %p482
    %p484 = scmp.ne.s32.totalorder %s470, %s471
    %p485 = scmp.eq.s32.totalorder %s31, 3
    %p486 = por %p484, %p485
    %p488 = scmp.ne.s32.totalorder %s471, %s487
    %p489 = scmp.eq.s32.totalorder %s31, 0
    %p490 = por %p488, %p489
    %p491 = scmp.le.s32.totalorder 1, %s25
    %p492 = scmp.lt.s32.totalorder %s25, 5
    %p493 = pnand %p491, %p492
    %p494 = pneg %p493
    // Predicated region
    $region9: #{tpu_custom_call.1} parent=5 // pred_check
      _
    $region10: #{tpu_custom_call.1} parent=5 // pred_check_branch
      %496 = sbr.rel (%p493) target = $region12
    $region11: #{tpu_custom_call.1} parent=5 // pred_region
      %s497 = ssub.s32 %s25, 1
      // Predicated region
      $region13: #{tpu_custom_call.1} parent=11 // pred_check
        %p498 = pneg %p140
      $region14: #{tpu_custom_call.1} parent=11 // pred_check_branch
        %500 = sbr.rel (%p498) target = $region16
      $region15: #{tpu_custom_call.1} parent=11 // pred_region
        _
      $region16: #{tpu_custom_call.1} parent=11 // pred_fallthru
        _
      // Predicated region
      $region17: #{tpu_custom_call.1} parent=11 // pred_check
        %p501 = pneg %p161
      $region18: #{tpu_custom_call.1} parent=11 // pred_check_branch
        %503 = sbr.rel (%p501) target = $region20
      $region19: #{tpu_custom_call.1} parent=11 // pred_region
        _
      $region20: #{tpu_custom_call.1} parent=11 // pred_fallthru
        _
      // Predicated region
      $region21: #{tpu_custom_call.1} parent=11 // pred_check
        %p504 = pneg %p182
      $region22: #{tpu_custom_call.1} parent=11 // pred_check_branch
        %506 = sbr.rel (%p504) target = $region24
      $region23: #{tpu_custom_call.1} parent=11 // pred_region
        _
      $region24: #{tpu_custom_call.1} parent=11 // pred_fallthru
        _
      // Predicated region
      $region25: #{tpu_custom_call.1} parent=11 // pred_check
        %p507 = pneg %p203
      $region26: #{tpu_custom_call.1} parent=11 // pred_check_branch
        %509 = sbr.rel (%p507) target = $region28
      $region27: #{tpu_custom_call.1} parent=11 // pred_region
        _
      $region28: #{tpu_custom_call.1} parent=11 // pred_fallthru
        _
      // Predicated region
      $region29: #{tpu_custom_call.1} parent=11 // pred_check
        %p510 = pneg %p224
      $region30: #{tpu_custom_call.1} parent=11 // pred_check_branch
        %512 = sbr.rel (%p510) target = $region32
      $region31: #{tpu_custom_call.1} parent=11 // pred_region
        _
      $region32: #{tpu_custom_call.1} parent=11 // pred_fallthru
        _
      // Predicated region
      $region33: #{tpu_custom_call.1} parent=11 // pred_check
        %p513 = pneg %p245
      $region34: #{tpu_custom_call.1} parent=11 // pred_check_branch
        %515 = sbr.rel (%p513) target = $region36
      $region35: #{tpu_custom_call.1} parent=11 // pred_region
        _
      $region36: #{tpu_custom_call.1} parent=11 // pred_fallthru
        _
      // Predicated region
      $region37: #{tpu_custom_call.1} parent=11 // pred_check
        %p516 = pneg %p266
      $region38: #{tpu_custom_call.1} parent=11 // pred_check_branch
        %518 = sbr.rel (%p516) target = $region40
      $region39: #{tpu_custom_call.1} parent=11 // pred_region
        _
      $region40: #{tpu_custom_call.1} parent=11 // pred_fallthru
        _
      // Predicated region
      $region41: #{tpu_custom_call.1} parent=11 // pred_check
        %p519 = pneg %p287
      $region42: #{tpu_custom_call.1} parent=11 // pred_check_branch
        %521 = sbr.rel (%p519) target = $region44
      $region43: #{tpu_custom_call.1} parent=11 // pred_region
        _
      $region44: #{tpu_custom_call.1} parent=11 // pred_fallthru
        _
      // Predicated region
      $region45: #{tpu_custom_call.1} parent=11 // pred_check
        %p522 = pneg %p308
      $region46: #{tpu_custom_call.1} parent=11 // pred_check_branch
        %524 = sbr.rel (%p522) target = $region48
      $region47: #{tpu_custom_call.1} parent=11 // pred_region
        _
      $region48: #{tpu_custom_call.1} parent=11 // pred_fallthru
        _
      // Predicated region
      $region49: #{tpu_custom_call.1} parent=11 // pred_check
        %p525 = pneg %p329
      $region50: #{tpu_custom_call.1} parent=11 // pred_check_branch
        %527 = sbr.rel (%p525) target = $region52
      $region51: #{tpu_custom_call.1} parent=11 // pred_region
        _
      $region52: #{tpu_custom_call.1} parent=11 // pred_fallthru
        _
      // Predicated region
      $region53: #{tpu_custom_call.1} parent=11 // pred_check
        %p528 = pneg %p350
      $region54: #{tpu_custom_call.1} parent=11 // pred_check_branch
        %530 = sbr.rel (%p528) target = $region56
      $region55: #{tpu_custom_call.1} parent=11 // pred_region
        _
      $region56: #{tpu_custom_call.1} parent=11 // pred_fallthru
        _
      // Predicated region
      $region57: #{tpu_custom_call.1} parent=11 // pred_check
        %p531 = pneg %p371
      $region58: #{tpu_custom_call.1} parent=11 // pred_check_branch
        %533 = sbr.rel (%p531) target = $region60
      $region59: #{tpu_custom_call.1} parent=11 // pred_region
        _
      $region60: #{tpu_custom_call.1} parent=11 // pred_fallthru
        _
      // Predicated region
      $region61: #{tpu_custom_call.1} parent=11 // pred_check
        %p534 = pneg %p392
      $region62: #{tpu_custom_call.1} parent=11 // pred_check_branch
        %536 = sbr.rel (%p534) target = $region64
      $region63: #{tpu_custom_call.1} parent=11 // pred_region
        _
      $region64: #{tpu_custom_call.1} parent=11 // pred_fallthru
        _
      // Predicated region
      $region65: #{tpu_custom_call.1} parent=11 // pred_check
        %p537 = pneg %p413
      $region66: #{tpu_custom_call.1} parent=11 // pred_check_branch
        %539 = sbr.rel (%p537) target = $region68
      $region67: #{tpu_custom_call.1} parent=11 // pred_region
        _
      $region68: #{tpu_custom_call.1} parent=11 // pred_fallthru
        _
      // Predicated region
      $region69: #{tpu_custom_call.1} parent=11 // pred_check
        %p540 = pneg %p434
      $region70: #{tpu_custom_call.1} parent=11 // pred_check_branch
        %542 = sbr.rel (%p540) target = $region72
      $region71: #{tpu_custom_call.1} parent=11 // pred_region
        _
      $region72: #{tpu_custom_call.1} parent=11 // pred_fallthru
        _
      // Predicated region
      $region73: #{tpu_custom_call.1} parent=11 // pred_check
        %p543 = pneg %p455
      $region74: #{tpu_custom_call.1} parent=11 // pred_check_branch
        %545 = sbr.rel (%p543) target = $region76
      $region75: #{tpu_custom_call.1} parent=11 // pred_region
        _
      $region76: #{tpu_custom_call.1} parent=11 // pred_fallthru
        _
    $region12: #{tpu_custom_call.1} parent=5 // pred_fallthru
      _
    %p546 = scmp.lt.s32.totalorder %s25, 4
    // Predicated region
    $region77: #{tpu_custom_call.1} parent=5 // pred_check
      %p547 = pneg %p546
    $region78: #{tpu_custom_call.1} parent=5 // pred_check_branch
      %549 = sbr.rel (%p547) target = $region80
    $region79: #{tpu_custom_call.1} parent=5 // pred_region
      // Predicated region
      $region81: #{tpu_custom_call.1} parent=79 // pred_check
        %p550 = pneg %p57
      $region82: #{tpu_custom_call.1} parent=79 // pred_check_branch
        %552 = sbr.rel (%p550) target = $region84
      $region83: #{tpu_custom_call.1} parent=79 // pred_region
        %p553 = scmp.lt.s32.totalorder %s32, 1
        %s554 = scalar_select %p553, %s32, 1
        %s555 = smul.addr %s554, 8
        %s556 = smul.addr %s555, 8
        %s557 = scalar_lea.vmem %s0, %s556
      $region84: #{tpu_custom_call.1} parent=79 // pred_fallthru
        _
      // Predicated region
      $region85: #{tpu_custom_call.1} parent=79 // pred_check
        %p558 = pneg %p85
      $region86: #{tpu_custom_call.1} parent=79 // pred_check_branch
        %560 = sbr.rel (%p558) target = $region88
      $region87: #{tpu_custom_call.1} parent=79 // pred_region
        %s561 = smul.u32 4, %s33
        %p562 = scmp.lt.s32.totalorder %s32, 1
        %s563 = scalar_select %p562, %s32, 1
        %p564 = scmp.lt.s32.totalorder %s561, 7
        %s565 = scalar_select %p564, %s561, 7
        %s566 = smul.addr %s563, 8
        %s567 = sadd.s32 %s565, %s566
        %s568 = smul.addr %s567, 8
        %s569 = scalar_lea.vmem %s1, %s568
        %s570 = smul.u32 4, %s33
      $region88: #{tpu_custom_call.1} parent=79 // pred_fallthru
        _
      // Predicated region
      $region89: #{tpu_custom_call.1} parent=79 // pred_check
        %p571 = pneg %p113
      $region90: #{tpu_custom_call.1} parent=79 // pred_check_branch
        %573 = sbr.rel (%p571) target = $region92
      $region91: #{tpu_custom_call.1} parent=79 // pred_region
        %p574 = scmp.lt.s32.totalorder %s32, 1
        %s575 = scalar_select %p574, %s32, 1
        %p576 = scmp.lt.s32.totalorder %s33, 1
        %s577 = scalar_select %p576, %s33, 1
        %s578 = smul.addr %s575, 2
        %s579 = sadd.s32 %s577, %s578
        %s580 = smul.addr %s579, 8
        %s581 = scalar_lea.vmem %s2, %s580
      $region92: #{tpu_custom_call.1} parent=79 // pred_fallthru
        _
    $region80: #{tpu_custom_call.1} parent=5 // pred_fallthru
      _
    %p582 = scmp.le.s32.totalorder 1, %s25
    %p583 = scmp.lt.s32.totalorder %s25, 5
    %p584 = pnand %p582, %p583
    %p585 = pneg %p584
    // Predicated region
    $region93: #{tpu_custom_call.1} parent=5 // pred_check
      _
    $region94: #{tpu_custom_call.1} parent=5 // pred_check_branch
      %587 = sbr.rel (%p584) target = $region96
    $region95: #{tpu_custom_call.1} parent=5 // pred_region
      %s588 = ssub.s32 %s25, 1
      %p589 = scmp.lt.s32.totalorder %s34, 1
      %s590 = scalar_select %p589, %s34, 1
      %s591 = smul.addr %s590, 8
      %s592 = smul.addr %s591, 8
      %s593 = scalar_lea.vmem %s0, %s592
      %p594 = pneg %p63
      %p595 = pneg %p60
      %s596 = smul.u32 4, %s35
      %p597 = scmp.lt.s32.totalorder %s34, 1
      %s598 = scalar_select %p597, %s34, 1
      %p599 = scmp.lt.s32.totalorder %s596, 7
      %s600 = scalar_select %p599, %s596, 7
      %s601 = smul.addr %s598, 8
      %s602 = sadd.s32 %s600, %s601
      %s603 = smul.addr %s602, 8
      %s604 = scalar_lea.vmem %s1, %s603
      %p605 = pneg %p91
      %p606 = pneg %p88
      %p607 = scmp.lt.s32.totalorder %s34, 1
      %s608 = scalar_select %p607, %s34, 1
      %p609 = scmp.lt.s32.totalorder %s35, 1
      %s610 = scalar_select %p609, %s35, 1
      %s611 = smul.addr %s608, 2
      %s612 = sadd.s32 %s610, %s611
      %s613 = smul.addr %s612, 8
      %s614 = scalar_lea.vmem %s2, %s613
      %p615 = pneg %p119
      %p616 = pneg %p116
      %p617 = pneg %p140
      %p618 = pneg %p137
      %p619 = pneg %p161
      %p620 = pneg %p158
      %p621 = pneg %p182
      %p622 = pneg %p179
      %p623 = pneg %p203
      %p624 = pneg %p200
      %p625 = pneg %p224
      %p626 = pneg %p221
      %p627 = pneg %p245
      %p628 = pneg %p242
      %p629 = pneg %p266
      %p630 = pneg %p263
      %p631 = pneg %p287
      %p632 = pneg %p284
      %p633 = pneg %p308
      %p634 = pneg %p305
      %p635 = pneg %p329
      %p636 = pneg %p326
      %p637 = pneg %p350
      %p638 = pneg %p347
      %p639 = pneg %p371
      %p640 = pneg %p368
      %p641 = pneg %p392
      %p642 = pneg %p389
      %p643 = pneg %p413
      %p644 = pneg %p410
      %p645 = pneg %p434
      %p646 = pneg %p431
      %p647 = pneg %p455
      %p648 = pneg %p452
      %p649 = pneg %p483
      %p650 = pneg %p480
      %s651 = smul.u32 4, %s35
      %p652 = scmp.lt.s32.totalorder %s34, 1
      %s653 = scalar_select %p652, %s34, 1
      %p654 = scmp.lt.s32.totalorder %s651, 7
      %s655 = scalar_select %p654, %s651, 7
      %s656 = smul.addr %s653, 8
      %s657 = sadd.s32 %s655, %s656
      %s658 = smul.addr %s657, 8
      %s659 = scalar_lea.vmem %s19, %s658
      %p660 = scmp.lt.s32.totalorder %s34, 1
      %s661 = scalar_select %p660, %s34, 1
      %s662 = smul.addr %s661, 8
      %s663 = smul.addr %s662, 8
      %s664 = scalar_lea.vmem %s0, %s663
      %s665 = smul.u32 4, %s35
      %p666 = scmp.lt.s32.totalorder %s34, 1
      %s667 = scalar_select %p666, %s34, 1
      %p668 = scmp.lt.s32.totalorder %s665, 7
      %s669 = scalar_select %p668, %s665, 7
      %s670 = smul.addr %s667, 8
      %s671 = sadd.s32 %s669, %s670
      %s672 = smul.addr %s671, 8
      %s673 = scalar_lea.vmem %s1, %s672
      %s674 = smul.u32 4, %s35
      %p675 = scmp.lt.s32.totalorder %s34, 1
      %s676 = scalar_select %p675, %s34, 1
      %p677 = scmp.lt.s32.totalorder %s35, 1
      %s678 = scalar_select %p677, %s35, 1
      %s679 = smul.addr %s676, 2
      %s680 = sadd.s32 %s678, %s679
      %s681 = smul.addr %s680, 8
      %s682 = scalar_lea.vmem %s2, %s681
      %s683 = smul.u32 4, %s35
      %p684 = scmp.lt.s32.totalorder %s34, 1
      %s685 = scalar_select %p684, %s34, 1
      %p686 = scmp.lt.s32.totalorder %s683, 7
      %s687 = scalar_select %p686, %s683, 7
      %s688 = smul.addr %s685, 8
      %s689 = sadd.s32 %s687, %s688
      %s690 = smul.addr %s689, 8
      %s691 = scalar_lea.vmem %s19, %s690
      %s692 = smul.u32 4, %s35
      %p693 = scmp.eq.s32.totalorder %s35, 0
      // Predicated region
      $region97: #{tpu_custom_call.1} parent=95 // pred_check
        %p694 = pneg %p693
      $region98: #{tpu_custom_call.1} parent=95 // pred_check_branch
        %696 = sbr.rel (%p694) target = $region100
      $region99: #{tpu_custom_call.1} parent=95 // pred_region
        %v697 = vld [vmem:[%s664] sm:$0xff]
        %v698 = vld [vmem:[%s664 + $0x8] sm:$0xff]
        %v699 = vld [vmem:[%s664 + $0x10] sm:$0xff]
        %v700 = vld [vmem:[%s664 + $0x18] sm:$0xff]
        %v701 = vld [vmem:[%s664 + $0x20] sm:$0xff]
        %v702 = vld [vmem:[%s664 + $0x28] sm:$0xff]
        %v703 = vld [vmem:[%s664 + $0x30] sm:$0xff]
        %v704 = vld [vmem:[%s664 + $0x38] sm:$0xff]
        %v705 = vld [vmem:[%s5] sm:$0xff]
        %v706 = vld [vmem:[%s5 + $0x8] sm:$0xff]
        %v707 = vld [vmem:[%s5 + $0x10] sm:$0xff]
        %v708 = vld [vmem:[%s5 + $0x18] sm:$0xff]
        %v709 = vld [vmem:[%s6] sm:$0x1]
        %v711 = vlaneseq
        %v712 = vshrl.u32 %v711, 7
        %v713 = vsub.s32 0, %v712
        %v714 = vrot.slane %v709, %v713
        %vm716 = vcmask 261120
        %v718 = vsel %vm716, %v697, 0
        %v721 = vsel %vm716, %v698, 0
        %v724 = vsel %vm716, %v699, 0
        %v727 = vsel %vm716, %v700, 0
        %v730 = vsel %vm716, %v701, 0
        %v733 = vsel %vm716, %v702, 0
        %v736 = vsel %vm716, %v703, 0
        %v739 = vsel %vm716, %v704, 0
        %741 = vmatprep.subr.mxu0 0.0
        %742 = vmatpush1.msra.mxu0 0.0
        %743 = vmatprep.subr.mxu0 0.0
        %744 = vmatpush1.msra.mxu0 0.0
        %745 = vmatprep.subr.mxu0 0.0
        %746 = vmatpush1.msra.mxu0 0.0
        %747 = vmatprep.subr.mxu0 0.0
        %748 = vmatpush1.msra.mxu0 0.0
        %749 = vmatprep.subr.mxu0 0.0
        %750 = vmatpush1.msra.mxu0 0.0
        %751 = vmatprep.subr.mxu0 0.0
        %752 = vmatpush1.msra.mxu0 0.0
        %753 = vmatprep.subr.mxu0 0.0
        %754 = vmatpush1.msra.mxu0 0.0
        %755 = vmatprep.subr.mxu0 0.0
        %756 = vmatpush1.msra.mxu0 0.0
        %757 = vmatprep.subr.mxu0 0.0
        %758 = vmatpush1.msra.mxu0 0.0
        %759 = vmatprep.subr.mxu0 0.0
        %760 = vmatpush1.msra.mxu0 0.0
        %761 = vmatprep.subr.mxu0 0.0
        %762 = vmatpush1.msra.mxu0 0.0
        %763 = vmatprep.subr.mxu0 0.0
        %764 = vmatpush1.msra.mxu0 0.0
        %765 = vmatprep.subr.mxu0 0.0
        %766 = vmatpush1.msra.mxu0 %v708
        %767 = vmatprep.subr.mxu0 0.0
        %768 = vmatpush1.msra.mxu0 %v707
        %769 = vmatprep.subr.mxu0 0.0
        %770 = vmatpush1.msra.mxu0 %v706
        %771 = vmatprep.subr.mxu0 0.0
        %772 = vmatpush1.msra.mxu0 %v705
        %773 = vmatprep.subr.mxu0 0.0
        %774 = vmatpush2.msra.mxu0 0.0
        %775 = vmatprep.subr.mxu0 0.0
        %776 = vmatpush2.msra.mxu0 0.0
        %777 = vmatprep.subr.mxu0 0.0
        %778 = vmatpush2.msra.mxu0 0.0
        %779 = vmatprep.subr.mxu0 0.0
        %780 = vmatpush2.msra.mxu0 0.0
        %781 = vmatprep.subr.mxu0 0.0
        %782 = vmatpush2.msra.mxu0 0.0
        %783 = vmatprep.subr.mxu0 0.0
        %784 = vmatpush2.msra.mxu0 0.0
        %785 = vmatprep.subr.mxu0 0.0
        %786 = vmatpush2.msra.mxu0 0.0
        %787 = vmatprep.subr.mxu0 0.0
        %788 = vmatpush2.msra.mxu0 0.0
        %789 = vmatprep.subr.mxu0 0.0
        %790 = vmatpush2.msra.mxu0 0.0
        %791 = vmatprep.subr.mxu0 0.0
        %792 = vmatpush2.msra.mxu0 0.0
        %793 = vmatprep.subr.mxu0 0.0
        %794 = vmatpush2.msra.mxu0 0.0
        %795 = vmatprep.subr.mxu0 0.0
        %796 = vmatpush2.msra.mxu0 0.0
        %797 = vmatprep.subr.mxu0 0.0
        %798 = vmatpush2.msra.mxu0 0.0
        %799 = vmatprep.subr.mxu0 0.0
        %800 = vmatpush2.msra.mxu0 0.0
        %801 = vmatprep.subr.mxu0 0.0
        %802 = vmatpush2.msra.mxu0 0.0
        %803 = vmatprep.subr.mxu0 0.0
        %804 = vmatpush2.msra.mxu0 0.0
        %805 = vmatprep.mubr.f32.mxu0 0.0
        %806 = vmatmul.mubr.f32.gmra.mxu0 %v718
        %v807 = vpop.f32.mrf.mxu0
        %v808 = vadd.f32 %v714, %v807
        %v809 = vpop.f32.mrf.mxu0
        %810 = vmatprep.mubr.f32.mxu0 0.0
        %811 = vmatmul.mubr.f32.gmra.mxu0 %v721
        %v812 = vpop.f32.mrf.mxu0
        %v813 = vadd.f32 %v714, %v812
        %v814 = vpop.f32.mrf.mxu0
        %815 = vmatprep.mubr.f32.mxu0 0.0
        %816 = vmatmul.mubr.f32.gmra.mxu0 %v724
        %v817 = vpop.f32.mrf.mxu0
        %v818 = vadd.f32 %v714, %v817
        %v819 = vpop.f32.mrf.mxu0
        %820 = vmatprep.mubr.f32.mxu0 0.0
        %821 = vmatmul.mubr.f32.gmra.mxu0 %v727
        %v822 = vpop.f32.mrf.mxu0
        %v823 = vadd.f32 %v714, %v822
        %v824 = vpop.f32.mrf.mxu0
        %825 = vmatprep.mubr.f32.mxu0 0.0
        %826 = vmatmul.mubr.f32.gmra.mxu0 %v730
        %v827 = vpop.f32.mrf.mxu0
        %v828 = vadd.f32 %v714, %v827
        %v829 = vpop.f32.mrf.mxu0
        %830 = vmatprep.mubr.f32.mxu0 0.0
        %831 = vmatmul.mubr.f32.gmra.mxu0 %v733
        %v832 = vpop.f32.mrf.mxu0
        %v833 = vadd.f32 %v714, %v832
        %v834 = vpop.f32.mrf.mxu0
        %835 = vmatprep.mubr.f32.mxu0 0.0
        %836 = vmatmul.mubr.f32.gmra.mxu0 %v736
        %v837 = vpop.f32.mrf.mxu0
        %v838 = vadd.f32 %v714, %v837
        %v839 = vpop.f32.mrf.mxu0
        %840 = vmatprep.mubr.f32.mxu0 0.0
        %841 = vmatmul.mubr.f32.gmra.mxu0 %v739
        %v842 = vpop.f32.mrf.mxu0
        %v843 = vadd.f32 %v714, %v842
        %v844 = vpop.f32.mrf.mxu0
        %845 = vdwg.mxu0
        %846 = vst.msk [vmem:[#allocation2] sm:$0xff] %vm716, %v808
        %847 = vst.msk [vmem:[#allocation2 + $0x8] sm:$0xff] %vm716, %v813
        %848 = vst.msk [vmem:[#allocation2 + $0x10] sm:$0xff] %vm716, %v818
        %849 = vst.msk [vmem:[#allocation2 + $0x18] sm:$0xff] %vm716, %v823
        %850 = vst.msk [vmem:[#allocation2 + $0x20] sm:$0xff] %vm716, %v828
        %851 = vst.msk [vmem:[#allocation2 + $0x28] sm:$0xff] %vm716, %v833
        %852 = vst.msk [vmem:[#allocation2 + $0x30] sm:$0xff] %vm716, %v838
        %853 = vst.msk [vmem:[#allocation2 + $0x38] sm:$0xff] %vm716, %v843
        %v854 = vld [vmem:[%s7] sm:$0xff]
        %v855 = vld [vmem:[%s7 + $0x8] sm:$0xff]
        %v856 = vld [vmem:[%s7 + $0x10] sm:$0xff]
        %v857 = vld [vmem:[%s7 + $0x18] sm:$0xff]
        %v858 = vld [vmem:[%s8] sm:$0x1]
        %v860 = vlaneseq
        %v861 = vshrl.u32 %v860, 7
        %v862 = vsub.s32 0, %v861
        %v863 = vrot.slane %v858, %v862
        %865 = vmatprep.subr.mxu0 0.0
        %866 = vmatpush1.msra.mxu0 0.0
        %867 = vmatprep.subr.mxu0 0.0
        %868 = vmatpush1.msra.mxu0 0.0
        %869 = vmatprep.subr.mxu0 0.0
        %870 = vmatpush1.msra.mxu0 0.0
        %871 = vmatprep.subr.mxu0 0.0
        %872 = vmatpush1.msra.mxu0 0.0
        %873 = vmatprep.subr.mxu0 0.0
        %874 = vmatpush1.msra.mxu0 0.0
        %875 = vmatprep.subr.mxu0 0.0
        %876 = vmatpush1.msra.mxu0 0.0
        %877 = vmatprep.subr.mxu0 0.0
        %878 = vmatpush1.msra.mxu0 0.0
        %879 = vmatprep.subr.mxu0 0.0
        %880 = vmatpush1.msra.mxu0 0.0
        %881 = vmatprep.subr.mxu0 0.0
        %882 = vmatpush1.msra.mxu0 0.0
        %883 = vmatprep.subr.mxu0 0.0
        %884 = vmatpush1.msra.mxu0 0.0
        %885 = vmatprep.subr.mxu0 0.0
        %886 = vmatpush1.msra.mxu0 0.0
        %887 = vmatprep.subr.mxu0 0.0
        %888 = vmatpush1.msra.mxu0 0.0
        %889 = vmatprep.subr.mxu0 0.0
        %890 = vmatpush1.msra.mxu0 %v857
        %891 = vmatprep.subr.mxu0 0.0
        %892 = vmatpush1.msra.mxu0 %v856
        %893 = vmatprep.subr.mxu0 0.0
        %894 = vmatpush1.msra.mxu0 %v855
        %895 = vmatprep.subr.mxu0 0.0
        %896 = vmatpush1.msra.mxu0 %v854
        %897 = vmatprep.subr.mxu0 0.0
        %898 = vmatpush2.msra.mxu0 0.0
        %899 = vmatprep.subr.mxu0 0.0
        %900 = vmatpush2.msra.mxu0 0.0
        %901 = vmatprep.subr.mxu0 0.0
        %902 = vmatpush2.msra.mxu0 0.0
        %903 = vmatprep.subr.mxu0 0.0
        %904 = vmatpush2.msra.mxu0 0.0
        %905 = vmatprep.subr.mxu0 0.0
        %906 = vmatpush2.msra.mxu0 0.0
        %907 = vmatprep.subr.mxu0 0.0
        %908 = vmatpush2.msra.mxu0 0.0
        %909 = vmatprep.subr.mxu0 0.0
        %910 = vmatpush2.msra.mxu0 0.0
        %911 = vmatprep.subr.mxu0 0.0
        %912 = vmatpush2.msra.mxu0 0.0
        %913 = vmatprep.subr.mxu0 0.0
        %914 = vmatpush2.msra.mxu0 0.0
        %915 = vmatprep.subr.mxu0 0.0
        %916 = vmatpush2.msra.mxu0 0.0
        %917 = vmatprep.subr.mxu0 0.0
        %918 = vmatpush2.msra.mxu0 0.0
        %919 = vmatprep.subr.mxu0 0.0
        %920 = vmatpush2.msra.mxu0 0.0
        %921 = vmatprep.subr.mxu0 0.0
        %922 = vmatpush2.msra.mxu0 0.0
        %923 = vmatprep.subr.mxu0 0.0
        %924 = vmatpush2.msra.mxu0 0.0
        %925 = vmatprep.subr.mxu0 0.0
        %926 = vmatpush2.msra.mxu0 0.0
        %927 = vmatprep.subr.mxu0 0.0
        %928 = vmatpush2.msra.mxu0 0.0
        %929 = vmatprep.mubr.f32.mxu0 0.0
        %930 = vmatmul.mubr.f32.gmra.mxu0 %v718
        %v931 = vpop.f32.mrf.mxu0
        %v932 = vadd.f32 %v863, %v931
        %v933 = vpop.f32.mrf.mxu0
        %934 = vmatprep.mubr.f32.mxu0 0.0
        %935 = vmatmul.mubr.f32.gmra.mxu0 %v721
        %v936 = vpop.f32.mrf.mxu0
        %v937 = vadd.f32 %v863, %v936
        %v938 = vpop.f32.mrf.mxu0
        %939 = vmatprep.mubr.f32.mxu0 0.0
        %940 = vmatmul.mubr.f32.gmra.mxu0 %v724
        %v941 = vpop.f32.mrf.mxu0
        %v942 = vadd.f32 %v863, %v941
        %v943 = vpop.f32.mrf.mxu0
        %944 = vmatprep.mubr.f32.mxu0 0.0
        %945 = vmatmul.mubr.f32.gmra.mxu0 %v727
        %v946 = vpop.f32.mrf.mxu0
        %v947 = vadd.f32 %v863, %v946
        %v948 = vpop.f32.mrf.mxu0
        %949 = vmatprep.mubr.f32.mxu0 0.0
        %950 = vmatmul.mubr.f32.gmra.mxu0 %v730
        %v951 = vpop.f32.mrf.mxu0
        %v952 = vadd.f32 %v863, %v951
        %v953 = vpop.f32.mrf.mxu0
        %954 = vmatprep.mubr.f32.mxu0 0.0
        %955 = vmatmul.mubr.f32.gmra.mxu0 %v733
        %v956 = vpop.f32.mrf.mxu0
        %v957 = vadd.f32 %v863, %v956
        %v958 = vpop.f32.mrf.mxu0
        %959 = vmatprep.mubr.f32.mxu0 0.0
        %960 = vmatmul.mubr.f32.gmra.mxu0 %v736
        %v961 = vpop.f32.mrf.mxu0
        %v962 = vadd.f32 %v863, %v961
        %v963 = vpop.f32.mrf.mxu0
        %964 = vmatprep.mubr.f32.mxu0 0.0
        %965 = vmatmul.mubr.f32.gmra.mxu0 %v739
        %v966 = vpop.f32.mrf.mxu0
        %v967 = vadd.f32 %v863, %v966
        %v968 = vpop.f32.mrf.mxu0
        %969 = vdwg.mxu0
        %970 = vst.msk [vmem:[#allocation3] sm:$0xff] %vm716, %v932
        %971 = vst.msk [vmem:[#allocation3 + $0x8] sm:$0xff] %vm716, %v937
        %972 = vst.msk [vmem:[#allocation3 + $0x10] sm:$0xff] %vm716, %v942
        %973 = vst.msk [vmem:[#allocation3 + $0x18] sm:$0xff] %vm716, %v947
        %974 = vst.msk [vmem:[#allocation3 + $0x20] sm:$0xff] %vm716, %v952
        %975 = vst.msk [vmem:[#allocation3 + $0x28] sm:$0xff] %vm716, %v957
        %976 = vst.msk [vmem:[#allocation3 + $0x30] sm:$0xff] %vm716, %v962
        %977 = vst.msk [vmem:[#allocation3 + $0x38] sm:$0xff] %vm716, %v967
      $region100: #{tpu_custom_call.1} parent=95 // pred_fallthru
        _
      %v978 = vld [vmem:[%s673] sm:$0xff]
      %v979 = vld [vmem:[%s673 + $0x8] sm:$0xff]
      %v980 = vld [vmem:[%s673 + $0x10] sm:$0xff]
      %v981 = vld [vmem:[%s673 + $0x18] sm:$0xff]
      %v982 = vld [vmem:[%s682] sm:$0xff]
      %v983 = vunpack.c.0.s8 %v982
      %v984 = vunpack.c.1.s8 %v982
      %v985 = vunpack.c.2.s8 %v982
      %v986 = vunpack.c.3.s8 %v982
      %v987 = vcvt.s32.f32 %v983
      %v988 = vcvt.s32.f32 %v984
      %v989 = vcvt.s32.f32 %v985
      %v990 = vcvt.s32.f32 %v986
      %v991 = vsub.f32 %v987, 1.0
      %v992 = vsub.f32 %v988, 1.0
      %v993 = vsub.f32 %v989, 1.0
      %v994 = vsub.f32 %v990, 1.0
      %v995 = vmul.f32 %v991, 1e+09
      %v996 = vmul.f32 %v992, 1e+09
      %v997 = vmul.f32 %v993, 1e+09
      %v998 = vmul.f32 %v994, 1e+09
      %v999 = vld [vmem:[%s3] sm:$0xff]
      %v1000 = vld [vmem:[%s3 + $0x8] sm:$0xff]
      %v1001 = vld [vmem:[%s3 + $0x10] sm:$0xff]
      %v1002 = vld [vmem:[%s3 + $0x18] sm:$0xff]
      %v1003 = vld [vmem:[%s4] sm:$0x1]
      %v1005 = vlaneseq
      %v1006 = vshrl.u32 %v1005, 7
      %v1007 = vsub.s32 0, %v1006
      %v1008 = vrot.slane %v1003, %v1007
      %vm1010 = vcmask 261120
      %v1012 = vsel %vm1010, %v978, 0
      %v1015 = vsel %vm1010, %v979, 0
      %v1018 = vsel %vm1010, %v980, 0
      %v1021 = vsel %vm1010, %v981, 0
      %1023 = vmatprep.subr.mxu0 0.0
      %1024 = vmatpush1.msra.mxu0 0.0
      %1025 = vmatprep.subr.mxu0 0.0
      %1026 = vmatpush1.msra.mxu0 0.0
      %1027 = vmatprep.subr.mxu0 0.0
      %1028 = vmatpush1.msra.mxu0 0.0
      %1029 = vmatprep.subr.mxu0 0.0
      %1030 = vmatpush1.msra.mxu0 0.0
      %1031 = vmatprep.subr.mxu0 0.0
      %1032 = vmatpush1.msra.mxu0 0.0
      %1033 = vmatprep.subr.mxu0 0.0
      %1034 = vmatpush1.msra.mxu0 0.0
      %1035 = vmatprep.subr.mxu0 0.0
      %1036 = vmatpush1.msra.mxu0 0.0
      %1037 = vmatprep.subr.mxu0 0.0
      %1038 = vmatpush1.msra.mxu0 0.0
      %1039 = vmatprep.subr.mxu0 0.0
      %1040 = vmatpush1.msra.mxu0 0.0
      %1041 = vmatprep.subr.mxu0 0.0
      %1042 = vmatpush1.msra.mxu0 0.0
      %1043 = vmatprep.subr.mxu0 0.0
      %1044 = vmatpush1.msra.mxu0 0.0
      %1045 = vmatprep.subr.mxu0 0.0
      %1046 = vmatpush1.msra.mxu0 0.0
      %1047 = vmatprep.subr.mxu0 0.0
      %1048 = vmatpush1.msra.mxu0 %v1002
      %1049 = vmatprep.subr.mxu0 0.0
      %1050 = vmatpush1.msra.mxu0 %v1001
      %1051 = vmatprep.subr.mxu0 0.0
      %1052 = vmatpush1.msra.mxu0 %v1000
      %1053 = vmatprep.subr.mxu0 0.0
      %1054 = vmatpush1.msra.mxu0 %v999
      %1055 = vmatprep.subr.mxu0 0.0
      %1056 = vmatpush2.msra.mxu0 0.0
      %1057 = vmatprep.subr.mxu0 0.0
      %1058 = vmatpush2.msra.mxu0 0.0
      %1059 = vmatprep.subr.mxu0 0.0
      %1060 = vmatpush2.msra.mxu0 0.0
      %1061 = vmatprep.subr.mxu0 0.0
      %1062 = vmatpush2.msra.mxu0 0.0
      %1063 = vmatprep.subr.mxu0 0.0
      %1064 = vmatpush2.msra.mxu0 0.0
      %1065 = vmatprep.subr.mxu0 0.0
      %1066 = vmatpush2.msra.mxu0 0.0
      %1067 = vmatprep.subr.mxu0 0.0
      %1068 = vmatpush2.msra.mxu0 0.0
      %1069 = vmatprep.subr.mxu0 0.0
      %1070 = vmatpush2.msra.mxu0 0.0
      %1071 = vmatprep.subr.mxu0 0.0
      %1072 = vmatpush2.msra.mxu0 0.0
      %1073 = vmatprep.subr.mxu0 0.0
      %1074 = vmatpush2.msra.mxu0 0.0
      %1075 = vmatprep.subr.mxu0 0.0
      %1076 = vmatpush2.msra.mxu0 0.0
      %1077 = vmatprep.subr.mxu0 0.0
      %1078 = vmatpush2.msra.mxu0 0.0
      %1079 = vmatprep.subr.mxu0 0.0
      %1080 = vmatpush2.msra.mxu0 0.0
      %1081 = vmatprep.subr.mxu0 0.0
      %1082 = vmatpush2.msra.mxu0 0.0
      %1083 = vmatprep.subr.mxu0 0.0
      %1084 = vmatpush2.msra.mxu0 0.0
      %1085 = vmatprep.subr.mxu0 0.0
      %1086 = vmatpush2.msra.mxu0 0.0
      %1087 = vmatprep.mubr.f32.mxu0 0.0
      %1088 = vmatmul.mubr.f32.gmra.mxu0 %v1012
      %v1089 = vpop.f32.mrf.mxu0
      %v1090 = vadd.f32 %v1008, %v1089
      %v1091 = vpop.f32.mrf.mxu0
      %1092 = vmatprep.mubr.f32.mxu0 0.0
      %1093 = vmatmul.mubr.f32.gmra.mxu0 %v1015
      %v1094 = vpop.f32.mrf.mxu0
      %v1095 = vadd.f32 %v1008, %v1094
      %v1096 = vpop.f32.mrf.mxu0
      %1097 = vmatprep.mubr.f32.mxu0 0.0
      %1098 = vmatmul.mubr.f32.gmra.mxu0 %v1018
      %v1099 = vpop.f32.mrf.mxu0
      %v1100 = vadd.f32 %v1008, %v1099
      %v1101 = vpop.f32.mrf.mxu0
      %1102 = vmatprep.mubr.f32.mxu0 0.0
      %1103 = vmatmul.mubr.f32.gmra.mxu0 %v1021
      %v1104 = vpop.f32.mrf.mxu0
      %v1105 = vadd.f32 %v1008, %v1104
      %v1106 = vpop.f32.mrf.mxu0
      %1107 = vdwg.mxu0
      %v1108 = vmul.f32 %v1090, 0.35355338
      %v1109 = vmul.f32 %v1095, 0.35355338
      %v1110 = vmul.f32 %v1100, 0.35355338
      %v1111 = vmul.f32 %v1105, 0.35355338
      %v1112 = vld [vmem:[#allocation2] sm:$0xff]
      %v1113 = vld [vmem:[#allocation2 + $0x8] sm:$0xff]
      %v1114 = vld [vmem:[#allocation2 + $0x10] sm:$0xff]
      %v1115 = vld [vmem:[#allocation2 + $0x18] sm:$0xff]
      %v1116 = vld [vmem:[#allocation2 + $0x20] sm:$0xff]
      %v1117 = vld [vmem:[#allocation2 + $0x28] sm:$0xff]
      %v1118 = vld [vmem:[#allocation2 + $0x30] sm:$0xff]
      %v1119 = vld [vmem:[#allocation2 + $0x38] sm:$0xff]
      %v1120 = vld [vmem:[#allocation3] sm:$0xff]
      %v1121 = vld [vmem:[#allocation3 + $0x8] sm:$0xff]
      %v1122 = vld [vmem:[#allocation3 + $0x10] sm:$0xff]
      %v1123 = vld [vmem:[#allocation3 + $0x18] sm:$0xff]
      %v1124 = vld [vmem:[#allocation3 + $0x20] sm:$0xff]
      %v1125 = vld [vmem:[#allocation3 + $0x28] sm:$0xff]
      %v1126 = vld [vmem:[#allocation3 + $0x30] sm:$0xff]
      %v1127 = vld [vmem:[#allocation3 + $0x38] sm:$0xff]
      %vm1128 = vcmask 64512
      %v1130 = vsel %vm1128, %v1108, 0
      %v1133 = vsel %vm1128, %v1109, 0
      %v1136 = vsel %vm1128, %v1110, 0
      %v1139 = vsel %vm1128, %v1111, 0
      %v1142 = vsel %vm1128, %v1112, 0
      %v1145 = vsel %vm1128, %v1113, 0
      %v1148 = vsel %vm1128, %v1114, 0
      %v1151 = vsel %vm1128, %v1115, 0
      %v1154 = vsel %vm1128, %v1116, 0
      %v1157 = vsel %vm1128, %v1117, 0
      %v1160 = vsel %vm1128, %v1118, 0
      %v1163 = vsel %vm1128, %v1119, 0
      %1165 = vmatprep.subr.mxu0 0.0
      %1166 = vmatpush1.xpose.msra.mxu0 0.0
      %1167 = vmatprep.subr.mxu0 0.0
      %1168 = vmatpush1.xpose.msra.mxu0 0.0
      %1169 = vmatprep.subr.mxu0 0.0
      %1170 = vmatpush1.xpose.msra.mxu0 0.0
      %1171 = vmatprep.subr.mxu0 0.0
      %1172 = vmatpush1.xpose.msra.mxu0 0.0
      %1173 = vmatprep.subr.mxu0 0.0
      %1174 = vmatpush1.xpose.msra.mxu0 0.0
      %1175 = vmatprep.subr.mxu0 0.0
      %1176 = vmatpush1.xpose.msra.mxu0 0.0
      %1177 = vmatprep.subr.mxu0 0.0
      %1178 = vmatpush1.xpose.msra.mxu0 0.0
      %1179 = vmatprep.subr.mxu0 0.0
      %1180 = vmatpush1.xpose.msra.mxu0 0.0
      %1181 = vmatprep.subr.mxu0 0.0
      %1182 = vmatpush1.xpose.msra.mxu0 %v1163
      %1183 = vmatprep.subr.mxu0 0.0
      %1184 = vmatpush1.xpose.msra.mxu0 %v1160
      %1185 = vmatprep.subr.mxu0 0.0
      %1186 = vmatpush1.xpose.msra.mxu0 %v1157
      %1187 = vmatprep.subr.mxu0 0.0
      %1188 = vmatpush1.xpose.msra.mxu0 %v1154
      %1189 = vmatprep.subr.mxu0 0.0
      %1190 = vmatpush1.xpose.msra.mxu0 %v1151
      %1191 = vmatprep.subr.mxu0 0.0
      %1192 = vmatpush1.xpose.msra.mxu0 %v1148
      %1193 = vmatprep.subr.mxu0 0.0
      %1194 = vmatpush1.xpose.msra.mxu0 %v1145
      %1195 = vmatprep.subr.mxu0 0.0
      %1196 = vmatpush1.xpose.msra.mxu0 %v1142
      %1197 = vmatprep.subr.mxu0 0.0
      %1198 = vmatpush2.xpose.msra.mxu0 0.0
      %1199 = vmatprep.subr.mxu0 0.0
      %1200 = vmatpush2.xpose.msra.mxu0 0.0
      %1201 = vmatprep.subr.mxu0 0.0
      %1202 = vmatpush2.xpose.msra.mxu0 0.0
      %1203 = vmatprep.subr.mxu0 0.0
      %1204 = vmatpush2.xpose.msra.mxu0 0.0
      %1205 = vmatprep.subr.mxu0 0.0
      %1206 = vmatpush2.xpose.msra.mxu0 0.0
      %1207 = vmatprep.subr.mxu0 0.0
      %1208 = vmatpush2.xpose.msra.mxu0 0.0
      %1209 = vmatprep.subr.mxu0 0.0
      %1210 = vmatpush2.xpose.msra.mxu0 0.0
      %1211 = vmatprep.subr.mxu0 0.0
      %1212 = vmatpush2.xpose.msra.mxu0 0.0
      %1213 = vmatprep.subr.mxu0 0.0
      %1214 = vmatpush2.xpose.msra.mxu0 0.0
      %1215 = vmatprep.subr.mxu0 0.0
      %1216 = vmatpush2.xpose.msra.mxu0 0.0
      %1217 = vmatprep.subr.mxu0 0.0
      %1218 = vmatpush2.xpose.msra.mxu0 0.0
      %1219 = vmatprep.subr.mxu0 0.0
      %1220 = vmatpush2.xpose.msra.mxu0 0.0
      %1221 = vmatprep.subr.mxu0 0.0
      %1222 = vmatpush2.xpose.msra.mxu0 0.0
      %1223 = vmatprep.subr.mxu0 0.0
      %1224 = vmatpush2.xpose.msra.mxu0 0.0
      %1225 = vmatprep.subr.mxu0 0.0
      %1226 = vmatpush2.xpose.msra.mxu0 0.0
      %1227 = vmatprep.subr.mxu0 0.0
      %1228 = vmatpush2.xpose.msra.mxu0 0.0
      %1229 = vmatprep.mubr.f32.mxu0 0.0
      %1230 = vmatmul.mubr.f32.gmra.mxu0 %v1130
      %v1231 = vpop.f32.mrf.mxu0
      %v1232 = vadd.f32 %v995, %v1231
      %v1233 = vpop.f32.mrf.mxu0
      %1234 = vmatprep.mubr.f32.mxu0 0.0
      %1235 = vmatmul.mubr.f32.gmra.mxu0 %v1133
      %v1236 = vpop.f32.mrf.mxu0
      %v1237 = vadd.f32 %v996, %v1236
      %v1238 = vpop.f32.mrf.mxu0
      %1239 = vmatprep.mubr.f32.mxu0 0.0
      %1240 = vmatmul.mubr.f32.gmra.mxu0 %v1136
      %v1241 = vpop.f32.mrf.mxu0
      %v1242 = vadd.f32 %v997, %v1241
      %v1243 = vpop.f32.mrf.mxu0
      %1244 = vmatprep.mubr.f32.mxu0 0.0
      %1245 = vmatmul.mubr.f32.gmra.mxu0 %v1139
      %v1246 = vpop.f32.mrf.mxu0
      %v1247 = vadd.f32 %v998, %v1246
      %v1248 = vpop.f32.mrf.mxu0
      %1249 = vdwg.mxu0
      %vm1250 = vcmask 523264
      %v1251 = vsel %vm1250, %v1232, -inf
      %1252 = vmax.xlane.f32.xlu0 %v1251
      %v1253 = vpop.xlane.xlu0 %1252
      %v1254 = vsel %vm1250, %v1237, -inf
      %1255 = vmax.xlane.f32.xlu0 %v1254
      %v1256 = vpop.xlane.xlu0 %1255
      %v1257 = vsel %vm1250, %v1242, -inf
      %1258 = vmax.xlane.f32.xlu0 %v1257
      %v1259 = vpop.xlane.xlu0 %1258
      %v1260 = vsel %vm1250, %v1247, -inf
      %1261 = vmax.xlane.f32.xlu0 %v1260
      %v1262 = vpop.xlane.xlu0 %1261
      %v1263 = vsub.f32 %v1232, %v1253
      %v1264 = vsub.f32 %v1237, %v1256
      %v1265 = vsub.f32 %v1242, %v1259
      %v1266 = vsub.f32 %v1247, %v1262
      %v1267 = vmul.f32 %v1263, 1.442695
      %v1268 = vpow.pop %v1267
      %v1269 = vmul.f32 %v1264, 1.442695
      %v1270 = vpow.pop %v1269
      %v1271 = vmul.f32 %v1265, 1.442695
      %v1272 = vpow.pop %v1271
      %v1273 = vmul.f32 %v1266, 1.442695
      %v1274 = vpow.pop %v1273
      %v1275 = vsel %vm1250, %v1268, 0.0
      %1276 = vadd.xlane.f32.xlu0 %v1275
      %v1277 = vpop.xlane.xlu0 %1276
      %v1278 = vsel %vm1250, %v1270, 0.0
      %1279 = vadd.xlane.f32.xlu0 %v1278
      %v1280 = vpop.xlane.xlu0 %1279
      %v1281 = vsel %vm1250, %v1272, 0.0
      %1282 = vadd.xlane.f32.xlu0 %v1281
      %v1283 = vpop.xlane.xlu0 %1282
      %v1284 = vsel %vm1250, %v1274, 0.0
      %1285 = vadd.xlane.f32.xlu0 %v1284
      %v1286 = vpop.xlane.xlu0 %1285
      %v1288 = vsel %vm1250, %v1268, 0
      %v1291 = vsel %vm1250, %v1270, 0
      %v1294 = vsel %vm1250, %v1272, 0
      %v1297 = vsel %vm1250, %v1274, 0
      %1299 = vmatprep.subr.mxu0 0.0
      %1300 = vmatpush1.msra.mxu0 0.0
      %1301 = vmatprep.subr.mxu0 0.0
      %1302 = vmatpush1.msra.mxu0 0.0
      %1303 = vmatprep.subr.mxu0 0.0
      %1304 = vmatpush1.msra.mxu0 0.0
      %1305 = vmatprep.subr.mxu0 0.0
      %1306 = vmatpush1.msra.mxu0 0.0
      %1307 = vmatprep.subr.mxu0 0.0
      %1308 = vmatpush1.msra.mxu0 0.0
      %1309 = vmatprep.subr.mxu0 0.0
      %1310 = vmatpush1.msra.mxu0 0.0
      %1311 = vmatprep.subr.mxu0 0.0
      %1312 = vmatpush1.msra.mxu0 0.0
      %1313 = vmatprep.subr.mxu0 0.0
      %1314 = vmatpush1.msra.mxu0 0.0
      %1315 = vmatprep.subr.mxu0 0.0
      %1316 = vmatpush1.msra.mxu0 %v1127
      %1317 = vmatprep.subr.mxu0 0.0
      %1318 = vmatpush1.msra.mxu0 %v1126
      %1319 = vmatprep.subr.mxu0 0.0
      %1320 = vmatpush1.msra.mxu0 %v1125
      %1321 = vmatprep.subr.mxu0 0.0
      %1322 = vmatpush1.msra.mxu0 %v1124
      %1323 = vmatprep.subr.mxu0 0.0
      %1324 = vmatpush1.msra.mxu0 %v1123
      %1325 = vmatprep.subr.mxu0 0.0
      %1326 = vmatpush1.msra.mxu0 %v1122
      %1327 = vmatprep.subr.mxu0 0.0
      %1328 = vmatpush1.msra.mxu0 %v1121
      %1329 = vmatprep.subr.mxu0 0.0
      %1330 = vmatpush1.msra.mxu0 %v1120
      %1331 = vmatprep.subr.mxu0 0.0
      %1332 = vmatpush2.msra.mxu0 0.0
      %1333 = vmatprep.subr.mxu0 0.0
      %1334 = vmatpush2.msra.mxu0 0.0
      %1335 = vmatprep.subr.mxu0 0.0
      %1336 = vmatpush2.msra.mxu0 0.0
      %1337 = vmatprep.subr.mxu0 0.0
      %1338 = vmatpush2.msra.mxu0 0.0
      %1339 = vmatprep.subr.mxu0 0.0
      %1340 = vmatpush2.msra.mxu0 0.0
      %1341 = vmatprep.subr.mxu0 0.0
      %1342 = vmatpush2.msra.mxu0 0.0
      %1343 = vmatprep.subr.mxu0 0.0
      %1344 = vmatpush2.msra.mxu0 0.0
      %1345 = vmatprep.subr.mxu0 0.0
      %1346 = vmatpush2.msra.mxu0 0.0
      %1347 = vmatprep.subr.mxu0 0.0
      %1348 = vmatpush2.msra.mxu0 0.0
      %1349 = vmatprep.subr.mxu0 0.0
      %1350 = vmatpush2.msra.mxu0 0.0
      %1351 = vmatprep.subr.mxu0 0.0
      %1352 = vmatpush2.msra.mxu0 0.0
      %1353 = vmatprep.subr.mxu0 0.0
      %1354 = vmatpush2.msra.mxu0 0.0
      %1355 = vmatprep.subr.mxu0 0.0
      %1356 = vmatpush2.msra.mxu0 0.0
      %1357 = vmatprep.subr.mxu0 0.0
      %1358 = vmatpush2.msra.mxu0 0.0
      %1359 = vmatprep.subr.mxu0 0.0
      %1360 = vmatpush2.msra.mxu0 0.0
      %1361 = vmatprep.subr.mxu0 0.0
      %1362 = vmatpush2.msra.mxu0 0.0
      %1363 = vmatprep.mubr.f32.mxu0 0.0
      %1364 = vmatmul.mubr.f32.gmra.mxu0 %v1288
      %v1365 = vpop.f32.mrf.mxu0
      %v1366 = vadd.f32 0.0, %v1365
      %v1367 = vpop.f32.mrf.mxu0
      %1368 = vmatprep.mubr.f32.mxu0 0.0
      %1369 = vmatmul.mubr.f32.gmra.mxu0 %v1291
      %v1370 = vpop.f32.mrf.mxu0
      %v1371 = vadd.f32 0.0, %v1370
      %v1372 = vpop.f32.mrf.mxu0
      %1373 = vmatprep.mubr.f32.mxu0 0.0
      %1374 = vmatmul.mubr.f32.gmra.mxu0 %v1294
      %v1375 = vpop.f32.mrf.mxu0
      %v1376 = vadd.f32 0.0, %v1375
      %v1377 = vpop.f32.mrf.mxu0
      %1378 = vmatprep.mubr.f32.mxu0 0.0
      %1379 = vmatmul.mubr.f32.gmra.mxu0 %v1297
      %v1380 = vpop.f32.mrf.mxu0
      %v1381 = vadd.f32 0.0, %v1380
      %v1382 = vpop.f32.mrf.mxu0
      %1383 = vdwg.mxu0
      %v1384 = vrcp.pop %v1277
      %v1385 = vrcp.pop %v1280
      %v1386 = vrcp.pop %v1283
      %v1387 = vrcp.pop %v1286
      %v1388 = vmul.f32 %v1366, %v1384
      %v1389 = vmul.f32 %v1371, %v1385
      %v1390 = vmul.f32 %v1376, %v1386
      %v1391 = vmul.f32 %v1381, %v1387
      %v1392 = vld [vmem:[%s9] sm:$0xff]
      %1393 = vrot.lane.b32.xlu0 %v1108, 120
      %v1394 = vpop.permute.xlu0 %1393
      %1395 = vrot.lane.b32.xlu0 %v1109, 120
      %v1396 = vpop.permute.xlu0 %1395
      %1397 = vrot.lane.b32.xlu0 %v1110, 120
      %v1398 = vpop.permute.xlu0 %1397
      %1399 = vrot.lane.b32.xlu0 %v1111, 120
      %v1400 = vpop.permute.xlu0 %1399
      %1401 = vrot.lane.b32.xlu0 %v1112, 120
      %v1402 = vpop.permute.xlu0 %1401
      %1403 = vrot.lane.b32.xlu0 %v1113, 120
      %v1404 = vpop.permute.xlu0 %1403
      %1405 = vrot.lane.b32.xlu0 %v1114, 120
      %v1406 = vpop.permute.xlu0 %1405
      %1407 = vrot.lane.b32.xlu0 %v1115, 120
      %v1408 = vpop.permute.xlu0 %1407
      %1409 = vrot.lane.b32.xlu0 %v1116, 120
      %v1410 = vpop.permute.xlu0 %1409
      %1411 = vrot.lane.b32.xlu0 %v1117, 120
      %v1412 = vpop.permute.xlu0 %1411
      %1413 = vrot.lane.b32.xlu0 %v1118, 120
      %v1414 = vpop.permute.xlu0 %1413
      %1415 = vrot.lane.b32.xlu0 %v1119, 120
      %v1416 = vpop.permute.xlu0 %1415
      %v1417 = vsel %vm1128, %v1394, 0
      %v1419 = vsel %vm1128, %v1396, 0
      %v1421 = vsel %vm1128, %v1398, 0
      %v1423 = vsel %vm1128, %v1400, 0
      %v1425 = vsel %vm1128, %v1402, 0
      %v1427 = vsel %vm1128, %v1404, 0
      %v1429 = vsel %vm1128, %v1406, 0
      %v1431 = vsel %vm1128, %v1408, 0
      %v1433 = vsel %vm1128, %v1410, 0
      %v1435 = vsel %vm1128, %v1412, 0
      %v1437 = vsel %vm1128, %v1414, 0
      %v1439 = vsel %vm1128, %v1416, 0
      %1441 = vmatprep.subr.mxu0 0.0
      %1442 = vmatpush1.xpose.msra.mxu0 0.0
      %1443 = vmatprep.subr.mxu0 0.0
      %1444 = vmatpush1.xpose.msra.mxu0 0.0
      %1445 = vmatprep.subr.mxu0 0.0
      %1446 = vmatpush1.xpose.msra.mxu0 0.0
      %1447 = vmatprep.subr.mxu0 0.0
      %1448 = vmatpush1.xpose.msra.mxu0 0.0
      %1449 = vmatprep.subr.mxu0 0.0
      %1450 = vmatpush1.xpose.msra.mxu0 0.0
      %1451 = vmatprep.subr.mxu0 0.0
      %1452 = vmatpush1.xpose.msra.mxu0 0.0
      %1453 = vmatprep.subr.mxu0 0.0
      %1454 = vmatpush1.xpose.msra.mxu0 0.0
      %1455 = vmatprep.subr.mxu0 0.0
      %1456 = vmatpush1.xpose.msra.mxu0 0.0
      %1457 = vmatprep.subr.mxu0 0.0
      %1458 = vmatpush1.xpose.msra.mxu0 %v1439
      %1459 = vmatprep.subr.mxu0 0.0
      %1460 = vmatpush1.xpose.msra.mxu0 %v1437
      %1461 = vmatprep.subr.mxu0 0.0
      %1462 = vmatpush1.xpose.msra.mxu0 %v1435
      %1463 = vmatprep.subr.mxu0 0.0
      %1464 = vmatpush1.xpose.msra.mxu0 %v1433
      %1465 = vmatprep.subr.mxu0 0.0
      %1466 = vmatpush1.xpose.msra.mxu0 %v1431
      %1467 = vmatprep.subr.mxu0 0.0
      %1468 = vmatpush1.xpose.msra.mxu0 %v1429
      %1469 = vmatprep.subr.mxu0 0.0
      %1470 = vmatpush1.xpose.msra.mxu0 %v1427
      %1471 = vmatprep.subr.mxu0 0.0
      %1472 = vmatpush1.xpose.msra.mxu0 %v1425
      %1473 = vmatprep.subr.mxu0 0.0
      %1474 = vmatpush2.xpose.msra.mxu0 0.0
      %1475 = vmatprep.subr.mxu0 0.0
      %1476 = vmatpush2.xpose.msra.mxu0 0.0
      %1477 = vmatprep.subr.mxu0 0.0
      %1478 = vmatpush2.xpose.msra.mxu0 0.0
      %1479 = vmatprep.subr.mxu0 0.0
      %1480 = vmatpush2.xpose.msra.mxu0 0.0
      %1481 = vmatprep.subr.mxu0 0.0
      %1482 = vmatpush2.xpose.msra.mxu0 0.0
      %1483 = vmatprep.subr.mxu0 0.0
      %1484 = vmatpush2.xpose.msra.mxu0 0.0
      %1485 = vmatprep.subr.mxu0 0.0
      %1486 = vmatpush2.xpose.msra.mxu0 0.0
      %1487 = vmatprep.subr.mxu0 0.0
      %1488 = vmatpush2.xpose.msra.mxu0 0.0
      %1489 = vmatprep.subr.mxu0 0.0
      %1490 = vmatpush2.xpose.msra.mxu0 0.0
      %1491 = vmatprep.subr.mxu0 0.0
      %1492 = vmatpush2.xpose.msra.mxu0 0.0
      %1493 = vmatprep.subr.mxu0 0.0
      %1494 = vmatpush2.xpose.msra.mxu0 0.0
      %1495 = vmatprep.subr.mxu0 0.0
      %1496 = vmatpush2.xpose.msra.mxu0 0.0
      %1497 = vmatprep.subr.mxu0 0.0
      %1498 = vmatpush2.xpose.msra.mxu0 0.0
      %1499 = vmatprep.subr.mxu0 0.0
      %1500 = vmatpush2.xpose.msra.mxu0 0.0
      %1501 = vmatprep.subr.mxu0 0.0
      %1502 = vmatpush2.xpose.msra.mxu0 0.0
      %1503 = vmatprep.subr.mxu0 0.0
      %1504 = vmatpush2.xpose.msra.mxu0 0.0
      %1505 = vmatprep.mubr.f32.mxu0 0.0
      %1506 = vmatmul.mubr.f32.gmra.mxu0 %v1417
      %v1507 = vpop.f32.mrf.mxu0
      %v1508 = vadd.f32 %v995, %v1507
      %v1509 = vpop.f32.mrf.mxu0
      %1510 = vmatprep.mubr.f32.mxu0 0.0
      %1511 = vmatmul.mubr.f32.gmra.mxu0 %v1419
      %v1512 = vpop.f32.mrf.mxu0
      %v1513 = vadd.f32 %v996, %v1512
      %v1514 = vpop.f32.mrf.mxu0
      %1515 = vmatprep.mubr.f32.mxu0 0.0
      %1516 = vmatmul.mubr.f32.gmra.mxu0 %v1421
      %v1517 = vpop.f32.mrf.mxu0
      %v1518 = vadd.f32 %v997, %v1517
      %v1519 = vpop.f32.mrf.mxu0
      %1520 = vmatprep.mubr.f32.mxu0 0.0
      %1521 = vmatmul.mubr.f32.gmra.mxu0 %v1423
      %v1522 = vpop.f32.mrf.mxu0
      %v1523 = vadd.f32 %v998, %v1522
      %v1524 = vpop.f32.mrf.mxu0
      %1525 = vdwg.mxu0
      %v1526 = vsel %vm1250, %v1508, -inf
      %1527 = vmax.xlane.f32.xlu0 %v1526
      %v1528 = vpop.xlane.xlu0 %1527
      %v1529 = vsel %vm1250, %v1513, -inf
      %1530 = vmax.xlane.f32.xlu0 %v1529
      %v1531 = vpop.xlane.xlu0 %1530
      %v1532 = vsel %vm1250, %v1518, -inf
      %1533 = vmax.xlane.f32.xlu0 %v1532
      %v1534 = vpop.xlane.xlu0 %1533
      %v1535 = vsel %vm1250, %v1523, -inf
      %1536 = vmax.xlane.f32.xlu0 %v1535
      %v1537 = vpop.xlane.xlu0 %1536
      %v1538 = vsub.f32 %v1508, %v1528
      %v1539 = vsub.f32 %v1513, %v1531
      %v1540 = vsub.f32 %v1518, %v1534
      %v1541 = vsub.f32 %v1523, %v1537
      %v1542 = vmul.f32 %v1538, 1.442695
      %v1543 = vpow.pop %v1542
      %v1544 = vmul.f32 %v1539, 1.442695
      %v1545 = vpow.pop %v1544
      %v1546 = vmul.f32 %v1540, 1.442695
      %v1547 = vpow.pop %v1546
      %v1548 = vmul.f32 %v1541, 1.442695
      %v1549 = vpow.pop %v1548
      %v1550 = vsel %vm1250, %v1543, 0.0
      %1551 = vadd.xlane.f32.xlu0 %v1550
      %v1552 = vpop.xlane.xlu0 %1551
      %v1553 = vsel %vm1250, %v1545, 0.0
      %1554 = vadd.xlane.f32.xlu0 %v1553
      %v1555 = vpop.xlane.xlu0 %1554
      %v1556 = vsel %vm1250, %v1547, 0.0
      %1557 = vadd.xlane.f32.xlu0 %v1556
      %v1558 = vpop.xlane.xlu0 %1557
      %v1559 = vsel %vm1250, %v1549, 0.0
      %1560 = vadd.xlane.f32.xlu0 %v1559
      %v1561 = vpop.xlane.xlu0 %1560
      %1570 = vrot.lane.b32.xlu0 %v1120, 120
      %v1571 = vpop.permute.xlu0 %1570
      %1572 = vrot.lane.b32.xlu0 %v1121, 120
      %v1573 = vpop.permute.xlu0 %1572
      %1574 = vrot.lane.b32.xlu0 %v1122, 120
      %v1575 = vpop.permute.xlu0 %1574
      %1576 = vrot.lane.b32.xlu0 %v1123, 120
      %v1577 = vpop.permute.xlu0 %1576
      %1578 = vrot.lane.b32.xlu0 %v1124, 120
      %v1579 = vpop.permute.xlu0 %1578
      %1580 = vrot.lane.b32.xlu0 %v1125, 120
      %v1581 = vpop.permute.xlu0 %1580
      %1582 = vrot.lane.b32.xlu0 %v1126, 120
      %v1583 = vpop.permute.xlu0 %1582
      %1584 = vrot.lane.b32.xlu0 %v1127, 120
      %v1585 = vpop.permute.xlu0 %1584
      %v1595 = vsel %vm1250, %v1543, 0
      %v1598 = vsel %vm1250, %v1545, 0
      %v1601 = vsel %vm1250, %v1547, 0
      %v1604 = vsel %vm1250, %v1549, 0
      %1606 = vmatprep.subr.mxu0 0.0
      %1607 = vmatpush1.msra.mxu0 0.0
      %1608 = vmatprep.subr.mxu0 0.0
      %1609 = vmatpush1.msra.mxu0 0.0
      %1610 = vmatprep.subr.mxu0 0.0
      %1611 = vmatpush1.msra.mxu0 0.0
      %1612 = vmatprep.subr.mxu0 0.0
      %1613 = vmatpush1.msra.mxu0 0.0
      %1614 = vmatprep.subr.mxu0 0.0
      %1615 = vmatpush1.msra.mxu0 0.0
      %1616 = vmatprep.subr.mxu0 0.0
      %1617 = vmatpush1.msra.mxu0 0.0
      %1618 = vmatprep.subr.mxu0 0.0
      %1619 = vmatpush1.msra.mxu0 0.0
      %1620 = vmatprep.subr.mxu0 0.0
      %1621 = vmatpush1.msra.mxu0 0.0
      %1622 = vmatprep.subr.mxu0 0.0
      %1623 = vmatpush1.msra.mxu0 %v1585
      %1624 = vmatprep.subr.mxu0 0.0
      %1625 = vmatpush1.msra.mxu0 %v1583
      %1626 = vmatprep.subr.mxu0 0.0
      %1627 = vmatpush1.msra.mxu0 %v1581
      %1628 = vmatprep.subr.mxu0 0.0
      %1629 = vmatpush1.msra.mxu0 %v1579
      %1630 = vmatprep.subr.mxu0 0.0
      %1631 = vmatpush1.msra.mxu0 %v1577
      %1632 = vmatprep.subr.mxu0 0.0
      %1633 = vmatpush1.msra.mxu0 %v1575
      %1634 = vmatprep.subr.mxu0 0.0
      %1635 = vmatpush1.msra.mxu0 %v1573
      %1636 = vmatprep.subr.mxu0 0.0
      %1637 = vmatpush1.msra.mxu0 %v1571
      %1638 = vmatprep.subr.mxu0 0.0
      %1639 = vmatpush2.msra.mxu0 0.0
      %1640 = vmatprep.subr.mxu0 0.0
      %1641 = vmatpush2.msra.mxu0 0.0
      %1642 = vmatprep.subr.mxu0 0.0
      %1643 = vmatpush2.msra.mxu0 0.0
      %1644 = vmatprep.subr.mxu0 0.0
      %1645 = vmatpush2.msra.mxu0 0.0
      %1646 = vmatprep.subr.mxu0 0.0
      %1647 = vmatpush2.msra.mxu0 0.0
      %1648 = vmatprep.subr.mxu0 0.0
      %1649 = vmatpush2.msra.mxu0 0.0
      %1650 = vmatprep.subr.mxu0 0.0
      %1651 = vmatpush2.msra.mxu0 0.0
      %1652 = vmatprep.subr.mxu0 0.0
      %1653 = vmatpush2.msra.mxu0 0.0
      %1654 = vmatprep.subr.mxu0 0.0
      %1655 = vmatpush2.msra.mxu0 0.0
      %1656 = vmatprep.subr.mxu0 0.0
      %1657 = vmatpush2.msra.mxu0 0.0
      %1658 = vmatprep.subr.mxu0 0.0
      %1659 = vmatpush2.msra.mxu0 0.0
      %1660 = vmatprep.subr.mxu0 0.0
      %1661 = vmatpush2.msra.mxu0 0.0
      %1662 = vmatprep.subr.mxu0 0.0
      %1663 = vmatpush2.msra.mxu0 0.0
      %1664 = vmatprep.subr.mxu0 0.0
      %1665 = vmatpush2.msra.mxu0 0.0
      %1666 = vmatprep.subr.mxu0 0.0
      %1667 = vmatpush2.msra.mxu0 0.0
      %1668 = vmatprep.subr.mxu0 0.0
      %1669 = vmatpush2.msra.mxu0 0.0
      %1670 = vmatprep.mubr.f32.mxu0 0.0
      %1671 = vmatmul.mubr.f32.gmra.mxu0 %v1595
      %v1672 = vpop.f32.mrf.mxu0
      %v1673 = vadd.f32 0.0, %v1672
      %v1674 = vpop.f32.mrf.mxu0
      %1675 = vmatprep.mubr.f32.mxu0 0.0
      %1676 = vmatmul.mubr.f32.gmra.mxu0 %v1598
      %v1677 = vpop.f32.mrf.mxu0
      %v1678 = vadd.f32 0.0, %v1677
      %v1679 = vpop.f32.mrf.mxu0
      %1680 = vmatprep.mubr.f32.mxu0 0.0
      %1681 = vmatmul.mubr.f32.gmra.mxu0 %v1601
      %v1682 = vpop.f32.mrf.mxu0
      %v1683 = vadd.f32 0.0, %v1682
      %v1684 = vpop.f32.mrf.mxu0
      %1685 = vmatprep.mubr.f32.mxu0 0.0
      %1686 = vmatmul.mubr.f32.gmra.mxu0 %v1604
      %v1687 = vpop.f32.mrf.mxu0
      %v1688 = vadd.f32 0.0, %v1687
      %v1689 = vpop.f32.mrf.mxu0
      %1690 = vdwg.mxu0
      %v1691 = vrcp.pop %v1552
      %v1692 = vrcp.pop %v1555
      %v1693 = vrcp.pop %v1558
      %v1694 = vrcp.pop %v1561
      %v1695 = vmul.f32 %v1673, %v1691
      %v1696 = vmul.f32 %v1678, %v1692
      %v1697 = vmul.f32 %v1683, %v1693
      %v1698 = vmul.f32 %v1688, %v1694
      %v1699 = vld [vmem:[%s9 + $0x8] sm:$0xff]
      %v1701 = vsel %vm1128, %v1695, 0
      %v1704 = vsel %vm1128, %v1696, 0
      %v1707 = vsel %vm1128, %v1697, 0
      %v1710 = vsel %vm1128, %v1698, 0
      %1712 = vmatprep.subr.mxu0 0.0
      %1713 = vmatpush1.msra.mxu0 0.0
      %1714 = vmatprep.subr.mxu0 0.0
      %1715 = vmatpush1.msra.mxu0 0.0
      %1716 = vmatprep.subr.mxu0 0.0
      %1717 = vmatpush1.msra.mxu0 0.0
      %1718 = vmatprep.subr.mxu0 0.0
      %1719 = vmatpush1.msra.mxu0 0.0
      %1720 = vmatprep.subr.mxu0 0.0
      %1721 = vmatpush1.msra.mxu0 0.0
      %1722 = vmatprep.subr.mxu0 0.0
      %1723 = vmatpush1.msra.mxu0 0.0
      %1724 = vmatprep.subr.mxu0 0.0
      %1725 = vmatpush1.msra.mxu0 0.0
      %1726 = vmatprep.subr.mxu0 0.0
      %1727 = vmatpush1.msra.mxu0 0.0
      %1728 = vmatprep.subr.mxu0 0.0
      %1729 = vmatpush1.msra.mxu0 0.0
      %1730 = vmatprep.subr.mxu0 0.0
      %1731 = vmatpush1.msra.mxu0 0.0
      %1732 = vmatprep.subr.mxu0 0.0
      %1733 = vmatpush1.msra.mxu0 0.0
      %1734 = vmatprep.subr.mxu0 0.0
      %1735 = vmatpush1.msra.mxu0 0.0
      %1736 = vmatprep.subr.mxu0 0.0
      %1737 = vmatpush1.msra.mxu0 0.0
      %1738 = vmatprep.subr.mxu0 0.0
      %1739 = vmatpush1.msra.mxu0 0.0
      %1740 = vmatprep.subr.mxu0 0.0
      %1741 = vmatpush1.msra.mxu0 0.0
      %1742 = vmatprep.subr.mxu0 0.0
      %1743 = vmatpush1.msra.mxu0 %v1699
      %1744 = vmatprep.subr.mxu0 0.0
      %1745 = vmatpush2.msra.mxu0 0.0
      %1746 = vmatprep.subr.mxu0 0.0
      %1747 = vmatpush2.msra.mxu0 0.0
      %1748 = vmatprep.subr.mxu0 0.0
      %1749 = vmatpush2.msra.mxu0 0.0
      %1750 = vmatprep.subr.mxu0 0.0
      %1751 = vmatpush2.msra.mxu0 0.0
      %1752 = vmatprep.subr.mxu0 0.0
      %1753 = vmatpush2.msra.mxu0 0.0
      %1754 = vmatprep.subr.mxu0 0.0
      %1755 = vmatpush2.msra.mxu0 0.0
      %1756 = vmatprep.subr.mxu0 0.0
      %1757 = vmatpush2.msra.mxu0 0.0
      %1758 = vmatprep.subr.mxu0 0.0
      %1759 = vmatpush2.msra.mxu0 0.0
      %1760 = vmatprep.subr.mxu0 0.0
      %1761 = vmatpush2.msra.mxu0 0.0
      %1762 = vmatprep.subr.mxu0 0.0
      %1763 = vmatpush2.msra.mxu0 0.0
      %1764 = vmatprep.subr.mxu0 0.0
      %1765 = vmatpush2.msra.mxu0 0.0
      %1766 = vmatprep.subr.mxu0 0.0
      %1767 = vmatpush2.msra.mxu0 0.0
      %1768 = vmatprep.subr.mxu0 0.0
      %1769 = vmatpush2.msra.mxu0 0.0
      %1770 = vmatprep.subr.mxu0 0.0
      %1771 = vmatpush2.msra.mxu0 0.0
      %1772 = vmatprep.subr.mxu0 0.0
      %1773 = vmatpush2.msra.mxu0 0.0
      %1774 = vmatprep.subr.mxu0 0.0
      %1775 = vmatpush2.msra.mxu0 0.0
      %1776 = vmatprep.mubr.f32.mxu0 0.0
      %1777 = vmatmul.mubr.f32.gmra.mxu0 %v1701
      %v1778 = vpop.f32.mrf.mxu0
      %v1779 = vadd.f32 0.0, %v1778
      %v1780 = vpop.f32.mrf.mxu0
      %1781 = vmatprep.mubr.f32.mxu0 0.0
      %1782 = vmatmul.mubr.f32.gmra.mxu0 %v1704
      %v1783 = vpop.f32.mrf.mxu0
      %v1784 = vadd.f32 0.0, %v1783
      %v1785 = vpop.f32.mrf.mxu0
      %1786 = vmatprep.mubr.f32.mxu0 0.0
      %1787 = vmatmul.mubr.f32.gmra.mxu0 %v1707
      %v1788 = vpop.f32.mrf.mxu0
      %v1789 = vadd.f32 0.0, %v1788
      %v1790 = vpop.f32.mrf.mxu0
      %1791 = vmatprep.mubr.f32.mxu0 0.0
      %1792 = vmatmul.mubr.f32.gmra.mxu0 %v1710
      %v1793 = vpop.f32.mrf.mxu0
      %v1794 = vadd.f32 0.0, %v1793
      %v1795 = vpop.f32.mrf.mxu0
      %1796 = vdwg.mxu0
      %v1798 = vsel %vm1128, %v1388, 0
      %v1801 = vsel %vm1128, %v1389, 0
      %v1804 = vsel %vm1128, %v1390, 0
      %v1807 = vsel %vm1128, %v1391, 0
      %1809 = vmatprep.subr.mxu0 0.0
      %1810 = vmatpush1.msra.mxu0 0.0
      %1811 = vmatprep.subr.mxu0 0.0
      %1812 = vmatpush1.msra.mxu0 0.0
      %1813 = vmatprep.subr.mxu0 0.0
      %1814 = vmatpush1.msra.mxu0 0.0
      %1815 = vmatprep.subr.mxu0 0.0
      %1816 = vmatpush1.msra.mxu0 0.0
      %1817 = vmatprep.subr.mxu0 0.0
      %1818 = vmatpush1.msra.mxu0 0.0
      %1819 = vmatprep.subr.mxu0 0.0
      %1820 = vmatpush1.msra.mxu0 0.0
      %1821 = vmatprep.subr.mxu0 0.0
      %1822 = vmatpush1.msra.mxu0 0.0
      %1823 = vmatprep.subr.mxu0 0.0
      %1824 = vmatpush1.msra.mxu0 0.0
      %1825 = vmatprep.subr.mxu0 0.0
      %1826 = vmatpush1.msra.mxu0 0.0
      %1827 = vmatprep.subr.mxu0 0.0
      %1828 = vmatpush1.msra.mxu0 0.0
      %1829 = vmatprep.subr.mxu0 0.0
      %1830 = vmatpush1.msra.mxu0 0.0
      %1831 = vmatprep.subr.mxu0 0.0
      %1832 = vmatpush1.msra.mxu0 0.0
      %1833 = vmatprep.subr.mxu0 0.0
      %1834 = vmatpush1.msra.mxu0 0.0
      %1835 = vmatprep.subr.mxu0 0.0
      %1836 = vmatpush1.msra.mxu0 0.0
      %1837 = vmatprep.subr.mxu0 0.0
      %1838 = vmatpush1.msra.mxu0 0.0
      %1839 = vmatprep.subr.mxu0 0.0
      %1840 = vmatpush1.msra.mxu0 %v1392
      %1841 = vmatprep.subr.mxu0 0.0
      %1842 = vmatpush2.msra.mxu0 0.0
      %1843 = vmatprep.subr.mxu0 0.0
      %1844 = vmatpush2.msra.mxu0 0.0
      %1845 = vmatprep.subr.mxu0 0.0
      %1846 = vmatpush2.msra.mxu0 0.0
      %1847 = vmatprep.subr.mxu0 0.0
      %1848 = vmatpush2.msra.mxu0 0.0
      %1849 = vmatprep.subr.mxu0 0.0
      %1850 = vmatpush2.msra.mxu0 0.0
      %1851 = vmatprep.subr.mxu0 0.0
      %1852 = vmatpush2.msra.mxu0 0.0
      %1853 = vmatprep.subr.mxu0 0.0
      %1854 = vmatpush2.msra.mxu0 0.0
      %1855 = vmatprep.subr.mxu0 0.0
      %1856 = vmatpush2.msra.mxu0 0.0
      %1857 = vmatprep.subr.mxu0 0.0
      %1858 = vmatpush2.msra.mxu0 0.0
      %1859 = vmatprep.subr.mxu0 0.0
      %1860 = vmatpush2.msra.mxu0 0.0
      %1861 = vmatprep.subr.mxu0 0.0
      %1862 = vmatpush2.msra.mxu0 0.0
      %1863 = vmatprep.subr.mxu0 0.0
      %1864 = vmatpush2.msra.mxu0 0.0
      %1865 = vmatprep.subr.mxu0 0.0
      %1866 = vmatpush2.msra.mxu0 0.0
      %1867 = vmatprep.subr.mxu0 0.0
      %1868 = vmatpush2.msra.mxu0 0.0
      %1869 = vmatprep.subr.mxu0 0.0
      %1870 = vmatpush2.msra.mxu0 0.0
      %1871 = vmatprep.subr.mxu0 0.0
      %1872 = vmatpush2.msra.mxu0 0.0
      %1873 = vmatprep.mubr.f32.mxu0 0.0
      %1874 = vmatmul.mubr.f32.gmra.mxu0 %v1798
      %v1875 = vpop.f32.mrf.mxu0
      %v1876 = vadd.f32 %v1779, %v1875
      %v1877 = vpop.f32.mrf.mxu0
      %1878 = vmatprep.mubr.f32.mxu0 0.0
      %1879 = vmatmul.mubr.f32.gmra.mxu0 %v1801
      %v1880 = vpop.f32.mrf.mxu0
      %v1881 = vadd.f32 %v1784, %v1880
      %v1882 = vpop.f32.mrf.mxu0
      %1883 = vmatprep.mubr.f32.mxu0 0.0
      %1884 = vmatmul.mubr.f32.gmra.mxu0 %v1804
      %v1885 = vpop.f32.mrf.mxu0
      %v1886 = vadd.f32 %v1789, %v1885
      %v1887 = vpop.f32.mrf.mxu0
      %1888 = vmatprep.mubr.f32.mxu0 0.0
      %1889 = vmatmul.mubr.f32.gmra.mxu0 %v1807
      %v1890 = vpop.f32.mrf.mxu0
      %v1891 = vadd.f32 %v1794, %v1890
      %v1892 = vpop.f32.mrf.mxu0
      %1893 = vdwg.mxu0
      %1894 = vrot.lane.b32.xlu0 %v1108, 112
      %v1895 = vpop.permute.xlu0 %1894
      %1896 = vrot.lane.b32.xlu0 %v1109, 112
      %v1897 = vpop.permute.xlu0 %1896
      %1898 = vrot.lane.b32.xlu0 %v1110, 112
      %v1899 = vpop.permute.xlu0 %1898
      %1900 = vrot.lane.b32.xlu0 %v1111, 112
      %v1901 = vpop.permute.xlu0 %1900
      %1902 = vrot.lane.b32.xlu0 %v1112, 112
      %v1903 = vpop.permute.xlu0 %1902
      %1904 = vrot.lane.b32.xlu0 %v1113, 112
      %v1905 = vpop.permute.xlu0 %1904
      %1906 = vrot.lane.b32.xlu0 %v1114, 112
      %v1907 = vpop.permute.xlu0 %1906
      %1908 = vrot.lane.b32.xlu0 %v1115, 112
      %v1909 = vpop.permute.xlu0 %1908
      %1910 = vrot.lane.b32.xlu0 %v1116, 112
      %v1911 = vpop.permute.xlu0 %1910
      %1912 = vrot.lane.b32.xlu0 %v1117, 112
      %v1913 = vpop.permute.xlu0 %1912
      %1914 = vrot.lane.b32.xlu0 %v1118, 112
      %v1915 = vpop.permute.xlu0 %1914
      %1916 = vrot.lane.b32.xlu0 %v1119, 112
      %v1917 = vpop.permute.xlu0 %1916
      %v1918 = vsel %vm1128, %v1895, 0
      %v1920 = vsel %vm1128, %v1897, 0
      %v1922 = vsel %vm1128, %v1899, 0
      %v1924 = vsel %vm1128, %v1901, 0
      %v1926 = vsel %vm1128, %v1903, 0
      %v1928 = vsel %vm1128, %v1905, 0
      %v1930 = vsel %vm1128, %v1907, 0
      %v1932 = vsel %vm1128, %v1909, 0
      %v1934 = vsel %vm1128, %v1911, 0
      %v1936 = vsel %vm1128, %v1913, 0
      %v1938 = vsel %vm1128, %v1915, 0
      %v1940 = vsel %vm1128, %v1917, 0
      %1942 = vmatprep.subr.mxu0 0.0
      %1943 = vmatpush1.xpose.msra.mxu0 0.0
      %1944 = vmatprep.subr.mxu0 0.0
      %1945 = vmatpush1.xpose.msra.mxu0 0.0
      %1946 = vmatprep.subr.mxu0 0.0
      %1947 = vmatpush1.xpose.msra.mxu0 0.0
      %1948 = vmatprep.subr.mxu0 0.0
      %1949 = vmatpush1.xpose.msra.mxu0 0.0
      %1950 = vmatprep.subr.mxu0 0.0
      %1951 = vmatpush1.xpose.msra.mxu0 0.0
      %1952 = vmatprep.subr.mxu0 0.0
      %1953 = vmatpush1.xpose.msra.mxu0 0.0
      %1954 = vmatprep.subr.mxu0 0.0
      %1955 = vmatpush1.xpose.msra.mxu0 0.0
      %1956 = vmatprep.subr.mxu0 0.0
      %1957 = vmatpush1.xpose.msra.mxu0 0.0
      %1958 = vmatprep.subr.mxu0 0.0
      %1959 = vmatpush1.xpose.msra.mxu0 %v1940
      %1960 = vmatprep.subr.mxu0 0.0
      %1961 = vmatpush1.xpose.msra.mxu0 %v1938
      %1962 = vmatprep.subr.mxu0 0.0
      %1963 = vmatpush1.xpose.msra.mxu0 %v1936
      %1964 = vmatprep.subr.mxu0 0.0
      %1965 = vmatpush1.xpose.msra.mxu0 %v1934
      %1966 = vmatprep.subr.mxu0 0.0
      %1967 = vmatpush1.xpose.msra.mxu0 %v1932
      %1968 = vmatprep.subr.mxu0 0.0
      %1969 = vmatpush1.xpose.msra.mxu0 %v1930
      %1970 = vmatprep.subr.mxu0 0.0
      %1971 = vmatpush1.xpose.msra.mxu0 %v1928
      %1972 = vmatprep.subr.mxu0 0.0
      %1973 = vmatpush1.xpose.msra.mxu0 %v1926
      %1974 = vmatprep.subr.mxu0 0.0
      %1975 = vmatpush2.xpose.msra.mxu0 0.0
      %1976 = vmatprep.subr.mxu0 0.0
      %1977 = vmatpush2.xpose.msra.mxu0 0.0
      %1978 = vmatprep.subr.mxu0 0.0
      %1979 = vmatpush2.xpose.msra.mxu0 0.0
      %1980 = vmatprep.subr.mxu0 0.0
      %1981 = vmatpush2.xpose.msra.mxu0 0.0
      %1982 = vmatprep.subr.mxu0 0.0
      %1983 = vmatpush2.xpose.msra.mxu0 0.0
      %1984 = vmatprep.subr.mxu0 0.0
      %1985 = vmatpush2.xpose.msra.mxu0 0.0
      %1986 = vmatprep.subr.mxu0 0.0
      %1987 = vmatpush2.xpose.msra.mxu0 0.0
      %1988 = vmatprep.subr.mxu0 0.0
      %1989 = vmatpush2.xpose.msra.mxu0 0.0
      %1990 = vmatprep.subr.mxu0 0.0
      %1991 = vmatpush2.xpose.msra.mxu0 0.0
      %1992 = vmatprep.subr.mxu0 0.0
      %1993 = vmatpush2.xpose.msra.mxu0 0.0
      %1994 = vmatprep.subr.mxu0 0.0
      %1995 = vmatpush2.xpose.msra.mxu0 0.0
      %1996 = vmatprep.subr.mxu0 0.0
      %1997 = vmatpush2.xpose.msra.mxu0 0.0
      %1998 = vmatprep.subr.mxu0 0.0
      %1999 = vmatpush2.xpose.msra.mxu0 0.0
      %2000 = vmatprep.subr.mxu0 0.0
      %2001 = vmatpush2.xpose.msra.mxu0 0.0
      %2002 = vmatprep.subr.mxu0 0.0
      %2003 = vmatpush2.xpose.msra.mxu0 0.0
      %2004 = vmatprep.subr.mxu0 0.0
      %2005 = vmatpush2.xpose.msra.mxu0 0.0
      %2006 = vmatprep.mubr.f32.mxu0 0.0
      %2007 = vmatmul.mubr.f32.gmra.mxu0 %v1918
      %v2008 = vpop.f32.mrf.mxu0
      %v2009 = vadd.f32 %v995, %v2008
      %v2010 = vpop.f32.mrf.mxu0
      %2011 = vmatprep.mubr.f32.mxu0 0.0
      %2012 = vmatmul.mubr.f32.gmra.mxu0 %v1920
      %v2013 = vpop.f32.mrf.mxu0
      %v2014 = vadd.f32 %v996, %v2013
      %v2015 = vpop.f32.mrf.mxu0
      %2016 = vmatprep.mubr.f32.mxu0 0.0
      %2017 = vmatmul.mubr.f32.gmra.mxu0 %v1922
      %v2018 = vpop.f32.mrf.mxu0
      %v2019 = vadd.f32 %v997, %v2018
      %v2020 = vpop.f32.mrf.mxu0
      %2021 = vmatprep.mubr.f32.mxu0 0.0
      %2022 = vmatmul.mubr.f32.gmra.mxu0 %v1924
      %v2023 = vpop.f32.mrf.mxu0
      %v2024 = vadd.f32 %v998, %v2023
      %v2025 = vpop.f32.mrf.mxu0
      %2026 = vdwg.mxu0
      %v2027 = vsel %vm1250, %v2009, -inf
      %2028 = vmax.xlane.f32.xlu0 %v2027
      %v2029 = vpop.xlane.xlu0 %2028
      %v2030 = vsel %vm1250, %v2014, -inf
      %2031 = vmax.xlane.f32.xlu0 %v2030
      %v2032 = vpop.xlane.xlu0 %2031
      %v2033 = vsel %vm1250, %v2019, -inf
      %2034 = vmax.xlane.f32.xlu0 %v2033
      %v2035 = vpop.xlane.xlu0 %2034
      %v2036 = vsel %vm1250, %v2024, -inf
      %2037 = vmax.xlane.f32.xlu0 %v2036
      %v2038 = vpop.xlane.xlu0 %2037
      %v2039 = vsub.f32 %v2009, %v2029
      %v2040 = vsub.f32 %v2014, %v2032
      %v2041 = vsub.f32 %v2019, %v2035
      %v2042 = vsub.f32 %v2024, %v2038
      %v2043 = vmul.f32 %v2039, 1.442695
      %v2044 = vpow.pop %v2043
      %v2045 = vmul.f32 %v2040, 1.442695
      %v2046 = vpow.pop %v2045
      %v2047 = vmul.f32 %v2041, 1.442695
      %v2048 = vpow.pop %v2047
      %v2049 = vmul.f32 %v2042, 1.442695
      %v2050 = vpow.pop %v2049
      %v2051 = vsel %vm1250, %v2044, 0.0
      %2052 = vadd.xlane.f32.xlu0 %v2051
      %v2053 = vpop.xlane.xlu0 %2052
      %v2054 = vsel %vm1250, %v2046, 0.0
      %2055 = vadd.xlane.f32.xlu0 %v2054
      %v2056 = vpop.xlane.xlu0 %2055
      %v2057 = vsel %vm1250, %v2048, 0.0
      %2058 = vadd.xlane.f32.xlu0 %v2057
      %v2059 = vpop.xlane.xlu0 %2058
      %v2060 = vsel %vm1250, %v2050, 0.0
      %2061 = vadd.xlane.f32.xlu0 %v2060
      %v2062 = vpop.xlane.xlu0 %2061
      %2063 = vrot.lane.b32.xlu0 %v1120, 112
      %v2064 = vpop.permute.xlu0 %2063
      %2065 = vrot.lane.b32.xlu0 %v1121, 112
      %v2066 = vpop.permute.xlu0 %2065
      %2067 = vrot.lane.b32.xlu0 %v1122, 112
      %v2068 = vpop.permute.xlu0 %2067
      %2069 = vrot.lane.b32.xlu0 %v1123, 112
      %v2070 = vpop.permute.xlu0 %2069
      %2071 = vrot.lane.b32.xlu0 %v1124, 112
      %v2072 = vpop.permute.xlu0 %2071
      %2073 = vrot.lane.b32.xlu0 %v1125, 112
      %v2074 = vpop.permute.xlu0 %2073
      %2075 = vrot.lane.b32.xlu0 %v1126, 112
      %v2076 = vpop.permute.xlu0 %2075
      %2077 = vrot.lane.b32.xlu0 %v1127, 112
      %v2078 = vpop.permute.xlu0 %2077
      %v2088 = vsel %vm1250, %v2044, 0
      %v2091 = vsel %vm1250, %v2046, 0
      %v2094 = vsel %vm1250, %v2048, 0
      %v2097 = vsel %vm1250, %v2050, 0
      %2099 = vmatprep.subr.mxu0 0.0
      %2100 = vmatpush1.msra.mxu0 0.0
      %2101 = vmatprep.subr.mxu0 0.0
      %2102 = vmatpush1.msra.mxu0 0.0
      %2103 = vmatprep.subr.mxu0 0.0
      %2104 = vmatpush1.msra.mxu0 0.0
      %2105 = vmatprep.subr.mxu0 0.0
      %2106 = vmatpush1.msra.mxu0 0.0
      %2107 = vmatprep.subr.mxu0 0.0
      %2108 = vmatpush1.msra.mxu0 0.0
      %2109 = vmatprep.subr.mxu0 0.0
      %2110 = vmatpush1.msra.mxu0 0.0
      %2111 = vmatprep.subr.mxu0 0.0
      %2112 = vmatpush1.msra.mxu0 0.0
      %2113 = vmatprep.subr.mxu0 0.0
      %2114 = vmatpush1.msra.mxu0 0.0
      %2115 = vmatprep.subr.mxu0 0.0
      %2116 = vmatpush1.msra.mxu0 %v2078
      %2117 = vmatprep.subr.mxu0 0.0
      %2118 = vmatpush1.msra.mxu0 %v2076
      %2119 = vmatprep.subr.mxu0 0.0
      %2120 = vmatpush1.msra.mxu0 %v2074
      %2121 = vmatprep.subr.mxu0 0.0
      %2122 = vmatpush1.msra.mxu0 %v2072
      %2123 = vmatprep.subr.mxu0 0.0
      %2124 = vmatpush1.msra.mxu0 %v2070
      %2125 = vmatprep.subr.mxu0 0.0
      %2126 = vmatpush1.msra.mxu0 %v2068
      %2127 = vmatprep.subr.mxu0 0.0
      %2128 = vmatpush1.msra.mxu0 %v2066
      %2129 = vmatprep.subr.mxu0 0.0
      %2130 = vmatpush1.msra.mxu0 %v2064
      %2131 = vmatprep.subr.mxu0 0.0
      %2132 = vmatpush2.msra.mxu0 0.0
      %2133 = vmatprep.subr.mxu0 0.0
      %2134 = vmatpush2.msra.mxu0 0.0
      %2135 = vmatprep.subr.mxu0 0.0
      %2136 = vmatpush2.msra.mxu0 0.0
      %2137 = vmatprep.subr.mxu0 0.0
      %2138 = vmatpush2.msra.mxu0 0.0
      %2139 = vmatprep.subr.mxu0 0.0
      %2140 = vmatpush2.msra.mxu0 0.0
      %2141 = vmatprep.subr.mxu0 0.0
      %2142 = vmatpush2.msra.mxu0 0.0
      %2143 = vmatprep.subr.mxu0 0.0
      %2144 = vmatpush2.msra.mxu0 0.0
      %2145 = vmatprep.subr.mxu0 0.0
      %2146 = vmatpush2.msra.mxu0 0.0
      %2147 = vmatprep.subr.mxu0 0.0
      %2148 = vmatpush2.msra.mxu0 0.0
      %2149 = vmatprep.subr.mxu0 0.0
      %2150 = vmatpush2.msra.mxu0 0.0
      %2151 = vmatprep.subr.mxu0 0.0
      %2152 = vmatpush2.msra.mxu0 0.0
      %2153 = vmatprep.subr.mxu0 0.0
      %2154 = vmatpush2.msra.mxu0 0.0
      %2155 = vmatprep.subr.mxu0 0.0
      %2156 = vmatpush2.msra.mxu0 0.0
      %2157 = vmatprep.subr.mxu0 0.0
      %2158 = vmatpush2.msra.mxu0 0.0
      %2159 = vmatprep.subr.mxu0 0.0
      %2160 = vmatpush2.msra.mxu0 0.0
      %2161 = vmatprep.subr.mxu0 0.0
      %2162 = vmatpush2.msra.mxu0 0.0
      %2163 = vmatprep.mubr.f32.mxu0 0.0
      %2164 = vmatmul.mubr.f32.gmra.mxu0 %v2088
      %v2165 = vpop.f32.mrf.mxu0
      %v2166 = vadd.f32 0.0, %v2165
      %v2167 = vpop.f32.mrf.mxu0
      %2168 = vmatprep.mubr.f32.mxu0 0.0
      %2169 = vmatmul.mubr.f32.gmra.mxu0 %v2091
      %v2170 = vpop.f32.mrf.mxu0
      %v2171 = vadd.f32 0.0, %v2170
      %v2172 = vpop.f32.mrf.mxu0
      %2173 = vmatprep.mubr.f32.mxu0 0.0
      %2174 = vmatmul.mubr.f32.gmra.mxu0 %v2094
      %v2175 = vpop.f32.mrf.mxu0
      %v2176 = vadd.f32 0.0, %v2175
      %v2177 = vpop.f32.mrf.mxu0
      %2178 = vmatprep.mubr.f32.mxu0 0.0
      %2179 = vmatmul.mubr.f32.gmra.mxu0 %v2097
      %v2180 = vpop.f32.mrf.mxu0
      %v2181 = vadd.f32 0.0, %v2180
      %v2182 = vpop.f32.mrf.mxu0
      %2183 = vdwg.mxu0
      %v2184 = vrcp.pop %v2053
      %v2185 = vrcp.pop %v2056
      %v2186 = vrcp.pop %v2059
      %v2187 = vrcp.pop %v2062
      %v2188 = vmul.f32 %v2166, %v2184
      %v2189 = vmul.f32 %v2171, %v2185
      %v2190 = vmul.f32 %v2176, %v2186
      %v2191 = vmul.f32 %v2181, %v2187
      %v2192 = vld [vmem:[%s9 + $0x10] sm:$0xff]
      %v2194 = vsel %vm1128, %v2188, 0
      %v2197 = vsel %vm1128, %v2189, 0
      %v2200 = vsel %vm1128, %v2190, 0
      %v2203 = vsel %vm1128, %v2191, 0
      %2205 = vmatprep.subr.mxu0 0.0
      %2206 = vmatpush1.msra.mxu0 0.0
      %2207 = vmatprep.subr.mxu0 0.0
      %2208 = vmatpush1.msra.mxu0 0.0
      %2209 = vmatprep.subr.mxu0 0.0
      %2210 = vmatpush1.msra.mxu0 0.0
      %2211 = vmatprep.subr.mxu0 0.0
      %2212 = vmatpush1.msra.mxu0 0.0
      %2213 = vmatprep.subr.mxu0 0.0
      %2214 = vmatpush1.msra.mxu0 0.0
      %2215 = vmatprep.subr.mxu0 0.0
      %2216 = vmatpush1.msra.mxu0 0.0
      %2217 = vmatprep.subr.mxu0 0.0
      %2218 = vmatpush1.msra.mxu0 0.0
      %2219 = vmatprep.subr.mxu0 0.0
      %2220 = vmatpush1.msra.mxu0 0.0
      %2221 = vmatprep.subr.mxu0 0.0
      %2222 = vmatpush1.msra.mxu0 0.0
      %2223 = vmatprep.subr.mxu0 0.0
      %2224 = vmatpush1.msra.mxu0 0.0
      %2225 = vmatprep.subr.mxu0 0.0
      %2226 = vmatpush1.msra.mxu0 0.0
      %2227 = vmatprep.subr.mxu0 0.0
      %2228 = vmatpush1.msra.mxu0 0.0
      %2229 = vmatprep.subr.mxu0 0.0
      %2230 = vmatpush1.msra.mxu0 0.0
      %2231 = vmatprep.subr.mxu0 0.0
      %2232 = vmatpush1.msra.mxu0 0.0
      %2233 = vmatprep.subr.mxu0 0.0
      %2234 = vmatpush1.msra.mxu0 0.0
      %2235 = vmatprep.subr.mxu0 0.0
      %2236 = vmatpush1.msra.mxu0 %v2192
      %2237 = vmatprep.subr.mxu0 0.0
      %2238 = vmatpush2.msra.mxu0 0.0
      %2239 = vmatprep.subr.mxu0 0.0
      %2240 = vmatpush2.msra.mxu0 0.0
      %2241 = vmatprep.subr.mxu0 0.0
      %2242 = vmatpush2.msra.mxu0 0.0
      %2243 = vmatprep.subr.mxu0 0.0
      %2244 = vmatpush2.msra.mxu0 0.0
      %2245 = vmatprep.subr.mxu0 0.0
      %2246 = vmatpush2.msra.mxu0 0.0
      %2247 = vmatprep.subr.mxu0 0.0
      %2248 = vmatpush2.msra.mxu0 0.0
      %2249 = vmatprep.subr.mxu0 0.0
      %2250 = vmatpush2.msra.mxu0 0.0
      %2251 = vmatprep.subr.mxu0 0.0
      %2252 = vmatpush2.msra.mxu0 0.0
      %2253 = vmatprep.subr.mxu0 0.0
      %2254 = vmatpush2.msra.mxu0 0.0
      %2255 = vmatprep.subr.mxu0 0.0
      %2256 = vmatpush2.msra.mxu0 0.0
      %2257 = vmatprep.subr.mxu0 0.0
      %2258 = vmatpush2.msra.mxu0 0.0
      %2259 = vmatprep.subr.mxu0 0.0
      %2260 = vmatpush2.msra.mxu0 0.0
      %2261 = vmatprep.subr.mxu0 0.0
      %2262 = vmatpush2.msra.mxu0 0.0
      %2263 = vmatprep.subr.mxu0 0.0
      %2264 = vmatpush2.msra.mxu0 0.0
      %2265 = vmatprep.subr.mxu0 0.0
      %2266 = vmatpush2.msra.mxu0 0.0
      %2267 = vmatprep.subr.mxu0 0.0
      %2268 = vmatpush2.msra.mxu0 0.0
      %2269 = vmatprep.mubr.f32.mxu0 0.0
      %2270 = vmatmul.mubr.f32.gmra.mxu0 %v2194
      %v2271 = vpop.f32.mrf.mxu0
      %v2272 = vadd.f32 0.0, %v2271
      %v2273 = vpop.f32.mrf.mxu0
      %2274 = vmatprep.mubr.f32.mxu0 0.0
      %2275 = vmatmul.mubr.f32.gmra.mxu0 %v2197
      %v2276 = vpop.f32.mrf.mxu0
      %v2277 = vadd.f32 0.0, %v2276
      %v2278 = vpop.f32.mrf.mxu0
      %2279 = vmatprep.mubr.f32.mxu0 0.0
      %2280 = vmatmul.mubr.f32.gmra.mxu0 %v2200
      %v2281 = vpop.f32.mrf.mxu0
      %v2282 = vadd.f32 0.0, %v2281
      %v2283 = vpop.f32.mrf.mxu0
      %2284 = vmatprep.mubr.f32.mxu0 0.0
      %2285 = vmatmul.mubr.f32.gmra.mxu0 %v2203
      %v2286 = vpop.f32.mrf.mxu0
      %v2287 = vadd.f32 0.0, %v2286
      %v2288 = vpop.f32.mrf.mxu0
      %2289 = vdwg.mxu0
      %v2290 = vadd.f32 %v1876, %v2272
      %v2291 = vadd.f32 %v1881, %v2277
      %v2292 = vadd.f32 %v1886, %v2282
      %v2293 = vadd.f32 %v1891, %v2287
      %2294 = vrot.lane.b32.xlu0 %v1108, 104
      %v2295 = vpop.permute.xlu0 %2294
      %2296 = vrot.lane.b32.xlu0 %v1109, 104
      %v2297 = vpop.permute.xlu0 %2296
      %2298 = vrot.lane.b32.xlu0 %v1110, 104
      %v2299 = vpop.permute.xlu0 %2298
      %2300 = vrot.lane.b32.xlu0 %v1111, 104
      %v2301 = vpop.permute.xlu0 %2300
      %2302 = vrot.lane.b32.xlu0 %v1112, 104
      %v2303 = vpop.permute.xlu0 %2302
      %2304 = vrot.lane.b32.xlu0 %v1113, 104
      %v2305 = vpop.permute.xlu0 %2304
      %2306 = vrot.lane.b32.xlu0 %v1114, 104
      %v2307 = vpop.permute.xlu0 %2306
      %2308 = vrot.lane.b32.xlu0 %v1115, 104
      %v2309 = vpop.permute.xlu0 %2308
      %2310 = vrot.lane.b32.xlu0 %v1116, 104
      %v2311 = vpop.permute.xlu0 %2310
      %2312 = vrot.lane.b32.xlu0 %v1117, 104
      %v2313 = vpop.permute.xlu0 %2312
      %2314 = vrot.lane.b32.xlu0 %v1118, 104
      %v2315 = vpop.permute.xlu0 %2314
      %2316 = vrot.lane.b32.xlu0 %v1119, 104
      %v2317 = vpop.permute.xlu0 %2316
      %v2318 = vsel %vm1128, %v2295, 0
      %v2320 = vsel %vm1128, %v2297, 0
      %v2322 = vsel %vm1128, %v2299, 0
      %v2324 = vsel %vm1128, %v2301, 0
      %v2326 = vsel %vm1128, %v2303, 0
      %v2328 = vsel %vm1128, %v2305, 0
      %v2330 = vsel %vm1128, %v2307, 0
      %v2332 = vsel %vm1128, %v2309, 0
      %v2334 = vsel %vm1128, %v2311, 0
      %v2336 = vsel %vm1128, %v2313, 0
      %v2338 = vsel %vm1128, %v2315, 0
      %v2340 = vsel %vm1128, %v2317, 0
      %2342 = vmatprep.subr.mxu0 0.0
      %2343 = vmatpush1.xpose.msra.mxu0 0.0
      %2344 = vmatprep.subr.mxu0 0.0
      %2345 = vmatpush1.xpose.msra.mxu0 0.0
      %2346 = vmatprep.subr.mxu0 0.0
      %2347 = vmatpush1.xpose.msra.mxu0 0.0
      %2348 = vmatprep.subr.mxu0 0.0
      %2349 = vmatpush1.xpose.msra.mxu0 0.0
      %2350 = vmatprep.subr.mxu0 0.0
      %2351 = vmatpush1.xpose.msra.mxu0 0.0
      %2352 = vmatprep.subr.mxu0 0.0
      %2353 = vmatpush1.xpose.msra.mxu0 0.0
      %2354 = vmatprep.subr.mxu0 0.0
      %2355 = vmatpush1.xpose.msra.mxu0 0.0
      %2356 = vmatprep.subr.mxu0 0.0
      %2357 = vmatpush1.xpose.msra.mxu0 0.0
      %2358 = vmatprep.subr.mxu0 0.0
      %2359 = vmatpush1.xpose.msra.mxu0 %v2340
      %2360 = vmatprep.subr.mxu0 0.0
      %2361 = vmatpush1.xpose.msra.mxu0 %v2338
      %2362 = vmatprep.subr.mxu0 0.0
      %2363 = vmatpush1.xpose.msra.mxu0 %v2336
      %2364 = vmatprep.subr.mxu0 0.0
      %2365 = vmatpush1.xpose.msra.mxu0 %v2334
      %2366 = vmatprep.subr.mxu0 0.0
      %2367 = vmatpush1.xpose.msra.mxu0 %v2332
      %2368 = vmatprep.subr.mxu0 0.0
      %2369 = vmatpush1.xpose.msra.mxu0 %v2330
      %2370 = vmatprep.subr.mxu0 0.0
      %2371 = vmatpush1.xpose.msra.mxu0 %v2328
      %2372 = vmatprep.subr.mxu0 0.0
      %2373 = vmatpush1.xpose.msra.mxu0 %v2326
      %2374 = vmatprep.subr.mxu0 0.0
      %2375 = vmatpush2.xpose.msra.mxu0 0.0
      %2376 = vmatprep.subr.mxu0 0.0
      %2377 = vmatpush2.xpose.msra.mxu0 0.0
      %2378 = vmatprep.subr.mxu0 0.0
      %2379 = vmatpush2.xpose.msra.mxu0 0.0
      %2380 = vmatprep.subr.mxu0 0.0
      %2381 = vmatpush2.xpose.msra.mxu0 0.0
      %2382 = vmatprep.subr.mxu0 0.0
      %2383 = vmatpush2.xpose.msra.mxu0 0.0
      %2384 = vmatprep.subr.mxu0 0.0
      %2385 = vmatpush2.xpose.msra.mxu0 0.0
      %2386 = vmatprep.subr.mxu0 0.0
      %2387 = vmatpush2.xpose.msra.mxu0 0.0
      %2388 = vmatprep.subr.mxu0 0.0
      %2389 = vmatpush2.xpose.msra.mxu0 0.0
      %2390 = vmatprep.subr.mxu0 0.0
      %2391 = vmatpush2.xpose.msra.mxu0 0.0
      %2392 = vmatprep.subr.mxu0 0.0
      %2393 = vmatpush2.xpose.msra.mxu0 0.0
      %2394 = vmatprep.subr.mxu0 0.0
      %2395 = vmatpush2.xpose.msra.mxu0 0.0
      %2396 = vmatprep.subr.mxu0 0.0
      %2397 = vmatpush2.xpose.msra.mxu0 0.0
      %2398 = vmatprep.subr.mxu0 0.0
      %2399 = vmatpush2.xpose.msra.mxu0 0.0
      %2400 = vmatprep.subr.mxu0 0.0
      %2401 = vmatpush2.xpose.msra.mxu0 0.0
      %2402 = vmatprep.subr.mxu0 0.0
      %2403 = vmatpush2.xpose.msra.mxu0 0.0
      %2404 = vmatprep.subr.mxu0 0.0
      %2405 = vmatpush2.xpose.msra.mxu0 0.0
      %2406 = vmatprep.mubr.f32.mxu0 0.0
      %2407 = vmatmul.mubr.f32.gmra.mxu0 %v2318
      %v2408 = vpop.f32.mrf.mxu0
      %v2409 = vadd.f32 %v995, %v2408
      %v2410 = vpop.f32.mrf.mxu0
      %2411 = vmatprep.mubr.f32.mxu0 0.0
      %2412 = vmatmul.mubr.f32.gmra.mxu0 %v2320
      %v2413 = vpop.f32.mrf.mxu0
      %v2414 = vadd.f32 %v996, %v2413
      %v2415 = vpop.f32.mrf.mxu0
      %2416 = vmatprep.mubr.f32.mxu0 0.0
      %2417 = vmatmul.mubr.f32.gmra.mxu0 %v2322
      %v2418 = vpop.f32.mrf.mxu0
      %v2419 = vadd.f32 %v997, %v2418
      %v2420 = vpop.f32.mrf.mxu0
      %2421 = vmatprep.mubr.f32.mxu0 0.0
      %2422 = vmatmul.mubr.f32.gmra.mxu0 %v2324
      %v2423 = vpop.f32.mrf.mxu0
      %v2424 = vadd.f32 %v998, %v2423
      %v2425 = vpop.f32.mrf.mxu0
      %2426 = vdwg.mxu0
      %v2427 = vsel %vm1250, %v2409, -inf
      %2428 = vmax.xlane.f32.xlu0 %v2427
      %v2429 = vpop.xlane.xlu0 %2428
      %v2430 = vsel %vm1250, %v2414, -inf
      %2431 = vmax.xlane.f32.xlu0 %v2430
      %v2432 = vpop.xlane.xlu0 %2431
      %v2433 = vsel %vm1250, %v2419, -inf
      %2434 = vmax.xlane.f32.xlu0 %v2433
      %v2435 = vpop.xlane.xlu0 %2434
      %v2436 = vsel %vm1250, %v2424, -inf
      %2437 = vmax.xlane.f32.xlu0 %v2436
      %v2438 = vpop.xlane.xlu0 %2437
      %v2439 = vsub.f32 %v2409, %v2429
      %v2440 = vsub.f32 %v2414, %v2432
      %v2441 = vsub.f32 %v2419, %v2435
      %v2442 = vsub.f32 %v2424, %v2438
      %v2443 = vmul.f32 %v2439, 1.442695
      %v2444 = vpow.pop %v2443
      %v2445 = vmul.f32 %v2440, 1.442695
      %v2446 = vpow.pop %v2445
      %v2447 = vmul.f32 %v2441, 1.442695
      %v2448 = vpow.pop %v2447
      %v2449 = vmul.f32 %v2442, 1.442695
      %v2450 = vpow.pop %v2449
      %v2451 = vsel %vm1250, %v2444, 0.0
      %2452 = vadd.xlane.f32.xlu0 %v2451
      %v2453 = vpop.xlane.xlu0 %2452
      %v2454 = vsel %vm1250, %v2446, 0.0
      %2455 = vadd.xlane.f32.xlu0 %v2454
      %v2456 = vpop.xlane.xlu0 %2455
      %v2457 = vsel %vm1250, %v2448, 0.0
      %2458 = vadd.xlane.f32.xlu0 %v2457
      %v2459 = vpop.xlane.xlu0 %2458
      %v2460 = vsel %vm1250, %v2450, 0.0
      %2461 = vadd.xlane.f32.xlu0 %v2460
      %v2462 = vpop.xlane.xlu0 %2461
      %2463 = vrot.lane.b32.xlu0 %v1120, 104
      %v2464 = vpop.permute.xlu0 %2463
      %2465 = vrot.lane.b32.xlu0 %v1121, 104
      %v2466 = vpop.permute.xlu0 %2465
      %2467 = vrot.lane.b32.xlu0 %v1122, 104
      %v2468 = vpop.permute.xlu0 %2467
      %2469 = vrot.lane.b32.xlu0 %v1123, 104
      %v2470 = vpop.permute.xlu0 %2469
      %2471 = vrot.lane.b32.xlu0 %v1124, 104
      %v2472 = vpop.permute.xlu0 %2471
      %2473 = vrot.lane.b32.xlu0 %v1125, 104
      %v2474 = vpop.permute.xlu0 %2473
      %2475 = vrot.lane.b32.xlu0 %v1126, 104
      %v2476 = vpop.permute.xlu0 %2475
      %2477 = vrot.lane.b32.xlu0 %v1127, 104
      %v2478 = vpop.permute.xlu0 %2477
      %v2488 = vsel %vm1250, %v2444, 0
      %v2491 = vsel %vm1250, %v2446, 0
      %v2494 = vsel %vm1250, %v2448, 0
      %v2497 = vsel %vm1250, %v2450, 0
      %2499 = vmatprep.subr.mxu0 0.0
      %2500 = vmatpush1.msra.mxu0 0.0
      %2501 = vmatprep.subr.mxu0 0.0
      %2502 = vmatpush1.msra.mxu0 0.0
      %2503 = vmatprep.subr.mxu0 0.0
      %2504 = vmatpush1.msra.mxu0 0.0
      %2505 = vmatprep.subr.mxu0 0.0
      %2506 = vmatpush1.msra.mxu0 0.0
      %2507 = vmatprep.subr.mxu0 0.0
      %2508 = vmatpush1.msra.mxu0 0.0
      %2509 = vmatprep.subr.mxu0 0.0
      %2510 = vmatpush1.msra.mxu0 0.0
      %2511 = vmatprep.subr.mxu0 0.0
      %2512 = vmatpush1.msra.mxu0 0.0
      %2513 = vmatprep.subr.mxu0 0.0
      %2514 = vmatpush1.msra.mxu0 0.0
      %2515 = vmatprep.subr.mxu0 0.0
      %2516 = vmatpush1.msra.mxu0 %v2478
      %2517 = vmatprep.subr.mxu0 0.0
      %2518 = vmatpush1.msra.mxu0 %v2476
      %2519 = vmatprep.subr.mxu0 0.0
      %2520 = vmatpush1.msra.mxu0 %v2474
      %2521 = vmatprep.subr.mxu0 0.0
      %2522 = vmatpush1.msra.mxu0 %v2472
      %2523 = vmatprep.subr.mxu0 0.0
      %2524 = vmatpush1.msra.mxu0 %v2470
      %2525 = vmatprep.subr.mxu0 0.0
      %2526 = vmatpush1.msra.mxu0 %v2468
      %2527 = vmatprep.subr.mxu0 0.0
      %2528 = vmatpush1.msra.mxu0 %v2466
      %2529 = vmatprep.subr.mxu0 0.0
      %2530 = vmatpush1.msra.mxu0 %v2464
      %2531 = vmatprep.subr.mxu0 0.0
      %2532 = vmatpush2.msra.mxu0 0.0
      %2533 = vmatprep.subr.mxu0 0.0
      %2534 = vmatpush2.msra.mxu0 0.0
      %2535 = vmatprep.subr.mxu0 0.0
      %2536 = vmatpush2.msra.mxu0 0.0
      %2537 = vmatprep.subr.mxu0 0.0
      %2538 = vmatpush2.msra.mxu0 0.0
      %2539 = vmatprep.subr.mxu0 0.0
      %2540 = vmatpush2.msra.mxu0 0.0
      %2541 = vmatprep.subr.mxu0 0.0
      %2542 = vmatpush2.msra.mxu0 0.0
      %2543 = vmatprep.subr.mxu0 0.0
      %2544 = vmatpush2.msra.mxu0 0.0
      %2545 = vmatprep.subr.mxu0 0.0
      %2546 = vmatpush2.msra.mxu0 0.0
      %2547 = vmatprep.subr.mxu0 0.0
      %2548 = vmatpush2.msra.mxu0 0.0
      %2549 = vmatprep.subr.mxu0 0.0
      %2550 = vmatpush2.msra.mxu0 0.0
      %2551 = vmatprep.subr.mxu0 0.0
      %2552 = vmatpush2.msra.mxu0 0.0
      %2553 = vmatprep.subr.mxu0 0.0
      %2554 = vmatpush2.msra.mxu0 0.0
      %2555 = vmatprep.subr.mxu0 0.0
      %2556 = vmatpush2.msra.mxu0 0.0
      %2557 = vmatprep.subr.mxu0 0.0
      %2558 = vmatpush2.msra.mxu0 0.0
      %2559 = vmatprep.subr.mxu0 0.0
      %2560 = vmatpush2.msra.mxu0 0.0
      %2561 = vmatprep.subr.mxu0 0.0
      %2562 = vmatpush2.msra.mxu0 0.0
      %2563 = vmatprep.mubr.f32.mxu0 0.0
      %2564 = vmatmul.mubr.f32.gmra.mxu0 %v2488
      %v2565 = vpop.f32.mrf.mxu0
      %v2566 = vadd.f32 0.0, %v2565
      %v2567 = vpop.f32.mrf.mxu0
      %2568 = vmatprep.mubr.f32.mxu0 0.0
      %2569 = vmatmul.mubr.f32.gmra.mxu0 %v2491
      %v2570 = vpop.f32.mrf.mxu0
      %v2571 = vadd.f32 0.0, %v2570
      %v2572 = vpop.f32.mrf.mxu0
      %2573 = vmatprep.mubr.f32.mxu0 0.0
      %2574 = vmatmul.mubr.f32.gmra.mxu0 %v2494
      %v2575 = vpop.f32.mrf.mxu0
      %v2576 = vadd.f32 0.0, %v2575
      %v2577 = vpop.f32.mrf.mxu0
      %2578 = vmatprep.mubr.f32.mxu0 0.0
      %2579 = vmatmul.mubr.f32.gmra.mxu0 %v2497
      %v2580 = vpop.f32.mrf.mxu0
      %v2581 = vadd.f32 0.0, %v2580
      %v2582 = vpop.f32.mrf.mxu0
      %2583 = vdwg.mxu0
      %v2584 = vrcp.pop %v2453
      %v2585 = vrcp.pop %v2456
      %v2586 = vrcp.pop %v2459
      %v2587 = vrcp.pop %v2462
      %v2588 = vmul.f32 %v2566, %v2584
      %v2589 = vmul.f32 %v2571, %v2585
      %v2590 = vmul.f32 %v2576, %v2586
      %v2591 = vmul.f32 %v2581, %v2587
      %v2592 = vld [vmem:[%s9 + $0x18] sm:$0xff]
      %v2594 = vsel %vm1128, %v2588, 0
      %v2597 = vsel %vm1128, %v2589, 0
      %v2600 = vsel %vm1128, %v2590, 0
      %v2603 = vsel %vm1128, %v2591, 0
      %2605 = vmatprep.subr.mxu0 0.0
      %2606 = vmatpush1.msra.mxu0 0.0
      %2607 = vmatprep.subr.mxu0 0.0
      %2608 = vmatpush1.msra.mxu0 0.0
      %2609 = vmatprep.subr.mxu0 0.0
      %2610 = vmatpush1.msra.mxu0 0.0
      %2611 = vmatprep.subr.mxu0 0.0
      %2612 = vmatpush1.msra.mxu0 0.0
      %2613 = vmatprep.subr.mxu0 0.0
      %2614 = vmatpush1.msra.mxu0 0.0
      %2615 = vmatprep.subr.mxu0 0.0
      %2616 = vmatpush1.msra.mxu0 0.0
      %2617 = vmatprep.subr.mxu0 0.0
      %2618 = vmatpush1.msra.mxu0 0.0
      %2619 = vmatprep.subr.mxu0 0.0
      %2620 = vmatpush1.msra.mxu0 0.0
      %2621 = vmatprep.subr.mxu0 0.0
      %2622 = vmatpush1.msra.mxu0 0.0
      %2623 = vmatprep.subr.mxu0 0.0
      %2624 = vmatpush1.msra.mxu0 0.0
      %2625 = vmatprep.subr.mxu0 0.0
      %2626 = vmatpush1.msra.mxu0 0.0
      %2627 = vmatprep.subr.mxu0 0.0
      %2628 = vmatpush1.msra.mxu0 0.0
      %2629 = vmatprep.subr.mxu0 0.0
      %2630 = vmatpush1.msra.mxu0 0.0
      %2631 = vmatprep.subr.mxu0 0.0
      %2632 = vmatpush1.msra.mxu0 0.0
      %2633 = vmatprep.subr.mxu0 0.0
      %2634 = vmatpush1.msra.mxu0 0.0
      %2635 = vmatprep.subr.mxu0 0.0
      %2636 = vmatpush1.msra.mxu0 %v2592
      %2637 = vmatprep.subr.mxu0 0.0
      %2638 = vmatpush2.msra.mxu0 0.0
      %2639 = vmatprep.subr.mxu0 0.0
      %2640 = vmatpush2.msra.mxu0 0.0
      %2641 = vmatprep.subr.mxu0 0.0
      %2642 = vmatpush2.msra.mxu0 0.0
      %2643 = vmatprep.subr.mxu0 0.0
      %2644 = vmatpush2.msra.mxu0 0.0
      %2645 = vmatprep.subr.mxu0 0.0
      %2646 = vmatpush2.msra.mxu0 0.0
      %2647 = vmatprep.subr.mxu0 0.0
      %2648 = vmatpush2.msra.mxu0 0.0
      %2649 = vmatprep.subr.mxu0 0.0
      %2650 = vmatpush2.msra.mxu0 0.0
      %2651 = vmatprep.subr.mxu0 0.0
      %2652 = vmatpush2.msra.mxu0 0.0
      %2653 = vmatprep.subr.mxu0 0.0
      %2654 = vmatpush2.msra.mxu0 0.0
      %2655 = vmatprep.subr.mxu0 0.0
      %2656 = vmatpush2.msra.mxu0 0.0
      %2657 = vmatprep.subr.mxu0 0.0
      %2658 = vmatpush2.msra.mxu0 0.0
      %2659 = vmatprep.subr.mxu0 0.0
      %2660 = vmatpush2.msra.mxu0 0.0
      %2661 = vmatprep.subr.mxu0 0.0
      %2662 = vmatpush2.msra.mxu0 0.0
      %2663 = vmatprep.subr.mxu0 0.0
      %2664 = vmatpush2.msra.mxu0 0.0
      %2665 = vmatprep.subr.mxu0 0.0
      %2666 = vmatpush2.msra.mxu0 0.0
      %2667 = vmatprep.subr.mxu0 0.0
      %2668 = vmatpush2.msra.mxu0 0.0
      %2669 = vmatprep.mubr.f32.mxu0 0.0
      %2670 = vmatmul.mubr.f32.gmra.mxu0 %v2594
      %v2671 = vpop.f32.mrf.mxu0
      %v2672 = vadd.f32 0.0, %v2671
      %v2673 = vpop.f32.mrf.mxu0
      %2674 = vmatprep.mubr.f32.mxu0 0.0
      %2675 = vmatmul.mubr.f32.gmra.mxu0 %v2597
      %v2676 = vpop.f32.mrf.mxu0
      %v2677 = vadd.f32 0.0, %v2676
      %v2678 = vpop.f32.mrf.mxu0
      %2679 = vmatprep.mubr.f32.mxu0 0.0
      %2680 = vmatmul.mubr.f32.gmra.mxu0 %v2600
      %v2681 = vpop.f32.mrf.mxu0
      %v2682 = vadd.f32 0.0, %v2681
      %v2683 = vpop.f32.mrf.mxu0
      %2684 = vmatprep.mubr.f32.mxu0 0.0
      %2685 = vmatmul.mubr.f32.gmra.mxu0 %v2603
      %v2686 = vpop.f32.mrf.mxu0
      %v2687 = vadd.f32 0.0, %v2686
      %v2688 = vpop.f32.mrf.mxu0
      %2689 = vdwg.mxu0
      %v2690 = vadd.f32 %v2290, %v2672
      %v2691 = vadd.f32 %v2291, %v2677
      %v2692 = vadd.f32 %v2292, %v2682
      %v2693 = vadd.f32 %v2293, %v2687
      %v2694 = vld [vmem:[%s10] sm:$0x1]
      %v2696 = vlaneseq
      %v2697 = vshrl.u32 %v2696, 7
      %v2698 = vsub.s32 0, %v2697
      %v2699 = vrot.slane %v2694, %v2698
      %v2701 = vadd.f32 %v2690, %v2699
      %v2702 = vadd.f32 %v2691, %v2699
      %v2703 = vadd.f32 %v2692, %v2699
      %v2704 = vadd.f32 %v2693, %v2699
      %v2705 = vld [vmem:[%s11] sm:$0x1]
      %v2706 = vld [vmem:[%s12] sm:$0x1]
      %v2707 = vadd.f32 %v978, %v2701
      %v2708 = vadd.f32 %v979, %v2702
      %v2709 = vadd.f32 %v980, %v2703
      %v2710 = vadd.f32 %v981, %v2704
      %v2711 = vsel %vm1010, %v2707, 0.0
      %2712 = vadd.xlane.f32.xlu0 %v2711
      %v2713 = vpop.xlane.xlu0 %2712
      %v2714 = vsel %vm1010, %v2708, 0.0
      %2715 = vadd.xlane.f32.xlu0 %v2714
      %v2716 = vpop.xlane.xlu0 %2715
      %v2717 = vsel %vm1010, %v2709, 0.0
      %2718 = vadd.xlane.f32.xlu0 %v2717
      %v2719 = vpop.xlane.xlu0 %2718
      %v2720 = vsel %vm1010, %v2710, 0.0
      %2721 = vadd.xlane.f32.xlu0 %v2720
      %v2722 = vpop.xlane.xlu0 %2721
      %v2723 = vrcp.pop 32.0
      %v2724 = vmul.f32 %v2713, %v2723
      %v2725 = vmul.f32 %v2716, %v2723
      %v2726 = vmul.f32 %v2719, %v2723
      %v2727 = vmul.f32 %v2722, %v2723
      %v2728 = vsub.f32 %v2707, %v2724
      %v2729 = vsub.f32 %v2708, %v2725
      %v2730 = vsub.f32 %v2709, %v2726
      %v2731 = vsub.f32 %v2710, %v2727
      %v2732 = vmul.f32 %v2728, %v2728
      %v2733 = vmul.f32 %v2729, %v2729
      %v2734 = vmul.f32 %v2730, %v2730
      %v2735 = vmul.f32 %v2731, %v2731
      %v2736 = vsel %vm1010, %v2732, 0.0
      %2737 = vadd.xlane.f32.xlu0 %v2736
      %v2738 = vpop.xlane.xlu0 %2737
      %v2739 = vsel %vm1010, %v2733, 0.0
      %2740 = vadd.xlane.f32.xlu0 %v2739
      %v2741 = vpop.xlane.xlu0 %2740
      %v2742 = vsel %vm1010, %v2734, 0.0
      %2743 = vadd.xlane.f32.xlu0 %v2742
      %v2744 = vpop.xlane.xlu0 %2743
      %v2745 = vsel %vm1010, %v2735, 0.0
      %2746 = vadd.xlane.f32.xlu0 %v2745
      %v2747 = vpop.xlane.xlu0 %2746
      %v2748 = vmul.f32 %v2738, %v2723
      %v2749 = vmul.f32 %v2741, %v2723
      %v2750 = vmul.f32 %v2744, %v2723
      %v2751 = vmul.f32 %v2747, %v2723
      %v2752 = vadd.f32 %v2748, 1e-05
      %v2753 = vadd.f32 %v2749, 1e-05
      %v2754 = vadd.f32 %v2750, 1e-05
      %v2755 = vadd.f32 %v2751, 1e-05
      %v2756 = vrsqrt.pop %v2752
      %v2757 = vrsqrt.pop %v2753
      %v2758 = vrsqrt.pop %v2754
      %v2759 = vrsqrt.pop %v2755
      %v2760 = vmul.f32 %v2728, %v2756
      %v2761 = vmul.f32 %v2729, %v2757
      %v2762 = vmul.f32 %v2730, %v2758
      %v2763 = vmul.f32 %v2731, %v2759
      %v2765 = vlaneseq
      %v2766 = vshrl.u32 %v2765, 7
      %v2767 = vsub.s32 0, %v2766
      %v2768 = vrot.slane %v2705, %v2767
      %v2770 = vmul.f32 %v2760, %v2768
      %v2771 = vmul.f32 %v2761, %v2768
      %v2772 = vmul.f32 %v2762, %v2768
      %v2773 = vmul.f32 %v2763, %v2768
      %v2775 = vlaneseq
      %v2776 = vshrl.u32 %v2775, 7
      %v2777 = vsub.s32 0, %v2776
      %v2778 = vrot.slane %v2706, %v2777
      %v2780 = vadd.f32 %v2770, %v2778
      %v2781 = vadd.f32 %v2771, %v2778
      %v2782 = vadd.f32 %v2772, %v2778
      %v2783 = vadd.f32 %v2773, %v2778
      %v2784 = vld [vmem:[%s13] sm:$0xff]
      %v2785 = vld [vmem:[%s13 + $0x8] sm:$0xff]
      %v2786 = vld [vmem:[%s13 + $0x10] sm:$0xff]
      %v2787 = vld [vmem:[%s13 + $0x18] sm:$0xff]
      %v2788 = vld [vmem:[%s14] sm:$0x1]
      %v2790 = vlaneseq
      %v2791 = vshrl.u32 %v2790, 7
      %v2792 = vsub.s32 0, %v2791
      %v2793 = vrot.slane %v2788, %v2792
      %v2796 = vsel %vm1010, %v2780, 0
      %v2799 = vsel %vm1010, %v2781, 0
      %v2802 = vsel %vm1010, %v2782, 0
      %v2805 = vsel %vm1010, %v2783, 0
      %2807 = vmatprep.subr.mxu0 0.0
      %2808 = vmatpush1.msra.mxu0 0.0
      %2809 = vmatprep.subr.mxu0 0.0
      %2810 = vmatpush1.msra.mxu0 0.0
      %2811 = vmatprep.subr.mxu0 0.0
      %2812 = vmatpush1.msra.mxu0 0.0
      %2813 = vmatprep.subr.mxu0 0.0
      %2814 = vmatpush1.msra.mxu0 0.0
      %2815 = vmatprep.subr.mxu0 0.0
      %2816 = vmatpush1.msra.mxu0 0.0
      %2817 = vmatprep.subr.mxu0 0.0
      %2818 = vmatpush1.msra.mxu0 0.0
      %2819 = vmatprep.subr.mxu0 0.0
      %2820 = vmatpush1.msra.mxu0 0.0
      %2821 = vmatprep.subr.mxu0 0.0
      %2822 = vmatpush1.msra.mxu0 0.0
      %2823 = vmatprep.subr.mxu0 0.0
      %2824 = vmatpush1.msra.mxu0 0.0
      %2825 = vmatprep.subr.mxu0 0.0
      %2826 = vmatpush1.msra.mxu0 0.0
      %2827 = vmatprep.subr.mxu0 0.0
      %2828 = vmatpush1.msra.mxu0 0.0
      %2829 = vmatprep.subr.mxu0 0.0
      %2830 = vmatpush1.msra.mxu0 0.0
      %2831 = vmatprep.subr.mxu0 0.0
      %2832 = vmatpush1.msra.mxu0 %v2787
      %2833 = vmatprep.subr.mxu0 0.0
      %2834 = vmatpush1.msra.mxu0 %v2786
      %2835 = vmatprep.subr.mxu0 0.0
      %2836 = vmatpush1.msra.mxu0 %v2785
      %2837 = vmatprep.subr.mxu0 0.0
      %2838 = vmatpush1.msra.mxu0 %v2784
      %2839 = vmatprep.subr.mxu0 0.0
      %2840 = vmatpush2.msra.mxu0 0.0
      %2841 = vmatprep.subr.mxu0 0.0
      %2842 = vmatpush2.msra.mxu0 0.0
      %2843 = vmatprep.subr.mxu0 0.0
      %2844 = vmatpush2.msra.mxu0 0.0
      %2845 = vmatprep.subr.mxu0 0.0
      %2846 = vmatpush2.msra.mxu0 0.0
      %2847 = vmatprep.subr.mxu0 0.0
      %2848 = vmatpush2.msra.mxu0 0.0
      %2849 = vmatprep.subr.mxu0 0.0
      %2850 = vmatpush2.msra.mxu0 0.0
      %2851 = vmatprep.subr.mxu0 0.0
      %2852 = vmatpush2.msra.mxu0 0.0
      %2853 = vmatprep.subr.mxu0 0.0
      %2854 = vmatpush2.msra.mxu0 0.0
      %2855 = vmatprep.subr.mxu0 0.0
      %2856 = vmatpush2.msra.mxu0 0.0
      %2857 = vmatprep.subr.mxu0 0.0
      %2858 = vmatpush2.msra.mxu0 0.0
      %2859 = vmatprep.subr.mxu0 0.0
      %2860 = vmatpush2.msra.mxu0 0.0
      %2861 = vmatprep.subr.mxu0 0.0
      %2862 = vmatpush2.msra.mxu0 0.0
      %2863 = vmatprep.subr.mxu0 0.0
      %2864 = vmatpush2.msra.mxu0 0.0
      %2865 = vmatprep.subr.mxu0 0.0
      %2866 = vmatpush2.msra.mxu0 0.0
      %2867 = vmatprep.subr.mxu0 0.0
      %2868 = vmatpush2.msra.mxu0 0.0
      %2869 = vmatprep.subr.mxu0 0.0
      %2870 = vmatpush2.msra.mxu0 0.0
      %2871 = vmatprep.mubr.f32.mxu0 0.0
      %2872 = vmatmul.mubr.f32.gmra.mxu0 %v2796
      %v2873 = vpop.f32.mrf.mxu0
      %v2874 = vadd.f32 %v2793, %v2873
      %v2875 = vpop.f32.mrf.mxu0
      %2876 = vmatprep.mubr.f32.mxu0 0.0
      %2877 = vmatmul.mubr.f32.gmra.mxu0 %v2799
      %v2878 = vpop.f32.mrf.mxu0
      %v2879 = vadd.f32 %v2793, %v2878
      %v2880 = vpop.f32.mrf.mxu0
      %2881 = vmatprep.mubr.f32.mxu0 0.0
      %2882 = vmatmul.mubr.f32.gmra.mxu0 %v2802
      %v2883 = vpop.f32.mrf.mxu0
      %v2884 = vadd.f32 %v2793, %v2883
      %v2885 = vpop.f32.mrf.mxu0
      %2886 = vmatprep.mubr.f32.mxu0 0.0
      %2887 = vmatmul.mubr.f32.gmra.mxu0 %v2805
      %v2888 = vpop.f32.mrf.mxu0
      %v2889 = vadd.f32 %v2793, %v2888
      %v2890 = vpop.f32.mrf.mxu0
      %2891 = vdwg.mxu0
      %v2892 = vmul.f32 %v2874, 0.5
      %v2893 = vmul.f32 %v2879, 0.5
      %v2894 = vmul.f32 %v2884, 0.5
      %v2895 = vmul.f32 %v2889, 0.5
      %v2896 = vmul.f32 %v2874, 0.70710677
      %v2897 = vmul.f32 %v2879, 0.70710677
      %v2898 = vmul.f32 %v2884, 0.70710677
      %v2899 = vmul.f32 %v2889, 0.70710677
      %v2900 = verf.f32.pop %v2896
      %v2901 = verf.f32.pop %v2897
      %v2902 = verf.f32.pop %v2898
      %v2903 = verf.f32.pop %v2899
      %v2904 = vadd.f32 %v2900, 1.0
      %v2905 = vadd.f32 %v2901, 1.0
      %v2906 = vadd.f32 %v2902, 1.0
      %v2907 = vadd.f32 %v2903, 1.0
      %v2908 = vmul.f32 %v2892, %v2904
      %v2909 = vmul.f32 %v2893, %v2905
      %v2910 = vmul.f32 %v2894, %v2906
      %v2911 = vmul.f32 %v2895, %v2907
      %v2912 = vld [vmem:[%s15] sm:$0xff]
      %v2913 = vld [vmem:[%s15 + $0x8] sm:$0xff]
      %v2914 = vld [vmem:[%s15 + $0x10] sm:$0xff]
      %v2915 = vld [vmem:[%s15 + $0x18] sm:$0xff]
      %v2916 = vld [vmem:[%s15 + $0x20] sm:$0xff]
      %v2917 = vld [vmem:[%s15 + $0x28] sm:$0xff]
      %v2918 = vld [vmem:[%s15 + $0x30] sm:$0xff]
      %v2919 = vld [vmem:[%s15 + $0x38] sm:$0xff]
      %v2920 = vld [vmem:[%s16] sm:$0x1]
      %v2922 = vlaneseq
      %v2923 = vshrl.u32 %v2922, 7
      %v2924 = vsub.s32 0, %v2923
      %v2925 = vrot.slane %v2920, %v2924
      %v2928 = vsel %vm1250, %v2908, 0
      %v2931 = vsel %vm1250, %v2909, 0
      %v2934 = vsel %vm1250, %v2910, 0
      %v2937 = vsel %vm1250, %v2911, 0
      %2939 = vmatprep.subr.mxu0 0.0
      %2940 = vmatpush1.msra.mxu0 0.0
      %2941 = vmatprep.subr.mxu0 0.0
      %2942 = vmatpush1.msra.mxu0 0.0
      %2943 = vmatprep.subr.mxu0 0.0
      %2944 = vmatpush1.msra.mxu0 0.0
      %2945 = vmatprep.subr.mxu0 0.0
      %2946 = vmatpush1.msra.mxu0 0.0
      %2947 = vmatprep.subr.mxu0 0.0
      %2948 = vmatpush1.msra.mxu0 0.0
      %2949 = vmatprep.subr.mxu0 0.0
      %2950 = vmatpush1.msra.mxu0 0.0
      %2951 = vmatprep.subr.mxu0 0.0
      %2952 = vmatpush1.msra.mxu0 0.0
      %2953 = vmatprep.subr.mxu0 0.0
      %2954 = vmatpush1.msra.mxu0 0.0
      %2955 = vmatprep.subr.mxu0 0.0
      %2956 = vmatpush1.msra.mxu0 %v2919
      %2957 = vmatprep.subr.mxu0 0.0
      %2958 = vmatpush1.msra.mxu0 %v2918
      %2959 = vmatprep.subr.mxu0 0.0
      %2960 = vmatpush1.msra.mxu0 %v2917
      %2961 = vmatprep.subr.mxu0 0.0
      %2962 = vmatpush1.msra.mxu0 %v2916
      %2963 = vmatprep.subr.mxu0 0.0
      %2964 = vmatpush1.msra.mxu0 %v2915
      %2965 = vmatprep.subr.mxu0 0.0
      %2966 = vmatpush1.msra.mxu0 %v2914
      %2967 = vmatprep.subr.mxu0 0.0
      %2968 = vmatpush1.msra.mxu0 %v2913
      %2969 = vmatprep.subr.mxu0 0.0
      %2970 = vmatpush1.msra.mxu0 %v2912
      %2971 = vmatprep.subr.mxu0 0.0
      %2972 = vmatpush2.msra.mxu0 0.0
      %2973 = vmatprep.subr.mxu0 0.0
      %2974 = vmatpush2.msra.mxu0 0.0
      %2975 = vmatprep.subr.mxu0 0.0
      %2976 = vmatpush2.msra.mxu0 0.0
      %2977 = vmatprep.subr.mxu0 0.0
      %2978 = vmatpush2.msra.mxu0 0.0
      %2979 = vmatprep.subr.mxu0 0.0
      %2980 = vmatpush2.msra.mxu0 0.0
      %2981 = vmatprep.subr.mxu0 0.0
      %2982 = vmatpush2.msra.mxu0 0.0
      %2983 = vmatprep.subr.mxu0 0.0
      %2984 = vmatpush2.msra.mxu0 0.0
      %2985 = vmatprep.subr.mxu0 0.0
      %2986 = vmatpush2.msra.mxu0 0.0
      %2987 = vmatprep.subr.mxu0 0.0
      %2988 = vmatpush2.msra.mxu0 0.0
      %2989 = vmatprep.subr.mxu0 0.0
      %2990 = vmatpush2.msra.mxu0 0.0
      %2991 = vmatprep.subr.mxu0 0.0
      %2992 = vmatpush2.msra.mxu0 0.0
      %2993 = vmatprep.subr.mxu0 0.0
      %2994 = vmatpush2.msra.mxu0 0.0
      %2995 = vmatprep.subr.mxu0 0.0
      %2996 = vmatpush2.msra.mxu0 0.0
      %2997 = vmatprep.subr.mxu0 0.0
      %2998 = vmatpush2.msra.mxu0 0.0
      %2999 = vmatprep.subr.mxu0 0.0
      %3000 = vmatpush2.msra.mxu0 0.0
      %3001 = vmatprep.subr.mxu0 0.0
      %3002 = vmatpush2.msra.mxu0 0.0
      %3003 = vmatprep.mubr.f32.mxu0 0.0
      %3004 = vmatmul.mubr.f32.gmra.mxu0 %v2928
      %v3005 = vpop.f32.mrf.mxu0
      %v3006 = vadd.f32 %v2925, %v3005
      %v3007 = vpop.f32.mrf.mxu0
      %3008 = vmatprep.mubr.f32.mxu0 0.0
      %3009 = vmatmul.mubr.f32.gmra.mxu0 %v2931
      %v3010 = vpop.f32.mrf.mxu0
      %v3011 = vadd.f32 %v2925, %v3010
      %v3012 = vpop.f32.mrf.mxu0
      %3013 = vmatprep.mubr.f32.mxu0 0.0
      %3014 = vmatmul.mubr.f32.gmra.mxu0 %v2934
      %v3015 = vpop.f32.mrf.mxu0
      %v3016 = vadd.f32 %v2925, %v3015
      %v3017 = vpop.f32.mrf.mxu0
      %3018 = vmatprep.mubr.f32.mxu0 0.0
      %3019 = vmatmul.mubr.f32.gmra.mxu0 %v2937
      %v3020 = vpop.f32.mrf.mxu0
      %v3021 = vadd.f32 %v2925, %v3020
      %v3022 = vpop.f32.mrf.mxu0
      %3023 = vdwg.mxu0
      %v3024 = vld [vmem:[%s17] sm:$0x1]
      %v3025 = vld [vmem:[%s18] sm:$0x1]
      %v3026 = vadd.f32 %v2780, %v3006
      %v3027 = vadd.f32 %v2781, %v3011
      %v3028 = vadd.f32 %v2782, %v3016
      %v3029 = vadd.f32 %v2783, %v3021
      %v3030 = vsel %vm1010, %v3026, 0.0
      %3031 = vadd.xlane.f32.xlu0 %v3030
      %v3032 = vpop.xlane.xlu0 %3031
      %v3033 = vsel %vm1010, %v3027, 0.0
      %3034 = vadd.xlane.f32.xlu0 %v3033
      %v3035 = vpop.xlane.xlu0 %3034
      %v3036 = vsel %vm1010, %v3028, 0.0
      %3037 = vadd.xlane.f32.xlu0 %v3036
      %v3038 = vpop.xlane.xlu0 %3037
      %v3039 = vsel %vm1010, %v3029, 0.0
      %3040 = vadd.xlane.f32.xlu0 %v3039
      %v3041 = vpop.xlane.xlu0 %3040
      %v3042 = vmul.f32 %v3032, %v2723
      %v3043 = vmul.f32 %v3035, %v2723
      %v3044 = vmul.f32 %v3038, %v2723
      %v3045 = vmul.f32 %v3041, %v2723
      %v3046 = vsub.f32 %v3026, %v3042
      %v3047 = vsub.f32 %v3027, %v3043
      %v3048 = vsub.f32 %v3028, %v3044
      %v3049 = vsub.f32 %v3029, %v3045
      %v3050 = vmul.f32 %v3046, %v3046
      %v3051 = vmul.f32 %v3047, %v3047
      %v3052 = vmul.f32 %v3048, %v3048
      %v3053 = vmul.f32 %v3049, %v3049
      %v3054 = vsel %vm1010, %v3050, 0.0
      %3055 = vadd.xlane.f32.xlu0 %v3054
      %v3056 = vpop.xlane.xlu0 %3055
      %v3057 = vsel %vm1010, %v3051, 0.0
      %3058 = vadd.xlane.f32.xlu0 %v3057
      %v3059 = vpop.xlane.xlu0 %3058
      %v3060 = vsel %vm1010, %v3052, 0.0
      %3061 = vadd.xlane.f32.xlu0 %v3060
      %v3062 = vpop.xlane.xlu0 %3061
      %v3063 = vsel %vm1010, %v3053, 0.0
      %3064 = vadd.xlane.f32.xlu0 %v3063
      %v3065 = vpop.xlane.xlu0 %3064
      %v3066 = vmul.f32 %v3056, %v2723
      %v3067 = vmul.f32 %v3059, %v2723
      %v3068 = vmul.f32 %v3062, %v2723
      %v3069 = vmul.f32 %v3065, %v2723
      %v3070 = vadd.f32 %v3066, 1e-05
      %v3071 = vadd.f32 %v3067, 1e-05
      %v3072 = vadd.f32 %v3068, 1e-05
      %v3073 = vadd.f32 %v3069, 1e-05
      %v3074 = vrsqrt.pop %v3070
      %v3075 = vrsqrt.pop %v3071
      %v3076 = vrsqrt.pop %v3072
      %v3077 = vrsqrt.pop %v3073
      %v3078 = vmul.f32 %v3046, %v3074
      %v3079 = vmul.f32 %v3047, %v3075
      %v3080 = vmul.f32 %v3048, %v3076
      %v3081 = vmul.f32 %v3049, %v3077
      %v3083 = vlaneseq
      %v3084 = vshrl.u32 %v3083, 7
      %v3085 = vsub.s32 0, %v3084
      %v3086 = vrot.slane %v3024, %v3085
      %v3088 = vmul.f32 %v3078, %v3086
      %v3089 = vmul.f32 %v3079, %v3086
      %v3090 = vmul.f32 %v3080, %v3086
      %v3091 = vmul.f32 %v3081, %v3086
      %v3093 = vlaneseq
      %v3094 = vshrl.u32 %v3093, 7
      %v3095 = vsub.s32 0, %v3094
      %v3096 = vrot.slane %v3025, %v3095
      %v3098 = vadd.f32 %v3088, %v3096
      %v3099 = vadd.f32 %v3089, %v3096
      %v3100 = vadd.f32 %v3090, %v3096
      %v3101 = vadd.f32 %v3091, %v3096
      %3102 = vst.msk [vmem:[%s691] sm:$0xff] %vm1010, %v3098
      %3103 = vst.msk [vmem:[%s691 + $0x8] sm:$0xff] %vm1010, %v3099
      %3104 = vst.msk [vmem:[%s691 + $0x10] sm:$0xff] %vm1010, %v3100
      %3105 = vst.msk [vmem:[%s691 + $0x18] sm:$0xff] %vm1010, %v3101
      %s3106 = smul.u32 4, %s35
      %p3107 = scmp.lt.s32.totalorder %s34, 1
      %s3108 = scalar_select %p3107, %s34, 1
      %p3109 = scmp.lt.s32.totalorder %s3106, 7
      %s3110 = scalar_select %p3109, %s3106, 7
      %s3111 = smul.addr %s3108, 8
      %s3112 = sadd.s32 %s3110, %s3111
      %s3113 = smul.addr %s3112, 8
      %s3114 = scalar_lea.vmem %s19, %s3113
      // Predicated region
      $region101: #{tpu_custom_call.1} parent=95 // pred_check
        %p3115 = pneg %p480
      $region102: #{tpu_custom_call.1} parent=95 // pred_check_branch
        %3117 = sbr.rel (%p3115) target = $region104
      $region103: #{tpu_custom_call.1} parent=95 // pred_region
        %s3118 = smul.u32 4, %s35
      $region104: #{tpu_custom_call.1} parent=95 // pred_fallthru
        _
    $region96: #{tpu_custom_call.1} parent=5 // pred_fallthru
      _
    %p3119 = scmp.le.s32.totalorder 2, %s25
    // Predicated region
    $region105: #{tpu_custom_call.1} parent=5 // pred_check
      %p3120 = pneg %p3119
    $region106: #{tpu_custom_call.1} parent=5 // pred_check_branch
      %3122 = sbr.rel (%p3120) target = $region108
    $region107: #{tpu_custom_call.1} parent=5 // pred_region
      %s3123 = ssub.s32 %s25, 2
      // Predicated region
      $region109: #{tpu_custom_call.1} parent=107 // pred_check
        %p3124 = pneg %p486
      $region110: #{tpu_custom_call.1} parent=107 // pred_check_branch
        %3126 = sbr.rel (%p3124) target = $region112
      $region111: #{tpu_custom_call.1} parent=107 // pred_region
        %s3127 = smul.u32 4, %s37
        %p3128 = scmp.lt.s32.totalorder %s36, 1
        %s3129 = scalar_select %p3128, %s36, 1
        %p3130 = scmp.lt.s32.totalorder %s3127, 7
        %s3131 = scalar_select %p3130, %s3127, 7
        %s3132 = smul.addr %s3129, 8
        %s3133 = sadd.s32 %s3131, %s3132
        %s3134 = smul.addr %s3133, 8
        %s3135 = scalar_lea.vmem %s19, %s3134
      $region112: #{tpu_custom_call.1} parent=107 // pred_fallthru
        _
    $region108: #{tpu_custom_call.1} parent=5 // pred_fallthru
      _
  $region6: #{tpu_custom_call.1} parent=0 // loop_footer
    %s29 = sadd.s32 1, %s25
  $region7: #{tpu_custom_call.1} parent=0 // loop_footer_branch
    %24 = sbr.rel target = $region3
  $region8: #{tpu_custom_call.1} parent=0 // loop_exit
    _

// kernel: tpu_custom_call.1
$region0: #{tpu_custom_call.1}
  #allocation0 [shape = 'u32[]', space=smem, size = 0x4, offset = 0x4, fixed_abs, tag = 'smem constant byte address 0x4 - core index']
  #allocation1 [shape = 'u32[144,128]{1,0:T(1,128)}', space=vmem, size = 0x12000, scoped, tag = 'internal scratch']
  #allocation2 [shape = 'f32[64,32]{1,0:T(8,128)}', space=vmem, size = 0x8000, scoped, tag = 'scratch operand']
  #allocation3 [shape = 'f32[64,32]{1,0:T(8,128)}', space=vmem, size = 0x8000, scoped, tag = 'scratch operand']
  %s0 = inlined_call_operand.vmem [shape: f32[2,64,32], index: 0, kind: input, shape index: {}]
  %s1 = inlined_call_operand.vmem [shape: f32[2,64,32], index: 1, kind: input, shape index: {}]
  %s2 = inlined_call_operand.vmem [shape: s8[2,1,64,64], index: 2, kind: input, shape index: {}]
  %s3 = inlined_call_operand.vmem [shape: f32[32,32], index: 3, kind: input, shape index: {}]
  %s4 = inlined_call_operand.vmem [shape: f32[1,32], index: 4, kind: input, shape index: {}]
  %s5 = inlined_call_operand.vmem [shape: f32[32,32], index: 5, kind: input, shape index: {}]
  %s6 = inlined_call_operand.vmem [shape: f32[1,32], index: 6, kind: input, shape index: {}]
  %s7 = inlined_call_operand.vmem [shape: f32[32,32], index: 7, kind: input, shape index: {}]
  %s8 = inlined_call_operand.vmem [shape: f32[1,32], index: 8, kind: input, shape index: {}]
  %s9 = inlined_call_operand.vmem [shape: f32[32,32], index: 9, kind: input, shape index: {}]
  %s10 = inlined_call_operand.vmem [shape: f32[1,32], index: 10, kind: input, shape index: {}]
  %s11 = inlined_call_operand.vmem [shape: f32[1,32], index: 11, kind: input, shape index: {}]
  %s12 = inlined_call_operand.vmem [shape: f32[1,32], index: 12, kind: input, shape index: {}]
  %s13 = inlined_call_operand.vmem [shape: f32[32,64], index: 13, kind: input, shape index: {}]
  %s14 = inlined_call_operand.vmem [shape: f32[1,64], index: 14, kind: input, shape index: {}]
  %s15 = inlined_call_operand.vmem [shape: f32[64,32], index: 15, kind: input, shape index: {}]
  %s16 = inlined_call_operand.vmem [shape: f32[1,32], index: 16, kind: input, shape index: {}]
  %s17 = inlined_call_operand.vmem [shape: f32[1,32], index: 17, kind: input, shape index: {}]
  %s18 = inlined_call_operand.vmem [shape: f32[1,32], index: 18, kind: input, shape index: {}]
  %s19 = inlined_call_operand.vmem [shape: f32[2,64,32], index: 19, kind: output, shape index: {}]
  %s20 = sld [smem:[#allocation0]]
  $region113: #{tpu_custom_call.1} parent=0
    _
  %s22 = ssub.s32 1, %s20
  %s23 = scalar_select 0, %s22, %s20
  loop: start=0, step=1, limit=6
  $region2: #{tpu_custom_call.1} parent=0 // loop_pre_header
    _
  $region3: #{tpu_custom_call.1} parent=0 // loop_header
    %s25 = sphi 0, %s29
    %p26 = scmp.ge.s32.totalorder %s25, 6
    %s32 = sphi 0, %s44
    %s33 = sphi 0, %s40
    %s34 = sphi 0, %s32
    %s35 = sphi 0, %s33
    %s36 = sphi 0, %s34
    %s37 = sphi 0, %s35
    %s47 = sphi 0, %s49
    %s50 = sphi 0, %s47
    %s51 = sphi 0, %s50
    %s67 = sphi 0, %s51
    %s75 = sphi 0, %s77
    %s78 = sphi 0, %s75
    %s79 = sphi 0, %s78
    %s95 = sphi 0, %s79
    %s103 = sphi 0, %s105
    %s106 = sphi 0, %s103
    %s107 = sphi 0, %s106
    %s123 = sphi 0, %s107
    %s127 = sphi 0, %s127
    %s129 = sphi 0, %s127
    %s130 = sphi 0, %s129
    %s144 = sphi 0, %s130
    %s148 = sphi 0, %s148
    %s150 = sphi 0, %s148
    %s151 = sphi 0, %s150
    %s165 = sphi 0, %s151
    %s169 = sphi 0, %s169
    %s171 = sphi 0, %s169
    %s172 = sphi 0, %s171
    %s186 = sphi 0, %s172
    %s190 = sphi 0, %s190
    %s192 = sphi 0, %s190
    %s193 = sphi 0, %s192
    %s207 = sphi 0, %s193
    %s211 = sphi 0, %s211
    %s213 = sphi 0, %s211
    %s214 = sphi 0, %s213
    %s228 = sphi 0, %s214
    %s232 = sphi 0, %s232
    %s234 = sphi 0, %s232
    %s235 = sphi 0, %s234
    %s249 = sphi 0, %s235
    %s253 = sphi 0, %s253
    %s255 = sphi 0, %s253
    %s256 = sphi 0, %s255
    %s270 = sphi 0, %s256
    %s274 = sphi 0, %s274
    %s276 = sphi 0, %s274
    %s277 = sphi 0, %s276
    %s291 = sphi 0, %s277
    %s295 = sphi 0, %s295
    %s297 = sphi 0, %s295
    %s298 = sphi 0, %s297
    %s312 = sphi 0, %s298
    %s316 = sphi 0, %s316
    %s318 = sphi 0, %s316
    %s319 = sphi 0, %s318
    %s333 = sphi 0, %s319
    %s337 = sphi 0, %s337
    %s339 = sphi 0, %s337
    %s340 = sphi 0, %s339
    %s354 = sphi 0, %s340
    %s358 = sphi 0, %s358
    %s360 = sphi 0, %s358
    %s361 = sphi 0, %s360
    %s375 = sphi 0, %s361
    %s379 = sphi 0, %s379
    %s381 = sphi 0, %s379
    %s382 = sphi 0, %s381
    %s396 = sphi 0, %s382
    %s400 = sphi 0, %s400
    %s402 = sphi 0, %s400
    %s403 = sphi 0, %s402
    %s417 = sphi 0, %s403
    %s421 = sphi 0, %s421
    %s423 = sphi 0, %s421
    %s424 = sphi 0, %s423
    %s438 = sphi 0, %s424
    %s442 = sphi 0, %s442
    %s444 = sphi 0, %s442
    %s445 = sphi 0, %s444
    %s459 = sphi 0, %s445
    %s467 = sphi 0, %s469
    %s470 = sphi 0, %s467
    %s471 = sphi 0, %s470
    %s487 = sphi 0, %s471
  $region4: #{tpu_custom_call.1} parent=0 // loop_header_branch
    %28 = sbr.rel (%p26) target = $region8
  $region5: #{tpu_custom_call.1} parent=0 // loop_body
    %s30 = ssub.s32 %s25, 1
    %s31 = ssub.s32 %s25, 2
    %s38 = sadd.s32 1, %s33
    %p39 = scmp.ge.s32.totalorder %s38, 2
    %s40 = scalar_select %p39, 0, %s38
    %s41 = sadd.s32 1, %s32
    %s42 = scalar_select %p39, %s41, %s32
    %p43 = scmp.ge.s32.totalorder %s42, 2
    %s44 = scalar_select %p43, 0, %s42
    %s45 = ssub.s32 %s32, %s44
    %p46 = scmp.eq.s32.totalorder %s45, 0
    %s48 = sadd.s32 %s47, 1
    %s49 = scalar_select %p46, %s47, %s48
    %p52 = pneg %p46
    %p53 = scmp.eq.s32.totalorder %s25, 3
    %p54 = por %p52, %p53
    %p55 = scmp.ne.s32.totalorder %s47, %s50
    %p56 = scmp.eq.s32.totalorder %s25, 0
    %p57 = por %p55, %p56
    %p58 = scmp.ne.s32.totalorder %s47, %s50
    %p59 = scmp.eq.s32.totalorder %s30, 3
    %p60 = por %p58, %p59
    %p61 = scmp.ne.s32.totalorder %s50, %s51
    %p62 = scmp.eq.s32.totalorder %s30, 0
    %p63 = por %p61, %p62
    %p64 = scmp.ne.s32.totalorder %s50, %s51
    %p65 = scmp.eq.s32.totalorder %s31, 3
    %p66 = por %p64, %p65
    %p68 = scmp.ne.s32.totalorder %s51, %s67
    %p69 = scmp.eq.s32.totalorder %s31, 0
    %p70 = por %p68, %p69
    %s71 = ssub.s32 %s32, %s44
    %s72 = ssub.s32 %s33, %s40
    %s73 = sor.u32 %s71, %s72
    %p74 = scmp.eq.s32.totalorder %s73, 0
    %s76 = sadd.s32 %s75, 1
    %s77 = scalar_select %p74, %s75, %s76
    %p80 = pneg %p74
    %p81 = scmp.eq.s32.totalorder %s25, 3
    %p82 = por %p80, %p81
    %p83 = scmp.ne.s32.totalorder %s75, %s78
    %p84 = scmp.eq.s32.totalorder %s25, 0
    %p85 = por %p83, %p84
    %p86 = scmp.ne.s32.totalorder %s75, %s78
    %p87 = scmp.eq.s32.totalorder %s30, 3
    %p88 = por %p86, %p87
    %p89 = scmp.ne.s32.totalorder %s78, %s79
    %p90 = scmp.eq.s32.totalorder %s30, 0
    %p91 = por %p89, %p90
    %p92 = scmp.ne.s32.totalorder %s78, %s79
    %p93 = scmp.eq.s32.totalorder %s31, 3
    %p94 = por %p92, %p93
    %p96 = scmp.ne.s32.totalorder %s79, %s95
    %p97 = scmp.eq.s32.totalorder %s31, 0
    %p98 = por %p96, %p97
    %s99 = ssub.s32 %s32, %s44
    %s100 = ssub.s32 %s33, %s40
    %s101 = sor.u32 %s99, %s100
    %p102 = scmp.eq.s32.totalorder %s101, 0
    %s104 = sadd.s32 %s103, 1
    %s105 = scalar_select %p102, %s103, %s104
    %p108 = pneg %p102
    %p109 = scmp.eq.s32.totalorder %s25, 3
    %p110 = por %p108, %p109
    %p111 = scmp.ne.s32.totalorder %s103, %s106
    %p112 = scmp.eq.s32.totalorder %s25, 0
    %p113 = por %p111, %p112
    %p114 = scmp.ne.s32.totalorder %s103, %s106
    %p115 = scmp.eq.s32.totalorder %s30, 3
    %p116 = por %p114, %p115
    %p117 = scmp.ne.s32.totalorder %s106, %s107
    %p118 = scmp.eq.s32.totalorder %s30, 0
    %p119 = por %p117, %p118
    %p120 = scmp.ne.s32.totalorder %s106, %s107
    %p121 = scmp.eq.s32.totalorder %s31, 3
    %p122 = por %p120, %p121
    %p124 = scmp.ne.s32.totalorder %s107, %s123
    %p125 = scmp.eq.s32.totalorder %s31, 0
    %p126 = por %p124, %p125
    %s128 = sadd.s32 %s127, 1
    %p131 = scmp.eq.s32.totalorder %s25, 3
    %p132 = scmp.ne.s32.totalorder %s127, %s129
    %p133 = scmp.eq.s32.totalorder %s25, 0
    %p134 = por %p132, %p133
    %p135 = scmp.ne.s32.totalorder %s127, %s129
    %p136 = scmp.eq.s32.totalorder %s30, 3
    %p137 = por %p135, %p136
    %p138 = scmp.ne.s32.totalorder %s129, %s130
    %p139 = scmp.eq.s32.totalorder %s30, 0
    %p140 = por %p138, %p139
    %p141 = scmp.ne.s32.totalorder %s129, %s130
    %p142 = scmp.eq.s32.totalorder %s31, 3
    %p143 = por %p141, %p142
    %p145 = scmp.ne.s32.totalorder %s130, %s144
    %p146 = scmp.eq.s32.totalorder %s31, 0
    %p147 = por %p145, %p146
    %s149 = sadd.s32 %s148, 1
    %p152 = scmp.eq.s32.totalorder %s25, 3
    %p153 = scmp.ne.s32.totalorder %s148, %s150
    %p154 = scmp.eq.s32.totalorder %s25, 0
    %p155 = por %p153, %p154
    %p156 = scmp.ne.s32.totalorder %s148, %s150
    %p157 = scmp.eq.s32.totalorder %s30, 3
    %p158 = por %p156, %p157
    %p159 = scmp.ne.s32.totalorder %s150, %s151
    %p160 = scmp.eq.s32.totalorder %s30, 0
    %p161 = por %p159, %p160
    %p162 = scmp.ne.s32.totalorder %s150, %s151
    %p163 = scmp.eq.s32.totalorder %s31, 3
    %p164 = por %p162, %p163
    %p166 = scmp.ne.s32.totalorder %s151, %s165
    %p167 = scmp.eq.s32.totalorder %s31, 0
    %p168 = por %p166, %p167
    %s170 = sadd.s32 %s169, 1
    %p173 = scmp.eq.s32.totalorder %s25, 3
    %p174 = scmp.ne.s32.totalorder %s169, %s171
    %p175 = scmp.eq.s32.totalorder %s25, 0
    %p176 = por %p174, %p175
    %p177 = scmp.ne.s32.totalorder %s169, %s171
    %p178 = scmp.eq.s32.totalorder %s30, 3
    %p179 = por %p177, %p178
    %p180 = scmp.ne.s32.totalorder %s171, %s172
    %p181 = scmp.eq.s32.totalorder %s30, 0
    %p182 = por %p180, %p181
    %p183 = scmp.ne.s32.totalorder %s171, %s172
    %p184 = scmp.eq.s32.totalorder %s31, 3
    %p185 = por %p183, %p184
    %p187 = scmp.ne.s32.totalorder %s172, %s186
    %p188 = scmp.eq.s32.totalorder %s31, 0
    %p189 = por %p187, %p188
    %s191 = sadd.s32 %s190, 1
    %p194 = scmp.eq.s32.totalorder %s25, 3
    %p195 = scmp.ne.s32.totalorder %s190, %s192
    %p196 = scmp.eq.s32.totalorder %s25, 0
    %p197 = por %p195, %p196
    %p198 = scmp.ne.s32.totalorder %s190, %s192
    %p199 = scmp.eq.s32.totalorder %s30, 3
    %p200 = por %p198, %p199
    %p201 = scmp.ne.s32.totalorder %s192, %s193
    %p202 = scmp.eq.s32.totalorder %s30, 0
    %p203 = por %p201, %p202
    %p204 = scmp.ne.s32.totalorder %s192, %s193
    %p205 = scmp.eq.s32.totalorder %s31, 3
    %p206 = por %p204, %p205
    %p208 = scmp.ne.s32.totalorder %s193, %s207
    %p209 = scmp.eq.s32.totalorder %s31, 0
    %p210 = por %p208, %p209
    %s212 = sadd.s32 %s211, 1
    %p215 = scmp.eq.s32.totalorder %s25, 3
    %p216 = scmp.ne.s32.totalorder %s211, %s213
    %p217 = scmp.eq.s32.totalorder %s25, 0
    %p218 = por %p216, %p217
    %p219 = scmp.ne.s32.totalorder %s211, %s213
    %p220 = scmp.eq.s32.totalorder %s30, 3
    %p221 = por %p219, %p220
    %p222 = scmp.ne.s32.totalorder %s213, %s214
    %p223 = scmp.eq.s32.totalorder %s30, 0
    %p224 = por %p222, %p223
    %p225 = scmp.ne.s32.totalorder %s213, %s214
    %p226 = scmp.eq.s32.totalorder %s31, 3
    %p227 = por %p225, %p226
    %p229 = scmp.ne.s32.totalorder %s214, %s228
    %p230 = scmp.eq.s32.totalorder %s31, 0
    %p231 = por %p229, %p230
    %s233 = sadd.s32 %s232, 1
    %p236 = scmp.eq.s32.totalorder %s25, 3
    %p237 = scmp.ne.s32.totalorder %s232, %s234
    %p238 = scmp.eq.s32.totalorder %s25, 0
    %p239 = por %p237, %p238
    %p240 = scmp.ne.s32.totalorder %s232, %s234
    %p241 = scmp.eq.s32.totalorder %s30, 3
    %p242 = por %p240, %p241
    %p243 = scmp.ne.s32.totalorder %s234, %s235
    %p244 = scmp.eq.s32.totalorder %s30, 0
    %p245 = por %p243, %p244
    %p246 = scmp.ne.s32.totalorder %s234, %s235
    %p247 = scmp.eq.s32.totalorder %s31, 3
    %p248 = por %p246, %p247
    %p250 = scmp.ne.s32.totalorder %s235, %s249
    %p251 = scmp.eq.s32.totalorder %s31, 0
    %p252 = por %p250, %p251
    %s254 = sadd.s32 %s253, 1
    %p257 = scmp.eq.s32.totalorder %s25, 3
    %p258 = scmp.ne.s32.totalorder %s253, %s255
    %p259 = scmp.eq.s32.totalorder %s25, 0
    %p260 = por %p258, %p259
    %p261 = scmp.ne.s32.totalorder %s253, %s255
    %p262 = scmp.eq.s32.totalorder %s30, 3
    %p263 = por %p261, %p262
    %p264 = scmp.ne.s32.totalorder %s255, %s256
    %p265 = scmp.eq.s32.totalorder %s30, 0
    %p266 = por %p264, %p265
    %p267 = scmp.ne.s32.totalorder %s255, %s256
    %p268 = scmp.eq.s32.totalorder %s31, 3
    %p269 = por %p267, %p268
    %p271 = scmp.ne.s32.totalorder %s256, %s270
    %p272 = scmp.eq.s32.totalorder %s31, 0
    %p273 = por %p271, %p272
    %s275 = sadd.s32 %s274, 1
    %p278 = scmp.eq.s32.totalorder %s25, 3
    %p279 = scmp.ne.s32.totalorder %s274, %s276
    %p280 = scmp.eq.s32.totalorder %s25, 0
    %p281 = por %p279, %p280
    %p282 = scmp.ne.s32.totalorder %s274, %s276
    %p283 = scmp.eq.s32.totalorder %s30, 3
    %p284 = por %p282, %p283
    %p285 = scmp.ne.s32.totalorder %s276, %s277
    %p286 = scmp.eq.s32.totalorder %s30, 0
    %p287 = por %p285, %p286
    %p288 = scmp.ne.s32.totalorder %s276, %s277
    %p289 = scmp.eq.s32.totalorder %s31, 3
    %p290 = por %p288, %p289
    %p292 = scmp.ne.s32.totalorder %s277, %s291
    %p293 = scmp.eq.s32.totalorder %s31, 0
    %p294 = por %p292, %p293
    %s296 = sadd.s32 %s295, 1
    %p299 = scmp.eq.s32.totalorder %s25, 3
    %p300 = scmp.ne.s32.totalorder %s295, %s297
    %p301 = scmp.eq.s32.totalorder %s25, 0
    %p302 = por %p300, %p301
    %p303 = scmp.ne.s32.totalorder %s295, %s297
    %p304 = scmp.eq.s32.totalorder %s30, 3
    %p305 = por %p303, %p304
    %p306 = scmp.ne.s32.totalorder %s297, %s298
    %p307 = scmp.eq.s32.totalorder %s30, 0
    %p308 = por %p306, %p307
    %p309 = scmp.ne.s32.totalorder %s297, %s298
    %p310 = scmp.eq.s32.totalorder %s31, 3
    %p311 = por %p309, %p310
    %p313 = scmp.ne.s32.totalorder %s298, %s312
    %p314 = scmp.eq.s32.totalorder %s31, 0
    %p315 = por %p313, %p314
    %s317 = sadd.s32 %s316, 1
    %p320 = scmp.eq.s32.totalorder %s25, 3
    %p321 = scmp.ne.s32.totalorder %s316, %s318
    %p322 = scmp.eq.s32.totalorder %s25, 0
    %p323 = por %p321, %p322
    %p324 = scmp.ne.s32.totalorder %s316, %s318
    %p325 = scmp.eq.s32.totalorder %s30, 3
    %p326 = por %p324, %p325
    %p327 = scmp.ne.s32.totalorder %s318, %s319
    %p328 = scmp.eq.s32.totalorder %s30, 0
    %p329 = por %p327, %p328
    %p330 = scmp.ne.s32.totalorder %s318, %s319
    %p331 = scmp.eq.s32.totalorder %s31, 3
    %p332 = por %p330, %p331
    %p334 = scmp.ne.s32.totalorder %s319, %s333
    %p335 = scmp.eq.s32.totalorder %s31, 0
    %p336 = por %p334, %p335
    %s338 = sadd.s32 %s337, 1
    %p341 = scmp.eq.s32.totalorder %s25, 3
    %p342 = scmp.ne.s32.totalorder %s337, %s339
    %p343 = scmp.eq.s32.totalorder %s25, 0
    %p344 = por %p342, %p343
    %p345 = scmp.ne.s32.totalorder %s337, %s339
    %p346 = scmp.eq.s32.totalorder %s30, 3
    %p347 = por %p345, %p346
    %p348 = scmp.ne.s32.totalorder %s339, %s340
    %p349 = scmp.eq.s32.totalorder %s30, 0
    %p350 = por %p348, %p349
    %p351 = scmp.ne.s32.totalorder %s339, %s340
    %p352 = scmp.eq.s32.totalorder %s31, 3
    %p353 = por %p351, %p352
    %p355 = scmp.ne.s32.totalorder %s340, %s354
    %p356 = scmp.eq.s32.totalorder %s31, 0
    %p357 = por %p355, %p356
    %s359 = sadd.s32 %s358, 1
    %p362 = scmp.eq.s32.totalorder %s25, 3
    %p363 = scmp.ne.s32.totalorder %s358, %s360
    %p364 = scmp.eq.s32.totalorder %s25, 0
    %p365 = por %p363, %p364
    %p366 = scmp.ne.s32.totalorder %s358, %s360
    %p367 = scmp.eq.s32.totalorder %s30, 3
    %p368 = por %p366, %p367
    %p369 = scmp.ne.s32.totalorder %s360, %s361
    %p370 = scmp.eq.s32.totalorder %s30, 0
    %p371 = por %p369, %p370
    %p372 = scmp.ne.s32.totalorder %s360, %s361
    %p373 = scmp.eq.s32.totalorder %s31, 3
    %p374 = por %p372, %p373
    %p376 = scmp.ne.s32.totalorder %s361, %s375
    %p377 = scmp.eq.s32.totalorder %s31, 0
    %p378 = por %p376, %p377
    %s380 = sadd.s32 %s379, 1
    %p383 = scmp.eq.s32.totalorder %s25, 3
    %p384 = scmp.ne.s32.totalorder %s379, %s381
    %p385 = scmp.eq.s32.totalorder %s25, 0
    %p386 = por %p384, %p385
    %p387 = scmp.ne.s32.totalorder %s379, %s381
    %p388 = scmp.eq.s32.totalorder %s30, 3
    %p389 = por %p387, %p388
    %p390 = scmp.ne.s32.totalorder %s381, %s382
    %p391 = scmp.eq.s32.totalorder %s30, 0
    %p392 = por %p390, %p391
    %p393 = scmp.ne.s32.totalorder %s381, %s382
    %p394 = scmp.eq.s32.totalorder %s31, 3
    %p395 = por %p393, %p394
    %p397 = scmp.ne.s32.totalorder %s382, %s396
    %p398 = scmp.eq.s32.totalorder %s31, 0
    %p399 = por %p397, %p398
    %s401 = sadd.s32 %s400, 1
    %p404 = scmp.eq.s32.totalorder %s25, 3
    %p405 = scmp.ne.s32.totalorder %s400, %s402
    %p406 = scmp.eq.s32.totalorder %s25, 0
    %p407 = por %p405, %p406
    %p408 = scmp.ne.s32.totalorder %s400, %s402
    %p409 = scmp.eq.s32.totalorder %s30, 3
    %p410 = por %p408, %p409
    %p411 = scmp.ne.s32.totalorder %s402, %s403
    %p412 = scmp.eq.s32.totalorder %s30, 0
    %p413 = por %p411, %p412
    %p414 = scmp.ne.s32.totalorder %s402, %s403
    %p415 = scmp.eq.s32.totalorder %s31, 3
    %p416 = por %p414, %p415
    %p418 = scmp.ne.s32.totalorder %s403, %s417
    %p419 = scmp.eq.s32.totalorder %s31, 0
    %p420 = por %p418, %p419
    %s422 = sadd.s32 %s421, 1
    %p425 = scmp.eq.s32.totalorder %s25, 3
    %p426 = scmp.ne.s32.totalorder %s421, %s423
    %p427 = scmp.eq.s32.totalorder %s25, 0
    %p428 = por %p426, %p427
    %p429 = scmp.ne.s32.totalorder %s421, %s423
    %p430 = scmp.eq.s32.totalorder %s30, 3
    %p431 = por %p429, %p430
    %p432 = scmp.ne.s32.totalorder %s423, %s424
    %p433 = scmp.eq.s32.totalorder %s30, 0
    %p434 = por %p432, %p433
    %p435 = scmp.ne.s32.totalorder %s423, %s424
    %p436 = scmp.eq.s32.totalorder %s31, 3
    %p437 = por %p435, %p436
    %p439 = scmp.ne.s32.totalorder %s424, %s438
    %p440 = scmp.eq.s32.totalorder %s31, 0
    %p441 = por %p439, %p440
    %s443 = sadd.s32 %s442, 1
    %p446 = scmp.eq.s32.totalorder %s25, 3
    %p447 = scmp.ne.s32.totalorder %s442, %s444
    %p448 = scmp.eq.s32.totalorder %s25, 0
    %p449 = por %p447, %p448
    %p450 = scmp.ne.s32.totalorder %s442, %s444
    %p451 = scmp.eq.s32.totalorder %s30, 3
    %p452 = por %p450, %p451
    %p453 = scmp.ne.s32.totalorder %s444, %s445
    %p454 = scmp.eq.s32.totalorder %s30, 0
    %p455 = por %p453, %p454
    %p456 = scmp.ne.s32.totalorder %s444, %s445
    %p457 = scmp.eq.s32.totalorder %s31, 3
    %p458 = por %p456, %p457
    %p460 = scmp.ne.s32.totalorder %s445, %s459
    %p461 = scmp.eq.s32.totalorder %s31, 0
    %p462 = por %p460, %p461
    %s463 = ssub.s32 %s32, %s44
    %s464 = ssub.s32 %s33, %s40
    %s465 = sor.u32 %s463, %s464
    %p466 = scmp.eq.s32.totalorder %s465, 0
    %s468 = sadd.s32 %s467, 1
    %s469 = scalar_select %p466, %s467, %s468
    %p472 = pneg %p466
    %p473 = scmp.eq.s32.totalorder %s25, 3
    %p474 = por %p472, %p473
    %p475 = scmp.ne.s32.totalorder %s467, %s470
    %p476 = scmp.eq.s32.totalorder %s25, 0
    %p477 = por %p475, %p476
    %p478 = scmp.ne.s32.totalorder %s467, %s470
    %p479 = scmp.eq.s32.totalorder %s30, 3
    %p480 = por %p478, %p479
    %p481 = scmp.ne.s32.totalorder %s470, %s471
    %p482 = scmp.eq.s32.totalorder %s30, 0
    %p483 = por %p481, %p482
    %p484 = scmp.ne.s32.totalorder %s470, %s471
    %p485 = scmp.eq.s32.totalorder %s31, 3
    %p486 = por %p484, %p485
    %p488 = scmp.ne.s32.totalorder %s471, %s487
    %p489 = scmp.eq.s32.totalorder %s31, 0
    %p490 = por %p488, %p489
    %p491 = scmp.le.s32.totalorder 1, %s25
    %p492 = scmp.lt.s32.totalorder %s25, 5
    %p493 = pnand %p491, %p492
    %p494 = pneg %p493
    // Predicated region
    $region9: #{tpu_custom_call.1} parent=5 // pred_check
      _
    $region10: #{tpu_custom_call.1} parent=5 // pred_check_branch
      %496 = sbr.rel (%p493) target = $region12
    $region11: #{tpu_custom_call.1} parent=5 // pred_region
      %s497 = ssub.s32 %s25, 1
      // Predicated region
      $region13: #{tpu_custom_call.1} parent=11 // pred_check
        %p498 = pneg %p140
      $region14: #{tpu_custom_call.1} parent=11 // pred_check_branch
        %500 = sbr.rel (%p498) target = $region16
      $region15: #{tpu_custom_call.1} parent=11 // pred_region
        _
      $region16: #{tpu_custom_call.1} parent=11 // pred_fallthru
        _
      // Predicated region
      $region17: #{tpu_custom_call.1} parent=11 // pred_check
        %p501 = pneg %p161
      $region18: #{tpu_custom_call.1} parent=11 // pred_check_branch
        %503 = sbr.rel (%p501) target = $region20
      $region19: #{tpu_custom_call.1} parent=11 // pred_region
        _
      $region20: #{tpu_custom_call.1} parent=11 // pred_fallthru
        _
      // Predicated region
      $region21: #{tpu_custom_call.1} parent=11 // pred_check
        %p504 = pneg %p182
      $region22: #{tpu_custom_call.1} parent=11 // pred_check_branch
        %506 = sbr.rel (%p504) target = $region24
      $region23: #{tpu_custom_call.1} parent=11 // pred_region
        _
      $region24: #{tpu_custom_call.1} parent=11 // pred_fallthru
        _
      // Predicated region
      $region25: #{tpu_custom_call.1} parent=11 // pred_check
        %p507 = pneg %p203
      $region26: #{tpu_custom_call.1} parent=11 // pred_check_branch
        %509 = sbr.rel (%p507) target = $region28
      $region27: #{tpu_custom_call.1} parent=11 // pred_region
        _
      $region28: #{tpu_custom_call.1} parent=11 // pred_fallthru
        _
      // Predicated region
      $region29: #{tpu_custom_call.1} parent=11 // pred_check
        %p510 = pneg %p224
      $region30: #{tpu_custom_call.1} parent=11 // pred_check_branch
        %512 = sbr.rel (%p510) target = $region32
      $region31: #{tpu_custom_call.1} parent=11 // pred_region
        _
      $region32: #{tpu_custom_call.1} parent=11 // pred_fallthru
        _
      // Predicated region
      $region33: #{tpu_custom_call.1} parent=11 // pred_check
        %p513 = pneg %p245
      $region34: #{tpu_custom_call.1} parent=11 // pred_check_branch
        %515 = sbr.rel (%p513) target = $region36
      $region35: #{tpu_custom_call.1} parent=11 // pred_region
        _
      $region36: #{tpu_custom_call.1} parent=11 // pred_fallthru
        _
      // Predicated region
      $region37: #{tpu_custom_call.1} parent=11 // pred_check
        %p516 = pneg %p266
      $region38: #{tpu_custom_call.1} parent=11 // pred_check_branch
        %518 = sbr.rel (%p516) target = $region40
      $region39: #{tpu_custom_call.1} parent=11 // pred_region
        _
      $region40: #{tpu_custom_call.1} parent=11 // pred_fallthru
        _
      // Predicated region
      $region41: #{tpu_custom_call.1} parent=11 // pred_check
        %p519 = pneg %p287
      $region42: #{tpu_custom_call.1} parent=11 // pred_check_branch
        %521 = sbr.rel (%p519) target = $region44
      $region43: #{tpu_custom_call.1} parent=11 // pred_region
        _
      $region44: #{tpu_custom_call.1} parent=11 // pred_fallthru
        _
      // Predicated region
      $region45: #{tpu_custom_call.1} parent=11 // pred_check
        %p522 = pneg %p308
      $region46: #{tpu_custom_call.1} parent=11 // pred_check_branch
        %524 = sbr.rel (%p522) target = $region48
      $region47: #{tpu_custom_call.1} parent=11 // pred_region
        _
      $region48: #{tpu_custom_call.1} parent=11 // pred_fallthru
        _
      // Predicated region
      $region49: #{tpu_custom_call.1} parent=11 // pred_check
        %p525 = pneg %p329
      $region50: #{tpu_custom_call.1} parent=11 // pred_check_branch
        %527 = sbr.rel (%p525) target = $region52
      $region51: #{tpu_custom_call.1} parent=11 // pred_region
        _
      $region52: #{tpu_custom_call.1} parent=11 // pred_fallthru
        _
      // Predicated region
      $region53: #{tpu_custom_call.1} parent=11 // pred_check
        %p528 = pneg %p350
      $region54: #{tpu_custom_call.1} parent=11 // pred_check_branch
        %530 = sbr.rel (%p528) target = $region56
      $region55: #{tpu_custom_call.1} parent=11 // pred_region
        _
      $region56: #{tpu_custom_call.1} parent=11 // pred_fallthru
        _
      // Predicated region
      $region57: #{tpu_custom_call.1} parent=11 // pred_check
        %p531 = pneg %p371
      $region58: #{tpu_custom_call.1} parent=11 // pred_check_branch
        %533 = sbr.rel (%p531) target = $region60
      $region59: #{tpu_custom_call.1} parent=11 // pred_region
        _
      $region60: #{tpu_custom_call.1} parent=11 // pred_fallthru
        _
      // Predicated region
      $region61: #{tpu_custom_call.1} parent=11 // pred_check
        %p534 = pneg %p392
      $region62: #{tpu_custom_call.1} parent=11 // pred_check_branch
        %536 = sbr.rel (%p534) target = $region64
      $region63: #{tpu_custom_call.1} parent=11 // pred_region
        _
      $region64: #{tpu_custom_call.1} parent=11 // pred_fallthru
        _
      // Predicated region
      $region65: #{tpu_custom_call.1} parent=11 // pred_check
        %p537 = pneg %p413
      $region66: #{tpu_custom_call.1} parent=11 // pred_check_branch
        %539 = sbr.rel (%p537) target = $region68
      $region67: #{tpu_custom_call.1} parent=11 // pred_region
        _
      $region68: #{tpu_custom_call.1} parent=11 // pred_fallthru
        _
      // Predicated region
      $region69: #{tpu_custom_call.1} parent=11 // pred_check
        %p540 = pneg %p434
      $region70: #{tpu_custom_call.1} parent=11 // pred_check_branch
        %542 = sbr.rel (%p540) target = $region72
      $region71: #{tpu_custom_call.1} parent=11 // pred_region
        _
      $region72: #{tpu_custom_call.1} parent=11 // pred_fallthru
        _
      // Predicated region
      $region73: #{tpu_custom_call.1} parent=11 // pred_check
        %p543 = pneg %p455
      $region74: #{tpu_custom_call.1} parent=11 // pred_check_branch
        %545 = sbr.rel (%p543) target = $region76
      $region75: #{tpu_custom_call.1} parent=11 // pred_region
        _
      $region76: #{tpu_custom_call.1} parent=11 // pred_fallthru
        _
    $region12: #{tpu_custom_call.1} parent=5 // pred_fallthru
      _
    %p546 = scmp.lt.s32.totalorder %s25, 4
    // Predicated region
    $region77: #{tpu_custom_call.1} parent=5 // pred_check
      %p547 = pneg %p546
    $region78: #{tpu_custom_call.1} parent=5 // pred_check_branch
      %549 = sbr.rel (%p547) target = $region80
    $region79: #{tpu_custom_call.1} parent=5 // pred_region
      // Predicated region
      $region81: #{tpu_custom_call.1} parent=79 // pred_check
        %p550 = pneg %p57
      $region82: #{tpu_custom_call.1} parent=79 // pred_check_branch
        %552 = sbr.rel (%p550) target = $region84
      $region83: #{tpu_custom_call.1} parent=79 // pred_region
        %p553 = scmp.lt.s32.totalorder %s32, 1
        %s554 = scalar_select %p553, %s32, 1
        %s555 = smul.addr %s554, 8
        %s556 = smul.addr %s555, 8
        %s557 = scalar_lea.vmem %s0, %s556
      $region84: #{tpu_custom_call.1} parent=79 // pred_fallthru
        _
      // Predicated region
      $region85: #{tpu_custom_call.1} parent=79 // pred_check
        %p558 = pneg %p85
      $region86: #{tpu_custom_call.1} parent=79 // pred_check_branch
        %560 = sbr.rel (%p558) target = $region88
      $region87: #{tpu_custom_call.1} parent=79 // pred_region
        %s561 = smul.u32 4, %s33
        %p562 = scmp.lt.s32.totalorder %s32, 1
        %s563 = scalar_select %p562, %s32, 1
        %p564 = scmp.lt.s32.totalorder %s561, 7
        %s565 = scalar_select %p564, %s561, 7
        %s566 = smul.addr %s563, 8
        %s567 = sadd.s32 %s565, %s566
        %s568 = smul.addr %s567, 8
        %s569 = scalar_lea.vmem %s1, %s568
        %s570 = smul.u32 4, %s33
      $region88: #{tpu_custom_call.1} parent=79 // pred_fallthru
        _
      // Predicated region
      $region89: #{tpu_custom_call.1} parent=79 // pred_check
        %p571 = pneg %p113
      $region90: #{tpu_custom_call.1} parent=79 // pred_check_branch
        %573 = sbr.rel (%p571) target = $region92
      $region91: #{tpu_custom_call.1} parent=79 // pred_region
        %p574 = scmp.lt.s32.totalorder %s32, 1
        %s575 = scalar_select %p574, %s32, 1
        %p576 = scmp.lt.s32.totalorder %s33, 1
        %s577 = scalar_select %p576, %s33, 1
        %s578 = smul.addr %s575, 2
        %s579 = sadd.s32 %s577, %s578
        %s580 = smul.addr %s579, 8
        %s581 = scalar_lea.vmem %s2, %s580
      $region92: #{tpu_custom_call.1} parent=79 // pred_fallthru
        _
    $region80: #{tpu_custom_call.1} parent=5 // pred_fallthru
      _
    %p582 = scmp.le.s32.totalorder 1, %s25
    %p583 = scmp.lt.s32.totalorder %s25, 5
    %p584 = pnand %p582, %p583
    %p585 = pneg %p584
    // Predicated region
    $region93: #{tpu_custom_call.1} parent=5 // pred_check
      _
    $region94: #{tpu_custom_call.1} parent=5 // pred_check_branch
      %587 = sbr.rel (%p584) target = $region96
    $region95: #{tpu_custom_call.1} parent=5 // pred_region
      %s588 = ssub.s32 %s25, 1
      %p589 = scmp.lt.s32.totalorder %s34, 1
      %s590 = scalar_select %p589, %s34, 1
      %s591 = smul.addr %s590, 8
      %s592 = smul.addr %s591, 8
      %s593 = scalar_lea.vmem %s0, %s592
      %p594 = pneg %p63
      %p595 = pneg %p60
      %s596 = smul.u32 4, %s35
      %p597 = scmp.lt.s32.totalorder %s34, 1
      %s598 = scalar_select %p597, %s34, 1
      %p599 = scmp.lt.s32.totalorder %s596, 7
      %s600 = scalar_select %p599, %s596, 7
      %s601 = smul.addr %s598, 8
      %s602 = sadd.s32 %s600, %s601
      %s603 = smul.addr %s602, 8
      %s604 = scalar_lea.vmem %s1, %s603
      %p605 = pneg %p91
      %p606 = pneg %p88
      %p607 = scmp.lt.s32.totalorder %s34, 1
      %s608 = scalar_select %p607, %s34, 1
      %p609 = scmp.lt.s32.totalorder %s35, 1
      %s610 = scalar_select %p609, %s35, 1
      %s611 = smul.addr %s608, 2
      %s612 = sadd.s32 %s610, %s611
      %s613 = smul.addr %s612, 8
      %s614 = scalar_lea.vmem %s2, %s613
      %p615 = pneg %p119
      %p616 = pneg %p116
      %p617 = pneg %p140
      %p618 = pneg %p137
      %p619 = pneg %p161
      %p620 = pneg %p158
      %p621 = pneg %p182
      %p622 = pneg %p179
      %p623 = pneg %p203
      %p624 = pneg %p200
      %p625 = pneg %p224
      %p626 = pneg %p221
      %p627 = pneg %p245
      %p628 = pneg %p242
      %p629 = pneg %p266
      %p630 = pneg %p263
      %p631 = pneg %p287
      %p632 = pneg %p284
      %p633 = pneg %p308
      %p634 = pneg %p305
      %p635 = pneg %p329
      %p636 = pneg %p326
      %p637 = pneg %p350
      %p638 = pneg %p347
      %p639 = pneg %p371
      %p640 = pneg %p368
      %p641 = pneg %p392
      %p642 = pneg %p389
      %p643 = pneg %p413
      %p644 = pneg %p410
      %p645 = pneg %p434
      %p646 = pneg %p431
      %p647 = pneg %p455
      %p648 = pneg %p452
      %p649 = pneg %p483
      %p650 = pneg %p480
      %s651 = smul.u32 4, %s35
      %p652 = scmp.lt.s32.totalorder %s34, 1
      %s653 = scalar_select %p652, %s34, 1
      %p654 = scmp.lt.s32.totalorder %s651, 7
      %s655 = scalar_select %p654, %s651, 7
      %s656 = smul.addr %s653, 8
      %s657 = sadd.s32 %s655, %s656
      %s658 = smul.addr %s657, 8
      %s659 = scalar_lea.vmem %s19, %s658
      %p660 = scmp.lt.s32.totalorder %s34, 1
      %s661 = scalar_select %p660, %s34, 1
      %s662 = smul.addr %s661, 8
      %s663 = smul.addr %s662, 8
      %s664 = scalar_lea.vmem %s0, %s663
      %s665 = smul.u32 4, %s35
      %p666 = scmp.lt.s32.totalorder %s34, 1
      %s667 = scalar_select %p666, %s34, 1
      %p668 = scmp.lt.s32.totalorder %s665, 7
      %s669 = scalar_select %p668, %s665, 7
      %s670 = smul.addr %s667, 8
      %s671 = sadd.s32 %s669, %s670
      %s672 = smul.addr %s671, 8
      %s673 = scalar_lea.vmem %s1, %s672
      %s674 = smul.u32 4, %s35
      %p675 = scmp.lt.s32.totalorder %s34, 1
      %s676 = scalar_select %p675, %s34, 1
      %p677 = scmp.lt.s32.totalorder %s35, 1
      %s678 = scalar_select %p677, %s35, 1
      %s679 = smul.addr %s676, 2
      %s680 = sadd.s32 %s678, %s679
      %s681 = smul.addr %s680, 8
      %s682 = scalar_lea.vmem %s2, %s681
      %s683 = smul.u32 4, %s35
      %p684 = scmp.lt.s32.totalorder %s34, 1
      %s685 = scalar_select %p684, %s34, 1
      %p686 = scmp.lt.s32.totalorder %s683, 7
      %s687 = scalar_select %p686, %s683, 7
      %s688 = smul.addr %s685, 8
      %s689 = sadd.s32 %s687, %s688
      %s690 = smul.addr %s689, 8
      %s691 = scalar_lea.vmem %s19, %s690
      %s692 = smul.u32 4, %s35
      %p693 = scmp.eq.s32.totalorder %s35, 0
      // Predicated region
      $region97: #{tpu_custom_call.1} parent=95 // pred_check
        %p694 = pneg %p693
      $region98: #{tpu_custom_call.1} parent=95 // pred_check_branch
        %696 = sbr.rel (%p694) target = $region100
      $region99: #{tpu_custom_call.1} parent=95 // pred_region
        %v697 = vld [vmem:[%s664] sm:$0xff]
        %v698 = vld [vmem:[%s664 + $0x8] sm:$0xff]
        %v699 = vld [vmem:[%s664 + $0x10] sm:$0xff]
        %v700 = vld [vmem:[%s664 + $0x18] sm:$0xff]
        %v701 = vld [vmem:[%s664 + $0x20] sm:$0xff]
        %v702 = vld [vmem:[%s664 + $0x28] sm:$0xff]
        %v703 = vld [vmem:[%s664 + $0x30] sm:$0xff]
        %v704 = vld [vmem:[%s664 + $0x38] sm:$0xff]
        %v705 = vld [vmem:[%s5] sm:$0xff]
        %v706 = vld [vmem:[%s5 + $0x8] sm:$0xff]
        %v707 = vld [vmem:[%s5 + $0x10] sm:$0xff]
        %v708 = vld [vmem:[%s5 + $0x18] sm:$0xff]
        %v709 = vld [vmem:[%s6] sm:$0x1]
        %v711 = vlaneseq
        %v712 = vshrl.u32 %v711, 7
        %v713 = vsub.s32 0, %v712
        %v714 = vrot.slane %v709, %v713
        %vm716 = vcmask 261120
        %v718 = vsel %vm716, %v697, 0
        %v721 = vsel %vm716, %v698, 0
        %v724 = vsel %vm716, %v699, 0
        %v727 = vsel %vm716, %v700, 0
        %v730 = vsel %vm716, %v701, 0
        %v733 = vsel %vm716, %v702, 0
        %v736 = vsel %vm716, %v703, 0
        %v739 = vsel %vm716, %v704, 0
        %741 = vmatprep.subr.mxu0 0.0
        %742 = vmatpush1.msra.mxu0 0.0
        %743 = vmatprep.subr.mxu0 0.0
        %744 = vmatpush1.msra.mxu0 0.0
        %745 = vmatprep.subr.mxu0 0.0
        %746 = vmatpush1.msra.mxu0 0.0
        %747 = vmatprep.subr.mxu0 0.0
        %748 = vmatpush1.msra.mxu0 0.0
        %749 = vmatprep.subr.mxu0 0.0
        %750 = vmatpush1.msra.mxu0 0.0
        %751 = vmatprep.subr.mxu0 0.0
        %752 = vmatpush1.msra.mxu0 0.0
        %753 = vmatprep.subr.mxu0 0.0
        %754 = vmatpush1.msra.mxu0 0.0
        %755 = vmatprep.subr.mxu0 0.0
        %756 = vmatpush1.msra.mxu0 0.0
        %757 = vmatprep.subr.mxu0 0.0
        %758 = vmatpush1.msra.mxu0 0.0
        %759 = vmatprep.subr.mxu0 0.0
        %760 = vmatpush1.msra.mxu0 0.0
        %761 = vmatprep.subr.mxu0 0.0
        %762 = vmatpush1.msra.mxu0 0.0
        %763 = vmatprep.subr.mxu0 0.0
        %764 = vmatpush1.msra.mxu0 0.0
        %765 = vmatprep.subr.mxu0 0.0
        %766 = vmatpush1.msra.mxu0 %v708
        %767 = vmatprep.subr.mxu0 0.0
        %768 = vmatpush1.msra.mxu0 %v707
        %769 = vmatprep.subr.mxu0 0.0
        %770 = vmatpush1.msra.mxu0 %v706
        %771 = vmatprep.subr.mxu0 0.0
        %772 = vmatpush1.msra.mxu0 %v705
        %773 = vmatprep.subr.mxu0 0.0
        %774 = vmatpush2.msra.mxu0 0.0
        %775 = vmatprep.subr.mxu0 0.0
        %776 = vmatpush2.msra.mxu0 0.0
        %777 = vmatprep.subr.mxu0 0.0
        %778 = vmatpush2.msra.mxu0 0.0
        %779 = vmatprep.subr.mxu0 0.0
        %780 = vmatpush2.msra.mxu0 0.0
        %781 = vmatprep.subr.mxu0 0.0
        %782 = vmatpush2.msra.mxu0 0.0
        %783 = vmatprep.subr.mxu0 0.0
        %784 = vmatpush2.msra.mxu0 0.0
        %785 = vmatprep.subr.mxu0 0.0
        %786 = vmatpush2.msra.mxu0 0.0
        %787 = vmatprep.subr.mxu0 0.0
        %788 = vmatpush2.msra.mxu0 0.0
        %789 = vmatprep.subr.mxu0 0.0
        %790 = vmatpush2.msra.mxu0 0.0
        %791 = vmatprep.subr.mxu0 0.0
        %792 = vmatpush2.msra.mxu0 0.0
        %793 = vmatprep.subr.mxu0 0.0
        %794 = vmatpush2.msra.mxu0 0.0
        %795 = vmatprep.subr.mxu0 0.0
        %796 = vmatpush2.msra.mxu0 0.0
        %797 = vmatprep.subr.mxu0 0.0
        %798 = vmatpush2.msra.mxu0 0.0
        %799 = vmatprep.subr.mxu0 0.0
        %800 = vmatpush2.msra.mxu0 0.0
        %801 = vmatprep.subr.mxu0 0.0
        %802 = vmatpush2.msra.mxu0 0.0
        %803 = vmatprep.subr.mxu0 0.0
        %804 = vmatpush2.msra.mxu0 0.0
        %805 = vmatprep.mubr.f32.mxu0 0.0
        %806 = vmatmul.mubr.f32.gmra.mxu0 %v718
        %v807 = vpop.f32.mrf.mxu0
        %v808 = vadd.f32 %v714, %v807
        %v809 = vpop.f32.mrf.mxu0
        %810 = vmatprep.mubr.f32.mxu0 0.0
        %811 = vmatmul.mubr.f32.gmra.mxu0 %v721
        %v812 = vpop.f32.mrf.mxu0
        %v813 = vadd.f32 %v714, %v812
        %v814 = vpop.f32.mrf.mxu0
        %815 = vmatprep.mubr.f32.mxu0 0.0
        %816 = vmatmul.mubr.f32.gmra.mxu0 %v724
        %v817 = vpop.f32.mrf.mxu0
        %v818 = vadd.f32 %v714, %v817
        %v819 = vpop.f32.mrf.mxu0
        %820 = vmatprep.mubr.f32.mxu0 0.0
        %821 = vmatmul.mubr.f32.gmra.mxu0 %v727
        %v822 = vpop.f32.mrf.mxu0
        %v823 = vadd.f32 %v714, %v822
        %v824 = vpop.f32.mrf.mxu0
        %825 = vmatprep.mubr.f32.mxu0 0.0
        %826 = vmatmul.mubr.f32.gmra.mxu0 %v730
        %v827 = vpop.f32.mrf.mxu0
        %v828 = vadd.f32 %v714, %v827
        %v829 = vpop.f32.mrf.mxu0
        %830 = vmatprep.mubr.f32.mxu0 0.0
        %831 = vmatmul.mubr.f32.gmra.mxu0 %v733
        %v832 = vpop.f32.mrf.mxu0
        %v833 = vadd.f32 %v714, %v832
        %v834 = vpop.f32.mrf.mxu0
        %835 = vmatprep.mubr.f32.mxu0 0.0
        %836 = vmatmul.mubr.f32.gmra.mxu0 %v736
        %v837 = vpop.f32.mrf.mxu0
        %v838 = vadd.f32 %v714, %v837
        %v839 = vpop.f32.mrf.mxu0
        %840 = vmatprep.mubr.f32.mxu0 0.0
        %841 = vmatmul.mubr.f32.gmra.mxu0 %v739
        %v842 = vpop.f32.mrf.mxu0
        %v843 = vadd.f32 %v714, %v842
        %v844 = vpop.f32.mrf.mxu0
        %845 = vdwg.mxu0
        %846 = vst.msk [vmem:[#allocation2] sm:$0xff] %vm716, %v808
        %847 = vst.msk [vmem:[#allocation2 + $0x8] sm:$0xff] %vm716, %v813
        %848 = vst.msk [vmem:[#allocation2 + $0x10] sm:$0xff] %vm716, %v818
        %849 = vst.msk [vmem:[#allocation2 + $0x18] sm:$0xff] %vm716, %v823
        %850 = vst.msk [vmem:[#allocation2 + $0x20] sm:$0xff] %vm716, %v828
        %851 = vst.msk [vmem:[#allocation2 + $0x28] sm:$0xff] %vm716, %v833
        %852 = vst.msk [vmem:[#allocation2 + $0x30] sm:$0xff] %vm716, %v838
        %853 = vst.msk [vmem:[#allocation2 + $0x38] sm:$0xff] %vm716, %v843
        %v854 = vld [vmem:[%s7] sm:$0xff]
        %v855 = vld [vmem:[%s7 + $0x8] sm:$0xff]
        %v856 = vld [vmem:[%s7 + $0x10] sm:$0xff]
        %v857 = vld [vmem:[%s7 + $0x18] sm:$0xff]
        %v858 = vld [vmem:[%s8] sm:$0x1]
        %v860 = vlaneseq
        %v861 = vshrl.u32 %v860, 7
        %v862 = vsub.s32 0, %v861
        %v863 = vrot.slane %v858, %v862
        %865 = vmatprep.subr.mxu0 0.0
        %866 = vmatpush1.msra.mxu0 0.0
        %867 = vmatprep.subr.mxu0 0.0
        %868 = vmatpush1.msra.mxu0 0.0
        %869 = vmatprep.subr.mxu0 0.0
        %870 = vmatpush1.msra.mxu0 0.0
        %871 = vmatprep.subr.mxu0 0.0
        %872 = vmatpush1.msra.mxu0 0.0
        %873 = vmatprep.subr.mxu0 0.0
        %874 = vmatpush1.msra.mxu0 0.0
        %875 = vmatprep.subr.mxu0 0.0
        %876 = vmatpush1.msra.mxu0 0.0
        %877 = vmatprep.subr.mxu0 0.0
        %878 = vmatpush1.msra.mxu0 0.0
        %879 = vmatprep.subr.mxu0 0.0
        %880 = vmatpush1.msra.mxu0 0.0
        %881 = vmatprep.subr.mxu0 0.0
        %882 = vmatpush1.msra.mxu0 0.0
        %883 = vmatprep.subr.mxu0 0.0
        %884 = vmatpush1.msra.mxu0 0.0
        %885 = vmatprep.subr.mxu0 0.0
        %886 = vmatpush1.msra.mxu0 0.0
        %887 = vmatprep.subr.mxu0 0.0
        %888 = vmatpush1.msra.mxu0 0.0
        %889 = vmatprep.subr.mxu0 0.0
        %890 = vmatpush1.msra.mxu0 %v857
        %891 = vmatprep.subr.mxu0 0.0
        %892 = vmatpush1.msra.mxu0 %v856
        %893 = vmatprep.subr.mxu0 0.0
        %894 = vmatpush1.msra.mxu0 %v855
        %895 = vmatprep.subr.mxu0 0.0
        %896 = vmatpush1.msra.mxu0 %v854
        %897 = vmatprep.subr.mxu0 0.0
        %898 = vmatpush2.msra.mxu0 0.0
        %899 = vmatprep.subr.mxu0 0.0
        %900 = vmatpush2.msra.mxu0 0.0
        %901 = vmatprep.subr.mxu0 0.0
        %902 = vmatpush2.msra.mxu0 0.0
        %903 = vmatprep.subr.mxu0 0.0
        %904 = vmatpush2.msra.mxu0 0.0
        %905 = vmatprep.subr.mxu0 0.0
        %906 = vmatpush2.msra.mxu0 0.0
        %907 = vmatprep.subr.mxu0 0.0
        %908 = vmatpush2.msra.mxu0 0.0
        %909 = vmatprep.subr.mxu0 0.0
        %910 = vmatpush2.msra.mxu0 0.0
        %911 = vmatprep.subr.mxu0 0.0
        %912 = vmatpush2.msra.mxu0 0.0
        %913 = vmatprep.subr.mxu0 0.0
        %914 = vmatpush2.msra.mxu0 0.0
        %915 = vmatprep.subr.mxu0 0.0
        %916 = vmatpush2.msra.mxu0 0.0
        %917 = vmatprep.subr.mxu0 0.0
        %918 = vmatpush2.msra.mxu0 0.0
        %919 = vmatprep.subr.mxu0 0.0
        %920 = vmatpush2.msra.mxu0 0.0
        %921 = vmatprep.subr.mxu0 0.0
        %922 = vmatpush2.msra.mxu0 0.0
        %923 = vmatprep.subr.mxu0 0.0
        %924 = vmatpush2.msra.mxu0 0.0
        %925 = vmatprep.subr.mxu0 0.0
        %926 = vmatpush2.msra.mxu0 0.0
        %927 = vmatprep.subr.mxu0 0.0
        %928 = vmatpush2.msra.mxu0 0.0
        %929 = vmatprep.mubr.f32.mxu0 0.0
        %930 = vmatmul.mubr.f32.gmra.mxu0 %v718
        %v931 = vpop.f32.mrf.mxu0
        %v932 = vadd.f32 %v863, %v931
        %v933 = vpop.f32.mrf.mxu0
        %934 = vmatprep.mubr.f32.mxu0 0.0
        %935 = vmatmul.mubr.f32.gmra.mxu0 %v721
        %v936 = vpop.f32.mrf.mxu0
        %v937 = vadd.f32 %v863, %v936
        %v938 = vpop.f32.mrf.mxu0
        %939 = vmatprep.mubr.f32.mxu0 0.0
        %940 = vmatmul.mubr.f32.gmra.mxu0 %v724
        %v941 = vpop.f32.mrf.mxu0
        %v942 = vadd.f32 %v863, %v941
        %v943 = vpop.f32.mrf.mxu0
        %944 = vmatprep.mubr.f32.mxu0 0.0
        %945 = vmatmul.mubr.f32.gmra.mxu0 %v727
        %v946 = vpop.f32.mrf.mxu0
        %v947 = vadd.f32 %v863, %v946
        %v948 = vpop.f32.mrf.mxu0
        %949 = vmatprep.mubr.f32.mxu0 0.0
        %950 = vmatmul.mubr.f32.gmra.mxu0 %v730
        %v951 = vpop.f32.mrf.mxu0
        %v952 = vadd.f32 %v863, %v951
        %v953 = vpop.f32.mrf.mxu0
        %954 = vmatprep.mubr.f32.mxu0 0.0
        %955 = vmatmul.mubr.f32.gmra.mxu0 %v733
        %v956 = vpop.f32.mrf.mxu0
        %v957 = vadd.f32 %v863, %v956
        %v958 = vpop.f32.mrf.mxu0
        %959 = vmatprep.mubr.f32.mxu0 0.0
        %960 = vmatmul.mubr.f32.gmra.mxu0 %v736
        %v961 = vpop.f32.mrf.mxu0
        %v962 = vadd.f32 %v863, %v961
        %v963 = vpop.f32.mrf.mxu0
        %964 = vmatprep.mubr.f32.mxu0 0.0
        %965 = vmatmul.mubr.f32.gmra.mxu0 %v739
        %v966 = vpop.f32.mrf.mxu0
        %v967 = vadd.f32 %v863, %v966
        %v968 = vpop.f32.mrf.mxu0
        %969 = vdwg.mxu0
        %970 = vst.msk [vmem:[#allocation3] sm:$0xff] %vm716, %v932
        %971 = vst.msk [vmem:[#allocation3 + $0x8] sm:$0xff] %vm716, %v937
        %972 = vst.msk [vmem:[#allocation3 + $0x10] sm:$0xff] %vm716, %v942
        %973 = vst.msk [vmem:[#allocation3 + $0x18] sm:$0xff] %vm716, %v947
        %974 = vst.msk [vmem:[#allocation3 + $0x20] sm:$0xff] %vm716, %v952
        %975 = vst.msk [vmem:[#allocation3 + $0x28] sm:$0xff] %vm716, %v957
        %976 = vst.msk [vmem:[#allocation3 + $0x30] sm:$0xff] %vm716, %v962
        %977 = vst.msk [vmem:[#allocation3 + $0x38] sm:$0xff] %vm716, %v967
      $region100: #{tpu_custom_call.1} parent=95 // pred_fallthru
        _
      %v978 = vld [vmem:[%s673] sm:$0xff]
      %v979 = vld [vmem:[%s673 + $0x8] sm:$0xff]
      %v980 = vld [vmem:[%s673 + $0x10] sm:$0xff]
      %v981 = vld [vmem:[%s673 + $0x18] sm:$0xff]
      %v982 = vld [vmem:[%s682] sm:$0xff]
      %v983 = vunpack.c.0.s8 %v982
      %v984 = vunpack.c.1.s8 %v982
      %v985 = vunpack.c.2.s8 %v982
      %v986 = vunpack.c.3.s8 %v982
      %v987 = vcvt.s32.f32 %v983
      %v988 = vcvt.s32.f32 %v984
      %v989 = vcvt.s32.f32 %v985
      %v990 = vcvt.s32.f32 %v986
      %v991 = vsub.f32 %v987, 1.0
      %v992 = vsub.f32 %v988, 1.0
      %v993 = vsub.f32 %v989, 1.0
      %v994 = vsub.f32 %v990, 1.0
      %v995 = vmul.f32 %v991, 1e+09
      %v996 = vmul.f32 %v992, 1e+09
      %v997 = vmul.f32 %v993, 1e+09
      %v998 = vmul.f32 %v994, 1e+09
      %v999 = vld [vmem:[%s3] sm:$0xff]
      %v1000 = vld [vmem:[%s3 + $0x8] sm:$0xff]
      %v1001 = vld [vmem:[%s3 + $0x10] sm:$0xff]
      %v1002 = vld [vmem:[%s3 + $0x18] sm:$0xff]
      %v1003 = vld [vmem:[%s4] sm:$0x1]
      %v1005 = vlaneseq
      %v1006 = vshrl.u32 %v1005, 7
      %v1007 = vsub.s32 0, %v1006
      %v1008 = vrot.slane %v1003, %v1007
      %vm1010 = vcmask 261120
      %v1012 = vsel %vm1010, %v978, 0
      %v1015 = vsel %vm1010, %v979, 0
      %v1018 = vsel %vm1010, %v980, 0
      %v1021 = vsel %vm1010, %v981, 0
      %1023 = vmatprep.subr.mxu0 0.0
      %1024 = vmatpush1.msra.mxu0 0.0
      %1025 = vmatprep.subr.mxu0 0.0
      %1026 = vmatpush1.msra.mxu0 0.0
      %1027 = vmatprep.subr.mxu0 0.0
      %1028 = vmatpush1.msra.mxu0 0.0
      %1029 = vmatprep.subr.mxu0 0.0
      %1030 = vmatpush1.msra.mxu0 0.0
      %1031 = vmatprep.subr.mxu0 0.0
      %1032 = vmatpush1.msra.mxu0 0.0
      %1033 = vmatprep.subr.mxu0 0.0
      %1034 = vmatpush1.msra.mxu0 0.0
      %1035 = vmatprep.subr.mxu0 0.0
      %1036 = vmatpush1.msra.mxu0 0.0
      %1037 = vmatprep.subr.mxu0 0.0
      %1038 = vmatpush1.msra.mxu0 0.0
      %1039 = vmatprep.subr.mxu0 0.0
      %1040 = vmatpush1.msra.mxu0 0.0
      %1041 = vmatprep.subr.mxu0 0.0
      %1042 = vmatpush1.msra.mxu0 0.0
      %1043 = vmatprep.subr.mxu0 0.0
      %1044 = vmatpush1.msra.mxu0 0.0
      %1045 = vmatprep.subr.mxu0 0.0
      %1046 = vmatpush1.msra.mxu0 0.0
      %1047 = vmatprep.subr.mxu0 0.0
      %1048 = vmatpush1.msra.mxu0 %v1002
      %1049 = vmatprep.subr.mxu0 0.0
      %1050 = vmatpush1.msra.mxu0 %v1001
      %1051 = vmatprep.subr.mxu0 0.0
      %1052 = vmatpush1.msra.mxu0 %v1000
      %1053 = vmatprep.subr.mxu0 0.0
      %1054 = vmatpush1.msra.mxu0 %v999
      %1055 = vmatprep.subr.mxu0 0.0
      %1056 = vmatpush2.msra.mxu0 0.0
      %1057 = vmatprep.subr.mxu0 0.0
      %1058 = vmatpush2.msra.mxu0 0.0
      %1059 = vmatprep.subr.mxu0 0.0
      %1060 = vmatpush2.msra.mxu0 0.0
      %1061 = vmatprep.subr.mxu0 0.0
      %1062 = vmatpush2.msra.mxu0 0.0
      %1063 = vmatprep.subr.mxu0 0.0
      %1064 = vmatpush2.msra.mxu0 0.0
      %1065 = vmatprep.subr.mxu0 0.0
      %1066 = vmatpush2.msra.mxu0 0.0
      %1067 = vmatprep.subr.mxu0 0.0
      %1068 = vmatpush2.msra.mxu0 0.0
      %1069 = vmatprep.subr.mxu0 0.0
      %1070 = vmatpush2.msra.mxu0 0.0
      %1071 = vmatprep.subr.mxu0 0.0
      %1072 = vmatpush2.msra.mxu0 0.0
      %1073 = vmatprep.subr.mxu0 0.0
      %1074 = vmatpush2.msra.mxu0 0.0
      %1075 = vmatprep.subr.mxu0 0.0
      %1076 = vmatpush2.msra.mxu0 0.0
      %1077 = vmatprep.subr.mxu0 0.0
      %1078 = vmatpush2.msra.mxu0 0.0
      %1079 = vmatprep.subr.mxu0 0.0
      %1080 = vmatpush2.msra.mxu0 0.0
      %1081 = vmatprep.subr.mxu0 0.0
      %1082 = vmatpush2.msra.mxu0 0.0
      %1083 = vmatprep.subr.mxu0 0.0
      %1084 = vmatpush2.msra.mxu0 0.0
      %1085 = vmatprep.subr.mxu0 0.0
      %1086 = vmatpush2.msra.mxu0 0.0
      %1087 = vmatprep.mubr.f32.mxu0 0.0
      %1088 = vmatmul.mubr.f32.gmra.mxu0 %v1012
      %v1089 = vpop.f32.mrf.mxu0
      %v1090 = vadd.f32 %v1008, %v1089
      %v1091 = vpop.f32.mrf.mxu0
      %1092 = vmatprep.mubr.f32.mxu0 0.0
      %1093 = vmatmul.mubr.f32.gmra.mxu0 %v1015
      %v1094 = vpop.f32.mrf.mxu0
      %v1095 = vadd.f32 %v1008, %v1094
      %v1096 = vpop.f32.mrf.mxu0
      %1097 = vmatprep.mubr.f32.mxu0 0.0
      %1098 = vmatmul.mubr.f32.gmra.mxu0 %v1018
      %v1099 = vpop.f32.mrf.mxu0
      %v1100 = vadd.f32 %v1008, %v1099
      %v1101 = vpop.f32.mrf.mxu0
      %1102 = vmatprep.mubr.f32.mxu0 0.0
      %1103 = vmatmul.mubr.f32.gmra.mxu0 %v1021
      %v1104 = vpop.f32.mrf.mxu0
      %v1105 = vadd.f32 %v1008, %v1104
      %v1106 = vpop.f32.mrf.mxu0
      %1107 = vdwg.mxu0
      %v1108 = vmul.f32 %v1090, 0.35355338
      %v1109 = vmul.f32 %v1095, 0.35355338
      %v1110 = vmul.f32 %v1100, 0.35355338
      %v1111 = vmul.f32 %v1105, 0.35355338
      %v1112 = vld [vmem:[#allocation2] sm:$0xff]
      %v1113 = vld [vmem:[#allocation2 + $0x8] sm:$0xff]
      %v1114 = vld [vmem:[#allocation2 + $0x10] sm:$0xff]
      %v1115 = vld [vmem:[#allocation2 + $0x18] sm:$0xff]
      %v1116 = vld [vmem:[#allocation2 + $0x20] sm:$0xff]
      %v1117 = vld [vmem:[#allocation2 + $0x28] sm:$0xff]
      %v1118 = vld [vmem:[#allocation2 + $0x30] sm:$0xff]
      %v1119 = vld [vmem:[#allocation2 + $0x38] sm:$0xff]
      %v1120 = vld [vmem:[#allocation3] sm:$0xff]
      %v1121 = vld [vmem:[#allocation3 + $0x8] sm:$0xff]
      %v1122 = vld [vmem:[#allocation3 + $0x10] sm:$0xff]
      %v1123 = vld [vmem:[#allocation3 + $0x18] sm:$0xff]
      %v1124 = vld [vmem:[#allocation3 + $0x20] sm:$0xff]
      %v1125 = vld [vmem:[#allocation3 + $0x28] sm:$0xff]
      %v1126 = vld [vmem:[#allocation3 + $0x30] sm:$0xff]
      %v1127 = vld [vmem:[#allocation3 + $0x38] sm:$0xff]
      %vm1128 = vcmask 64512
      %v1130 = vsel %vm1128, %v1108, 0
      %v1133 = vsel %vm1128, %v1109, 0
      %v1136 = vsel %vm1128, %v1110, 0
      %v1139 = vsel %vm1128, %v1111, 0
      %v1142 = vsel %vm1128, %v1112, 0
      %v1145 = vsel %vm1128, %v1113, 0
      %v1148 = vsel %vm1128, %v1114, 0
      %v1151 = vsel %vm1128, %v1115, 0
      %v1154 = vsel %vm1128, %v1116, 0
      %v1157 = vsel %vm1128, %v1117, 0
      %v1160 = vsel %vm1128, %v1118, 0
      %v1163 = vsel %vm1128, %v1119, 0
      %1165 = vmatprep.subr.mxu0 0.0
      %1166 = vmatpush1.xpose.msra.mxu0 0.0
      %1167 = vmatprep.subr.mxu0 0.0
      %1168 = vmatpush1.xpose.msra.mxu0 0.0
      %1169 = vmatprep.subr.mxu0 0.0
      %1170 = vmatpush1.xpose.msra.mxu0 0.0
      %1171 = vmatprep.subr.mxu0 0.0
      %1172 = vmatpush1.xpose.msra.mxu0 0.0
      %1173 = vmatprep.subr.mxu0 0.0
      %1174 = vmatpush1.xpose.msra.mxu0 0.0
      %1175 = vmatprep.subr.mxu0 0.0
      %1176 = vmatpush1.xpose.msra.mxu0 0.0
      %1177 = vmatprep.subr.mxu0 0.0
      %1178 = vmatpush1.xpose.msra.mxu0 0.0
      %1179 = vmatprep.subr.mxu0 0.0
      %1180 = vmatpush1.xpose.msra.mxu0 0.0
      %1181 = vmatprep.subr.mxu0 0.0
      %1182 = vmatpush1.xpose.msra.mxu0 %v1163
      %1183 = vmatprep.subr.mxu0 0.0
      %1184 = vmatpush1.xpose.msra.mxu0 %v1160
      %1185 = vmatprep.subr.mxu0 0.0
      %1186 = vmatpush1.xpose.msra.mxu0 %v1157
      %1187 = vmatprep.subr.mxu0 0.0
      %1188 = vmatpush1.xpose.msra.mxu0 %v1154
      %1189 = vmatprep.subr.mxu0 0.0
      %1190 = vmatpush1.xpose.msra.mxu0 %v1151
      %1191 = vmatprep.subr.mxu0 0.0
      %1192 = vmatpush1.xpose.msra.mxu0 %v1148
      %1193 = vmatprep.subr.mxu0 0.0
      %1194 = vmatpush1.xpose.msra.mxu0 %v1145
      %1195 = vmatprep.subr.mxu0 0.0
      %1196 = vmatpush1.xpose.msra.mxu0 %v1142
      %1197 = vmatprep.subr.mxu0 0.0
      %1198 = vmatpush2.xpose.msra.mxu0 0.0
      %1199 = vmatprep.subr.mxu0 0.0
      %1200 = vmatpush2.xpose.msra.mxu0 0.0
      %1201 = vmatprep.subr.mxu0 0.0
      %1202 = vmatpush2.xpose.msra.mxu0 0.0
      %1203 = vmatprep.subr.mxu0 0.0
      %1204 = vmatpush2.xpose.msra.mxu0 0.0
      %1205 = vmatprep.subr.mxu0 0.0
      %1206 = vmatpush2.xpose.msra.mxu0 0.0
      %1207 = vmatprep.subr.mxu0 0.0
      %1208 = vmatpush2.xpose.msra.mxu0 0.0
      %1209 = vmatprep.subr.mxu0 0.0
      %1210 = vmatpush2.xpose.msra.mxu0 0.0
      %1211 = vmatprep.subr.mxu0 0.0
      %1212 = vmatpush2.xpose.msra.mxu0 0.0
      %1213 = vmatprep.subr.mxu0 0.0
      %1214 = vmatpush2.xpose.msra.mxu0 0.0
      %1215 = vmatprep.subr.mxu0 0.0
      %1216 = vmatpush2.xpose.msra.mxu0 0.0
      %1217 = vmatprep.subr.mxu0 0.0
      %1218 = vmatpush2.xpose.msra.mxu0 0.0
      %1219 = vmatprep.subr.mxu0 0.0
      %1220 = vmatpush2.xpose.msra.mxu0 0.0
      %1221 = vmatprep.subr.mxu0 0.0
      %1222 = vmatpush2.xpose.msra.mxu0 0.0
      %1223 = vmatprep.subr.mxu0 0.0
      %1224 = vmatpush2.xpose.msra.mxu0 0.0
      %1225 = vmatprep.subr.mxu0 0.0
      %1226 = vmatpush2.xpose.msra.mxu0 0.0
      %1227 = vmatprep.subr.mxu0 0.0
      %1228 = vmatpush2.xpose.msra.mxu0 0.0
      %1229 = vmatprep.mubr.f32.mxu0 0.0
      %1230 = vmatmul.mubr.f32.gmra.mxu0 %v1130
      %v1231 = vpop.f32.mrf.mxu0
      %v1232 = vadd.f32 %v995, %v1231
      %v1233 = vpop.f32.mrf.mxu0
      %1234 = vmatprep.mubr.f32.mxu0 0.0
      %1235 = vmatmul.mubr.f32.gmra.mxu0 %v1133
      %v1236 = vpop.f32.mrf.mxu0
      %v1237 = vadd.f32 %v996, %v1236
      %v1238 = vpop.f32.mrf.mxu0
      %1239 = vmatprep.mubr.f32.mxu0 0.0
      %1240 = vmatmul.mubr.f32.gmra.mxu0 %v1136
      %v1241 = vpop.f32.mrf.mxu0
      %v1242 = vadd.f32 %v997, %v1241
      %v1243 = vpop.f32.mrf.mxu0
      %1244 = vmatprep.mubr.f32.mxu0 0.0
      %1245 = vmatmul.mubr.f32.gmra.mxu0 %v1139
      %v1246 = vpop.f32.mrf.mxu0
      %v1247 = vadd.f32 %v998, %v1246
      %v1248 = vpop.f32.mrf.mxu0
      %1249 = vdwg.mxu0
      %vm1250 = vcmask 523264
      %v1251 = vsel %vm1250, %v1232, -inf
      %1252 = vmax.xlane.f32.xlu0 %v1251
      %v1253 = vpop.xlane.xlu0 %1252
      %v1254 = vsel %vm1250, %v1237, -inf
      %1255 = vmax.xlane.f32.xlu0 %v1254
      %v1256 = vpop.xlane.xlu0 %1255
      %v1257 = vsel %vm1250, %v1242, -inf
      %1258 = vmax.xlane.f32.xlu0 %v1257
      %v1259 = vpop.xlane.xlu0 %1258
      %v1260 = vsel %vm1250, %v1247, -inf
      %1261 = vmax.xlane.f32.xlu0 %v1260
      %v1262 = vpop.xlane.xlu0 %1261
      %v1263 = vsub.f32 %v1232, %v1253
      %v1264 = vsub.f32 %v1237, %v1256
      %v1265 = vsub.f32 %v1242, %v1259
      %v1266 = vsub.f32 %v1247, %v1262
      %v1267 = vmul.f32 %v1263, 1.442695
      %v1268 = vpow.pop %v1267
      %v1269 = vmul.f32 %v1264, 1.442695
      %v1270 = vpow.pop %v1269
      %v1271 = vmul.f32 %v1265, 1.442695
      %v1272 = vpow.pop %v1271
      %v1273 = vmul.f32 %v1266, 1.442695
      %v1274 = vpow.pop %v1273
      %v1275 = vsel %vm1250, %v1268, 0.0
      %1276 = vadd.xlane.f32.xlu0 %v1275
      %v1277 = vpop.xlane.xlu0 %1276
      %v1278 = vsel %vm1250, %v1270, 0.0
      %1279 = vadd.xlane.f32.xlu0 %v1278
      %v1280 = vpop.xlane.xlu0 %1279
      %v1281 = vsel %vm1250, %v1272, 0.0
      %1282 = vadd.xlane.f32.xlu0 %v1281
      %v1283 = vpop.xlane.xlu0 %1282
      %v1284 = vsel %vm1250, %v1274, 0.0
      %1285 = vadd.xlane.f32.xlu0 %v1284
      %v1286 = vpop.xlane.xlu0 %1285
      %v1288 = vsel %vm1250, %v1268, 0
      %v1291 = vsel %vm1250, %v1270, 0
      %v1294 = vsel %vm1250, %v1272, 0
      %v1297 = vsel %vm1250, %v1274, 0
      %1299 = vmatprep.subr.mxu0 0.0
      %1300 = vmatpush1.msra.mxu0 0.0
      %1301 = vmatprep.subr.mxu0 0.0
      %1302 = vmatpush1.msra.mxu0 0.0
      %1303 = vmatprep.subr.mxu0 0.0
      %1304 = vmatpush1.msra.mxu0 0.0
      %1305 = vmatprep.subr.mxu0 0.0
      %1306 = vmatpush1.msra.mxu0 0.0
      %1307 = vmatprep.subr.mxu0 0.0
      %1308 = vmatpush1.msra.mxu0 0.0
      %1309 = vmatprep.subr.mxu0 0.0
      %1310 = vmatpush1.msra.mxu0 0.0
      %1311 = vmatprep.subr.mxu0 0.0
      %1312 = vmatpush1.msra.mxu0 0.0
      %1313 = vmatprep.subr.mxu0 0.0
      %1314 = vmatpush1.msra.mxu0 0.0
      %1315 = vmatprep.subr.mxu0 0.0
      %1316 = vmatpush1.msra.mxu0 %v1127
      %1317 = vmatprep.subr.mxu0 0.0
      %1318 = vmatpush1.msra.mxu0 %v1126
      %1319 = vmatprep.subr.mxu0 0.0
      %1320 = vmatpush1.msra.mxu0 %v1125
      %1321 = vmatprep.subr.mxu0 0.0
      %1322 = vmatpush1.msra.mxu0 %v1124
      %1323 = vmatprep.subr.mxu0 0.0
      %1324 = vmatpush1.msra.mxu0 %v1123
      %1325 = vmatprep.subr.mxu0 0.0
      %1326 = vmatpush1.msra.mxu0 %v1122
      %1327 = vmatprep.subr.mxu0 0.0
      %1328 = vmatpush1.msra.mxu0 %v1121
      %1329 = vmatprep.subr.mxu0 0.0
      %1330 = vmatpush1.msra.mxu0 %v1120
      %1331 = vmatprep.subr.mxu0 0.0
      %1332 = vmatpush2.msra.mxu0 0.0
      %1333 = vmatprep.subr.mxu0 0.0
      %1334 = vmatpush2.msra.mxu0 0.0
      %1335 = vmatprep.subr.mxu0 0.0
      %1336 = vmatpush2.msra.mxu0 0.0
      %1337 = vmatprep.subr.mxu0 0.0
      %1338 = vmatpush2.msra.mxu0 0.0
      %1339 = vmatprep.subr.mxu0 0.0
      %1340 = vmatpush2.msra.mxu0 0.0
      %1341 = vmatprep.subr.mxu0 0.0
      %1342 = vmatpush2.msra.mxu0 0.0
      %1343 = vmatprep.subr.mxu0 0.0
      %1344 = vmatpush2.msra.mxu0 0.0
      %1345 = vmatprep.subr.mxu0 0.0
      %1346 = vmatpush2.msra.mxu0 0.0
      %1347 = vmatprep.subr.mxu0 0.0
      %1348 = vmatpush2.msra.mxu0 0.0
      %1349 = vmatprep.subr.mxu0 0.0
      %1350 = vmatpush2.msra.mxu0 0.0
      %1351 = vmatprep.subr.mxu0 0.0
      %1352 = vmatpush2.msra.mxu0 0.0
      %1353 = vmatprep.subr.mxu0 0.0
      %1354 = vmatpush2.msra.mxu0 0.0
      %1355 = vmatprep.subr.mxu0 0.0
      %1356 = vmatpush2.msra.mxu0 0.0
      %1357 = vmatprep.subr.mxu0 0.0
      %1358 = vmatpush2.msra.mxu0 0.0
      %1359 = vmatprep.subr.mxu0 0.0
      %1360 = vmatpush2.msra.mxu0 0.0
      %1361 = vmatprep.subr.mxu0 0.0
      %1362 = vmatpush2.msra.mxu0 0.0
      %1363 = vmatprep.mubr.f32.mxu0 0.0
      %1364 = vmatmul.mubr.f32.gmra.mxu0 %v1288
      %v1365 = vpop.f32.mrf.mxu0
      %v1366 = vadd.f32 0.0, %v1365
      %v1367 = vpop.f32.mrf.mxu0
      %1368 = vmatprep.mubr.f32.mxu0 0.0
      %1369 = vmatmul.mubr.f32.gmra.mxu0 %v1291
      %v1370 = vpop.f32.mrf.mxu0
      %v1371 = vadd.f32 0.0, %v1370
      %v1372 = vpop.f32.mrf.mxu0
      %1373 = vmatprep.mubr.f32.mxu0 0.0
      %1374 = vmatmul.mubr.f32.gmra.mxu0 %v1294
      %v1375 = vpop.f32.mrf.mxu0
      %v1376 = vadd.f32 0.0, %v1375
      %v1377 = vpop.f32.mrf.mxu0
      %1378 = vmatprep.mubr.f32.mxu0 0.0
      %1379 = vmatmul.mubr.f32.gmra.mxu0 %v1297
      %v1380 = vpop.f32.mrf.mxu0
      %v1381 = vadd.f32 0.0, %v1380
      %v1382 = vpop.f32.mrf.mxu0
      %1383 = vdwg.mxu0
      %v1384 = vrcp.pop %v1277
      %v1385 = vrcp.pop %v1280
      %v1386 = vrcp.pop %v1283
      %v1387 = vrcp.pop %v1286
      %v1388 = vmul.f32 %v1366, %v1384
      %v1389 = vmul.f32 %v1371, %v1385
      %v1390 = vmul.f32 %v1376, %v1386
      %v1391 = vmul.f32 %v1381, %v1387
      %v1392 = vld [vmem:[%s9] sm:$0xff]
      %1393 = vrot.lane.b32.xlu0 %v1108, 120
      %v1394 = vpop.permute.xlu0 %1393
      %1395 = vrot.lane.b32.xlu0 %v1109, 120
      %v1396 = vpop.permute.xlu0 %1395
      %1397 = vrot.lane.b32.xlu0 %v1110, 120
      %v1398 = vpop.permute.xlu0 %1397
      %1399 = vrot.lane.b32.xlu0 %v1111, 120
      %v1400 = vpop.permute.xlu0 %1399
      %1401 = vrot.lane.b32.xlu0 %v1112, 120
      %v1402 = vpop.permute.xlu0 %1401
      %1403 = vrot.lane.b32.xlu0 %v1113, 120
      %v1404 = vpop.permute.xlu0 %1403
      %1405 = vrot.lane.b32.xlu0 %v1114, 120
      %v1406 = vpop.permute.xlu0 %1405
      %1407 = vrot.lane.b32.xlu0 %v1115, 120
      %v1408 = vpop.permute.xlu0 %1407
      %1409 = vrot.lane.b32.xlu0 %v1116, 120
      %v1410 = vpop.permute.xlu0 %1409
      %1411 = vrot.lane.b32.xlu0 %v1117, 120
      %v1412 = vpop.permute.xlu0 %1411
      %1413 = vrot.lane.b32.xlu0 %v1118, 120
      %v1414 = vpop.permute.xlu0 %1413
      %1415 = vrot.lane.b32.xlu0 %v1119, 120
      %v1416 = vpop.permute.xlu0 %1415
      %v1417 = vsel %vm1128, %v1394, 0
      %v1419 = vsel %vm1128, %v1396, 0
      %v1421 = vsel %vm1128, %v1398, 0
      %v1423 = vsel %vm1128, %v1400, 0
      %v1425 = vsel %vm1128, %v1402, 0
      %v1427 = vsel %vm1128, %v1404, 0
      %v1429 = vsel %vm1128, %v1406, 0
      %v1431 = vsel %vm1128, %v1408, 0
      %v1433 = vsel %vm1128, %v1410, 0
      %v1435 = vsel %vm1128, %v1412, 0
      %v1437 = vsel %vm1128, %v1414, 0
      %v1439 = vsel %vm1128, %v1416, 0
      %1441 = vmatprep.subr.mxu0 0.0
      %1442 = vmatpush1.xpose.msra.mxu0 0.0
      %1443 = vmatprep.subr.mxu0 0.0
      %1444 = vmatpush1.xpose.msra.mxu0 0.0
      %1445 = vmatprep.subr.mxu0 0.0
      %1446 = vmatpush1.xpose.msra.mxu0 0.0
      %1447 = vmatprep.subr.mxu0 0.0
      %1448 = vmatpush1.xpose.msra.mxu0 0.0
      %1449 = vmatprep.subr.mxu0 0.0
      %1450 = vmatpush1.xpose.msra.mxu0 0.0
      %1451 = vmatprep.subr.mxu0 0.0
      %1452 = vmatpush1.xpose.msra.mxu0 0.0
      %1453 = vmatprep.subr.mxu0 0.0
      %1454 = vmatpush1.xpose.msra.mxu0 0.0
      %1455 = vmatprep.subr.mxu0 0.0
      %1456 = vmatpush1.xpose.msra.mxu0 0.0
      %1457 = vmatprep.subr.mxu0 0.0
      %1458 = vmatpush1.xpose.msra.mxu0 %v1439
      %1459 = vmatprep.subr.mxu0 0.0
      %1460 = vmatpush1.xpose.msra.mxu0 %v1437
      %1461 = vmatprep.subr.mxu0 0.0
      %1462 = vmatpush1.xpose.msra.mxu0 %v1435
      %1463 = vmatprep.subr.mxu0 0.0
      %1464 = vmatpush1.xpose.msra.mxu0 %v1433
      %1465 = vmatprep.subr.mxu0 0.0
      %1466 = vmatpush1.xpose.msra.mxu0 %v1431
      %1467 = vmatprep.subr.mxu0 0.0
      %1468 = vmatpush1.xpose.msra.mxu0 %v1429
      %1469 = vmatprep.subr.mxu0 0.0
      %1470 = vmatpush1.xpose.msra.mxu0 %v1427
      %1471 = vmatprep.subr.mxu0 0.0
      %1472 = vmatpush1.xpose.msra.mxu0 %v1425
      %1473 = vmatprep.subr.mxu0 0.0
      %1474 = vmatpush2.xpose.msra.mxu0 0.0
      %1475 = vmatprep.subr.mxu0 0.0
      %1476 = vmatpush2.xpose.msra.mxu0 0.0
      %1477 = vmatprep.subr.mxu0 0.0
      %1478 = vmatpush2.xpose.msra.mxu0 0.0
      %1479 = vmatprep.subr.mxu0 0.0
      %1480 = vmatpush2.xpose.msra.mxu0 0.0
      %1481 = vmatprep.subr.mxu0 0.0
      %1482 = vmatpush2.xpose.msra.mxu0 0.0
      %1483 = vmatprep.subr.mxu0 0.0
      %1484 = vmatpush2.xpose.msra.mxu0 0.0
      %1485 = vmatprep.subr.mxu0 0.0
      %1486 = vmatpush2.xpose.msra.mxu0 0.0
      %1487 = vmatprep.subr.mxu0 0.0
      %1488 = vmatpush2.xpose.msra.mxu0 0.0
      %1489 = vmatprep.subr.mxu0 0.0
      %1490 = vmatpush2.xpose.msra.mxu0 0.0
      %1491 = vmatprep.subr.mxu0 0.0
      %1492 = vmatpush2.xpose.msra.mxu0 0.0
      %1493 = vmatprep.subr.mxu0 0.0
      %1494 = vmatpush2.xpose.msra.mxu0 0.0
      %1495 = vmatprep.subr.mxu0 0.0
      %1496 = vmatpush2.xpose.msra.mxu0 0.0
      %1497 = vmatprep.subr.mxu0 0.0
      %1498 = vmatpush2.xpose.msra.mxu0 0.0
      %1499 = vmatprep.subr.mxu0 0.0
      %1500 = vmatpush2.xpose.msra.mxu0 0.0
      %1501 = vmatprep.subr.mxu0 0.0
      %1502 = vmatpush2.xpose.msra.mxu0 0.0
      %1503 = vmatprep.subr.mxu0 0.0
      %1504 = vmatpush2.xpose.msra.mxu0 0.0
      %1505 = vmatprep.mubr.f32.mxu0 0.0
      %1506 = vmatmul.mubr.f32.gmra.mxu0 %v1417
      %v1507 = vpop.f32.mrf.mxu0
      %v1508 = vadd.f32 %v995, %v1507
      %v1509 = vpop.f32.mrf.mxu0
      %1510 = vmatprep.mubr.f32.mxu0 0.0
      %1511 = vmatmul.mubr.f32.gmra.mxu0 %v1419
      %v1512 = vpop.f32.mrf.mxu0
      %v1513 = vadd.f32 %v996, %v1512
      %v1514 = vpop.f32.mrf.mxu0
      %1515 = vmatprep.mubr.f32.mxu0 0.0
      %1516 = vmatmul.mubr.f32.gmra.mxu0 %v1421
      %v1517 = vpop.f32.mrf.mxu0
      %v1518 = vadd.f32 %v997, %v1517
      %v1519 = vpop.f32.mrf.mxu0
      %1520 = vmatprep.mubr.f32.mxu0 0.0
      %1521 = vmatmul.mubr.f32.gmra.mxu0 %v1423
      %v1522 = vpop.f32.mrf.mxu0
      %v1523 = vadd.f32 %v998, %v1522
      %v1524 = vpop.f32.mrf.mxu0
      %1525 = vdwg.mxu0
      %v1526 = vsel %vm1250, %v1508, -inf
      %1527 = vmax.xlane.f32.xlu0 %v1526
      %v1528 = vpop.xlane.xlu0 %1527
      %v1529 = vsel %vm1250, %v1513, -inf
      %1530 = vmax.xlane.f32.xlu0 %v1529
      %v1531 = vpop.xlane.xlu0 %1530
      %v1532 = vsel %vm1250, %v1518, -inf
      %1533 = vmax.xlane.f32.xlu0 %v1532
      %v1534 = vpop.xlane.xlu0 %1533
      %v1535 = vsel %vm1250, %v1523, -inf
      %1536 = vmax.xlane.f32.xlu0 %v1535
      %v1537 = vpop.xlane.xlu0 %1536
      %v1538 = vsub.f32 %v1508, %v1528
      %v1539 = vsub.f32 %v1513, %v1531
      %v1540 = vsub.f32 %v1518, %v1534
      %v1541 = vsub.f32 %v1523, %v1537
      %v1542 = vmul.f32 %v1538, 1.442695
      %v1543 = vpow.pop %v1542
      %v1544 = vmul.f32 %v1539, 1.442695
      %v1545 = vpow.pop %v1544
      %v1546 = vmul.f32 %v1540, 1.442695
      %v1547 = vpow.pop %v1546
      %v1548 = vmul.f32 %v1541, 1.442695
      %v1549 = vpow.pop %v1548
      %v1550 = vsel %vm1250, %v1543, 0.0
      %1551 = vadd.xlane.f32.xlu0 %v1550
      %v1552 = vpop.xlane.xlu0 %1551
      %v1553 = vsel %vm1250, %v1545, 0.0
      %1554 = vadd.xlane.f32.xlu0 %v1553
      %v1555 = vpop.xlane.xlu0 %1554
      %v1556 = vsel %vm1250, %v1547, 0.0
      %1557 = vadd.xlane.f32.xlu0 %v1556
      %v1558 = vpop.xlane.xlu0 %1557
      %v1559 = vsel %vm1250, %v1549, 0.0
      %1560 = vadd.xlane.f32.xlu0 %v1559
      %v1561 = vpop.xlane.xlu0 %1560
      %1570 = vrot.lane.b32.xlu0 %v1120, 120
      %v1571 = vpop.permute.xlu0 %1570
      %1572 = vrot.lane.b32.xlu0 %v1121, 120
      %v1573 = vpop.permute.xlu0 %1572
      %1574 = vrot.lane.b32.xlu0 %v1122, 120
      %v1575 = vpop.permute.xlu0 %1574
      %1576 = vrot.lane.b32.xlu0 %v1123, 120
      %v1577 = vpop.permute.xlu0 %1576
      %1578 = vrot.lane.b32.xlu0 %v1124, 120
      %v1579 = vpop.permute.xlu0 %1578
      %1580 = vrot.lane.b32.xlu0 %v1125, 120
      %v1581 = vpop.permute.xlu0 %1580
      %1582 = vrot.lane.b32.xlu0 %v1126, 120
      %v1583 = vpop.permute.xlu0 %1582
      %1584 = vrot.lane.b32.xlu0 %v1127, 120
      %v1585 = vpop.permute.xlu0 %1584
      %v1595 = vsel %vm1250, %v1543, 0
      %v1598 = vsel %vm1250, %v1545, 0
      %v1601 = vsel %vm1250, %v1547, 0
      %v1604 = vsel %vm1250, %v1549, 0
      %1606 = vmatprep.subr.mxu0 0.0
      %1607 = vmatpush1.msra.mxu0 0.0
      %1608 = vmatprep.subr.mxu0 0.0
      %1609 = vmatpush1.msra.mxu0 0.0
      %1610 = vmatprep.subr.mxu0 0.0
      %1611 = vmatpush1.msra.mxu0 0.0
      %1612 = vmatprep.subr.mxu0 0.0
      %1613 = vmatpush1.msra.mxu0 0.0
      %1614 = vmatprep.subr.mxu0 0.0
      %1615 = vmatpush1.msra.mxu0 0.0
      %1616 = vmatprep.subr.mxu0 0.0
      %1617 = vmatpush1.msra.mxu0 0.0
      %1618 = vmatprep.subr.mxu0 0.0
      %1619 = vmatpush1.msra.mxu0 0.0
      %1620 = vmatprep.subr.mxu0 0.0
      %1621 = vmatpush1.msra.mxu0 0.0
      %1622 = vmatprep.subr.mxu0 0.0
      %1623 = vmatpush1.msra.mxu0 %v1585
      %1624 = vmatprep.subr.mxu0 0.0
      %1625 = vmatpush1.msra.mxu0 %v1583
      %1626 = vmatprep.subr.mxu0 0.0
      %1627 = vmatpush1.msra.mxu0 %v1581
      %1628 = vmatprep.subr.mxu0 0.0
      %1629 = vmatpush1.msra.mxu0 %v1579
      %1630 = vmatprep.subr.mxu0 0.0
      %1631 = vmatpush1.msra.mxu0 %v1577
      %1632 = vmatprep.subr.mxu0 0.0
      %1633 = vmatpush1.msra.mxu0 %v1575
      %1634 = vmatprep.subr.mxu0 0.0
      %1635 = vmatpush1.msra.mxu0 %v1573
      %1636 = vmatprep.subr.mxu0 0.0
      %1637 = vmatpush1.msra.mxu0 %v1571
      %1638 = vmatprep.subr.mxu0 0.0
      %1639 = vmatpush2.msra.mxu0 0.0
      %1640 = vmatprep.subr.mxu0 0.0
      %1641 = vmatpush2.msra.mxu0 0.0
      %1642 = vmatprep.subr.mxu0 0.0
      %1643 = vmatpush2.msra.mxu0 0.0
      %1644 = vmatprep.subr.mxu0 0.0
      %1645 = vmatpush2.msra.mxu0 0.0
      %1646 = vmatprep.subr.mxu0 0.0
      %1647 = vmatpush2.msra.mxu0 0.0
      %1648 = vmatprep.subr.mxu0 0.0
      %1649 = vmatpush2.msra.mxu0 0.0
      %1650 = vmatprep.subr.mxu0 0.0
      %1651 = vmatpush2.msra.mxu0 0.0
      %1652 = vmatprep.subr.mxu0 0.0
      %1653 = vmatpush2.msra.mxu0 0.0
      %1654 = vmatprep.subr.mxu0 0.0
      %1655 = vmatpush2.msra.mxu0 0.0
      %1656 = vmatprep.subr.mxu0 0.0
      %1657 = vmatpush2.msra.mxu0 0.0
      %1658 = vmatprep.subr.mxu0 0.0
      %1659 = vmatpush2.msra.mxu0 0.0
      %1660 = vmatprep.subr.mxu0 0.0
      %1661 = vmatpush2.msra.mxu0 0.0
      %1662 = vmatprep.subr.mxu0 0.0
      %1663 = vmatpush2.msra.mxu0 0.0
      %1664 = vmatprep.subr.mxu0 0.0
      %1665 = vmatpush2.msra.mxu0 0.0
      %1666 = vmatprep.subr.mxu0 0.0
      %1667 = vmatpush2.msra.mxu0 0.0
      %1668 = vmatprep.subr.mxu0 0.0
      %1669 = vmatpush2.msra.mxu0 0.0
      %1670 = vmatprep.mubr.f32.mxu0 0.0
      %1671 = vmatmul.mubr.f32.gmra.mxu0 %v1595
      %v1672 = vpop.f32.mrf.mxu0
      %v1673 = vadd.f32 0.0, %v1672
      %v1674 = vpop.f32.mrf.mxu0
      %1675 = vmatprep.mubr.f32.mxu0 0.0
      %1676 = vmatmul.mubr.f32.gmra.mxu0 %v1598
      %v1677 = vpop.f32.mrf.mxu0
      %v1678 = vadd.f32 0.0, %v1677
      %v1679 = vpop.f32.mrf.mxu0
      %1680 = vmatprep.mubr.f32.mxu0 0.0
      %1681 = vmatmul.mubr.f32.gmra.mxu0 %v1601
      %v1682 = vpop.f32.mrf.mxu0
      %v1683 = vadd.f32 0.0, %v1682
      %v1684 = vpop.f32.mrf.mxu0
      %1685 = vmatprep.mubr.f32.mxu0 0.0
      %1686 = vmatmul.mubr.f32.gmra.mxu0 %v1604
      %v1687 = vpop.f32.mrf.mxu0
      %v1688 = vadd.f32 0.0, %v1687
      %v1689 = vpop.f32.mrf.mxu0
      %1690 = vdwg.mxu0
      %v1691 = vrcp.pop %v1552
      %v1692 = vrcp.pop %v1555
      %v1693 = vrcp.pop %v1558
      %v1694 = vrcp.pop %v1561
      %v1695 = vmul.f32 %v1673, %v1691
      %v1696 = vmul.f32 %v1678, %v1692
      %v1697 = vmul.f32 %v1683, %v1693
      %v1698 = vmul.f32 %v1688, %v1694
      %v1699 = vld [vmem:[%s9 + $0x8] sm:$0xff]
      %v1701 = vsel %vm1128, %v1695, 0
      %v1704 = vsel %vm1128, %v1696, 0
      %v1707 = vsel %vm1128, %v1697, 0
      %v1710 = vsel %vm1128, %v1698, 0
      %1712 = vmatprep.subr.mxu0 0.0
      %1713 = vmatpush1.msra.mxu0 0.0
      %1714 = vmatprep.subr.mxu0 0.0
      %1715 = vmatpush1.msra.mxu0 0.0
      %1716 = vmatprep.subr.mxu0 0.0
      %1717 = vmatpush1.msra.mxu0 0.0
      %1718 = vmatprep.subr.mxu0 0.0
      %1719 = vmatpush1.msra.mxu0 0.0
      %1720 = vmatprep.subr.mxu0 0.0
      %1721 = vmatpush1.msra.mxu0 0.0
      %1722 = vmatprep.subr.mxu0 0.0
      %1723 = vmatpush1.msra.mxu0 0.0
      %1724 = vmatprep.subr.mxu0 0.0
      %1725 = vmatpush1.msra.mxu0 0.0
      %1726 = vmatprep.subr.mxu0 0.0
      %1727 = vmatpush1.msra.mxu0 0.0
      %1728 = vmatprep.subr.mxu0 0.0
      %1729 = vmatpush1.msra.mxu0 0.0
      %1730 = vmatprep.subr.mxu0 0.0
      %1731 = vmatpush1.msra.mxu0 0.0
      %1732 = vmatprep.subr.mxu0 0.0
      %1733 = vmatpush1.msra.mxu0 0.0
      %1734 = vmatprep.subr.mxu0 0.0
      %1735 = vmatpush1.msra.mxu0 0.0
      %1736 = vmatprep.subr.mxu0 0.0
      %1737 = vmatpush1.msra.mxu0 0.0
      %1738 = vmatprep.subr.mxu0 0.0
      %1739 = vmatpush1.msra.mxu0 0.0
      %1740 = vmatprep.subr.mxu0 0.0
      %1741 = vmatpush1.msra.mxu0 0.0
      %1742 = vmatprep.subr.mxu0 0.0
      %1743 = vmatpush1.msra.mxu0 %v1699
      %1744 = vmatprep.subr.mxu0 0.0
      %1745 = vmatpush2.msra.mxu0 0.0
      %1746 = vmatprep.subr.mxu0 0.0
      %1747 = vmatpush2.msra.mxu0 0.0
      %1748 = vmatprep.subr.mxu0 0.0
      %1749 = vmatpush2.msra.mxu0 0.0
      %1750 = vmatprep.subr.mxu0 0.0
      %1751 = vmatpush2.msra.mxu0 0.0
      %1752 = vmatprep.subr.mxu0 0.0
      %1753 = vmatpush2.msra.mxu0 0.0
      %1754 = vmatprep.subr.mxu0 0.0
      %1755 = vmatpush2.msra.mxu0 0.0
      %1756 = vmatprep.subr.mxu0 0.0
      %1757 = vmatpush2.msra.mxu0 0.0
      %1758 = vmatprep.subr.mxu0 0.0
      %1759 = vmatpush2.msra.mxu0 0.0
      %1760 = vmatprep.subr.mxu0 0.0
      %1761 = vmatpush2.msra.mxu0 0.0
      %1762 = vmatprep.subr.mxu0 0.0
      %1763 = vmatpush2.msra.mxu0 0.0
      %1764 = vmatprep.subr.mxu0 0.0
      %1765 = vmatpush2.msra.mxu0 0.0
      %1766 = vmatprep.subr.mxu0 0.0
      %1767 = vmatpush2.msra.mxu0 0.0
      %1768 = vmatprep.subr.mxu0 0.0
      %1769 = vmatpush2.msra.mxu0 0.0
      %1770 = vmatprep.subr.mxu0 0.0
      %1771 = vmatpush2.msra.mxu0 0.0
      %1772 = vmatprep.subr.mxu0 0.0
      %1773 = vmatpush2.msra.mxu0 0.0
      %1774 = vmatprep.subr.mxu0 0.0
      %1775 = vmatpush2.msra.mxu0 0.0
      %1776 = vmatprep.mubr.f32.mxu0 0.0
      %1777 = vmatmul.mubr.f32.gmra.mxu0 %v1701
      %v1778 = vpop.f32.mrf.mxu0
      %v1779 = vadd.f32 0.0, %v1778
      %v1780 = vpop.f32.mrf.mxu0
      %1781 = vmatprep.mubr.f32.mxu0 0.0
      %1782 = vmatmul.mubr.f32.gmra.mxu0 %v1704
      %v1783 = vpop.f32.mrf.mxu0
      %v1784 = vadd.f32 0.0, %v1783
      %v1785 = vpop.f32.mrf.mxu0
      %1786 = vmatprep.mubr.f32.mxu0 0.0
      %1787 = vmatmul.mubr.f32.gmra.mxu0 %v1707
      %v1788 = vpop.f32.mrf.mxu0
      %v1789 = vadd.f32 0.0, %v1788
      %v1790 = vpop.f32.mrf.mxu0
      %1791 = vmatprep.mubr.f32.mxu0 0.0
      %1792 = vmatmul.mubr.f32.gmra.mxu0 %v1710
      %v1793 = vpop.f32.mrf.mxu0
      %v1794 = vadd.f32 0.0, %v1793
      %v1795 = vpop.f32.mrf.mxu0
      %1796 = vdwg.mxu0
      %v1798 = vsel %vm1128, %v1388, 0
      %v1801 = vsel %vm1128, %v1389, 0
      %v1804 = vsel %vm1128, %v1390, 0
      %v1807 = vsel %vm1128, %v1391, 0
      %1809 = vmatprep.subr.mxu0 0.0
      %1810 = vmatpush1.msra.mxu0 0.0
      %1811 = vmatprep.subr.mxu0 0.0
      %1812 = vmatpush1.msra.mxu0 0.0
      %1813 = vmatprep.subr.mxu0 0.0
      %1814 = vmatpush1.msra.mxu0 0.0
      %1815 = vmatprep.subr.mxu0 0.0
      %1816 = vmatpush1.msra.mxu0 0.0
      %1817 = vmatprep.subr.mxu0 0.0
      %1818 = vmatpush1.msra.mxu0 0.0
      %1819 = vmatprep.subr.mxu0 0.0
      %1820 = vmatpush1.msra.mxu0 0.0
      %1821 = vmatprep.subr.mxu0 0.0
      %1822 = vmatpush1.msra.mxu0 0.0
      %1823 = vmatprep.subr.mxu0 0.0
      %1824 = vmatpush1.msra.mxu0 0.0
      %1825 = vmatprep.subr.mxu0 0.0
      %1826 = vmatpush1.msra.mxu0 0.0
      %1827 = vmatprep.subr.mxu0 0.0
      %1828 = vmatpush1.msra.mxu0 0.0
      %1829 = vmatprep.subr.mxu0 0.0
      %1830 = vmatpush1.msra.mxu0 0.0
      %1831 = vmatprep.subr.mxu0 0.0
      %1832 = vmatpush1.msra.mxu0 0.0
      %1833 = vmatprep.subr.mxu0 0.0
      %1834 = vmatpush1.msra.mxu0 0.0
      %1835 = vmatprep.subr.mxu0 0.0
      %1836 = vmatpush1.msra.mxu0 0.0
      %1837 = vmatprep.subr.mxu0 0.0
      %1838 = vmatpush1.msra.mxu0 0.0
      %1839 = vmatprep.subr.mxu0 0.0
      %1840 = vmatpush1.msra.mxu0 %v1392
      %1841 = vmatprep.subr.mxu0 0.0
      %1842 = vmatpush2.msra.mxu0 0.0
      %1843 = vmatprep.subr.mxu0 0.0
      %1844 = vmatpush2.msra.mxu0 0.0
      %1845 = vmatprep.subr.mxu0 0.0
      %1846 = vmatpush2.msra.mxu0 0.0
      %1847 = vmatprep.subr.mxu0 0.0
      %1848 = vmatpush2.msra.mxu0 0.0
      %1849 = vmatprep.subr.mxu0 0.0
      %1850 = vmatpush2.msra.mxu0 0.0
      %1851 = vmatprep.subr.mxu0 0.0
      %1852 = vmatpush2.msra.mxu0 0.0
      %1853 = vmatprep.subr.mxu0 0.0
      %1854 = vmatpush2.msra.mxu0 0.0
      %1855 = vmatprep.subr.mxu0 0.0
      %1856 = vmatpush2.msra.mxu0 0.0
      %1857 = vmatprep.subr.mxu0 0.0
      %1858 = vmatpush2.msra.mxu0 0.0
      %1859 = vmatprep.subr.mxu0 0.0
      %1860 = vmatpush2.msra.mxu0 0.0
      %1861 = vmatprep.subr.mxu0 0.0
      %1862 = vmatpush2.msra.mxu0 0.0
      %1863 = vmatprep.subr.mxu0 0.0
      %1864 = vmatpush2.msra.mxu0 0.0
      %1865 = vmatprep.subr.mxu0 0.0
      %1866 = vmatpush2.msra.mxu0 0.0
      %1867 = vmatprep.subr.mxu0 0.0
      %1868 = vmatpush2.msra.mxu0 0.0
      %1869 = vmatprep.subr.mxu0 0.0
      %1870 = vmatpush2.msra.mxu0 0.0
      %1871 = vmatprep.subr.mxu0 0.0
      %1872 = vmatpush2.msra.mxu0 0.0
      %1873 = vmatprep.mubr.f32.mxu0 0.0
      %1874 = vmatmul.mubr.f32.gmra.mxu0 %v1798
      %v1875 = vpop.f32.mrf.mxu0
      %v1876 = vadd.f32 %v1779, %v1875
      %v1877 = vpop.f32.mrf.mxu0
      %1878 = vmatprep.mubr.f32.mxu0 0.0
      %1879 = vmatmul.mubr.f32.gmra.mxu0 %v1801
      %v1880 = vpop.f32.mrf.mxu0
      %v1881 = vadd.f32 %v1784, %v1880
      %v1882 = vpop.f32.mrf.mxu0
      %1883 = vmatprep.mubr.f32.mxu0 0.0
      %1884 = vmatmul.mubr.f32.gmra.mxu0 %v1804
      %v1885 = vpop.f32.mrf.mxu0
      %v1886 = vadd.f32 %v1789, %v1885
      %v1887 = vpop.f32.mrf.mxu0
      %1888 = vmatprep.mubr.f32.mxu0 0.0
      %1889 = vmatmul.mubr.f32.gmra.mxu0 %v1807
      %v1890 = vpop.f32.mrf.mxu0
      %v1891 = vadd.f32 %v1794, %v1890
      %v1892 = vpop.f32.mrf.mxu0
      %1893 = vdwg.mxu0
      %1894 = vrot.lane.b32.xlu0 %v1108, 112
      %v1895 = vpop.permute.xlu0 %1894
      %1896 = vrot.lane.b32.xlu0 %v1109, 112
      %v1897 = vpop.permute.xlu0 %1896
      %1898 = vrot.lane.b32.xlu0 %v1110, 112
      %v1899 = vpop.permute.xlu0 %1898
      %1900 = vrot.lane.b32.xlu0 %v1111, 112
      %v1901 = vpop.permute.xlu0 %1900
      %1902 = vrot.lane.b32.xlu0 %v1112, 112
      %v1903 = vpop.permute.xlu0 %1902
      %1904 = vrot.lane.b32.xlu0 %v1113, 112
      %v1905 = vpop.permute.xlu0 %1904
      %1906 = vrot.lane.b32.xlu0 %v1114, 112
      %v1907 = vpop.permute.xlu0 %1906
      %1908 = vrot.lane.b32.xlu0 %v1115, 112
      %v1909 = vpop.permute.xlu0 %1908
      %1910 = vrot.lane.b32.xlu0 %v1116, 112
      %v1911 = vpop.permute.xlu0 %1910
      %1912 = vrot.lane.b32.xlu0 %v1117, 112
      %v1913 = vpop.permute.xlu0 %1912
      %1914 = vrot.lane.b32.xlu0 %v1118, 112
      %v1915 = vpop.permute.xlu0 %1914
      %1916 = vrot.lane.b32.xlu0 %v1119, 112
      %v1917 = vpop.permute.xlu0 %1916
      %v1918 = vsel %vm1128, %v1895, 0
      %v1920 = vsel %vm1128, %v1897, 0
      %v1922 = vsel %vm1128, %v1899, 0
      %v1924 = vsel %vm1128, %v1901, 0
      %v1926 = vsel %vm1128, %v1903, 0
      %v1928 = vsel %vm1128, %v1905, 0
      %v1930 = vsel %vm1128, %v1907, 0
      %v1932 = vsel %vm1128, %v1909, 0
      %v1934 = vsel %vm1128, %v1911, 0
      %v1936 = vsel %vm1128, %v1913, 0
      %v1938 = vsel %vm1128, %v1915, 0
      %v1940 = vsel %vm1128, %v1917, 0
      %1942 = vmatprep.subr.mxu0 0.0
      %1943 = vmatpush1.xpose.msra.mxu0 0.0
      %1944 = vmatprep.subr.mxu0 0.0
      %1945 = vmatpush1.xpose.msra.mxu0 0.0
      %1946 = vmatprep.subr.mxu0 0.0
      %1947 = vmatpush1.xpose.msra.mxu0 0.0
      %1948 = vmatprep.subr.mxu0 0.0
      %1949 = vmatpush1.xpose.msra.mxu0 0.0
      %1950 = vmatprep.subr.mxu0 0.0
      %1951 = vmatpush1.xpose.msra.mxu0 0.0
      %1952 = vmatprep.subr.mxu0 0.0
      %1953 = vmatpush1.xpose.msra.mxu0 0.0
      %1954 = vmatprep.subr.mxu0 0.0
      %1955 = vmatpush1.xpose.msra.mxu0 0.0
      %1956 = vmatprep.subr.mxu0 0.0
      %1957 = vmatpush1.xpose.msra.mxu0 0.0
      %1958 = vmatprep.subr.mxu0 0.0
      %1959 = vmatpush1.xpose.msra.mxu0 %v1940
      %1960 = vmatprep.subr.mxu0 0.0
      %1961 = vmatpush1.xpose.msra.mxu0 %v1938
      %1962 = vmatprep.subr.mxu0 0.0
      %1963 = vmatpush1.xpose.msra.mxu0 %v1936
      %1964 = vmatprep.subr.mxu0 0.0
      %1965 = vmatpush1.xpose.msra.mxu0 %v1934
      %1966 = vmatprep.subr.mxu0 0.0
      %1967 = vmatpush1.xpose.msra.mxu0 %v1932
      %1968 = vmatprep.subr.mxu0 0.0
      %1969 = vmatpush1.xpose.msra.mxu0 %v1930
      %1970 = vmatprep.subr.mxu0 0.0
      %1971 = vmatpush1.xpose.msra.mxu0 %v1928
      %1972 = vmatprep.subr.mxu0 0.0
      %1973 = vmatpush1.xpose.msra.mxu0 %v1926
      %1974 = vmatprep.subr.mxu0 0.0
      %1975 = vmatpush2.xpose.msra.mxu0 0.0
      %1976 = vmatprep.subr.mxu0 0.0
      %1977 = vmatpush2.xpose.msra.mxu0 0.0
      %1978 = vmatprep.subr.mxu0 0.0
      %1979 = vmatpush2.xpose.msra.mxu0 0.0
      %1980 = vmatprep.subr.mxu0 0.0
      %1981 = vmatpush2.xpose.msra.mxu0 0.0
      %1982 = vmatprep.subr.mxu0 0.0
      %1983 = vmatpush2.xpose.msra.mxu0 0.0
      %1984 = vmatprep.subr.mxu0 0.0
      %1985 = vmatpush2.xpose.msra.mxu0 0.0
      %1986 = vmatprep.subr.mxu0 0.0
      %1987 = vmatpush2.xpose.msra.mxu0 0.0
      %1988 = vmatprep.subr.mxu0 0.0
      %1989 = vmatpush2.xpose.msra.mxu0 0.0
      %1990 = vmatprep.subr.mxu0 0.0
      %1991 = vmatpush2.xpose.msra.mxu0 0.0
      %1992 = vmatprep.subr.mxu0 0.0
      %1993 = vmatpush2.xpose.msra.mxu0 0.0
      %1994 = vmatprep.subr.mxu0 0.0
      %1995 = vmatpush2.xpose.msra.mxu0 0.0
      %1996 = vmatprep.subr.mxu0 0.0
      %1997 = vmatpush2.xpose.msra.mxu0 0.0
      %1998 = vmatprep.subr.mxu0 0.0
      %1999 = vmatpush2.xpose.msra.mxu0 0.0
      %2000 = vmatprep.subr.mxu0 0.0
      %2001 = vmatpush2.xpose.msra.mxu0 0.0
      %2002 = vmatprep.subr.mxu0 0.0
      %2003 = vmatpush2.xpose.msra.mxu0 0.0
      %2004 = vmatprep.subr.mxu0 0.0
      %2005 = vmatpush2.xpose.msra.mxu0 0.0
      %2006 = vmatprep.mubr.f32.mxu0 0.0
      %2007 = vmatmul.mubr.f32.gmra.mxu0 %v1918
      %v2008 = vpop.f32.mrf.mxu0
      %v2009 = vadd.f32 %v995, %v2008
      %v2010 = vpop.f32.mrf.mxu0
      %2011 = vmatprep.mubr.f32.mxu0 0.0
      %2012 = vmatmul.mubr.f32.gmra.mxu0 %v1920
      %v2013 = vpop.f32.mrf.mxu0
      %v2014 = vadd.f32 %v996, %v2013
      %v2015 = vpop.f32.mrf.mxu0
      %2016 = vmatprep.mubr.f32.mxu0 0.0
      %2017 = vmatmul.mubr.f32.gmra.mxu0 %v1922
      %v2018 = vpop.f32.mrf.mxu0
      %v2019 = vadd.f32 %v997, %v2018
      %v2020 = vpop.f32.mrf.mxu0
      %2021 = vmatprep.mubr.f32.mxu0 0.0
      %2022 = vmatmul.mubr.f32.gmra.mxu0 %v1924
      %v2023 = vpop.f32.mrf.mxu0
      %v2024 = vadd.f32 %v998, %v2023
      %v2025 = vpop.f32.mrf.mxu0
      %2026 = vdwg.mxu0
      %v2027 = vsel %vm1250, %v2009, -inf
      %2028 = vmax.xlane.f32.xlu0 %v2027
      %v2029 = vpop.xlane.xlu0 %2028
      %v2030 = vsel %vm1250, %v2014, -inf
      %2031 = vmax.xlane.f32.xlu0 %v2030
      %v2032 = vpop.xlane.xlu0 %2031
      %v2033 = vsel %vm1250, %v2019, -inf
      %2034 = vmax.xlane.f32.xlu0 %v2033
      %v2035 = vpop.xlane.xlu0 %2034
      %v2036 = vsel %vm1250, %v2024, -inf
      %2037 = vmax.xlane.f32.xlu0 %v2036
      %v2038 = vpop.xlane.xlu0 %2037
      %v2039 = vsub.f32 %v2009, %v2029
      %v2040 = vsub.f32 %v2014, %v2032
      %v2041 = vsub.f32 %v2019, %v2035
      %v2042 = vsub.f32 %v2024, %v2038
      %v2043 = vmul.f32 %v2039, 1.442695
      %v2044 = vpow.pop %v2043
      %v2045 = vmul.f32 %v2040, 1.442695
      %v2046 = vpow.pop %v2045
      %v2047 = vmul.f32 %v2041, 1.442695
      %v2048 = vpow.pop %v2047
      %v2049 = vmul.f32 %v2042, 1.442695
      %v2050 = vpow.pop %v2049
      %v2051 = vsel %vm1250, %v2044, 0.0
      %2052 = vadd.xlane.f32.xlu0 %v2051
      %v2053 = vpop.xlane.xlu0 %2052
      %v2054 = vsel %vm1250, %v2046, 0.0
      %2055 = vadd.xlane.f32.xlu0 %v2054
      %v2056 = vpop.xlane.xlu0 %2055
      %v2057 = vsel %vm1250, %v2048, 0.0
      %2058 = vadd.xlane.f32.xlu0 %v2057
      %v2059 = vpop.xlane.xlu0 %2058
      %v2060 = vsel %vm1250, %v2050, 0.0
      %2061 = vadd.xlane.f32.xlu0 %v2060
      %v2062 = vpop.xlane.xlu0 %2061
      %2063 = vrot.lane.b32.xlu0 %v1120, 112
      %v2064 = vpop.permute.xlu0 %2063
      %2065 = vrot.lane.b32.xlu0 %v1121, 112
      %v2066 = vpop.permute.xlu0 %2065
      %2067 = vrot.lane.b32.xlu0 %v1122, 112
      %v2068 = vpop.permute.xlu0 %2067
      %2069 = vrot.lane.b32.xlu0 %v1123, 112
      %v2070 = vpop.permute.xlu0 %2069
      %2071 = vrot.lane.b32.xlu0 %v1124, 112
      %v2072 = vpop.permute.xlu0 %2071
      %2073 = vrot.lane.b32.xlu0 %v1125, 112
      %v2074 = vpop.permute.xlu0 %2073
      %2075 = vrot.lane.b32.xlu0 %v1126, 112
      %v2076 = vpop.permute.xlu0 %2075
      %2077 = vrot.lane.b32.xlu0 %v1127, 112
      %v2078 = vpop.permute.xlu0 %2077
      %v2088 = vsel %vm1250, %v2044, 0
      %v2091 = vsel %vm1250, %v2046, 0
      %v2094 = vsel %vm1250, %v2048, 0
      %v2097 = vsel %vm1250, %v2050, 0
      %2099 = vmatprep.subr.mxu0 0.0
      %2100 = vmatpush1.msra.mxu0 0.0
      %2101 = vmatprep.subr.mxu0 0.0
      %2102 = vmatpush1.msra.mxu0 0.0
      %2103 = vmatprep.subr.mxu0 0.0
      %2104 = vmatpush1.msra.mxu0 0.0
      %2105 = vmatprep.subr.mxu0 0.0
      %2106 = vmatpush1.msra.mxu0 0.0
      %2107 = vmatprep.subr.mxu0 0.0
      %2108 = vmatpush1.msra.mxu0 0.0
      %2109 = vmatprep.subr.mxu0 0.0
      %2110 = vmatpush1.msra.mxu0 0.0
      %2111 = vmatprep.subr.mxu0 0.0
      %2112 = vmatpush1.msra.mxu0 0.0
      %2113 = vmatprep.subr.mxu0 0.0
      %2114 = vmatpush1.msra.mxu0 0.0
      %2115 = vmatprep.subr.mxu0 0.0
      %2116 = vmatpush1.msra.mxu0 %v2078
      %2117 = vmatprep.subr.mxu0 0.0
      %2118 = vmatpush1.msra.mxu0 %v2076
      %2119 = vmatprep.subr.mxu0 0.0
      %2120 = vmatpush1.msra.mxu0 %v2074
      %2121 = vmatprep.subr.mxu0 0.0
      %2122 = vmatpush1.msra.mxu0 %v2072
      %2123 = vmatprep.subr.mxu0 0.0
      %2124 = vmatpush1.msra.mxu0 %v2070
      %2125 = vmatprep.subr.mxu0 0.0
      %2126 = vmatpush1.msra.mxu0 %v2068
      %2127 = vmatprep.subr.mxu0 0.0
      %2128 = vmatpush1.msra.mxu0 %v2066
      %2129 = vmatprep.subr.mxu0 0.0
      %2130 = vmatpush1.msra.mxu0 %v2064
      %2131 = vmatprep.subr.mxu0 0.0
      %2132 = vmatpush2.msra.mxu0 0.0
      %2133 = vmatprep.subr.mxu0 0.0
      %2134 = vmatpush2.msra.mxu0 0.0
      %2135 = vmatprep.subr.mxu0 0.0
      %2136 = vmatpush2.msra.mxu0 0.0
      %2137 = vmatprep.subr.mxu0 0.0
      %2138 = vmatpush2.msra.mxu0 0.0
      %2139 = vmatprep.subr.mxu0 0.0
      %2140 = vmatpush2.msra.mxu0 0.0
      %2141 = vmatprep.subr.mxu0 0.0
      %2142 = vmatpush2.msra.mxu0 0.0
      %2143 = vmatprep.subr.mxu0 0.0
      %2144 = vmatpush2.msra.mxu0 0.0
      %2145 = vmatprep.subr.mxu0 0.0
      %2146 = vmatpush2.msra.mxu0 0.0
      %2147 = vmatprep.subr.mxu0 0.0
      %2148 = vmatpush2.msra.mxu0 0.0
      %2149 = vmatprep.subr.mxu0 0.0
      %2150 = vmatpush2.msra.mxu0 0.0
      %2151 = vmatprep.subr.mxu0 0.0
      %2152 = vmatpush2.msra.mxu0 0.0
      %2153 = vmatprep.subr.mxu0 0.0
      %2154 = vmatpush2.msra.mxu0 0.0
      %2155 = vmatprep.subr.mxu0 0.0
      %2156 = vmatpush2.msra.mxu0 0.0
      %2157 = vmatprep.subr.mxu0 0.0
      %2158 = vmatpush2.msra.mxu0 0.0
      %2159 = vmatprep.subr.mxu0 0.0
      %2160 = vmatpush2.msra.mxu0 0.0
      %2161 = vmatprep.subr.mxu0 0.0
      %2162 = vmatpush2.msra.mxu0 0.0
      %2163 = vmatprep.mubr.f32.mxu0 0.0
      %2164 = vmatmul.mubr.f32.gmra.mxu0 %v2088
      %v2165 = vpop.f32.mrf.mxu0
      %v2166 = vadd.f32 0.0, %v2165
      %v2167 = vpop.f32.mrf.mxu0
      %2168 = vmatprep.mubr.f32.mxu0 0.0
      %2169 = vmatmul.mubr.f32.gmra.mxu0 %v2091
      %v2170 = vpop.f32.mrf.mxu0
      %v2171 = vadd.f32 0.0, %v2170
      %v2172 = vpop.f32.mrf.mxu0
      %2173 = vmatprep.mubr.f32.mxu0 0.0
      %2174 = vmatmul.mubr.f32.gmra.mxu0 %v2094
      %v2175 = vpop.f32.mrf.mxu0
      %v2176 = vadd.f32 0.0, %v2175
      %v2177 = vpop.f32.mrf.mxu0
      %2178 = vmatprep.mubr.f32.mxu0 0.0
      %2179 = vmatmul.mubr.f32.gmra.mxu0 %v2097
      %v2180 = vpop.f32.mrf.mxu0
      %v2181 = vadd.f32 0.0, %v2180
      %v2182 = vpop.f32.mrf.mxu0
      %2183 = vdwg.mxu0
      %v2184 = vrcp.pop %v2053
      %v2185 = vrcp.pop %v2056
      %v2186 = vrcp.pop %v2059
      %v2187 = vrcp.pop %v2062
      %v2188 = vmul.f32 %v2166, %v2184
      %v2189 = vmul.f32 %v2171, %v2185
      %v2190 = vmul.f32 %v2176, %v2186
      %v2191 = vmul.f32 %v2181, %v2187
      %v2192 = vld [vmem:[%s9 + $0x10] sm:$0xff]
      %v2194 = vsel %vm1128, %v2188, 0
      %v2197 = vsel %vm1128, %v2189, 0
      %v2200 = vsel %vm1128, %v2190, 0
      %v2203 = vsel %vm1128, %v2191, 0
      %2205 = vmatprep.subr.mxu0 0.0
      %2206 = vmatpush1.msra.mxu0 0.0
      %2207 = vmatprep.subr.mxu0 0.0
      %2208 = vmatpush1.msra.mxu0 0.0
      %2209 = vmatprep.subr.mxu0 0.0
      %2210 = vmatpush1.msra.mxu0 0.0
      %2211 = vmatprep.subr.mxu0 0.0
      %2212 = vmatpush1.msra.mxu0 0.0
      %2213 = vmatprep.subr.mxu0 0.0
      %2214 = vmatpush1.msra.mxu0 0.0
      %2215 = vmatprep.subr.mxu0 0.0
      %2216 = vmatpush1.msra.mxu0 0.0
      %2217 = vmatprep.subr.mxu0 0.0
      %2218 = vmatpush1.msra.mxu0 0.0
      %2219 = vmatprep.subr.mxu0 0.0
      %2220 = vmatpush1.msra.mxu0 0.0
      %2221 = vmatprep.subr.mxu0 0.0
      %2222 = vmatpush1.msra.mxu0 0.0
      %2223 = vmatprep.subr.mxu0 0.0
      %2224 = vmatpush1.msra.mxu0 0.0
      %2225 = vmatprep.subr.mxu0 0.0
      %2226 = vmatpush1.msra.mxu0 0.0
      %2227 = vmatprep.subr.mxu0 0.0
      %2228 = vmatpush1.msra.mxu0 0.0
      %2229 = vmatprep.subr.mxu0 0.0
      %2230 = vmatpush1.msra.mxu0 0.0
      %2231 = vmatprep.subr.mxu0 0.0
      %2232 = vmatpush1.msra.mxu0 0.0
      %2233 = vmatprep.subr.mxu0 0.0
      %2234 = vmatpush1.msra.mxu0 0.0
      %2235 = vmatprep.subr.mxu0 0.0
      %2236 = vmatpush1.msra.mxu0 %v2192
      %2237 = vmatprep.subr.mxu0 0.0
      %2238 = vmatpush2.msra.mxu0 0.0
      %2239 = vmatprep.subr.mxu0 0.0
      %2240 = vmatpush2.msra.mxu0 0.0
      %2241 = vmatprep.subr.mxu0 0.0
      %2242 = vmatpush2.msra.mxu0 0.0
      %2243 = vmatprep.subr.mxu0 0.0
      %2244 = vmatpush2.msra.mxu0 0.0
      %2245 = vmatprep.subr.mxu0 0.0
      %2246 = vmatpush2.msra.mxu0 0.0
      %2247 = vmatprep.subr.mxu0 0.0
      %2248 = vmatpush2.msra.mxu0 0.0
      %2249 = vmatprep.subr.mxu0 0.0
      %2250 = vmatpush2.msra.mxu0 0.0
      %2251 = vmatprep.subr.mxu0 0.0
      %2252 = vmatpush2.msra.mxu0 0.0
      %2253 = vmatprep.subr.mxu0 0.0
      %2254 = vmatpush2.msra.mxu0 0.0
      %2255 = vmatprep.subr.mxu0 0.0
      %2256 = vmatpush2.msra.mxu0 0.0
      %2257 = vmatprep.subr.mxu0 0.0
      %2258 = vmatpush2.msra.mxu0 0.0
      %2259 = vmatprep.subr.mxu0 0.0
      %2260 = vmatpush2.msra.mxu0 0.0
      %2261 = vmatprep.subr.mxu0 0.0
      %2262 = vmatpush2.msra.mxu0 0.0
      %2263 = vmatprep.subr.mxu0 0.0
      %2264 = vmatpush2.msra.mxu0 0.0
      %2265 = vmatprep.subr.mxu0 0.0
      %2266 = vmatpush2.msra.mxu0 0.0
      %2267 = vmatprep.subr.mxu0 0.0
      %2268 = vmatpush2.msra.mxu0 0.0
      %2269 = vmatprep.mubr.f32.mxu0 0.0
      %2270 = vmatmul.mubr.f32.gmra.mxu0 %v2194
      %v2271 = vpop.f32.mrf.mxu0
      %v2272 = vadd.f32 0.0, %v2271
      %v2273 = vpop.f32.mrf.mxu0
      %2274 = vmatprep.mubr.f32.mxu0 0.0
      %2275 = vmatmul.mubr.f32.gmra.mxu0 %v2197
      %v2276 = vpop.f32.mrf.mxu0
      %v2277 = vadd.f32 0.0, %v2276
      %v2278 = vpop.f32.mrf.mxu0
      %2279 = vmatprep.mubr.f32.mxu0 0.0
      %2280 = vmatmul.mubr.f32.gmra.mxu0 %v2200
      %v2281 = vpop.f32.mrf.mxu0
      %v2282 = vadd.f32 0.0, %v2281
      %v2283 = vpop.f32.mrf.mxu0
      %2284 = vmatprep.mubr.f32.mxu0 0.0
      %2285 = vmatmul.mubr.f32.gmra.mxu0 %v2203
      %v2286 = vpop.f32.mrf.mxu0
      %v2287 = vadd.f32 0.0, %v2286
      %v2288 = vpop.f32.mrf.mxu0
      %2289 = vdwg.mxu0
      %v2290 = vadd.f32 %v1876, %v2272
      %v2291 = vadd.f32 %v1881, %v2277
      %v2292 = vadd.f32 %v1886, %v2282
      %v2293 = vadd.f32 %v1891, %v2287
      %2294 = vrot.lane.b32.xlu0 %v1108, 104
      %v2295 = vpop.permute.xlu0 %2294
      %2296 = vrot.lane.b32.xlu0 %v1109, 104
      %v2297 = vpop.permute.xlu0 %2296
      %2298 = vrot.lane.b32.xlu0 %v1110, 104
      %v2299 = vpop.permute.xlu0 %2298
      %2300 = vrot.lane.b32.xlu0 %v1111, 104
      %v2301 = vpop.permute.xlu0 %2300
      %2302 = vrot.lane.b32.xlu0 %v1112, 104
      %v2303 = vpop.permute.xlu0 %2302
      %2304 = vrot.lane.b32.xlu0 %v1113, 104
      %v2305 = vpop.permute.xlu0 %2304
      %2306 = vrot.lane.b32.xlu0 %v1114, 104
      %v2307 = vpop.permute.xlu0 %2306
      %2308 = vrot.lane.b32.xlu0 %v1115, 104
      %v2309 = vpop.permute.xlu0 %2308
      %2310 = vrot.lane.b32.xlu0 %v1116, 104
      %v2311 = vpop.permute.xlu0 %2310
      %2312 = vrot.lane.b32.xlu0 %v1117, 104
      %v2313 = vpop.permute.xlu0 %2312
      %2314 = vrot.lane.b32.xlu0 %v1118, 104
      %v2315 = vpop.permute.xlu0 %2314
      %2316 = vrot.lane.b32.xlu0 %v1119, 104
      %v2317 = vpop.permute.xlu0 %2316
      %v2318 = vsel %vm1128, %v2295, 0
      %v2320 = vsel %vm1128, %v2297, 0
      %v2322 = vsel %vm1128, %v2299, 0
      %v2324 = vsel %vm1128, %v2301, 0
      %v2326 = vsel %vm1128, %v2303, 0
      %v2328 = vsel %vm1128, %v2305, 0
      %v2330 = vsel %vm1128, %v2307, 0
      %v2332 = vsel %vm1128, %v2309, 0
      %v2334 = vsel %vm1128, %v2311, 0
      %v2336 = vsel %vm1128, %v2313, 0
      %v2338 = vsel %vm1128, %v2315, 0
      %v2340 = vsel %vm1128, %v2317, 0
      %2342 = vmatprep.subr.mxu0 0.0
      %2343 = vmatpush1.xpose.msra.mxu0 0.0
      %2344 = vmatprep.subr.mxu0 0.0
      %2345 = vmatpush1.xpose.msra.mxu0 0.0
      %2346 = vmatprep.subr.mxu0 0.0
      %2347 = vmatpush1.xpose.msra.mxu0 0.0
      %2348 = vmatprep.subr.mxu0 0.0
      %2349 = vmatpush1.xpose.msra.mxu0 0.0
      %2350 = vmatprep.subr.mxu0 0.0
      %2351 = vmatpush1.xpose.msra.mxu0 0.0
      %2352 = vmatprep.subr.mxu0 0.0
      %2353 = vmatpush1.xpose.msra.mxu0 0.0
      %2354 = vmatprep.subr.mxu0 0.0
      %2355 = vmatpush1.xpose.msra.mxu0 0.0
      %2356 = vmatprep.subr.mxu0 0.0
      %2357 = vmatpush1.xpose.msra.mxu0 0.0
      %2358 = vmatprep.subr.mxu0 0.0
      %2359 = vmatpush1.xpose.msra.mxu0 %v2340
      %2360 = vmatprep.subr.mxu0 0.0
      %2361 = vmatpush1.xpose.msra.mxu0 %v2338
      %2362 = vmatprep.subr.mxu0 0.0
      %2363 = vmatpush1.xpose.msra.mxu0 %v2336
      %2364 = vmatprep.subr.mxu0 0.0
      %2365 = vmatpush1.xpose.msra.mxu0 %v2334
      %2366 = vmatprep.subr.mxu0 0.0
      %2367 = vmatpush1.xpose.msra.mxu0 %v2332
      %2368 = vmatprep.subr.mxu0 0.0
      %2369 = vmatpush1.xpose.msra.mxu0 %v2330
      %2370 = vmatprep.subr.mxu0 0.0
      %2371 = vmatpush1.xpose.msra.mxu0 %v2328
      %2372 = vmatprep.subr.mxu0 0.0
      %2373 = vmatpush1.xpose.msra.mxu0 %v2326
      %2374 = vmatprep.subr.mxu0 0.0
      %2375 = vmatpush2.xpose.msra.mxu0 0.0
      %2376 = vmatprep.subr.mxu0 0.0
      %2377 = vmatpush2.xpose.msra.mxu0 0.0
      %2378 = vmatprep.subr.mxu0 0.0
      %2379 = vmatpush2.xpose.msra.mxu0 0.0
      %2380 = vmatprep.subr.mxu0 0.0
      %2381 = vmatpush2.xpose.msra.mxu0 0.0
      %2382 = vmatprep.subr.mxu0 0.0
      %2383 = vmatpush2.xpose.msra.mxu0 0.0
      %2384 = vmatprep.subr.mxu0 0.0
      %2385 = vmatpush2.xpose.msra.mxu0 0.0
      %2386 = vmatprep.subr.mxu0 0.0
      %2387 = vmatpush2.xpose.msra.mxu0 0.0
      %2388 = vmatprep.subr.mxu0 0.0
      %2389 = vmatpush2.xpose.msra.mxu0 0.0
      %2390 = vmatprep.subr.mxu0 0.0
      %2391 = vmatpush2.xpose.msra.mxu0 0.0
      %2392 = vmatprep.subr.mxu0 0.0
      %2393 = vmatpush2.xpose.msra.mxu0 0.0
      %2394 = vmatprep.subr.mxu0 0.0
      %2395 = vmatpush2.xpose.msra.mxu0 0.0
      %2396 = vmatprep.subr.mxu0 0.0
      %2397 = vmatpush2.xpose.msra.mxu0 0.0
      %2398 = vmatprep.subr.mxu0 0.0
      %2399 = vmatpush2.xpose.msra.mxu0 0.0
      %2400 = vmatprep.subr.mxu0 0.0
      %2401 = vmatpush2.xpose.msra.mxu0 0.0
      %2402 = vmatprep.subr.mxu0 0.0
      %2403 = vmatpush2.xpose.msra.mxu0 0.0
      %2404 = vmatprep.subr.mxu0 0.0
      %2405 = vmatpush2.xpose.msra.mxu0 0.0
      %2406 = vmatprep.mubr.f32.mxu0 0.0
      %2407 = vmatmul.mubr.f32.gmra.mxu0 %v2318
      %v2408 = vpop.f32.mrf.mxu0
      %v2409 = vadd.f32 %v995, %v2408
      %v2410 = vpop.f32.mrf.mxu0
      %2411 = vmatprep.mubr.f32.mxu0 0.0
      %2412 = vmatmul.mubr.f32.gmra.mxu0 %v2320
      %v2413 = vpop.f32.mrf.mxu0
      %v2414 = vadd.f32 %v996, %v2413
      %v2415 = vpop.f32.mrf.mxu0
      %2416 = vmatprep.mubr.f32.mxu0 0.0
      %2417 = vmatmul.mubr.f32.gmra.mxu0 %v2322
      %v2418 = vpop.f32.mrf.mxu0
      %v2419 = vadd.f32 %v997, %v2418
      %v2420 = vpop.f32.mrf.mxu0
      %2421 = vmatprep.mubr.f32.mxu0 0.0
      %2422 = vmatmul.mubr.f32.gmra.mxu0 %v2324
      %v2423 = vpop.f32.mrf.mxu0
      %v2424 = vadd.f32 %v998, %v2423
      %v2425 = vpop.f32.mrf.mxu0
      %2426 = vdwg.mxu0
      %v2427 = vsel %vm1250, %v2409, -inf
      %2428 = vmax.xlane.f32.xlu0 %v2427
      %v2429 = vpop.xlane.xlu0 %2428
      %v2430 = vsel %vm1250, %v2414, -inf
      %2431 = vmax.xlane.f32.xlu0 %v2430
      %v2432 = vpop.xlane.xlu0 %2431
      %v2433 = vsel %vm1250, %v2419, -inf
      %2434 = vmax.xlane.f32.xlu0 %v2433
      %v2435 = vpop.xlane.xlu0 %2434
      %v2436 = vsel %vm1250, %v2424, -inf
      %2437 = vmax.xlane.f32.xlu0 %v2436
      %v2438 = vpop.xlane.xlu0 %2437
      %v2439 = vsub.f32 %v2409, %v2429
      %v2440 = vsub.f32 %v2414, %v2432
      %v2441 = vsub.f32 %v2419, %v2435
      %v2442 = vsub.f32 %v2424, %v2438
      %v2443 = vmul.f32 %v2439, 1.442695
      %v2444 = vpow.pop %v2443
      %v2445 = vmul.f32 %v2440, 1.442695
      %v2446 = vpow.pop %v2445
      %v2447 = vmul.f32 %v2441, 1.442695
      %v2448 = vpow.pop %v2447
      %v2449 = vmul.f32 %v2442, 1.442695
      %v2450 = vpow.pop %v2449
      %v2451 = vsel %vm1250, %v2444, 0.0
      %2452 = vadd.xlane.f32.xlu0 %v2451
      %v2453 = vpop.xlane.xlu0 %2452
      %v2454 = vsel %vm1250, %v2446, 0.0
      %2455 = vadd.xlane.f32.xlu0 %v2454
      %v2456 = vpop.xlane.xlu0 %2455
      %v2457 = vsel %vm1250, %v2448, 0.0
      %2458 = vadd.xlane.f32.xlu0 %v2457
      %v2459 = vpop.xlane.xlu0 %2458
      %v2460 = vsel %vm1250, %v2450, 0.0
      %2461 = vadd.xlane.f32.xlu0 %v2460
      %v2462 = vpop.xlane.xlu0 %2461
      %2463 = vrot.lane.b32.xlu0 %v1120, 104
      %v2464 = vpop.permute.xlu0 %2463
      %2465 = vrot.lane.b32.xlu0 %v1121, 104
      %v2466 = vpop.permute.xlu0 %2465
      %2467 = vrot.lane.b32.xlu0 %v1122, 104
      %v2468 = vpop.permute.xlu0 %2467
      %2469 = vrot.lane.b32.xlu0 %v1123, 104
      %v2470 = vpop.permute.xlu0 %2469
      %2471 = vrot.lane.b32.xlu0 %v1124, 104
      %v2472 = vpop.permute.xlu0 %2471
      %2473 = vrot.lane.b32.xlu0 %v1125, 104
      %v2474 = vpop.permute.xlu0 %2473
      %2475 = vrot.lane.b32.xlu0 %v1126, 104
      %v2476 = vpop.permute.xlu0 %2475
      %2477 = vrot.lane.b32.xlu0 %v1127, 104
      %v2478 = vpop.permute.xlu0 %2477
      %v2488 = vsel %vm1250, %v2444, 0
      %v2491 = vsel %vm1250, %v2446, 0
      %v2494 = vsel %vm1250, %v2448, 0
      %v2497 = vsel %vm1250, %v2450, 0
      %2499 = vmatprep.subr.mxu0 0.0
      %2500 = vmatpush1.msra.mxu0 0.0
      %2501 = vmatprep.subr.mxu0 0.0
      %2502 = vmatpush1.msra.mxu0 0.0
      %2503 = vmatprep.subr.mxu0 0.0
      %2504 = vmatpush1.msra.mxu0 0.0
      %2505 = vmatprep.subr.mxu0 0.0
      %2506 = vmatpush1.msra.mxu0 0.0
      %2507 = vmatprep.subr.mxu0 0.0
      %2508 = vmatpush1.msra.mxu0 0.0
      %2509 = vmatprep.subr.mxu0 0.0
      %2510 = vmatpush1.msra.mxu0 0.0
      %2511 = vmatprep.subr.mxu0 0.0
      %2512 = vmatpush1.msra.mxu0 0.0
      %2513 = vmatprep.subr.mxu0 0.0
      %2514 = vmatpush1.msra.mxu0 0.0
      %2515 = vmatprep.subr.mxu0 0.0
      %2516 = vmatpush1.msra.mxu0 %v2478
      %2517 = vmatprep.subr.mxu0 0.0
      %2518 = vmatpush1.msra.mxu0 %v2476
      %2519 = vmatprep.subr.mxu0 0.0
      %2520 = vmatpush1.msra.mxu0 %v2474
      %2521 = vmatprep.subr.mxu0 0.0
      %2522 = vmatpush1.msra.mxu0 %v2472
      %2523 = vmatprep.subr.mxu0 0.0
      %2524 = vmatpush1.msra.mxu0 %v2470
      %2525 = vmatprep.subr.mxu0 0.0
      %2526 = vmatpush1.msra.mxu0 %v2468
      %2527 = vmatprep.subr.mxu0 0.0
      %2528 = vmatpush1.msra.mxu0 %v2466
      %2529 = vmatprep.subr.mxu0 0.0
      %2530 = vmatpush1.msra.mxu0 %v2464
      %2531 = vmatprep.subr.mxu0 0.0
      %2532 = vmatpush2.msra.mxu0 0.0
      %2533 = vmatprep.subr.mxu0 0.0
      %2534 = vmatpush2.msra.mxu0 0.0
      %2535 = vmatprep.subr.mxu0 0.0
      %2536 = vmatpush2.msra.mxu0 0.0
      %2537 = vmatprep.subr.mxu0 0.0
      %2538 = vmatpush2.msra.mxu0 0.0
      %2539 = vmatprep.subr.mxu0 0.0
      %2540 = vmatpush2.msra.mxu0 0.0
      %2541 = vmatprep.subr.mxu0 0.0
      %2542 = vmatpush2.msra.mxu0 0.0
      %2543 = vmatprep.subr.mxu0 0.0
      %2544 = vmatpush2.msra.mxu0 0.0
      %2545 = vmatprep.subr.mxu0 0.0
      %2546 = vmatpush2.msra.mxu0 0.0
      %2547 = vmatprep.subr.mxu0 0.0
      %2548 = vmatpush2.msra.mxu0 0.0
      %2549 = vmatprep.subr.mxu0 0.0
      %2550 = vmatpush2.msra.mxu0 0.0
      %2551 = vmatprep.subr.mxu0 0.0
      %2552 = vmatpush2.msra.mxu0 0.0
      %2553 = vmatprep.subr.mxu0 0.0
      %2554 = vmatpush2.msra.mxu0 0.0
      %2555 = vmatprep.subr.mxu0 0.0
      %2556 = vmatpush2.msra.mxu0 0.0
      %2557 = vmatprep.subr.mxu0 0.0
      %2558 = vmatpush2.msra.mxu0 0.0
      %2559 = vmatprep.subr.mxu0 0.0
      %2560 = vmatpush2.msra.mxu0 0.0
      %2561 = vmatprep.subr.mxu0 0.0
      %2562 = vmatpush2.msra.mxu0 0.0
      %2563 = vmatprep.mubr.f32.mxu0 0.0
      %2564 = vmatmul.mubr.f32.gmra.mxu0 %v2488
      %v2565 = vpop.f32.mrf.mxu0
      %v2566 = vadd.f32 0.0, %v2565
      %v2567 = vpop.f32.mrf.mxu0
      %2568 = vmatprep.mubr.f32.mxu0 0.0
      %2569 = vmatmul.mubr.f32.gmra.mxu0 %v2491
      %v2570 = vpop.f32.mrf.mxu0
      %v2571 = vadd.f32 0.0, %v2570
      %v2572 = vpop.f32.mrf.mxu0
      %2573 = vmatprep.mubr.f32.mxu0 0.0
      %2574 = vmatmul.mubr.f32.gmra.mxu0 %v2494
      %v2575 = vpop.f32.mrf.mxu0
      %v2576 = vadd.f32 0.0, %v2575
      %v2577 = vpop.f32.mrf.mxu0
      %2578 = vmatprep.mubr.f32.mxu0 0.0
      %2579 = vmatmul.mubr.f32.gmra.mxu0 %v2497
      %v2580 = vpop.f32.mrf.mxu0
      %v2581 = vadd.f32 0.0, %v2580
      %v2582 = vpop.f32.mrf.mxu0
      %2583 = vdwg.mxu0
      %v2584 = vrcp.pop %v2453
      %v2585 = vrcp.pop %v2456
      %v2586 = vrcp.pop %v2459
      %v2587 = vrcp.pop %v2462
      %v2588 = vmul.f32 %v2566, %v2584
      %v2589 = vmul.f32 %v2571, %v2585
      %v2590 = vmul.f32 %v2576, %v2586
      %v2591 = vmul.f32 %v2581, %v2587
      %v2592 = vld [vmem:[%s9 + $0x18] sm:$0xff]
      %v2594 = vsel %vm1128, %v2588, 0
      %v2597 = vsel %vm1128, %v2589, 0
      %v2600 = vsel %vm1128, %v2590, 0
      %v2603 = vsel %vm1128, %v2591, 0
      %2605 = vmatprep.subr.mxu0 0.0
      %2606 = vmatpush1.msra.mxu0 0.0
      %2607 = vmatprep.subr.mxu0 0.0
      %2608 = vmatpush1.msra.mxu0 0.0
      %2609 = vmatprep.subr.mxu0 0.0
      %2610 = vmatpush1.msra.mxu0 0.0
      %2611 = vmatprep.subr.mxu0 0.0
      %2612 = vmatpush1.msra.mxu0 0.0
      %2613 = vmatprep.subr.mxu0 0.0
      %2614 = vmatpush1.msra.mxu0 0.0
      %2615 = vmatprep.subr.mxu0 0.0
      %2616 = vmatpush1.msra.mxu0 0.0
      %2617 = vmatprep.subr.mxu0 0.0
      %2618 = vmatpush1.msra.mxu0 0.0
      %2619 = vmatprep.subr.mxu0 0.0
      %2620 = vmatpush1.msra.mxu0 0.0
      %2621 = vmatprep.subr.mxu0 0.0
      %2622 = vmatpush1.msra.mxu0 0.0
      %2623 = vmatprep.subr.mxu0 0.0
      %2624 = vmatpush1.msra.mxu0 0.0
      %2625 = vmatprep.subr.mxu0 0.0
      %2626 = vmatpush1.msra.mxu0 0.0
      %2627 = vmatprep.subr.mxu0 0.0
      %2628 = vmatpush1.msra.mxu0 0.0
      %2629 = vmatprep.subr.mxu0 0.0
      %2630 = vmatpush1.msra.mxu0 0.0
      %2631 = vmatprep.subr.mxu0 0.0
      %2632 = vmatpush1.msra.mxu0 0.0
      %2633 = vmatprep.subr.mxu0 0.0
      %2634 = vmatpush1.msra.mxu0 0.0
      %2635 = vmatprep.subr.mxu0 0.0
      %2636 = vmatpush1.msra.mxu0 %v2592
      %2637 = vmatprep.subr.mxu0 0.0
      %2638 = vmatpush2.msra.mxu0 0.0
      %2639 = vmatprep.subr.mxu0 0.0
      %2640 = vmatpush2.msra.mxu0 0.0
      %2641 = vmatprep.subr.mxu0 0.0
      %2642 = vmatpush2.msra.mxu0 0.0
      %2643 = vmatprep.subr.mxu0 0.0
      %2644 = vmatpush2.msra.mxu0 0.0
      %2645 = vmatprep.subr.mxu0 0.0
      %2646 = vmatpush2.msra.mxu0 0.0
      %2647 = vmatprep.subr.mxu0 0.0
      %2648 = vmatpush2.msra.mxu0 0.0
      %2649 = vmatprep.subr.mxu0 0.0
      %2650 = vmatpush2.msra.mxu0 0.0
      %2651 = vmatprep.subr.mxu0 0.0
      %2652 = vmatpush2.msra.mxu0 0.0
      %2653 = vmatprep.subr.mxu0 0.0
      %2654 = vmatpush2.msra.mxu0 0.0
      %2655 = vmatprep.subr.mxu0 0.0
      %2656 = vmatpush2.msra.mxu0 0.0
      %2657 = vmatprep.subr.mxu0 0.0
      %2658 = vmatpush2.msra.mxu0 0.0
      %2659 = vmatprep.subr.mxu0 0.0
      %2660 = vmatpush2.msra.mxu0 0.0
      %2661 = vmatprep.subr.mxu0 0.0
      %2662 = vmatpush2.msra.mxu0 0.0
      %2663 = vmatprep.subr.mxu0 0.0
      %2664 = vmatpush2.msra.mxu0 0.0
      %2665 = vmatprep.subr.mxu0 0.0
      %2666 = vmatpush2.msra.mxu0 0.0
      %2667 = vmatprep.subr.mxu0 0.0
      %2668 = vmatpush2.msra.mxu0 0.0
      %2669 = vmatprep.mubr.f32.mxu0 0.0
      %2670 = vmatmul.mubr.f32.gmra.mxu0 %v2594
      %v2671 = vpop.f32.mrf.mxu0
      %v2672 = vadd.f32 0.0, %v2671
      %v2673 = vpop.f32.mrf.mxu0
      %2674 = vmatprep.mubr.f32.mxu0 0.0
      %2675 = vmatmul.mubr.f32.gmra.mxu0 %v2597
      %v2676 = vpop.f32.mrf.mxu0
      %v2677 = vadd.f32 0.0, %v2676
      %v2678 = vpop.f32.mrf.mxu0
      %2679 = vmatprep.mubr.f32.mxu0 0.0
      %2680 = vmatmul.mubr.f32.gmra.mxu0 %v2600
      %v2681 = vpop.f32.mrf.mxu0
      %v2682 = vadd.f32 0.0, %v2681
      %v2683 = vpop.f32.mrf.mxu0
      %2684 = vmatprep.mubr.f32.mxu0 0.0
      %2685 = vmatmul.mubr.f32.gmra.mxu0 %v2603
      %v2686 = vpop.f32.mrf.mxu0
      %v2687 = vadd.f32 0.0, %v2686
      %v2688 = vpop.f32.mrf.mxu0
      %2689 = vdwg.mxu0
      %v2690 = vadd.f32 %v2290, %v2672
      %v2691 = vadd.f32 %v2291, %v2677
      %v2692 = vadd.f32 %v2292, %v2682
      %v2693 = vadd.f32 %v2293, %v2687
      %v2694 = vld [vmem:[%s10] sm:$0x1]
      %v2696 = vlaneseq
      %v2697 = vshrl.u32 %v2696, 7
      %v2698 = vsub.s32 0, %v2697
      %v2699 = vrot.slane %v2694, %v2698
      %v2701 = vadd.f32 %v2690, %v2699
      %v2702 = vadd.f32 %v2691, %v2699
      %v2703 = vadd.f32 %v2692, %v2699
      %v2704 = vadd.f32 %v2693, %v2699
      %v2705 = vld [vmem:[%s11] sm:$0x1]
      %v2706 = vld [vmem:[%s12] sm:$0x1]
      %v2707 = vadd.f32 %v978, %v2701
      %v2708 = vadd.f32 %v979, %v2702
      %v2709 = vadd.f32 %v980, %v2703
      %v2710 = vadd.f32 %v981, %v2704
      %v2711 = vsel %vm1010, %v2707, 0.0
      %2712 = vadd.xlane.f32.xlu0 %v2711
      %v2713 = vpop.xlane.xlu0 %2712
      %v2714 = vsel %vm1010, %v2708, 0.0
      %2715 = vadd.xlane.f32.xlu0 %v2714
      %v2716 = vpop.xlane.xlu0 %2715
      %v2717 = vsel %vm1010, %v2709, 0.0
      %2718 = vadd.xlane.f32.xlu0 %v2717
      %v2719 = vpop.xlane.xlu0 %2718
      %v2720 = vsel %vm1010, %v2710, 0.0
      %2721 = vadd.xlane.f32.xlu0 %v2720
      %v2722 = vpop.xlane.xlu0 %2721
      %v2723 = vrcp.pop 32.0
      %v2724 = vmul.f32 %v2713, %v2723
      %v2725 = vmul.f32 %v2716, %v2723
      %v2726 = vmul.f32 %v2719, %v2723
      %v2727 = vmul.f32 %v2722, %v2723
      %v2728 = vsub.f32 %v2707, %v2724
      %v2729 = vsub.f32 %v2708, %v2725
      %v2730 = vsub.f32 %v2709, %v2726
      %v2731 = vsub.f32 %v2710, %v2727
      %v2732 = vmul.f32 %v2728, %v2728
      %v2733 = vmul.f32 %v2729, %v2729
      %v2734 = vmul.f32 %v2730, %v2730
      %v2735 = vmul.f32 %v2731, %v2731
      %v2736 = vsel %vm1010, %v2732, 0.0
      %2737 = vadd.xlane.f32.xlu0 %v2736
      %v2738 = vpop.xlane.xlu0 %2737
      %v2739 = vsel %vm1010, %v2733, 0.0
      %2740 = vadd.xlane.f32.xlu0 %v2739
      %v2741 = vpop.xlane.xlu0 %2740
      %v2742 = vsel %vm1010, %v2734, 0.0
      %2743 = vadd.xlane.f32.xlu0 %v2742
      %v2744 = vpop.xlane.xlu0 %2743
      %v2745 = vsel %vm1010, %v2735, 0.0
      %2746 = vadd.xlane.f32.xlu0 %v2745
      %v2747 = vpop.xlane.xlu0 %2746
      %v2748 = vmul.f32 %v2738, %v2723
      %v2749 = vmul.f32 %v2741, %v2723
      %v2750 = vmul.f32 %v2744, %v2723
      %v2751 = vmul.f32 %v2747, %v2723
      %v2752 = vadd.f32 %v2748, 1e-05
      %v2753 = vadd.f32 %v2749, 1e-05
      %v2754 = vadd.f32 %v2750, 1e-05
      %v2755 = vadd.f32 %v2751, 1e-05
      %v2756 = vrsqrt.pop %v2752
      %v2757 = vrsqrt.pop %v2753
      %v2758 = vrsqrt.pop %v2754
      %v2759 = vrsqrt.pop %v2755
      %v2760 = vmul.f32 %v2728, %v2756
      %v2761 = vmul.f32 %v2729, %v2757
      %v2762 = vmul.f32 %v2730, %v2758
      %v2763 = vmul.f32 %v2731, %v2759
      %v2765 = vlaneseq
      %v2766 = vshrl.u32 %v2765, 7
      %v2767 = vsub.s32 0, %v2766
      %v2768 = vrot.slane %v2705, %v2767
      %v2770 = vmul.f32 %v2760, %v2768
      %v2771 = vmul.f32 %v2761, %v2768
      %v2772 = vmul.f32 %v2762, %v2768
      %v2773 = vmul.f32 %v2763, %v2768
      %v2775 = vlaneseq
      %v2776 = vshrl.u32 %v2775, 7
      %v2777 = vsub.s32 0, %v2776
      %v2778 = vrot.slane %v2706, %v2777
      %v2780 = vadd.f32 %v2770, %v2778
      %v2781 = vadd.f32 %v2771, %v2778
      %v2782 = vadd.f32 %v2772, %v2778
      %v2783 = vadd.f32 %v2773, %v2778
      %v2784 = vld [vmem:[%s13] sm:$0xff]
      %v2785 = vld [vmem:[%s13 + $0x8] sm:$0xff]
      %v2786 = vld [vmem:[%s13 + $0x10] sm:$0xff]
      %v2787 = vld [vmem:[%s13 + $0x18] sm:$0xff]
      %v2788 = vld [vmem:[%s14] sm:$0x1]
      %v2790 = vlaneseq
      %v2791 = vshrl.u32 %v2790, 7
      %v2792 = vsub.s32 0, %v2791
      %v2793 = vrot.slane %v2788, %v2792
      %v2796 = vsel %vm1010, %v2780, 0
      %v2799 = vsel %vm1010, %v2781, 0
      %v2802 = vsel %vm1010, %v2782, 0
      %v2805 = vsel %vm1010, %v2783, 0
      %2807 = vmatprep.subr.mxu0 0.0
      %2808 = vmatpush1.msra.mxu0 0.0
      %2809 = vmatprep.subr.mxu0 0.0
      %2810 = vmatpush1.msra.mxu0 0.0
      %2811 = vmatprep.subr.mxu0 0.0
      %2812 = vmatpush1.msra.mxu0 0.0
      %2813 = vmatprep.subr.mxu0 0.0
      %2814 = vmatpush1.msra.mxu0 0.0
      %2815 = vmatprep.subr.mxu0 0.0
      %2816 = vmatpush1.msra.mxu0 0.0
      %2817 = vmatprep.subr.mxu0 0.0
      %2818 = vmatpush1.msra.mxu0 0.0
      %2819 = vmatprep.subr.mxu0 0.0
      %2820 = vmatpush1.msra.mxu0 0.0
      %2821 = vmatprep.subr.mxu0 0.0
      %2822 = vmatpush1.msra.mxu0 0.0
      %2823 = vmatprep.subr.mxu0 0.0
      %2824 = vmatpush1.msra.mxu0 0.0
      %2825 = vmatprep.subr.mxu0 0.0
      %2826 = vmatpush1.msra.mxu0 0.0
      %2827 = vmatprep.subr.mxu0 0.0
      %2828 = vmatpush1.msra.mxu0 0.0
      %2829 = vmatprep.subr.mxu0 0.0
      %2830 = vmatpush1.msra.mxu0 0.0
      %2831 = vmatprep.subr.mxu0 0.0
      %2832 = vmatpush1.msra.mxu0 %v2787
      %2833 = vmatprep.subr.mxu0 0.0
      %2834 = vmatpush1.msra.mxu0 %v2786
      %2835 = vmatprep.subr.mxu0 0.0
      %2836 = vmatpush1.msra.mxu0 %v2785
      %2837 = vmatprep.subr.mxu0 0.0
      %2838 = vmatpush1.msra.mxu0 %v2784
      %2839 = vmatprep.subr.mxu0 0.0
      %2840 = vmatpush2.msra.mxu0 0.0
      %2841 = vmatprep.subr.mxu0 0.0
      %2842 = vmatpush2.msra.mxu0 0.0
      %2843 = vmatprep.subr.mxu0 0.0
      %2844 = vmatpush2.msra.mxu0 0.0
      %2845 = vmatprep.subr.mxu0 0.0
      %2846 = vmatpush2.msra.mxu0 0.0
      %2847 = vmatprep.subr.mxu0 0.0
      %2848 = vmatpush2.msra.mxu0 0.0
      %2849 = vmatprep.subr.mxu0 0.0
      %2850 = vmatpush2.msra.mxu0 0.0
      %2851 = vmatprep.subr.mxu0 0.0
      %2852 = vmatpush2.msra.mxu0 0.0
      %2853 = vmatprep.subr.mxu0 0.0
      %2854 = vmatpush2.msra.mxu0 0.0
      %2855 = vmatprep.subr.mxu0 0.0
      %2856 = vmatpush2.msra.mxu0 0.0
      %2857 = vmatprep.subr.mxu0 0.0
      %2858 = vmatpush2.msra.mxu0 0.0
      %2859 = vmatprep.subr.mxu0 0.0
      %2860 = vmatpush2.msra.mxu0 0.0
      %2861 = vmatprep.subr.mxu0 0.0
      %2862 = vmatpush2.msra.mxu0 0.0
      %2863 = vmatprep.subr.mxu0 0.0
      %2864 = vmatpush2.msra.mxu0 0.0
      %2865 = vmatprep.subr.mxu0 0.0
      %2866 = vmatpush2.msra.mxu0 0.0
      %2867 = vmatprep.subr.mxu0 0.0
      %2868 = vmatpush2.msra.mxu0 0.0
      %2869 = vmatprep.subr.mxu0 0.0
      %2870 = vmatpush2.msra.mxu0 0.0
      %2871 = vmatprep.mubr.f32.mxu0 0.0
      %2872 = vmatmul.mubr.f32.gmra.mxu0 %v2796
      %v2873 = vpop.f32.mrf.mxu0
      %v2874 = vadd.f32 %v2793, %v2873
      %v2875 = vpop.f32.mrf.mxu0
      %2876 = vmatprep.mubr.f32.mxu0 0.0
      %2877 = vmatmul.mubr.f32.gmra.mxu0 %v2799
      %v2878 = vpop.f32.mrf.mxu0
      %v2879 = vadd.f32 %v2793, %v2878
      %v2880 = vpop.f32.mrf.mxu0
      %2881 = vmatprep.mubr.f32.mxu0 0.0
      %2882 = vmatmul.mubr.f32.gmra.mxu0 %v2802
      %v2883 = vpop.f32.mrf.mxu0
      %v2884 = vadd.f32 %v2793, %v2883
      %v2885 = vpop.f32.mrf.mxu0
      %2886 = vmatprep.mubr.f32.mxu0 0.0
      %2887 = vmatmul.mubr.f32.gmra.mxu0 %v2805
      %v2888 = vpop.f32.mrf.mxu0
      %v2889 = vadd.f32 %v2793, %v2888
      %v2890 = vpop.f32.mrf.mxu0
      %2891 = vdwg.mxu0
      %v2892 = vmul.f32 %v2874, 0.5
      %v2893 = vmul.f32 %v2879, 0.5
      %v2894 = vmul.f32 %v2884, 0.5
      %v2895 = vmul.f32 %v2889, 0.5
      %v2896 = vmul.f32 %v2874, 0.70710677
      %v2897 = vmul.f32 %v2879, 0.70710677
      %v2898 = vmul.f32 %v2884, 0.70710677
      %v2899 = vmul.f32 %v2889, 0.70710677
      %v2900 = verf.f32.pop %v2896
      %v2901 = verf.f32.pop %v2897
      %v2902 = verf.f32.pop %v2898
      %v2903 = verf.f32.pop %v2899
      %v2904 = vadd.f32 %v2900, 1.0
      %v2905 = vadd.f32 %v2901, 1.0
      %v2906 = vadd.f32 %v2902, 1.0
      %v2907 = vadd.f32 %v2903, 1.0
      %v2908 = vmul.f32 %v2892, %v2904
      %v2909 = vmul.f32 %v2893, %v2905
      %v2910 = vmul.f32 %v2894, %v2906
      %v2911 = vmul.f32 %v2895, %v2907
      %v2912 = vld [vmem:[%s15] sm:$0xff]
      %v2913 = vld [vmem:[%s15 + $0x8] sm:$0xff]
      %v2914 = vld [vmem:[%s15 + $0x10] sm:$0xff]
      %v2915 = vld [vmem:[%s15 + $0x18] sm:$0xff]
      %v2916 = vld [vmem:[%s15 + $0x20] sm:$0xff]
      %v2917 = vld [vmem:[%s15 + $0x28] sm:$0xff]
      %v2918 = vld [vmem:[%s15 + $0x30] sm:$0xff]
      %v2919 = vld [vmem:[%s15 + $0x38] sm:$0xff]
      %v2920 = vld [vmem:[%s16] sm:$0x1]
      %v2922 = vlaneseq
      %v2923 = vshrl.u32 %v2922, 7
      %v2924 = vsub.s32 0, %v2923
      %v2925 = vrot.slane %v2920, %v2924
      %v2928 = vsel %vm1250, %v2908, 0
      %v2931 = vsel %vm1250, %v2909, 0
      %v2934 = vsel %vm1250, %v2910, 0
      %v2937 = vsel %vm1250, %v2911, 0
      %2939 = vmatprep.subr.mxu0 0.0
      %2940 = vmatpush1.msra.mxu0 0.0
      %2941 = vmatprep.subr.mxu0 0.0
      %2942 = vmatpush1.msra.mxu0 0.0
      %2943 = vmatprep.subr.mxu0 0.0
      %2944 = vmatpush1.msra.mxu0 0.0
      %2945 = vmatprep.subr.mxu0 0.0
      %2946 = vmatpush1.msra.mxu0 0.0
      %2947 = vmatprep.subr.mxu0 0.0
      %2948 = vmatpush1.msra.mxu0 0.0
      %2949 = vmatprep.subr.mxu0 0.0
      %2950 = vmatpush1.msra.mxu0 0.0
      %2951 = vmatprep.subr.mxu0 0.0
      %2952 = vmatpush1.msra.mxu0 0.0
      %2953 = vmatprep.subr.mxu0 0.0
      %2954 = vmatpush1.msra.mxu0 0.0
      %2955 = vmatprep.subr.mxu0 0.0
      %2956 = vmatpush1.msra.mxu0 %v2919
      %2957 = vmatprep.subr.mxu0 0.0
      %2958 = vmatpush1.msra.mxu0 %v2918
      %2959 = vmatprep.subr.mxu0 0.0
      %2960 = vmatpush1.msra.mxu0 %v2917
      %2961 = vmatprep.subr.mxu0 0.0
      %2962 = vmatpush1.msra.mxu0 %v2916
      %2963 = vmatprep.subr.mxu0 0.0
      %2964 = vmatpush1.msra.mxu0 %v2915
      %2965 = vmatprep.subr.mxu0 0.0
      %2966 = vmatpush1.msra.mxu0 %v2914
      %2967 = vmatprep.subr.mxu0 0.0
      %2968 = vmatpush1.msra.mxu0 %v2913
      %2969 = vmatprep.subr.mxu0 0.0
      %2970 = vmatpush1.msra.mxu0 %v2912
      %2971 = vmatprep.subr.mxu0 0.0
      %2972 = vmatpush2.msra.mxu0 0.0
      %2973 = vmatprep.subr.mxu0 0.0
      %2974 = vmatpush2.msra.mxu0 0.0
      %2975 = vmatprep.subr.mxu0 0.0
      %2976 = vmatpush2.msra.mxu0 0.0
      %2977 = vmatprep.subr.mxu0 0.0
      %2978 = vmatpush2.msra.mxu0 0.0
      %2979 = vmatprep.subr.mxu0 0.0
      %2980 = vmatpush2.msra.mxu0 0.0
      %2981 = vmatprep.subr.mxu0 0.0
      %2982 = vmatpush2.msra.mxu0 0.0
      %2983 = vmatprep.subr.mxu0 0.0
      %2984 = vmatpush2.msra.mxu0 0.0
      %2985 = vmatprep.subr.mxu0 0.0
      %2986 = vmatpush2.msra.mxu0 0.0
      %2987 = vmatprep.subr.mxu0 0.0
      %2988 = vmatpush2.msra.mxu0 0.0
      %2989 = vmatprep.subr.mxu0 0.0
      %2990 = vmatpush2.msra.mxu0 0.0
      %2991 = vmatprep.subr.mxu0 0.0
      %2992 = vmatpush2.msra.mxu0 0.0
      %2993 = vmatprep.subr.mxu0 0.0
      %2994 = vmatpush2.msra.mxu0 0.0
      %2995 = vmatprep.subr.mxu0 0.0
      %2996 = vmatpush2.msra.mxu0 0.0
      %2997 = vmatprep.subr.mxu0 0.0
      %2998 = vmatpush2.msra.mxu0 0.0
      %2999 = vmatprep.subr.mxu0 0.0
      %3000 = vmatpush2.msra.mxu0 0.0
      %3001 = vmatprep.subr.mxu0 0.0
      %3002 = vmatpush2.msra.mxu0 0.0
      %3003 = vmatprep.mubr.f32.mxu0 0.0
      %3004 = vmatmul.mubr.f32.gmra.mxu0 %v2928
      %v3005 = vpop.f32.mrf.mxu0
      %v3006 = vadd.f32 %v2925, %v3005
      %v3007 = vpop.f32.mrf.mxu0
      %3008 = vmatprep.mubr.f32.mxu0 0.0
      %3009 = vmatmul.mubr.f32.gmra.mxu0 %v2931
      %v3010 = vpop.f32.mrf.mxu0
      %v3011 = vadd.f32 %v2925, %v3010
      %v3012 = vpop.f32.mrf.mxu0
      %3013 = vmatprep.mubr.f32.mxu0 0.0
      %3014 = vmatmul.mubr.f32.gmra.mxu0 %v2934
      %v3015 = vpop.f32.mrf.mxu0
      %v3016 = vadd.f32 %v2925, %v3015
      %v3017 = vpop.f32.mrf.mxu0
      %3018 = vmatprep.mubr.f32.mxu0 0.0
      %3019 = vmatmul.mubr.f32.gmra.mxu0 %v2937
      %v3020 = vpop.f32.mrf.mxu0
      %v3021 = vadd.f32 %v2925, %v3020
      %v3022 = vpop.f32.mrf.mxu0
      %3023 = vdwg.mxu0
      %v3024 = vld [vmem:[%s17] sm:$0x1]
      %v3025 = vld [vmem:[%s18] sm:$0x1]
      %v3026 = vadd.f32 %v2780, %v3006
      %v3027 = vadd.f32 %v2781, %v3011
      %v3028 = vadd.f32 %v2782, %v3016
      %v3029 = vadd.f32 %v2783, %v3021
      %v3030 = vsel %vm1010, %v3026, 0.0
      %3031 = vadd.xlane.f32.xlu0 %v3030
      %v3032 = vpop.xlane.xlu0 %3031
      %v3033 = vsel %vm1010, %v3027, 0.0
      %3034 = vadd.xlane.f32.xlu0 %v3033
      %v3035 = vpop.xlane.xlu0 %3034
      %v3036 = vsel %vm1010, %v3028, 0.0
      %3037 = vadd.xlane.f32.xlu0 %v3036
      %v3038 = vpop.xlane.xlu0 %3037
      %v3039 = vsel %vm1010, %v3029, 0.0
      %3040 = vadd.xlane.f32.xlu0 %v3039
      %v3041 = vpop.xlane.xlu0 %3040
      %v3042 = vmul.f32 %v3032, %v2723
      %v3043 = vmul.f32 %v3035, %v2723
      %v3044 = vmul.f32 %v3038, %v2723
      %v3045 = vmul.f32 %v3041, %v2723
      %v3046 = vsub.f32 %v3026, %v3042
      %v3047 = vsub.f32 %v3027, %v3043
      %v3048 = vsub.f32 %v3028, %v3044
      %v3049 = vsub.f32 %v3029, %v3045
      %v3050 = vmul.f32 %v3046, %v3046
      %v3051 = vmul.f32 %v3047, %v3047
      %v3052 = vmul.f32 %v3048, %v3048
      %v3053 = vmul.f32 %v3049, %v3049
      %v3054 = vsel %vm1010, %v3050, 0.0
      %3055 = vadd.xlane.f32.xlu0 %v3054
      %v3056 = vpop.xlane.xlu0 %3055
      %v3057 = vsel %vm1010, %v3051, 0.0
      %3058 = vadd.xlane.f32.xlu0 %v3057
      %v3059 = vpop.xlane.xlu0 %3058
      %v3060 = vsel %vm1010, %v3052, 0.0
      %3061 = vadd.xlane.f32.xlu0 %v3060
      %v3062 = vpop.xlane.xlu0 %3061
      %v3063 = vsel %vm1010, %v3053, 0.0
      %3064 = vadd.xlane.f32.xlu0 %v3063
      %v3065 = vpop.xlane.xlu0 %3064
      %v3066 = vmul.f32 %v3056, %v2723
      %v3067 = vmul.f32 %v3059, %v2723
      %v3068 = vmul.f32 %v3062, %v2723
      %v3069 = vmul.f32 %v3065, %v2723
      %v3070 = vadd.f32 %v3066, 1e-05
      %v3071 = vadd.f32 %v3067, 1e-05
      %v3072 = vadd.f32 %v3068, 1e-05
      %v3073 = vadd.f32 %v3069, 1e-05
      %v3074 = vrsqrt.pop %v3070
      %v3075 = vrsqrt.pop %v3071
      %v3076 = vrsqrt.pop %v3072
      %v3077 = vrsqrt.pop %v3073
      %v3078 = vmul.f32 %v3046, %v3074
      %v3079 = vmul.f32 %v3047, %v3075
      %v3080 = vmul.f32 %v3048, %v3076
      %v3081 = vmul.f32 %v3049, %v3077
      %v3083 = vlaneseq
      %v3084 = vshrl.u32 %v3083, 7
      %v3085 = vsub.s32 0, %v3084
      %v3086 = vrot.slane %v3024, %v3085
      %v3088 = vmul.f32 %v3078, %v3086
      %v3089 = vmul.f32 %v3079, %v3086
      %v3090 = vmul.f32 %v3080, %v3086
      %v3091 = vmul.f32 %v3081, %v3086
      %v3093 = vlaneseq
      %v3094 = vshrl.u32 %v3093, 7
      %v3095 = vsub.s32 0, %v3094
      %v3096 = vrot.slane %v3025, %v3095
      %v3098 = vadd.f32 %v3088, %v3096
      %v3099 = vadd.f32 %v3089, %v3096
      %v3100 = vadd.f32 %v3090, %v3096
      %v3101 = vadd.f32 %v3091, %v3096
      %3102 = vst.msk [vmem:[%s691] sm:$0xff] %vm1010, %v3098
      %3103 = vst.msk [vmem:[%s691 + $0x8] sm:$0xff] %vm1010, %v3099
      %3104 = vst.msk [vmem:[%s691 + $0x10] sm:$0xff] %vm1010, %v3100
      %3105 = vst.msk [vmem:[%s691 + $0x18] sm:$0xff] %vm1010, %v3101
      %s3106 = smul.u32 4, %s35
      %p3107 = scmp.lt.s32.totalorder %s34, 1
      %s3108 = scalar_select %p3107, %s34, 1
      %p3109 = scmp.lt.s32.totalorder %s3106, 7
      %s3110 = scalar_select %p3109, %s3106, 7
      %s3111 = smul.addr %s3108, 8
      %s3112 = sadd.s32 %s3110, %s3111
      %s3113 = smul.addr %s3112, 8
      %s3114 = scalar_lea.vmem %s19, %s3113
      // Predicated region
      $region101: #{tpu_custom_call.1} parent=95 // pred_check
        %p3115 = pneg %p480
      $region102: #{tpu_custom_call.1} parent=95 // pred_check_branch
        %3117 = sbr.rel (%p3115) target = $region104
      $region103: #{tpu_custom_call.1} parent=95 // pred_region
        %s3118 = smul.u32 4, %s35
      $region104: #{tpu_custom_call.1} parent=95 // pred_fallthru
        _
    $region96: #{tpu_custom_call.1} parent=5 // pred_fallthru
      _
    %p3119 = scmp.le.s32.totalorder 2, %s25
    // Predicated region
    $region105: #{tpu_custom_call.1} parent=5 // pred_check
      %p3120 = pneg %p3119
    $region106: #{tpu_custom_call.1} parent=5 // pred_check_branch
      %3122 = sbr.rel (%p3120) target = $region108
    $region107: #{tpu_custom_call.1} parent=5 // pred_region
      %s3123 = ssub.s32 %s25, 2
      // Predicated region
      $region109: #{tpu_custom_call.1} parent=107 // pred_check
        %p3124 = pneg %p486
      $region110: #{tpu_custom_call.1} parent=107 // pred_check_branch
        %3126 = sbr.rel (%p3124) target = $region112
      $region111: #{tpu_custom_call.1} parent=107 // pred_region
        %s3127 = smul.u32 4, %s37
        %p3128 = scmp.lt.s32.totalorder %s36, 1
        %s3129 = scalar_select %p3128, %s36, 1
        %p3130 = scmp.lt.s32.totalorder %s3127, 7
        %s3131 = scalar_select %p3130, %s3127, 7
        %s3132 = smul.addr %s3129, 8
        %s3133 = sadd.s32 %s3131, %s3132
        %s3134 = smul.addr %s3133, 8
        %s3135 = scalar_lea.vmem %s19, %s3134
      $region112: #{tpu_custom_call.1} parent=107 // pred_fallthru
        _
    $region108: #{tpu_custom_call.1} parent=5 // pred_fallthru
      _
  $region6: #{tpu_custom_call.1} parent=0 // loop_footer
    %s29 = sadd.s32 1, %s25
  $region7: #{tpu_custom_call.1} parent=0 // loop_footer_branch
    %24 = sbr.rel target = $region3
  $region8: #{tpu_custom_call.1} parent=0 // loop_exit
    _

</llo_original>
